<compile_context>
chip_gen: v6e
topology: v6e:2x2x1
jax: 0.10.0
libtpu: 0.0.40
codegen_flags: <defaults>
</compile_context>

<pallas_src>
import jax
import jax.numpy as jnp
from jax.experimental import pallas as pl
from jax.experimental.pallas import tpu as pltpu

# ---------------------------------------------------------------------------
# Vocabulary (copied from the reference module) -> len_lexicon
# ---------------------------------------------------------------------------
tokens = (['<START>', '<END>', '<PAD>', 'measure', 'note', 'pitch', 'step', 'alter',
           'octave', 'duration', 'type', 'rest', 'dot', 'staff', 'notations', 'slur',
           'ff', 'f', 'mf', 'mp', 'p', 'pp', 'backup', 'chord']
          + list('ABCDEFG') + ['-1'] + list('0123456789')
          + ['10', '11', '12', '13', '14', '15', '16'] + ['}']
          + ['whole', 'half', 'quarter', 'eighth', '16th'])
LEN_LEXICON = len(tokens)          # 55
LSTM_HIDDEN = 128
FC1_OUTPUT = 128
EMBED_DIM = 5
FC2_PAD = 128                      # lane-dense padded fc2 output width

VMEM_SPEC = pl.BlockSpec(memory_space=pltpu.MemorySpace.VMEM)
SMEM_SPEC = pl.BlockSpec(memory_space=pltpu.MemorySpace.SMEM)


# ---------------------------------------------------------------------------
# Single fused kernel: CNN stand-in + image gates + gather + recurrence + fc2
# ---------------------------------------------------------------------------
def _fused_net_kernel(seq_ref, img_ref, cnn_w_ref, cnn_b_ref, wih2_img_ref,
                      b2_l0_ref, tbl_ref, whh1_l0_ref, w1_l1_ref, b1_l1_ref,
                      w2_l0_ref, w2_l1_ref, b2_l1_ref, fc2_w_ref, fc2_b_ref,
                      h1_0_ref, c1_0_ref, h2_0_ref, c2_0_ref,
                      out_ref, h1_f_ref, c1_f_ref, h2_f_ref, c2_f_ref,
                      h21_scr):
    B, T = seq_ref.shape
    H = LSTM_HIDDEN
    f32 = jnp.float32
    bf16 = jnp.bfloat16

    # ---- one-time prologue (off the serial chain) --------------------------
    # TODO(synk): Linear+ReLU stand-in for the pretrained squeezenet1_0 backbone
    # (no pretrained conv weights available in-script).
    feat = jnp.dot(img_ref[...].astype(bf16), cnn_w_ref[...],
                   preferred_element_type=f32) + cnn_b_ref[...]
    feat = jnp.maximum(feat, 0.0)
    # Time-invariant LSTM2-layer-0 image contribution, bias folded in.
    img_gates = jnp.dot(feat.astype(bf16), wih2_img_ref[...],
                        preferred_element_type=f32) + b2_l0_ref[...]

    # Weights are VMEM-resident for the whole launch; read once (hoisted).
    whh1_l0 = whh1_l0_ref[...]
    w1_l1 = w1_l1_ref[...]
    w2_l0 = w2_l0_ref[...]
    w2_l1 = w2_l1_ref[...]
    # Hoist bias broadcasts out of the time loop (JAX does not CSE broadcasts).
    b1_l1 = jnp.broadcast_to(b1_l1_ref[...], (B, 4 * H))
    b2_l1 = jnp.broadcast_to(b2_l1_ref[...], (B, 4 * H))

    def cell(gates, c):
        # gate columns permuted to [i | f | o | g]; one wide sigmoid push.
        ifo = jax.nn.sigmoid(gates[:, :3 * H])
        g = jnp.tanh(gates[:, 3 * H:])
        i = ifo[:, :H]
        f = ifo[:, H:2 * H]
        o = ifo[:, 2 * H:]
        c_new = f * c + i * g
        return o * jnp.tanh(c_new), c_new

    h10, c10 = h1_0_ref[0], c1_0_ref[0]
    h11, c11 = h1_0_ref[1], c1_0_ref[1]
    h20, c20 = h2_0_ref[0], c2_0_ref[0]
    h21, c21 = h2_0_ref[1], c2_0_ref[1]

    # T is small (<= ~16) -> fully unrolled straight-line body, static offsets.
    for t in range(T):
        # Embedding + Wih1_l0 + b1_l0 folded into a (55,1,4H) VMEM gate table;
        # token ids read as SMEM scalars, rows gathered by dynamic leading index.
        rows = []
        for b in range(B):
            tok = jnp.clip(seq_ref[b, t], 0, LEN_LEXICON - 1)
            rows.append(tbl_ref[tok])                       # (1, 4H)
        xg = jnp.concatenate(rows, axis=0)                  # (B, 4H)

        # LSTM1 layer 0 (input matmul pre-folded into the table).
        g = xg + jnp.dot(h10.astype(bf16), whh1_l0, preferred_element_type=f32)
        h10, c10 = cell(g, c10)
        # LSTM1 layer 1: single stacked [x | h] matmul.
        g = jnp.dot(jnp.concatenate([h10, h11], axis=1).astype(bf16), w1_l1,
                    preferred_element_type=f32) + b1_l1
        h11, c11 = cell(g, c11)
        # LSTM2 layer 0: image half hoisted into img_gates.
        g = img_gates + jnp.dot(
            jnp.concatenate([h11, h20], axis=1).astype(bf16), w2_l0,
            preferred_element_type=f32)
        h20, c20 = cell(g, c20)
        # LSTM2 layer 1.
        g = jnp.dot(jnp.concatenate([h20, h21], axis=1).astype(bf16), w2_l1,
                    preferred_element_type=f32) + b2_l1
        h21, c21 = cell(g, c21)
        # fc2 deferred: stash h21 (static sublane offset), batched matmul later.
        h21_scr[pl.ds(t * B, B), :] = h21

    # ---- epilogue: ONE batched fc2 matmul (M=T*B), lane-dense 128-wide store ----
    fc2_b = jnp.broadcast_to(fc2_b_ref[...], (T * B, FC2_PAD))
    out_ref[...] = (jnp.dot(h21_scr[...].astype(bf16), fc2_w_ref[...],
                            preferred_element_type=f32) + fc2_b
                    ).astype(out_ref.dtype)

    h1_f_ref[0] = h10
    h1_f_ref[1] = h11
    c1_f_ref[0] = c10
    c1_f_ref[1] = c11
    h2_f_ref[0] = h20
    h2_f_ref[1] = h21
    c2_f_ref[0] = c20
    c2_f_ref[1] = c21


# ---------------------------------------------------------------------------
# Parameter init (deterministic, synthetic; same layout/semantics as before)
# ---------------------------------------------------------------------------
def _uniform(key, shape, scale):
    return jax.random.uniform(key, shape, jnp.float32, -scale, scale)


def init_params(key, image_features):
    keys = iter(jax.random.split(key, 32))
    H = LSTM_HIDDEN
    p = {}
    # TODO(synk): `cnn` is the injected SqueezeCNN (pretrained squeezenet1_0 with a
    # 1x1-conv classifier head); a Linear(3*H*W -> fc1_output_size) + ReLU stand-in
    # is used for its forward (no pretrained weights available in-script).
    p['cnn_w'] = _uniform(next(keys), (image_features, FC1_OUTPUT), 0.02)
    p['cnn_b'] = _uniform(next(keys), (1, FC1_OUTPUT), 0.02)
    # nn.Embedding(len_lexicon, 5)
    p['embed'] = jax.random.normal(next(keys), (LEN_LEXICON, EMBED_DIM), jnp.float32)
    # nn.LSTM(input=5, hidden=128, num_layers=2)   (PyTorch gate order i,f,g,o;
    # single bias == bias_ih + bias_hh summed)
    s = 1.0 / jnp.sqrt(H)
    p['lstm1'] = []
    for in_size in (EMBED_DIM, H):
        p['lstm1'].append((_uniform(next(keys), (in_size, 4 * H), s),
                           _uniform(next(keys), (H, 4 * H), s),
                           _uniform(next(keys), (1, 4 * H), s)))
    # nn.LSTM(input=fc1_output + hidden, hidden=128, num_layers=2)
    p['lstm2'] = []
    for in_size in (FC1_OUTPUT + H, H):
        p['lstm2'].append((_uniform(next(keys), (in_size, 4 * H), s),
                           _uniform(next(keys), (H, 4 * H), s),
                           _uniform(next(keys), (1, 4 * H), s)))
    # nn.Linear(hidden, len_lexicon)
    p['fc2_w'] = _uniform(next(keys), (H, LEN_LEXICON), s)
    p['fc2_b'] = _uniform(next(keys), (1, LEN_LEXICON), s)
    return p


# ---------------------------------------------------------------------------
# One-time prep: permute gate columns, stack [Wih;Whh], build gather table,
# pad fc2 to 128 lanes, cast matmul weight slabs to bf16.  Pure glue, done once.
# ---------------------------------------------------------------------------
def _permute_gate_cols(w):
    # PyTorch order [i | f | g | o] -> kernel order [i | f | o | g] (columns).
    H = LSTM_HIDDEN
    return jnp.concatenate([w[..., :2 * H], w[..., 3 * H:4 * H], w[..., 2 * H:3 * H]],
                           axis=-1)


def prepare_fused_params(p):
    H = LSTM_HIDDEN
    bf16 = jnp.bfloat16
    f = {'cnn_w': p['cnn_w'].astype(bf16), 'cnn_b': p['cnn_b']}
    # LSTM1 layer 0: embedding lookup + input matmul + bias folded into one table,
    # reshaped (55, 1, 4H) so the kernel gathers rows by dynamic leading index.
    wih, whh, b = p['lstm1'][0]
    f['emb_gate_table'] = _permute_gate_cols(p['embed'] @ wih + b)[:, None, :]
    f['whh1_l0'] = _permute_gate_cols(whh).astype(bf16)
    # LSTM1 layer 1: stacked [Wih; Whh].
    wih, whh, b = p['lstm1'][1]
    f['w1_l1'] = _permute_gate_cols(jnp.concatenate([wih, whh], axis=0)).astype(bf16)
    f['b1_l1'] = _permute_gate_cols(b)
    # LSTM2 layer 0: image half of Wih hoisted; seq half stacked with Whh.
    wih, whh, b = p['lstm2'][0]
    f['wih2_img'] = _permute_gate_cols(wih[:FC1_OUTPUT]).astype(bf16)
    f['b2_l0'] = _permute_gate_cols(b)
    f['w2_l0'] = _permute_gate_cols(
        jnp.concatenate([wih[FC1_OUTPUT:], whh], axis=0)).astype(bf16)
    # LSTM2 layer 1.
    wih, whh, b = p['lstm2'][1]
    f['w2_l1'] = _permute_gate_cols(jnp.concatenate([wih, whh], axis=0)).astype(bf16)
    f['b2_l1'] = _permute_gate_cols(b)
    # fc2 zero-padded 55 -> 128 output lanes.
    f['fc2_w'] = (jnp.zeros((H, FC2_PAD), jnp.float32)
                  .at[:, :LEN_LEXICON].set(p['fc2_w']).astype(bf16))
    f['fc2_b'] = jnp.zeros((1, FC2_PAD), jnp.float32).at[:, :LEN_LEXICON].set(p['fc2_b'])
    return f


# ---------------------------------------------------------------------------
# Net.forward  (single pallas_call)
# ---------------------------------------------------------------------------
def net_forward(fused, image_input, sequence_input, internal1=None, internal2=None):
    B = image_input.shape[0]
    T = sequence_input.shape[1]
    H = LSTM_HIDDEN

    if internal1 is not None:
        h1, c1 = internal1
    else:
        h1 = jnp.zeros((2, B, H), jnp.float32)
        c1 = jnp.zeros((2, B, H), jnp.float32)
    if internal2 is not None:
        h2, c2 = internal2
    else:
        h2 = jnp.zeros((2, B, H), jnp.float32)
        c2 = jnp.zeros((2, B, H), jnp.float32)

    img_flat = image_input.reshape(B, -1)
    seq = sequence_input.astype(jnp.int32)

    out_flat, h1f, c1f, h2f, c2f = pl.pallas_call(
        _fused_net_kernel,
        out_shape=(
            jax.ShapeDtypeStruct((T * B, FC2_PAD), jnp.float32),
            jax.ShapeDtypeStruct((2, B, H), jnp.float32),
            jax.ShapeDtypeStruct((2, B, H), jnp.float32),
            jax.ShapeDtypeStruct((2, B, H), jnp.float32),
            jax.ShapeDtypeStruct((2, B, H), jnp.float32),
        ),
        in_specs=[SMEM_SPEC] + [VMEM_SPEC] * 18,
        out_specs=(VMEM_SPEC,) * 5,
        scratch_shapes=[pltpu.VMEM((T * B, H), jnp.float32)],
        # Alias initial h/c states to the final-state outputs (free write-back).
        input_output_aliases={15: 1, 16: 2, 17: 3, 18: 4},
    )(seq, img_flat, fused['cnn_w'], fused['cnn_b'], fused['wih2_img'],
      fused['b2_l0'], fused['emb_gate_table'], fused['whh1_l0'], fused['w1_l1'],
      fused['b1_l1'], fused['w2_l0'], fused['w2_l1'], fused['b2_l1'],
      fused['fc2_w'], fused['fc2_b'], h1, c1, h2, c2)

    # TODO(synk): inter-layer dropout(p=0.3) of nn.LSTM in training mode is
    # stochastic; eval-mode (no dropout) semantics are implemented here.
    out = out_flat.reshape(T, B, FC2_PAD).transpose(1, 0, 2)[:, :, :LEN_LEXICON]
    return out, (h1f, c1f), (h2f, c2f)


# ---------------------------------------------------------------------------
# Main
# ---------------------------------------------------------------------------
if __name__ == "__main__":
    key = jax.random.PRNGKey(0)
    k_param, k_img, k_seq = jax.random.split(key, 3)

    B, C, Himg, Wimg = 2, 3, 16, 16      # small NCHW image (stand-in for 3x224x224)
    T = 8                                # small seq_len

    params = init_params(k_param, C * Himg * Wimg)
    fused = prepare_fused_params(params)

    image_input = jax.random.normal(k_img, (B, C, Himg, Wimg), jnp.float32)
    sequence_input = jax.random.randint(k_seq, (B, T), 0, LEN_LEXICON, jnp.int32)

    fwd = jax.jit(net_forward)
    out, (h1, c1), (h2, c2) = fwd(fused, image_input, sequence_input)
    jax.block_until_ready(out)
    jax.block_until_ready(h1)
    jax.block_until_ready(h2)

    assert out.shape == (B, T, LEN_LEXICON)
    assert h1.shape == (2, B, LSTM_HIDDEN) and c1.shape == (2, B, LSTM_HIDDEN)
    assert h2.shape == (2, B, LSTM_HIDDEN) and c2.shape == (2, B, LSTM_HIDDEN)
    print("KERNEL_OK")
</pallas_src>

<mosaic_0001>
module attributes {stable_mosaic.version = 11 : i64} {
  func.func @_fused_net_kernel(%arg0: memref<2x8xi32, #tpu.memory_space<smem>>, %arg1: memref<2x768xf32, #tpu.memory_space<vmem>>, %arg2: memref<768x128xbf16, #tpu.memory_space<vmem>>, %arg3: memref<1x128xf32, #tpu.memory_space<vmem>>, %arg4: memref<128x512xbf16, #tpu.memory_space<vmem>>, %arg5: memref<1x512xf32, #tpu.memory_space<vmem>>, %arg6: memref<55x1x512xf32, #tpu.memory_space<vmem>>, %arg7: memref<128x512xbf16, #tpu.memory_space<vmem>>, %arg8: memref<256x512xbf16, #tpu.memory_space<vmem>>, %arg9: memref<1x512xf32, #tpu.memory_space<vmem>>, %arg10: memref<256x512xbf16, #tpu.memory_space<vmem>>, %arg11: memref<256x512xbf16, #tpu.memory_space<vmem>>, %arg12: memref<1x512xf32, #tpu.memory_space<vmem>>, %arg13: memref<128x128xbf16, #tpu.memory_space<vmem>>, %arg14: memref<1x128xf32, #tpu.memory_space<vmem>>, %arg15: memref<2x2x128xf32, #tpu.memory_space<vmem>>, %arg16: memref<2x2x128xf32, #tpu.memory_space<vmem>>, %arg17: memref<2x2x128xf32, #tpu.memory_space<vmem>>, %arg18: memref<2x2x128xf32, #tpu.memory_space<vmem>>, %arg19: memref<16x128xf32, #tpu.memory_space<vmem>>, %arg20: memref<2x2x128xf32, #tpu.memory_space<vmem>>, %arg21: memref<2x2x128xf32, #tpu.memory_space<vmem>>, %arg22: memref<2x2x128xf32, #tpu.memory_space<vmem>>, %arg23: memref<2x2x128xf32, #tpu.memory_space<vmem>>, %arg24: memref<16x128xf32, #tpu.memory_space<vmem>>) attributes {dimension_semantics = [], scalar_prefetch = 0 : i64, scratch_operands = 1 : i64, tpu.core_type = #tpu.core_type<tc>} {
    %c0 = arith.constant 0 : index
    %c0_0 = arith.constant 0 : index
    %0 = vector.load %arg1[%c0, %c0_0] : memref<2x768xf32, #tpu.memory_space<vmem>>, vector<2x768xf32>
    %1 = arith.truncf %0 : vector<2x768xf32> to vector<2x768xbf16>
    %c0_1 = arith.constant 0 : index
    %c0_2 = arith.constant 0 : index
    %2 = vector.load %arg2[%c0_1, %c0_2] : memref<768x128xbf16, #tpu.memory_space<vmem>>, vector<768x128xbf16>
    %cst = arith.constant dense<0.000000e+00> : vector<2x128xf32>
    %3 = tpu.matmul %1, %2, %cst {dimension_numbers = #tpu.dot_dimension_numbers<[1], [0], [0], [1], [0, 0, 1, 1], [], []>} : vector<2x768xbf16>, vector<768x128xbf16>, vector<2x128xf32> -> vector<2x128xf32>
    %c0_3 = arith.constant 0 : index
    %c0_4 = arith.constant 0 : index
    %4 = vector.load %arg3[%c0_3, %c0_4] : memref<1x128xf32, #tpu.memory_space<vmem>>, vector<1x128xf32>
    %5 = vector.broadcast %4 : vector<1x128xf32> to vector<2x128xf32>
    %6 = arith.addf %3, %5 : vector<2x128xf32>
    %cst_5 = arith.constant 0.000000e+00 : f32
    %7 = vector.broadcast %cst_5 : f32 to vector<2x128xf32>
    %8 = arith.maximumf %6, %7 : vector<2x128xf32>
    %9 = arith.truncf %8 : vector<2x128xf32> to vector<2x128xbf16>
    %c0_6 = arith.constant 0 : index
    %c0_7 = arith.constant 0 : index
    %10 = vector.load %arg4[%c0_6, %c0_7] : memref<128x512xbf16, #tpu.memory_space<vmem>>, vector<128x512xbf16>
    %cst_8 = arith.constant dense<0.000000e+00> : vector<2x512xf32>
    %11 = tpu.matmul %9, %10, %cst_8 {dimension_numbers = #tpu.dot_dimension_numbers<[1], [0], [0], [1], [0, 0, 1, 1], [], []>} : vector<2x128xbf16>, vector<128x512xbf16>, vector<2x512xf32> -> vector<2x512xf32>
    %c0_9 = arith.constant 0 : index
    %c0_10 = arith.constant 0 : index
    %12 = vector.load %arg5[%c0_9, %c0_10] : memref<1x512xf32, #tpu.memory_space<vmem>>, vector<1x512xf32>
    %13 = vector.broadcast %12 : vector<1x512xf32> to vector<2x512xf32>
    %14 = arith.addf %11, %13 : vector<2x512xf32>
    %c0_11 = arith.constant 0 : index
    %c0_12 = arith.constant 0 : index
    %15 = vector.load %arg7[%c0_11, %c0_12] : memref<128x512xbf16, #tpu.memory_space<vmem>>, vector<128x512xbf16>
    %c0_13 = arith.constant 0 : index
    %c0_14 = arith.constant 0 : index
    %16 = vector.load %arg8[%c0_13, %c0_14] : memref<256x512xbf16, #tpu.memory_space<vmem>>, vector<256x512xbf16>
    %c0_15 = arith.constant 0 : index
    %c0_16 = arith.constant 0 : index
    %17 = vector.load %arg10[%c0_15, %c0_16] : memref<256x512xbf16, #tpu.memory_space<vmem>>, vector<256x512xbf16>
    %c0_17 = arith.constant 0 : index
    %c0_18 = arith.constant 0 : index
    %18 = vector.load %arg11[%c0_17, %c0_18] : memref<256x512xbf16, #tpu.memory_space<vmem>>, vector<256x512xbf16>
    %c0_19 = arith.constant 0 : index
    %c0_20 = arith.constant 0 : index
    %19 = vector.load %arg9[%c0_19, %c0_20] : memref<1x512xf32, #tpu.memory_space<vmem>>, vector<1x512xf32>
    %20 = vector.shape_cast %19 : vector<1x512xf32> to vector<1x512xf32>
    %21 = vector.broadcast %20 : vector<1x512xf32> to vector<2x512xf32>
    %c0_21 = arith.constant 0 : index
    %c0_22 = arith.constant 0 : index
    %22 = vector.load %arg12[%c0_21, %c0_22] : memref<1x512xf32, #tpu.memory_space<vmem>>, vector<1x512xf32>
    %23 = vector.shape_cast %22 : vector<1x512xf32> to vector<1x512xf32>
    %24 = vector.broadcast %23 : vector<1x512xf32> to vector<2x512xf32>
    %c0_23 = arith.constant 0 : index
    %c0_24 = arith.constant 0 : index
    %c0_25 = arith.constant 0 : index
    %25 = vector.load %arg15[%c0_23, %c0_24, %c0_25] : memref<2x2x128xf32, #tpu.memory_space<vmem>>, vector<1x2x128xf32>
    %26 = vector.shape_cast %25 : vector<1x2x128xf32> to vector<2x128xf32>
    %c0_26 = arith.constant 0 : index
    %c0_27 = arith.constant 0 : index
    %c0_28 = arith.constant 0 : index
    %27 = vector.load %arg16[%c0_26, %c0_27, %c0_28] : memref<2x2x128xf32, #tpu.memory_space<vmem>>, vector<1x2x128xf32>
    %28 = vector.shape_cast %27 : vector<1x2x128xf32> to vector<2x128xf32>
    %c1 = arith.constant 1 : index
    %c0_29 = arith.constant 0 : index
    %c0_30 = arith.constant 0 : index
    %29 = vector.load %arg15[%c1, %c0_29, %c0_30] : memref<2x2x128xf32, #tpu.memory_space<vmem>>, vector<1x2x128xf32>
    %30 = vector.shape_cast %29 : vector<1x2x128xf32> to vector<2x128xf32>
    %c1_31 = arith.constant 1 : index
    %c0_32 = arith.constant 0 : index
    %c0_33 = arith.constant 0 : index
    %31 = vector.load %arg16[%c1_31, %c0_32, %c0_33] : memref<2x2x128xf32, #tpu.memory_space<vmem>>, vector<1x2x128xf32>
    %32 = vector.shape_cast %31 : vector<1x2x128xf32> to vector<2x128xf32>
    %c0_34 = arith.constant 0 : index
    %c0_35 = arith.constant 0 : index
    %c0_36 = arith.constant 0 : index
    %33 = vector.load %arg17[%c0_34, %c0_35, %c0_36] : memref<2x2x128xf32, #tpu.memory_space<vmem>>, vector<1x2x128xf32>
    %34 = vector.shape_cast %33 : vector<1x2x128xf32> to vector<2x128xf32>
    %c0_37 = arith.constant 0 : index
    %c0_38 = arith.constant 0 : index
    %c0_39 = arith.constant 0 : index
    %35 = vector.load %arg18[%c0_37, %c0_38, %c0_39] : memref<2x2x128xf32, #tpu.memory_space<vmem>>, vector<1x2x128xf32>
    %36 = vector.shape_cast %35 : vector<1x2x128xf32> to vector<2x128xf32>
    %c1_40 = arith.constant 1 : index
    %c0_41 = arith.constant 0 : index
    %c0_42 = arith.constant 0 : index
    %37 = vector.load %arg17[%c1_40, %c0_41, %c0_42] : memref<2x2x128xf32, #tpu.memory_space<vmem>>, vector<1x2x128xf32>
    %38 = vector.shape_cast %37 : vector<1x2x128xf32> to vector<2x128xf32>
    %c1_43 = arith.constant 1 : index
    %c0_44 = arith.constant 0 : index
    %c0_45 = arith.constant 0 : index
    %39 = vector.load %arg18[%c1_43, %c0_44, %c0_45] : memref<2x2x128xf32, #tpu.memory_space<vmem>>, vector<1x2x128xf32>
    %40 = vector.shape_cast %39 : vector<1x2x128xf32> to vector<2x128xf32>
    %c0_46 = arith.constant 0 : index
    %c0_47 = arith.constant 0 : index
    %41 = memref.load %arg0[%c0_46, %c0_47] : memref<2x8xi32, #tpu.memory_space<smem>>
    %c0_i32 = arith.constant 0 : i32
    %c54_i32 = arith.constant 54 : i32
    %42 = arith.maxsi %c0_i32, %41 : i32
    %43 = arith.minsi %c54_i32, %42 : i32
    %44 = arith.index_cast %43 : i32 to index
    %c0_48 = arith.constant 0 : index
    %c0_49 = arith.constant 0 : index
    %45 = vector.load %arg6[%44, %c0_48, %c0_49] : memref<55x1x512xf32, #tpu.memory_space<vmem>>, vector<1x1x512xf32>
    %46 = vector.shape_cast %45 : vector<1x1x512xf32> to vector<1x512xf32>
    %c1_50 = arith.constant 1 : index
    %c0_51 = arith.constant 0 : index
    %47 = memref.load %arg0[%c1_50, %c0_51] : memref<2x8xi32, #tpu.memory_space<smem>>
    %c0_i32_52 = arith.constant 0 : i32
    %c54_i32_53 = arith.constant 54 : i32
    %48 = arith.maxsi %c0_i32_52, %47 : i32
    %49 = arith.minsi %c54_i32_53, %48 : i32
    %50 = arith.index_cast %49 : i32 to index
    %c0_54 = arith.constant 0 : index
    %c0_55 = arith.constant 0 : index
    %51 = vector.load %arg6[%50, %c0_54, %c0_55] : memref<55x1x512xf32, #tpu.memory_space<vmem>>, vector<1x1x512xf32>
    %52 = vector.shape_cast %51 : vector<1x1x512xf32> to vector<1x512xf32>
    %53 = tpu.concatenate %46, %52 in 0 : vector<1x512xf32>, vector<1x512xf32> -> vector<2x512xf32>
    %54 = arith.truncf %26 : vector<2x128xf32> to vector<2x128xbf16>
    %cst_56 = arith.constant dense<0.000000e+00> : vector<2x512xf32>
    %55 = tpu.matmul %54, %15, %cst_56 {dimension_numbers = #tpu.dot_dimension_numbers<[1], [0], [0], [1], [0, 0, 1, 1], [], []>} : vector<2x128xbf16>, vector<128x512xbf16>, vector<2x512xf32> -> vector<2x512xf32>
    %56 = arith.addf %53, %55 : vector<2x512xf32>
    %57 = vector.extract_strided_slice %56 {offsets = [0, 0], sizes = [2, 384], strides = [1, 1]} : vector<2x512xf32> to vector<2x384xf32>
    %58 = arith.negf %57 : vector<2x384xf32>
    %59 = math.exp %58 : vector<2x384xf32>
    %cst_57 = arith.constant 1.000000e+00 : f32
    %60 = vector.broadcast %cst_57 : f32 to vector<2x384xf32>
    %61 = arith.addf %60, %59 : vector<2x384xf32>
    %62 = arith.divf %60, %61 : vector<2x384xf32>
    %63 = vector.extract_strided_slice %56 {offsets = [0, 384], sizes = [2, 128], strides = [1, 1]} : vector<2x512xf32> to vector<2x128xf32>
    %64 = math.tanh %63 : vector<2x128xf32>
    %65 = vector.extract_strided_slice %62 {offsets = [0, 0], sizes = [2, 128], strides = [1, 1]} : vector<2x384xf32> to vector<2x128xf32>
    %66 = vector.extract_strided_slice %62 {offsets = [0, 128], sizes = [2, 128], strides = [1, 1]} : vector<2x384xf32> to vector<2x128xf32>
    %67 = vector.extract_strided_slice %62 {offsets = [0, 256], sizes = [2, 128], strides = [1, 1]} : vector<2x384xf32> to vector<2x128xf32>
    %68 = arith.mulf %66, %28 : vector<2x128xf32>
    %69 = arith.mulf %65, %64 : vector<2x128xf32>
    %70 = arith.addf %68, %69 : vector<2x128xf32>
    %71 = math.tanh %70 : vector<2x128xf32>
    %72 = arith.mulf %67, %71 : vector<2x128xf32>
    %73 = tpu.concatenate %72, %30 in 1 : vector<2x128xf32>, vector<2x128xf32> -> vector<2x256xf32>
    %74 = arith.truncf %73 : vector<2x256xf32> to vector<2x256xbf16>
    %cst_58 = arith.constant dense<0.000000e+00> : vector<2x512xf32>
    %75 = tpu.matmul %74, %16, %cst_58 {dimension_numbers = #tpu.dot_dimension_numbers<[1], [0], [0], [1], [0, 0, 1, 1], [], []>} : vector<2x256xbf16>, vector<256x512xbf16>, vector<2x512xf32> -> vector<2x512xf32>
    %76 = arith.addf %75, %21 : vector<2x512xf32>
    %77 = vector.extract_strided_slice %76 {offsets = [0, 0], sizes = [2, 384], strides = [1, 1]} : vector<2x512xf32> to vector<2x384xf32>
    %78 = arith.negf %77 : vector<2x384xf32>
    %79 = math.exp %78 : vector<2x384xf32>
    %cst_59 = arith.constant 1.000000e+00 : f32
    %80 = vector.broadcast %cst_59 : f32 to vector<2x384xf32>
    %81 = arith.addf %80, %79 : vector<2x384xf32>
    %82 = arith.divf %80, %81 : vector<2x384xf32>
    %83 = vector.extract_strided_slice %76 {offsets = [0, 384], sizes = [2, 128], strides = [1, 1]} : vector<2x512xf32> to vector<2x128xf32>
    %84 = math.tanh %83 : vector<2x128xf32>
    %85 = vector.extract_strided_slice %82 {offsets = [0, 0], sizes = [2, 128], strides = [1, 1]} : vector<2x384xf32> to vector<2x128xf32>
    %86 = vector.extract_strided_slice %82 {offsets = [0, 128], sizes = [2, 128], strides = [1, 1]} : vector<2x384xf32> to vector<2x128xf32>
    %87 = vector.extract_strided_slice %82 {offsets = [0, 256], sizes = [2, 128], strides = [1, 1]} : vector<2x384xf32> to vector<2x128xf32>
    %88 = arith.mulf %86, %32 : vector<2x128xf32>
    %89 = arith.mulf %85, %84 : vector<2x128xf32>
    %90 = arith.addf %88, %89 : vector<2x128xf32>
    %91 = math.tanh %90 : vector<2x128xf32>
    %92 = arith.mulf %87, %91 : vector<2x128xf32>
    %93 = tpu.concatenate %92, %34 in 1 : vector<2x128xf32>, vector<2x128xf32> -> vector<2x256xf32>
    %94 = arith.truncf %93 : vector<2x256xf32> to vector<2x256xbf16>
    %cst_60 = arith.constant dense<0.000000e+00> : vector<2x512xf32>
    %95 = tpu.matmul %94, %17, %cst_60 {dimension_numbers = #tpu.dot_dimension_numbers<[1], [0], [0], [1], [0, 0, 1, 1], [], []>} : vector<2x256xbf16>, vector<256x512xbf16>, vector<2x512xf32> -> vector<2x512xf32>
    %96 = arith.addf %14, %95 : vector<2x512xf32>
    %97 = vector.extract_strided_slice %96 {offsets = [0, 0], sizes = [2, 384], strides = [1, 1]} : vector<2x512xf32> to vector<2x384xf32>
    %98 = arith.negf %97 : vector<2x384xf32>
    %99 = math.exp %98 : vector<2x384xf32>
    %cst_61 = arith.constant 1.000000e+00 : f32
    %100 = vector.broadcast %cst_61 : f32 to vector<2x384xf32>
    %101 = arith.addf %100, %99 : vector<2x384xf32>
    %102 = arith.divf %100, %101 : vector<2x384xf32>
    %103 = vector.extract_strided_slice %96 {offsets = [0, 384], sizes = [2, 128], strides = [1, 1]} : vector<2x512xf32> to vector<2x128xf32>
    %104 = math.tanh %103 : vector<2x128xf32>
    %105 = vector.extract_strided_slice %102 {offsets = [0, 0], sizes = [2, 128], strides = [1, 1]} : vector<2x384xf32> to vector<2x128xf32>
    %106 = vector.extract_strided_slice %102 {offsets = [0, 128], sizes = [2, 128], strides = [1, 1]} : vector<2x384xf32> to vector<2x128xf32>
    %107 = vector.extract_strided_slice %102 {offsets = [0, 256], sizes = [2, 128], strides = [1, 1]} : vector<2x384xf32> to vector<2x128xf32>
    %108 = arith.mulf %106, %36 : vector<2x128xf32>
    %109 = arith.mulf %105, %104 : vector<2x128xf32>
    %110 = arith.addf %108, %109 : vector<2x128xf32>
    %111 = math.tanh %110 : vector<2x128xf32>
    %112 = arith.mulf %107, %111 : vector<2x128xf32>
    %113 = tpu.concatenate %112, %38 in 1 : vector<2x128xf32>, vector<2x128xf32> -> vector<2x256xf32>
    %114 = arith.truncf %113 : vector<2x256xf32> to vector<2x256xbf16>
    %cst_62 = arith.constant dense<0.000000e+00> : vector<2x512xf32>
    %115 = tpu.matmul %114, %18, %cst_62 {dimension_numbers = #tpu.dot_dimension_numbers<[1], [0], [0], [1], [0, 0, 1, 1], [], []>} : vector<2x256xbf16>, vector<256x512xbf16>, vector<2x512xf32> -> vector<2x512xf32>
    %116 = arith.addf %115, %24 : vector<2x512xf32>
    %117 = vector.extract_strided_slice %116 {offsets = [0, 0], sizes = [2, 384], strides = [1, 1]} : vector<2x512xf32> to vector<2x384xf32>
    %118 = arith.negf %117 : vector<2x384xf32>
    %119 = math.exp %118 : vector<2x384xf32>
    %cst_63 = arith.constant 1.000000e+00 : f32
    %120 = vector.broadcast %cst_63 : f32 to vector<2x384xf32>
    %121 = arith.addf %120, %119 : vector<2x384xf32>
    %122 = arith.divf %120, %121 : vector<2x384xf32>
    %123 = vector.extract_strided_slice %116 {offsets = [0, 384], sizes = [2, 128], strides = [1, 1]} : vector<2x512xf32> to vector<2x128xf32>
    %124 = math.tanh %123 : vector<2x128xf32>
    %125 = vector.extract_strided_slice %122 {offsets = [0, 0], sizes = [2, 128], strides = [1, 1]} : vector<2x384xf32> to vector<2x128xf32>
    %126 = vector.extract_strided_slice %122 {offsets = [0, 128], sizes = [2, 128], strides = [1, 1]} : vector<2x384xf32> to vector<2x128xf32>
    %127 = vector.extract_strided_slice %122 {offsets = [0, 256], sizes = [2, 128], strides = [1, 1]} : vector<2x384xf32> to vector<2x128xf32>
    %128 = arith.mulf %126, %40 : vector<2x128xf32>
    %129 = arith.mulf %125, %124 : vector<2x128xf32>
    %130 = arith.addf %128, %129 : vector<2x128xf32>
    %131 = math.tanh %130 : vector<2x128xf32>
    %132 = arith.mulf %127, %131 : vector<2x128xf32>
    %c0_64 = arith.constant 0 : index
    %c0_65 = arith.constant 0 : index
    %133 = vector.load %arg24[%c0_64, %c0_65] : memref<16x128xf32, #tpu.memory_space<vmem>>, vector<2x128xf32>
    tpu.vector_store %arg24[%c0_64, %c0_65], %132 {strides = array<i32>} : memref<16x128xf32, #tpu.memory_space<vmem>>, vector<2x128xf32>,
    %c0_66 = arith.constant 0 : index
    %c1_67 = arith.constant 1 : index
    %134 = memref.load %arg0[%c0_66, %c1_67] : memref<2x8xi32, #tpu.memory_space<smem>>
    %c0_i32_68 = arith.constant 0 : i32
    %c54_i32_69 = arith.constant 54 : i32
    %135 = arith.maxsi %c0_i32_68, %134 : i32
    %136 = arith.minsi %c54_i32_69, %135 : i32
    %137 = arith.index_cast %136 : i32 to index
    %c0_70 = arith.constant 0 : index
    %c0_71 = arith.constant 0 : index
    %138 = vector.load %arg6[%137, %c0_70, %c0_71] : memref<55x1x512xf32, #tpu.memory_space<vmem>>, vector<1x1x512xf32>
    %139 = vector.shape_cast %138 : vector<1x1x512xf32> to vector<1x512xf32>
    %c1_72 = arith.constant 1 : index
    %c1_73 = arith.constant 1 : index
    %140 = memref.load %arg0[%c1_72, %c1_73] : memref<2x8xi32, #tpu.memory_space<smem>>
    %c0_i32_74 = arith.constant 0 : i32
    %c54_i32_75 = arith.constant 54 : i32
    %141 = arith.maxsi %c0_i32_74, %140 : i32
    %142 = arith.minsi %c54_i32_75, %141 : i32
    %143 = arith.index_cast %142 : i32 to index
    %c0_76 = arith.constant 0 : index
    %c0_77 = arith.constant 0 : index
    %144 = vector.load %arg6[%143, %c0_76, %c0_77] : memref<55x1x512xf32, #tpu.memory_space<vmem>>, vector<1x1x512xf32>
    %145 = vector.shape_cast %144 : vector<1x1x512xf32> to vector<1x512xf32>
    %146 = tpu.concatenate %139, %145 in 0 : vector<1x512xf32>, vector<1x512xf32> -> vector<2x512xf32>
    %147 = arith.truncf %72 : vector<2x128xf32> to vector<2x128xbf16>
    %cst_78 = arith.constant dense<0.000000e+00> : vector<2x512xf32>
    %148 = tpu.matmul %147, %15, %cst_78 {dimension_numbers = #tpu.dot_dimension_numbers<[1], [0], [0], [1], [0, 0, 1, 1], [], []>} : vector<2x128xbf16>, vector<128x512xbf16>, vector<2x512xf32> -> vector<2x512xf32>
    %149 = arith.addf %146, %148 : vector<2x512xf32>
    %150 = vector.extract_strided_slice %149 {offsets = [0, 0], sizes = [2, 384], strides = [1, 1]} : vector<2x512xf32> to vector<2x384xf32>
    %151 = arith.negf %150 : vector<2x384xf32>
    %152 = math.exp %151 : vector<2x384xf32>
    %cst_79 = arith.constant 1.000000e+00 : f32
    %153 = vector.broadcast %cst_79 : f32 to vector<2x384xf32>
    %154 = arith.addf %153, %152 : vector<2x384xf32>
    %155 = arith.divf %153, %154 : vector<2x384xf32>
    %156 = vector.extract_strided_slice %149 {offsets = [0, 384], sizes = [2, 128], strides = [1, 1]} : vector<2x512xf32> to vector<2x128xf32>
    %157 = math.tanh %156 : vector<2x128xf32>
    %158 = vector.extract_strided_slice %155 {offsets = [0, 0], sizes = [2, 128], strides = [1, 1]} : vector<2x384xf32> to vector<2x128xf32>
    %159 = vector.extract_strided_slice %155 {offsets = [0, 128], sizes = [2, 128], strides = [1, 1]} : vector<2x384xf32> to vector<2x128xf32>
    %160 = vector.extract_strided_slice %155 {offsets = [0, 256], sizes = [2, 128], strides = [1, 1]} : vector<2x384xf32> to vector<2x128xf32>
    %161 = arith.mulf %159, %70 : vector<2x128xf32>
    %162 = arith.mulf %158, %157 : vector<2x128xf32>
    %163 = arith.addf %161, %162 : vector<2x128xf32>
    %164 = math.tanh %163 : vector<2x128xf32>
    %165 = arith.mulf %160, %164 : vector<2x128xf32>
    %166 = tpu.concatenate %165, %92 in 1 : vector<2x128xf32>, vector<2x128xf32> -> vector<2x256xf32>
    %167 = arith.truncf %166 : vector<2x256xf32> to vector<2x256xbf16>
    %cst_80 = arith.constant dense<0.000000e+00> : vector<2x512xf32>
    %168 = tpu.matmul %167, %16, %cst_80 {dimension_numbers = #tpu.dot_dimension_numbers<[1], [0], [0], [1], [0, 0, 1, 1], [], []>} : vector<2x256xbf16>, vector<256x512xbf16>, vector<2x512xf32> -> vector<2x512xf32>
    %169 = arith.addf %168, %21 : vector<2x512xf32>
    %170 = vector.extract_strided_slice %169 {offsets = [0, 0], sizes = [2, 384], strides = [1, 1]} : vector<2x512xf32> to vector<2x384xf32>
    %171 = arith.negf %170 : vector<2x384xf32>
    %172 = math.exp %171 : vector<2x384xf32>
    %cst_81 = arith.constant 1.000000e+00 : f32
    %173 = vector.broadcast %cst_81 : f32 to vector<2x384xf32>
    %174 = arith.addf %173, %172 : vector<2x384xf32>
    %175 = arith.divf %173, %174 : vector<2x384xf32>
    %176 = vector.extract_strided_slice %169 {offsets = [0, 384], sizes = [2, 128], strides = [1, 1]} : vector<2x512xf32> to vector<2x128xf32>
    %177 = math.tanh %176 : vector<2x128xf32>
    %178 = vector.extract_strided_slice %175 {offsets = [0, 0], sizes = [2, 128], strides = [1, 1]} : vector<2x384xf32> to vector<2x128xf32>
    %179 = vector.extract_strided_slice %175 {offsets = [0, 128], sizes = [2, 128], strides = [1, 1]} : vector<2x384xf32> to vector<2x128xf32>
    %180 = vector.extract_strided_slice %175 {offsets = [0, 256], sizes = [2, 128], strides = [1, 1]} : vector<2x384xf32> to vector<2x128xf32>
    %181 = arith.mulf %179, %90 : vector<2x128xf32>
    %182 = arith.mulf %178, %177 : vector<2x128xf32>
    %183 = arith.addf %181, %182 : vector<2x128xf32>
    %184 = math.tanh %183 : vector<2x128xf32>
    %185 = arith.mulf %180, %184 : vector<2x128xf32>
    %186 = tpu.concatenate %185, %112 in 1 : vector<2x128xf32>, vector<2x128xf32> -> vector<2x256xf32>
    %187 = arith.truncf %186 : vector<2x256xf32> to vector<2x256xbf16>
    %cst_82 = arith.constant dense<0.000000e+00> : vector<2x512xf32>
    %188 = tpu.matmul %187, %17, %cst_82 {dimension_numbers = #tpu.dot_dimension_numbers<[1], [0], [0], [1], [0, 0, 1, 1], [], []>} : vector<2x256xbf16>, vector<256x512xbf16>, vector<2x512xf32> -> vector<2x512xf32>
    %189 = arith.addf %14, %188 : vector<2x512xf32>
    %190 = vector.extract_strided_slice %189 {offsets = [0, 0], sizes = [2, 384], strides = [1, 1]} : vector<2x512xf32> to vector<2x384xf32>
    %191 = arith.negf %190 : vector<2x384xf32>
    %192 = math.exp %191 : vector<2x384xf32>
    %cst_83 = arith.constant 1.000000e+00 : f32
    %193 = vector.broadcast %cst_83 : f32 to vector<2x384xf32>
    %194 = arith.addf %193, %192 : vector<2x384xf32>
    %195 = arith.divf %193, %194 : vector<2x384xf32>
    %196 = vector.extract_strided_slice %189 {offsets = [0, 384], sizes = [2, 128], strides = [1, 1]} : vector<2x512xf32> to vector<2x128xf32>
    %197 = math.tanh %196 : vector<2x128xf32>
    %198 = vector.extract_strided_slice %195 {offsets = [0, 0], sizes = [2, 128], strides = [1, 1]} : vector<2x384xf32> to vector<2x128xf32>
    %199 = vector.extract_strided_slice %195 {offsets = [0, 128], sizes = [2, 128], strides = [1, 1]} : vector<2x384xf32> to vector<2x128xf32>
    %200 = vector.extract_strided_slice %195 {offsets = [0, 256], sizes = [2, 128], strides = [1, 1]} : vector<2x384xf32> to vector<2x128xf32>
    %201 = arith.mulf %199, %110 : vector<2x128xf32>
    %202 = arith.mulf %198, %197 : vector<2x128xf32>
    %203 = arith.addf %201, %202 : vector<2x128xf32>
    %204 = math.tanh %203 : vector<2x128xf32>
    %205 = arith.mulf %200, %204 : vector<2x128xf32>
    %206 = tpu.concatenate %205, %132 in 1 : vector<2x128xf32>, vector<2x128xf32> -> vector<2x256xf32>
    %207 = arith.truncf %206 : vector<2x256xf32> to vector<2x256xbf16>
    %cst_84 = arith.constant dense<0.000000e+00> : vector<2x512xf32>
    %208 = tpu.matmul %207, %18, %cst_84 {dimension_numbers = #tpu.dot_dimension_numbers<[1], [0], [0], [1], [0, 0, 1, 1], [], []>} : vector<2x256xbf16>, vector<256x512xbf16>, vector<2x512xf32> -> vector<2x512xf32>
    %209 = arith.addf %208, %24 : vector<2x512xf32>
    %210 = vector.extract_strided_slice %209 {offsets = [0, 0], sizes = [2, 384], strides = [1, 1]} : vector<2x512xf32> to vector<2x384xf32>
    %211 = arith.negf %210 : vector<2x384xf32>
    %212 = math.exp %211 : vector<2x384xf32>
    %cst_85 = arith.constant 1.000000e+00 : f32
    %213 = vector.broadcast %cst_85 : f32 to vector<2x384xf32>
    %214 = arith.addf %213, %212 : vector<2x384xf32>
    %215 = arith.divf %213, %214 : vector<2x384xf32>
    %216 = vector.extract_strided_slice %209 {offsets = [0, 384], sizes = [2, 128], strides = [1, 1]} : vector<2x512xf32> to vector<2x128xf32>
    %217 = math.tanh %216 : vector<2x128xf32>
    %218 = vector.extract_strided_slice %215 {offsets = [0, 0], sizes = [2, 128], strides = [1, 1]} : vector<2x384xf32> to vector<2x128xf32>
    %219 = vector.extract_strided_slice %215 {offsets = [0, 128], sizes = [2, 128], strides = [1, 1]} : vector<2x384xf32> to vector<2x128xf32>
    %220 = vector.extract_strided_slice %215 {offsets = [0, 256], sizes = [2, 128], strides = [1, 1]} : vector<2x384xf32> to vector<2x128xf32>
    %221 = arith.mulf %219, %130 : vector<2x128xf32>
    %222 = arith.mulf %218, %217 : vector<2x128xf32>
    %223 = arith.addf %221, %222 : vector<2x128xf32>
    %224 = math.tanh %223 : vector<2x128xf32>
    %225 = arith.mulf %220, %224 : vector<2x128xf32>
    %c2 = arith.constant 2 : index
    %c0_86 = arith.constant 0 : index
    %226 = vector.load %arg24[%c2, %c0_86] : memref<16x128xf32, #tpu.memory_space<vmem>>, vector<2x128xf32>
    tpu.vector_store %arg24[%c2, %c0_86], %225 {strides = array<i32>} : memref<16x128xf32, #tpu.memory_space<vmem>>, vector<2x128xf32>,
    %c0_87 = arith.constant 0 : index
    %c2_88 = arith.constant 2 : index
    %227 = memref.load %arg0[%c0_87, %c2_88] : memref<2x8xi32, #tpu.memory_space<smem>>
    %c0_i32_89 = arith.constant 0 : i32
    %c54_i32_90 = arith.constant 54 : i32
    %228 = arith.maxsi %c0_i32_89, %227 : i32
    %229 = arith.minsi %c54_i32_90, %228 : i32
    %230 = arith.index_cast %229 : i32 to index
    %c0_91 = arith.constant 0 : index
    %c0_92 = arith.constant 0 : index
    %231 = vector.load %arg6[%230, %c0_91, %c0_92] : memref<55x1x512xf32, #tpu.memory_space<vmem>>, vector<1x1x512xf32>
    %232 = vector.shape_cast %231 : vector<1x1x512xf32> to vector<1x512xf32>
    %c1_93 = arith.constant 1 : index
    %c2_94 = arith.constant 2 : index
    %233 = memref.load %arg0[%c1_93, %c2_94] : memref<2x8xi32, #tpu.memory_space<smem>>
    %c0_i32_95 = arith.constant 0 : i32
    %c54_i32_96 = arith.constant 54 : i32
    %234 = arith.maxsi %c0_i32_95, %233 : i32
    %235 = arith.minsi %c54_i32_96, %234 : i32
    %236 = arith.index_cast %235 : i32 to index
    %c0_97 = arith.constant 0 : index
    %c0_98 = arith.constant 0 : index
    %237 = vector.load %arg6[%236, %c0_97, %c0_98] : memref<55x1x512xf32, #tpu.memory_space<vmem>>, vector<1x1x512xf32>
    %238 = vector.shape_cast %237 : vector<1x1x512xf32> to vector<1x512xf32>
    %239 = tpu.concatenate %232, %238 in 0 : vector<1x512xf32>, vector<1x512xf32> -> vector<2x512xf32>
    %240 = arith.truncf %165 : vector<2x128xf32> to vector<2x128xbf16>
    %cst_99 = arith.constant dense<0.000000e+00> : vector<2x512xf32>
    %241 = tpu.matmul %240, %15, %cst_99 {dimension_numbers = #tpu.dot_dimension_numbers<[1], [0], [0], [1], [0, 0, 1, 1], [], []>} : vector<2x128xbf16>, vector<128x512xbf16>, vector<2x512xf32> -> vector<2x512xf32>
    %242 = arith.addf %239, %241 : vector<2x512xf32>
    %243 = vector.extract_strided_slice %242 {offsets = [0, 0], sizes = [2, 384], strides = [1, 1]} : vector<2x512xf32> to vector<2x384xf32>
    %244 = arith.negf %243 : vector<2x384xf32>
    %245 = math.exp %244 : vector<2x384xf32>
    %cst_100 = arith.constant 1.000000e+00 : f32
    %246 = vector.broadcast %cst_100 : f32 to vector<2x384xf32>
    %247 = arith.addf %246, %245 : vector<2x384xf32>
    %248 = arith.divf %246, %247 : vector<2x384xf32>
    %249 = vector.extract_strided_slice %242 {offsets = [0, 384], sizes = [2, 128], strides = [1, 1]} : vector<2x512xf32> to vector<2x128xf32>
    %250 = math.tanh %249 : vector<2x128xf32>
    %251 = vector.extract_strided_slice %248 {offsets = [0, 0], sizes = [2, 128], strides = [1, 1]} : vector<2x384xf32> to vector<2x128xf32>
    %252 = vector.extract_strided_slice %248 {offsets = [0, 128], sizes = [2, 128], strides = [1, 1]} : vector<2x384xf32> to vector<2x128xf32>
    %253 = vector.extract_strided_slice %248 {offsets = [0, 256], sizes = [2, 128], strides = [1, 1]} : vector<2x384xf32> to vector<2x128xf32>
    %254 = arith.mulf %252, %163 : vector<2x128xf32>
    %255 = arith.mulf %251, %250 : vector<2x128xf32>
    %256 = arith.addf %254, %255 : vector<2x128xf32>
    %257 = math.tanh %256 : vector<2x128xf32>
    %258 = arith.mulf %253, %257 : vector<2x128xf32>
    %259 = tpu.concatenate %258, %185 in 1 : vector<2x128xf32>, vector<2x128xf32> -> vector<2x256xf32>
    %260 = arith.truncf %259 : vector<2x256xf32> to vector<2x256xbf16>
    %cst_101 = arith.constant dense<0.000000e+00> : vector<2x512xf32>
    %261 = tpu.matmul %260, %16, %cst_101 {dimension_numbers = #tpu.dot_dimension_numbers<[1], [0], [0], [1], [0, 0, 1, 1], [], []>} : vector<2x256xbf16>, vector<256x512xbf16>, vector<2x512xf32> -> vector<2x512xf32>
    %262 = arith.addf %261, %21 : vector<2x512xf32>
    %263 = vector.extract_strided_slice %262 {offsets = [0, 0], sizes = [2, 384], strides = [1, 1]} : vector<2x512xf32> to vector<2x384xf32>
    %264 = arith.negf %263 : vector<2x384xf32>
    %265 = math.exp %264 : vector<2x384xf32>
    %cst_102 = arith.constant 1.000000e+00 : f32
    %266 = vector.broadcast %cst_102 : f32 to vector<2x384xf32>
    %267 = arith.addf %266, %265 : vector<2x384xf32>
    %268 = arith.divf %266, %267 : vector<2x384xf32>
    %269 = vector.extract_strided_slice %262 {offsets = [0, 384], sizes = [2, 128], strides = [1, 1]} : vector<2x512xf32> to vector<2x128xf32>
    %270 = math.tanh %269 : vector<2x128xf32>
    %271 = vector.extract_strided_slice %268 {offsets = [0, 0], sizes = [2, 128], strides = [1, 1]} : vector<2x384xf32> to vector<2x128xf32>
    %272 = vector.extract_strided_slice %268 {offsets = [0, 128], sizes = [2, 128], strides = [1, 1]} : vector<2x384xf32> to vector<2x128xf32>
    %273 = vector.extract_strided_slice %268 {offsets = [0, 256], sizes = [2, 128], strides = [1, 1]} : vector<2x384xf32> to vector<2x128xf32>
    %274 = arith.mulf %272, %183 : vector<2x128xf32>
    %275 = arith.mulf %271, %270 : vector<2x128xf32>
    %276 = arith.addf %274, %275 : vector<2x128xf32>
    %277 = math.tanh %276 : vector<2x128xf32>
    %278 = arith.mulf %273, %277 : vector<2x128xf32>
    %279 = tpu.concatenate %278, %205 in 1 : vector<2x128xf32>, vector<2x128xf32> -> vector<2x256xf32>
    %280 = arith.truncf %279 : vector<2x256xf32> to vector<2x256xbf16>
    %cst_103 = arith.constant dense<0.000000e+00> : vector<2x512xf32>
    %281 = tpu.matmul %280, %17, %cst_103 {dimension_numbers = #tpu.dot_dimension_numbers<[1], [0], [0], [1], [0, 0, 1, 1], [], []>} : vector<2x256xbf16>, vector<256x512xbf16>, vector<2x512xf32> -> vector<2x512xf32>
    %282 = arith.addf %14, %281 : vector<2x512xf32>
    %283 = vector.extract_strided_slice %282 {offsets = [0, 0], sizes = [2, 384], strides = [1, 1]} : vector<2x512xf32> to vector<2x384xf32>
    %284 = arith.negf %283 : vector<2x384xf32>
    %285 = math.exp %284 : vector<2x384xf32>
    %cst_104 = arith.constant 1.000000e+00 : f32
    %286 = vector.broadcast %cst_104 : f32 to vector<2x384xf32>
    %287 = arith.addf %286, %285 : vector<2x384xf32>
    %288 = arith.divf %286, %287 : vector<2x384xf32>
    %289 = vector.extract_strided_slice %282 {offsets = [0, 384], sizes = [2, 128], strides = [1, 1]} : vector<2x512xf32> to vector<2x128xf32>
    %290 = math.tanh %289 : vector<2x128xf32>
    %291 = vector.extract_strided_slice %288 {offsets = [0, 0], sizes = [2, 128], strides = [1, 1]} : vector<2x384xf32> to vector<2x128xf32>
    %292 = vector.extract_strided_slice %288 {offsets = [0, 128], sizes = [2, 128], strides = [1, 1]} : vector<2x384xf32> to vector<2x128xf32>
    %293 = vector.extract_strided_slice %288 {offsets = [0, 256], sizes = [2, 128], strides = [1, 1]} : vector<2x384xf32> to vector<2x128xf32>
    %294 = arith.mulf %292, %203 : vector<2x128xf32>
    %295 = arith.mulf %291, %290 : vector<2x128xf32>
    %296 = arith.addf %294, %295 : vector<2x128xf32>
    %297 = math.tanh %296 : vector<2x128xf32>
    %298 = arith.mulf %293, %297 : vector<2x128xf32>
    %299 = tpu.concatenate %298, %225 in 1 : vector<2x128xf32>, vector<2x128xf32> -> vector<2x256xf32>
    %300 = arith.truncf %299 : vector<2x256xf32> to vector<2x256xbf16>
    %cst_105 = arith.constant dense<0.000000e+00> : vector<2x512xf32>
    %301 = tpu.matmul %300, %18, %cst_105 {dimension_numbers = #tpu.dot_dimension_numbers<[1], [0], [0], [1], [0, 0, 1, 1], [], []>} : vector<2x256xbf16>, vector<256x512xbf16>, vector<2x512xf32> -> vector<2x512xf32>
    %302 = arith.addf %301, %24 : vector<2x512xf32>
    %303 = vector.extract_strided_slice %302 {offsets = [0, 0], sizes = [2, 384], strides = [1, 1]} : vector<2x512xf32> to vector<2x384xf32>
    %304 = arith.negf %303 : vector<2x384xf32>
    %305 = math.exp %304 : vector<2x384xf32>
    %cst_106 = arith.constant 1.000000e+00 : f32
    %306 = vector.broadcast %cst_106 : f32 to vector<2x384xf32>
    %307 = arith.addf %306, %305 : vector<2x384xf32>
    %308 = arith.divf %306, %307 : vector<2x384xf32>
    %309 = vector.extract_strided_slice %302 {offsets = [0, 384], sizes = [2, 128], strides = [1, 1]} : vector<2x512xf32> to vector<2x128xf32>
    %310 = math.tanh %309 : vector<2x128xf32>
    %311 = vector.extract_strided_slice %308 {offsets = [0, 0], sizes = [2, 128], strides = [1, 1]} : vector<2x384xf32> to vector<2x128xf32>
    %312 = vector.extract_strided_slice %308 {offsets = [0, 128], sizes = [2, 128], strides = [1, 1]} : vector<2x384xf32> to vector<2x128xf32>
    %313 = vector.extract_strided_slice %308 {offsets = [0, 256], sizes = [2, 128], strides = [1, 1]} : vector<2x384xf32> to vector<2x128xf32>
    %314 = arith.mulf %312, %223 : vector<2x128xf32>
    %315 = arith.mulf %311, %310 : vector<2x128xf32>
    %316 = arith.addf %314, %315 : vector<2x128xf32>
    %317 = math.tanh %316 : vector<2x128xf32>
    %318 = arith.mulf %313, %317 : vector<2x128xf32>
    %c4 = arith.constant 4 : index
    %c0_107 = arith.constant 0 : index
    %319 = vector.load %arg24[%c4, %c0_107] : memref<16x128xf32, #tpu.memory_space<vmem>>, vector<2x128xf32>
    tpu.vector_store %arg24[%c4, %c0_107], %318 {strides = array<i32>} : memref<16x128xf32, #tpu.memory_space<vmem>>, vector<2x128xf32>,
    %c0_108 = arith.constant 0 : index
    %c3 = arith.constant 3 : index
    %320 = memref.load %arg0[%c0_108, %c3] : memref<2x8xi32, #tpu.memory_space<smem>>
    %c0_i32_109 = arith.constant 0 : i32
    %c54_i32_110 = arith.constant 54 : i32
    %321 = arith.maxsi %c0_i32_109, %320 : i32
    %322 = arith.minsi %c54_i32_110, %321 : i32
    %323 = arith.index_cast %322 : i32 to index
    %c0_111 = arith.constant 0 : index
    %c0_112 = arith.constant 0 : index
    %324 = vector.load %arg6[%323, %c0_111, %c0_112] : memref<55x1x512xf32, #tpu.memory_space<vmem>>, vector<1x1x512xf32>
    %325 = vector.shape_cast %324 : vector<1x1x512xf32> to vector<1x512xf32>
    %c1_113 = arith.constant 1 : index
    %c3_114 = arith.constant 3 : index
    %326 = memref.load %arg0[%c1_113, %c3_114] : memref<2x8xi32, #tpu.memory_space<smem>>
    %c0_i32_115 = arith.constant 0 : i32
    %c54_i32_116 = arith.constant 54 : i32
    %327 = arith.maxsi %c0_i32_115, %326 : i32
    %328 = arith.minsi %c54_i32_116, %327 : i32
    %329 = arith.index_cast %328 : i32 to index
    %c0_117 = arith.constant 0 : index
    %c0_118 = arith.constant 0 : index
    %330 = vector.load %arg6[%329, %c0_117, %c0_118] : memref<55x1x512xf32, #tpu.memory_space<vmem>>, vector<1x1x512xf32>
    %331 = vector.shape_cast %330 : vector<1x1x512xf32> to vector<1x512xf32>
    %332 = tpu.concatenate %325, %331 in 0 : vector<1x512xf32>, vector<1x512xf32> -> vector<2x512xf32>
    %333 = arith.truncf %258 : vector<2x128xf32> to vector<2x128xbf16>
    %cst_119 = arith.constant dense<0.000000e+00> : vector<2x512xf32>
    %334 = tpu.matmul %333, %15, %cst_119 {dimension_numbers = #tpu.dot_dimension_numbers<[1], [0], [0], [1], [0, 0, 1, 1], [], []>} : vector<2x128xbf16>, vector<128x512xbf16>, vector<2x512xf32> -> vector<2x512xf32>
    %335 = arith.addf %332, %334 : vector<2x512xf32>
    %336 = vector.extract_strided_slice %335 {offsets = [0, 0], sizes = [2, 384], strides = [1, 1]} : vector<2x512xf32> to vector<2x384xf32>
    %337 = arith.negf %336 : vector<2x384xf32>
    %338 = math.exp %337 : vector<2x384xf32>
    %cst_120 = arith.constant 1.000000e+00 : f32
    %339 = vector.broadcast %cst_120 : f32 to vector<2x384xf32>
    %340 = arith.addf %339, %338 : vector<2x384xf32>
    %341 = arith.divf %339, %340 : vector<2x384xf32>
    %342 = vector.extract_strided_slice %335 {offsets = [0, 384], sizes = [2, 128], strides = [1, 1]} : vector<2x512xf32> to vector<2x128xf32>
    %343 = math.tanh %342 : vector<2x128xf32>
    %344 = vector.extract_strided_slice %341 {offsets = [0, 0], sizes = [2, 128], strides = [1, 1]} : vector<2x384xf32> to vector<2x128xf32>
    %345 = vector.extract_strided_slice %341 {offsets = [0, 128], sizes = [2, 128], strides = [1, 1]} : vector<2x384xf32> to vector<2x128xf32>
    %346 = vector.extract_strided_slice %341 {offsets = [0, 256], sizes = [2, 128], strides = [1, 1]} : vector<2x384xf32> to vector<2x128xf32>
    %347 = arith.mulf %345, %256 : vector<2x128xf32>
    %348 = arith.mulf %344, %343 : vector<2x128xf32>
    %349 = arith.addf %347, %348 : vector<2x128xf32>
    %350 = math.tanh %349 : vector<2x128xf32>
    %351 = arith.mulf %346, %350 : vector<2x128xf32>
    %352 = tpu.concatenate %351, %278 in 1 : vector<2x128xf32>, vector<2x128xf32> -> vector<2x256xf32>
    %353 = arith.truncf %352 : vector<2x256xf32> to vector<2x256xbf16>
    %cst_121 = arith.constant dense<0.000000e+00> : vector<2x512xf32>
    %354 = tpu.matmul %353, %16, %cst_121 {dimension_numbers = #tpu.dot_dimension_numbers<[1], [0], [0], [1], [0, 0, 1, 1], [], []>} : vector<2x256xbf16>, vector<256x512xbf16>, vector<2x512xf32> -> vector<2x512xf32>
    %355 = arith.addf %354, %21 : vector<2x512xf32>
    %356 = vector.extract_strided_slice %355 {offsets = [0, 0], sizes = [2, 384], strides = [1, 1]} : vector<2x512xf32> to vector<2x384xf32>
    %357 = arith.negf %356 : vector<2x384xf32>
    %358 = math.exp %357 : vector<2x384xf32>
    %cst_122 = arith.constant 1.000000e+00 : f32
    %359 = vector.broadcast %cst_122 : f32 to vector<2x384xf32>
    %360 = arith.addf %359, %358 : vector<2x384xf32>
    %361 = arith.divf %359, %360 : vector<2x384xf32>
    %362 = vector.extract_strided_slice %355 {offsets = [0, 384], sizes = [2, 128], strides = [1, 1]} : vector<2x512xf32> to vector<2x128xf32>
    %363 = math.tanh %362 : vector<2x128xf32>
    %364 = vector.extract_strided_slice %361 {offsets = [0, 0], sizes = [2, 128], strides = [1, 1]} : vector<2x384xf32> to vector<2x128xf32>
    %365 = vector.extract_strided_slice %361 {offsets = [0, 128], sizes = [2, 128], strides = [1, 1]} : vector<2x384xf32> to vector<2x128xf32>
    %366 = vector.extract_strided_slice %361 {offsets = [0, 256], sizes = [2, 128], strides = [1, 1]} : vector<2x384xf32> to vector<2x128xf32>
    %367 = arith.mulf %365, %276 : vector<2x128xf32>
    %368 = arith.mulf %364, %363 : vector<2x128xf32>
    %369 = arith.addf %367, %368 : vector<2x128xf32>
    %370 = math.tanh %369 : vector<2x128xf32>
    %371 = arith.mulf %366, %370 : vector<2x128xf32>
    %372 = tpu.concatenate %371, %298 in 1 : vector<2x128xf32>, vector<2x128xf32> -> vector<2x256xf32>
    %373 = arith.truncf %372 : vector<2x256xf32> to vector<2x256xbf16>
    %cst_123 = arith.constant dense<0.000000e+00> : vector<2x512xf32>
    %374 = tpu.matmul %373, %17, %cst_123 {dimension_numbers = #tpu.dot_dimension_numbers<[1], [0], [0], [1], [0, 0, 1, 1], [], []>} : vector<2x256xbf16>, vector<256x512xbf16>, vector<2x512xf32> -> vector<2x512xf32>
    %375 = arith.addf %14, %374 : vector<2x512xf32>
    %376 = vector.extract_strided_slice %375 {offsets = [0, 0], sizes = [2, 384], strides = [1, 1]} : vector<2x512xf32> to vector<2x384xf32>
    %377 = arith.negf %376 : vector<2x384xf32>
    %378 = math.exp %377 : vector<2x384xf32>
    %cst_124 = arith.constant 1.000000e+00 : f32
    %379 = vector.broadcast %cst_124 : f32 to vector<2x384xf32>
    %380 = arith.addf %379, %378 : vector<2x384xf32>
    %381 = arith.divf %379, %380 : vector<2x384xf32>
    %382 = vector.extract_strided_slice %375 {offsets = [0, 384], sizes = [2, 128], strides = [1, 1]} : vector<2x512xf32> to vector<2x128xf32>
    %383 = math.tanh %382 : vector<2x128xf32>
    %384 = vector.extract_strided_slice %381 {offsets = [0, 0], sizes = [2, 128], strides = [1, 1]} : vector<2x384xf32> to vector<2x128xf32>
    %385 = vector.extract_strided_slice %381 {offsets = [0, 128], sizes = [2, 128], strides = [1, 1]} : vector<2x384xf32> to vector<2x128xf32>
    %386 = vector.extract_strided_slice %381 {offsets = [0, 256], sizes = [2, 128], strides = [1, 1]} : vector<2x384xf32> to vector<2x128xf32>
    %387 = arith.mulf %385, %296 : vector<2x128xf32>
    %388 = arith.mulf %384, %383 : vector<2x128xf32>
    %389 = arith.addf %387, %388 : vector<2x128xf32>
    %390 = math.tanh %389 : vector<2x128xf32>
    %391 = arith.mulf %386, %390 : vector<2x128xf32>
    %392 = tpu.concatenate %391, %318 in 1 : vector<2x128xf32>, vector<2x128xf32> -> vector<2x256xf32>
    %393 = arith.truncf %392 : vector<2x256xf32> to vector<2x256xbf16>
    %cst_125 = arith.constant dense<0.000000e+00> : vector<2x512xf32>
    %394 = tpu.matmul %393, %18, %cst_125 {dimension_numbers = #tpu.dot_dimension_numbers<[1], [0], [0], [1], [0, 0, 1, 1], [], []>} : vector<2x256xbf16>, vector<256x512xbf16>, vector<2x512xf32> -> vector<2x512xf32>
    %395 = arith.addf %394, %24 : vector<2x512xf32>
    %396 = vector.extract_strided_slice %395 {offsets = [0, 0], sizes = [2, 384], strides = [1, 1]} : vector<2x512xf32> to vector<2x384xf32>
    %397 = arith.negf %396 : vector<2x384xf32>
    %398 = math.exp %397 : vector<2x384xf32>
    %cst_126 = arith.constant 1.000000e+00 : f32
    %399 = vector.broadcast %cst_126 : f32 to vector<2x384xf32>
    %400 = arith.addf %399, %398 : vector<2x384xf32>
    %401 = arith.divf %399, %400 : vector<2x384xf32>
    %402 = vector.extract_strided_slice %395 {offsets = [0, 384], sizes = [2, 128], strides = [1, 1]} : vector<2x512xf32> to vector<2x128xf32>
    %403 = math.tanh %402 : vector<2x128xf32>
    %404 = vector.extract_strided_slice %401 {offsets = [0, 0], sizes = [2, 128], strides = [1, 1]} : vector<2x384xf32> to vector<2x128xf32>
    %405 = vector.extract_strided_slice %401 {offsets = [0, 128], sizes = [2, 128], strides = [1, 1]} : vector<2x384xf32> to vector<2x128xf32>
    %406 = vector.extract_strided_slice %401 {offsets = [0, 256], sizes = [2, 128], strides = [1, 1]} : vector<2x384xf32> to vector<2x128xf32>
    %407 = arith.mulf %405, %316 : vector<2x128xf32>
    %408 = arith.mulf %404, %403 : vector<2x128xf32>
    %409 = arith.addf %407, %408 : vector<2x128xf32>
    %410 = math.tanh %409 : vector<2x128xf32>
    %411 = arith.mulf %406, %410 : vector<2x128xf32>
    %c6 = arith.constant 6 : index
    %c0_127 = arith.constant 0 : index
    %412 = vector.load %arg24[%c6, %c0_127] : memref<16x128xf32, #tpu.memory_space<vmem>>, vector<2x128xf32>
    tpu.vector_store %arg24[%c6, %c0_127], %411 {strides = array<i32>} : memref<16x128xf32, #tpu.memory_space<vmem>>, vector<2x128xf32>,
    %c0_128 = arith.constant 0 : index
    %c4_129 = arith.constant 4 : index
    %413 = memref.load %arg0[%c0_128, %c4_129] : memref<2x8xi32, #tpu.memory_space<smem>>
    %c0_i32_130 = arith.constant 0 : i32
    %c54_i32_131 = arith.constant 54 : i32
    %414 = arith.maxsi %c0_i32_130, %413 : i32
    %415 = arith.minsi %c54_i32_131, %414 : i32
    %416 = arith.index_cast %415 : i32 to index
    %c0_132 = arith.constant 0 : index
    %c0_133 = arith.constant 0 : index
    %417 = vector.load %arg6[%416, %c0_132, %c0_133] : memref<55x1x512xf32, #tpu.memory_space<vmem>>, vector<1x1x512xf32>
    %418 = vector.shape_cast %417 : vector<1x1x512xf32> to vector<1x512xf32>
    %c1_134 = arith.constant 1 : index
    %c4_135 = arith.constant 4 : index
    %419 = memref.load %arg0[%c1_134, %c4_135] : memref<2x8xi32, #tpu.memory_space<smem>>
    %c0_i32_136 = arith.constant 0 : i32
    %c54_i32_137 = arith.constant 54 : i32
    %420 = arith.maxsi %c0_i32_136, %419 : i32
    %421 = arith.minsi %c54_i32_137, %420 : i32
    %422 = arith.index_cast %421 : i32 to index
    %c0_138 = arith.constant 0 : index
    %c0_139 = arith.constant 0 : index
    %423 = vector.load %arg6[%422, %c0_138, %c0_139] : memref<55x1x512xf32, #tpu.memory_space<vmem>>, vector<1x1x512xf32>
    %424 = vector.shape_cast %423 : vector<1x1x512xf32> to vector<1x512xf32>
    %425 = tpu.concatenate %418, %424 in 0 : vector<1x512xf32>, vector<1x512xf32> -> vector<2x512xf32>
    %426 = arith.truncf %351 : vector<2x128xf32> to vector<2x128xbf16>
    %cst_140 = arith.constant dense<0.000000e+00> : vector<2x512xf32>
    %427 = tpu.matmul %426, %15, %cst_140 {dimension_numbers = #tpu.dot_dimension_numbers<[1], [0], [0], [1], [0, 0, 1, 1], [], []>} : vector<2x128xbf16>, vector<128x512xbf16>, vector<2x512xf32> -> vector<2x512xf32>
    %428 = arith.addf %425, %427 : vector<2x512xf32>
    %429 = vector.extract_strided_slice %428 {offsets = [0, 0], sizes = [2, 384], strides = [1, 1]} : vector<2x512xf32> to vector<2x384xf32>
    %430 = arith.negf %429 : vector<2x384xf32>
    %431 = math.exp %430 : vector<2x384xf32>
    %cst_141 = arith.constant 1.000000e+00 : f32
    %432 = vector.broadcast %cst_141 : f32 to vector<2x384xf32>
    %433 = arith.addf %432, %431 : vector<2x384xf32>
    %434 = arith.divf %432, %433 : vector<2x384xf32>
    %435 = vector.extract_strided_slice %428 {offsets = [0, 384], sizes = [2, 128], strides = [1, 1]} : vector<2x512xf32> to vector<2x128xf32>
    %436 = math.tanh %435 : vector<2x128xf32>
    %437 = vector.extract_strided_slice %434 {offsets = [0, 0], sizes = [2, 128], strides = [1, 1]} : vector<2x384xf32> to vector<2x128xf32>
    %438 = vector.extract_strided_slice %434 {offsets = [0, 128], sizes = [2, 128], strides = [1, 1]} : vector<2x384xf32> to vector<2x128xf32>
    %439 = vector.extract_strided_slice %434 {offsets = [0, 256], sizes = [2, 128], strides = [1, 1]} : vector<2x384xf32> to vector<2x128xf32>
    %440 = arith.mulf %438, %349 : vector<2x128xf32>
    %441 = arith.mulf %437, %436 : vector<2x128xf32>
    %442 = arith.addf %440, %441 : vector<2x128xf32>
    %443 = math.tanh %442 : vector<2x128xf32>
    %444 = arith.mulf %439, %443 : vector<2x128xf32>
    %445 = tpu.concatenate %444, %371 in 1 : vector<2x128xf32>, vector<2x128xf32> -> vector<2x256xf32>
    %446 = arith.truncf %445 : vector<2x256xf32> to vector<2x256xbf16>
    %cst_142 = arith.constant dense<0.000000e+00> : vector<2x512xf32>
    %447 = tpu.matmul %446, %16, %cst_142 {dimension_numbers = #tpu.dot_dimension_numbers<[1], [0], [0], [1], [0, 0, 1, 1], [], []>} : vector<2x256xbf16>, vector<256x512xbf16>, vector<2x512xf32> -> vector<2x512xf32>
    %448 = arith.addf %447, %21 : vector<2x512xf32>
    %449 = vector.extract_strided_slice %448 {offsets = [0, 0], sizes = [2, 384], strides = [1, 1]} : vector<2x512xf32> to vector<2x384xf32>
    %450 = arith.negf %449 : vector<2x384xf32>
    %451 = math.exp %450 : vector<2x384xf32>
    %cst_143 = arith.constant 1.000000e+00 : f32
    %452 = vector.broadcast %cst_143 : f32 to vector<2x384xf32>
    %453 = arith.addf %452, %451 : vector<2x384xf32>
    %454 = arith.divf %452, %453 : vector<2x384xf32>
    %455 = vector.extract_strided_slice %448 {offsets = [0, 384], sizes = [2, 128], strides = [1, 1]} : vector<2x512xf32> to vector<2x128xf32>
    %456 = math.tanh %455 : vector<2x128xf32>
    %457 = vector.extract_strided_slice %454 {offsets = [0, 0], sizes = [2, 128], strides = [1, 1]} : vector<2x384xf32> to vector<2x128xf32>
    %458 = vector.extract_strided_slice %454 {offsets = [0, 128], sizes = [2, 128], strides = [1, 1]} : vector<2x384xf32> to vector<2x128xf32>
    %459 = vector.extract_strided_slice %454 {offsets = [0, 256], sizes = [2, 128], strides = [1, 1]} : vector<2x384xf32> to vector<2x128xf32>
    %460 = arith.mulf %458, %369 : vector<2x128xf32>
    %461 = arith.mulf %457, %456 : vector<2x128xf32>
    %462 = arith.addf %460, %461 : vector<2x128xf32>
    %463 = math.tanh %462 : vector<2x128xf32>
    %464 = arith.mulf %459, %463 : vector<2x128xf32>
    %465 = tpu.concatenate %464, %391 in 1 : vector<2x128xf32>, vector<2x128xf32> -> vector<2x256xf32>
    %466 = arith.truncf %465 : vector<2x256xf32> to vector<2x256xbf16>
    %cst_144 = arith.constant dense<0.000000e+00> : vector<2x512xf32>
    %467 = tpu.matmul %466, %17, %cst_144 {dimension_numbers = #tpu.dot_dimension_numbers<[1], [0], [0], [1], [0, 0, 1, 1], [], []>} : vector<2x256xbf16>, vector<256x512xbf16>, vector<2x512xf32> -> vector<2x512xf32>
    %468 = arith.addf %14, %467 : vector<2x512xf32>
    %469 = vector.extract_strided_slice %468 {offsets = [0, 0], sizes = [2, 384], strides = [1, 1]} : vector<2x512xf32> to vector<2x384xf32>
    %470 = arith.negf %469 : vector<2x384xf32>
    %471 = math.exp %470 : vector<2x384xf32>
    %cst_145 = arith.constant 1.000000e+00 : f32
    %472 = vector.broadcast %cst_145 : f32 to vector<2x384xf32>
    %473 = arith.addf %472, %471 : vector<2x384xf32>
    %474 = arith.divf %472, %473 : vector<2x384xf32>
    %475 = vector.extract_strided_slice %468 {offsets = [0, 384], sizes = [2, 128], strides = [1, 1]} : vector<2x512xf32> to vector<2x128xf32>
    %476 = math.tanh %475 : vector<2x128xf32>
    %477 = vector.extract_strided_slice %474 {offsets = [0, 0], sizes = [2, 128], strides = [1, 1]} : vector<2x384xf32> to vector<2x128xf32>
    %478 = vector.extract_strided_slice %474 {offsets = [0, 128], sizes = [2, 128], strides = [1, 1]} : vector<2x384xf32> to vector<2x128xf32>
    %479 = vector.extract_strided_slice %474 {offsets = [0, 256], sizes = [2, 128], strides = [1, 1]} : vector<2x384xf32> to vector<2x128xf32>
    %480 = arith.mulf %478, %389 : vector<2x128xf32>
    %481 = arith.mulf %477, %476 : vector<2x128xf32>
    %482 = arith.addf %480, %481 : vector<2x128xf32>
    %483 = math.tanh %482 : vector<2x128xf32>
    %484 = arith.mulf %479, %483 : vector<2x128xf32>
    %485 = tpu.concatenate %484, %411 in 1 : vector<2x128xf32>, vector<2x128xf32> -> vector<2x256xf32>
    %486 = arith.truncf %485 : vector<2x256xf32> to vector<2x256xbf16>
    %cst_146 = arith.constant dense<0.000000e+00> : vector<2x512xf32>
    %487 = tpu.matmul %486, %18, %cst_146 {dimension_numbers = #tpu.dot_dimension_numbers<[1], [0], [0], [1], [0, 0, 1, 1], [], []>} : vector<2x256xbf16>, vector<256x512xbf16>, vector<2x512xf32> -> vector<2x512xf32>
    %488 = arith.addf %487, %24 : vector<2x512xf32>
    %489 = vector.extract_strided_slice %488 {offsets = [0, 0], sizes = [2, 384], strides = [1, 1]} : vector<2x512xf32> to vector<2x384xf32>
    %490 = arith.negf %489 : vector<2x384xf32>
    %491 = math.exp %490 : vector<2x384xf32>
    %cst_147 = arith.constant 1.000000e+00 : f32
    %492 = vector.broadcast %cst_147 : f32 to vector<2x384xf32>
    %493 = arith.addf %492, %491 : vector<2x384xf32>
    %494 = arith.divf %492, %493 : vector<2x384xf32>
    %495 = vector.extract_strided_slice %488 {offsets = [0, 384], sizes = [2, 128], strides = [1, 1]} : vector<2x512xf32> to vector<2x128xf32>
    %496 = math.tanh %495 : vector<2x128xf32>
    %497 = vector.extract_strided_slice %494 {offsets = [0, 0], sizes = [2, 128], strides = [1, 1]} : vector<2x384xf32> to vector<2x128xf32>
    %498 = vector.extract_strided_slice %494 {offsets = [0, 128], sizes = [2, 128], strides = [1, 1]} : vector<2x384xf32> to vector<2x128xf32>
    %499 = vector.extract_strided_slice %494 {offsets = [0, 256], sizes = [2, 128], strides = [1, 1]} : vector<2x384xf32> to vector<2x128xf32>
    %500 = arith.mulf %498, %409 : vector<2x128xf32>
    %501 = arith.mulf %497, %496 : vector<2x128xf32>
    %502 = arith.addf %500, %501 : vector<2x128xf32>
    %503 = math.tanh %502 : vector<2x128xf32>
    %504 = arith.mulf %499, %503 : vector<2x128xf32>
    %c8 = arith.constant 8 : index
    %c0_148 = arith.constant 0 : index
    %505 = vector.load %arg24[%c8, %c0_148] : memref<16x128xf32, #tpu.memory_space<vmem>>, vector<2x128xf32>
    tpu.vector_store %arg24[%c8, %c0_148], %504 {strides = array<i32>} : memref<16x128xf32, #tpu.memory_space<vmem>>, vector<2x128xf32>,
    %c0_149 = arith.constant 0 : index
    %c5 = arith.constant 5 : index
    %506 = memref.load %arg0[%c0_149, %c5] : memref<2x8xi32, #tpu.memory_space<smem>>
    %c0_i32_150 = arith.constant 0 : i32
    %c54_i32_151 = arith.constant 54 : i32
    %507 = arith.maxsi %c0_i32_150, %506 : i32
    %508 = arith.minsi %c54_i32_151, %507 : i32
    %509 = arith.index_cast %508 : i32 to index
    %c0_152 = arith.constant 0 : index
    %c0_153 = arith.constant 0 : index
    %510 = vector.load %arg6[%509, %c0_152, %c0_153] : memref<55x1x512xf32, #tpu.memory_space<vmem>>, vector<1x1x512xf32>
    %511 = vector.shape_cast %510 : vector<1x1x512xf32> to vector<1x512xf32>
    %c1_154 = arith.constant 1 : index
    %c5_155 = arith.constant 5 : index
    %512 = memref.load %arg0[%c1_154, %c5_155] : memref<2x8xi32, #tpu.memory_space<smem>>
    %c0_i32_156 = arith.constant 0 : i32
    %c54_i32_157 = arith.constant 54 : i32
    %513 = arith.maxsi %c0_i32_156, %512 : i32
    %514 = arith.minsi %c54_i32_157, %513 : i32
    %515 = arith.index_cast %514 : i32 to index
    %c0_158 = arith.constant 0 : index
    %c0_159 = arith.constant 0 : index
    %516 = vector.load %arg6[%515, %c0_158, %c0_159] : memref<55x1x512xf32, #tpu.memory_space<vmem>>, vector<1x1x512xf32>
    %517 = vector.shape_cast %516 : vector<1x1x512xf32> to vector<1x512xf32>
    %518 = tpu.concatenate %511, %517 in 0 : vector<1x512xf32>, vector<1x512xf32> -> vector<2x512xf32>
    %519 = arith.truncf %444 : vector<2x128xf32> to vector<2x128xbf16>
    %cst_160 = arith.constant dense<0.000000e+00> : vector<2x512xf32>
    %520 = tpu.matmul %519, %15, %cst_160 {dimension_numbers = #tpu.dot_dimension_numbers<[1], [0], [0], [1], [0, 0, 1, 1], [], []>} : vector<2x128xbf16>, vector<128x512xbf16>, vector<2x512xf32> -> vector<2x512xf32>
    %521 = arith.addf %518, %520 : vector<2x512xf32>
    %522 = vector.extract_strided_slice %521 {offsets = [0, 0], sizes = [2, 384], strides = [1, 1]} : vector<2x512xf32> to vector<2x384xf32>
    %523 = arith.negf %522 : vector<2x384xf32>
    %524 = math.exp %523 : vector<2x384xf32>
    %cst_161 = arith.constant 1.000000e+00 : f32
    %525 = vector.broadcast %cst_161 : f32 to vector<2x384xf32>
    %526 = arith.addf %525, %524 : vector<2x384xf32>
    %527 = arith.divf %525, %526 : vector<2x384xf32>
    %528 = vector.extract_strided_slice %521 {offsets = [0, 384], sizes = [2, 128], strides = [1, 1]} : vector<2x512xf32> to vector<2x128xf32>
    %529 = math.tanh %528 : vector<2x128xf32>
    %530 = vector.extract_strided_slice %527 {offsets = [0, 0], sizes = [2, 128], strides = [1, 1]} : vector<2x384xf32> to vector<2x128xf32>
    %531 = vector.extract_strided_slice %527 {offsets = [0, 128], sizes = [2, 128], strides = [1, 1]} : vector<2x384xf32> to vector<2x128xf32>
    %532 = vector.extract_strided_slice %527 {offsets = [0, 256], sizes = [2, 128], strides = [1, 1]} : vector<2x384xf32> to vector<2x128xf32>
    %533 = arith.mulf %531, %442 : vector<2x128xf32>
    %534 = arith.mulf %530, %529 : vector<2x128xf32>
    %535 = arith.addf %533, %534 : vector<2x128xf32>
    %536 = math.tanh %535 : vector<2x128xf32>
    %537 = arith.mulf %532, %536 : vector<2x128xf32>
    %538 = tpu.concatenate %537, %464 in 1 : vector<2x128xf32>, vector<2x128xf32> -> vector<2x256xf32>
    %539 = arith.truncf %538 : vector<2x256xf32> to vector<2x256xbf16>
    %cst_162 = arith.constant dense<0.000000e+00> : vector<2x512xf32>
    %540 = tpu.matmul %539, %16, %cst_162 {dimension_numbers = #tpu.dot_dimension_numbers<[1], [0], [0], [1], [0, 0, 1, 1], [], []>} : vector<2x256xbf16>, vector<256x512xbf16>, vector<2x512xf32> -> vector<2x512xf32>
    %541 = arith.addf %540, %21 : vector<2x512xf32>
    %542 = vector.extract_strided_slice %541 {offsets = [0, 0], sizes = [2, 384], strides = [1, 1]} : vector<2x512xf32> to vector<2x384xf32>
    %543 = arith.negf %542 : vector<2x384xf32>
    %544 = math.exp %543 : vector<2x384xf32>
    %cst_163 = arith.constant 1.000000e+00 : f32
    %545 = vector.broadcast %cst_163 : f32 to vector<2x384xf32>
    %546 = arith.addf %545, %544 : vector<2x384xf32>
    %547 = arith.divf %545, %546 : vector<2x384xf32>
    %548 = vector.extract_strided_slice %541 {offsets = [0, 384], sizes = [2, 128], strides = [1, 1]} : vector<2x512xf32> to vector<2x128xf32>
    %549 = math.tanh %548 : vector<2x128xf32>
    %550 = vector.extract_strided_slice %547 {offsets = [0, 0], sizes = [2, 128], strides = [1, 1]} : vector<2x384xf32> to vector<2x128xf32>
    %551 = vector.extract_strided_slice %547 {offsets = [0, 128], sizes = [2, 128], strides = [1, 1]} : vector<2x384xf32> to vector<2x128xf32>
    %552 = vector.extract_strided_slice %547 {offsets = [0, 256], sizes = [2, 128], strides = [1, 1]} : vector<2x384xf32> to vector<2x128xf32>
    %553 = arith.mulf %551, %462 : vector<2x128xf32>
    %554 = arith.mulf %550, %549 : vector<2x128xf32>
    %555 = arith.addf %553, %554 : vector<2x128xf32>
    %556 = math.tanh %555 : vector<2x128xf32>
    %557 = arith.mulf %552, %556 : vector<2x128xf32>
    %558 = tpu.concatenate %557, %484 in 1 : vector<2x128xf32>, vector<2x128xf32> -> vector<2x256xf32>
    %559 = arith.truncf %558 : vector<2x256xf32> to vector<2x256xbf16>
    %cst_164 = arith.constant dense<0.000000e+00> : vector<2x512xf32>
    %560 = tpu.matmul %559, %17, %cst_164 {dimension_numbers = #tpu.dot_dimension_numbers<[1], [0], [0], [1], [0, 0, 1, 1], [], []>} : vector<2x256xbf16>, vector<256x512xbf16>, vector<2x512xf32> -> vector<2x512xf32>
    %561 = arith.addf %14, %560 : vector<2x512xf32>
    %562 = vector.extract_strided_slice %561 {offsets = [0, 0], sizes = [2, 384], strides = [1, 1]} : vector<2x512xf32> to vector<2x384xf32>
    %563 = arith.negf %562 : vector<2x384xf32>
    %564 = math.exp %563 : vector<2x384xf32>
    %cst_165 = arith.constant 1.000000e+00 : f32
    %565 = vector.broadcast %cst_165 : f32 to vector<2x384xf32>
    %566 = arith.addf %565, %564 : vector<2x384xf32>
    %567 = arith.divf %565, %566 : vector<2x384xf32>
    %568 = vector.extract_strided_slice %561 {offsets = [0, 384], sizes = [2, 128], strides = [1, 1]} : vector<2x512xf32> to vector<2x128xf32>
    %569 = math.tanh %568 : vector<2x128xf32>
    %570 = vector.extract_strided_slice %567 {offsets = [0, 0], sizes = [2, 128], strides = [1, 1]} : vector<2x384xf32> to vector<2x128xf32>
    %571 = vector.extract_strided_slice %567 {offsets = [0, 128], sizes = [2, 128], strides = [1, 1]} : vector<2x384xf32> to vector<2x128xf32>
    %572 = vector.extract_strided_slice %567 {offsets = [0, 256], sizes = [2, 128], strides = [1, 1]} : vector<2x384xf32> to vector<2x128xf32>
    %573 = arith.mulf %571, %482 : vector<2x128xf32>
    %574 = arith.mulf %570, %569 : vector<2x128xf32>
    %575 = arith.addf %573, %574 : vector<2x128xf32>
    %576 = math.tanh %575 : vector<2x128xf32>
    %577 = arith.mulf %572, %576 : vector<2x128xf32>
    %578 = tpu.concatenate %577, %504 in 1 : vector<2x128xf32>, vector<2x128xf32> -> vector<2x256xf32>
    %579 = arith.truncf %578 : vector<2x256xf32> to vector<2x256xbf16>
    %cst_166 = arith.constant dense<0.000000e+00> : vector<2x512xf32>
    %580 = tpu.matmul %579, %18, %cst_166 {dimension_numbers = #tpu.dot_dimension_numbers<[1], [0], [0], [1], [0, 0, 1, 1], [], []>} : vector<2x256xbf16>, vector<256x512xbf16>, vector<2x512xf32> -> vector<2x512xf32>
    %581 = arith.addf %580, %24 : vector<2x512xf32>
    %582 = vector.extract_strided_slice %581 {offsets = [0, 0], sizes = [2, 384], strides = [1, 1]} : vector<2x512xf32> to vector<2x384xf32>
    %583 = arith.negf %582 : vector<2x384xf32>
    %584 = math.exp %583 : vector<2x384xf32>
    %cst_167 = arith.constant 1.000000e+00 : f32
    %585 = vector.broadcast %cst_167 : f32 to vector<2x384xf32>
    %586 = arith.addf %585, %584 : vector<2x384xf32>
    %587 = arith.divf %585, %586 : vector<2x384xf32>
    %588 = vector.extract_strided_slice %581 {offsets = [0, 384], sizes = [2, 128], strides = [1, 1]} : vector<2x512xf32> to vector<2x128xf32>
    %589 = math.tanh %588 : vector<2x128xf32>
    %590 = vector.extract_strided_slice %587 {offsets = [0, 0], sizes = [2, 128], strides = [1, 1]} : vector<2x384xf32> to vector<2x128xf32>
    %591 = vector.extract_strided_slice %587 {offsets = [0, 128], sizes = [2, 128], strides = [1, 1]} : vector<2x384xf32> to vector<2x128xf32>
    %592 = vector.extract_strided_slice %587 {offsets = [0, 256], sizes = [2, 128], strides = [1, 1]} : vector<2x384xf32> to vector<2x128xf32>
    %593 = arith.mulf %591, %502 : vector<2x128xf32>
    %594 = arith.mulf %590, %589 : vector<2x128xf32>
    %595 = arith.addf %593, %594 : vector<2x128xf32>
    %596 = math.tanh %595 : vector<2x128xf32>
    %597 = arith.mulf %592, %596 : vector<2x128xf32>
    %c10 = arith.constant 10 : index
    %c0_168 = arith.constant 0 : index
    %598 = vector.load %arg24[%c10, %c0_168] : memref<16x128xf32, #tpu.memory_space<vmem>>, vector<2x128xf32>
    tpu.vector_store %arg24[%c10, %c0_168], %597 {strides = array<i32>} : memref<16x128xf32, #tpu.memory_space<vmem>>, vector<2x128xf32>,
    %c0_169 = arith.constant 0 : index
    %c6_170 = arith.constant 6 : index
    %599 = memref.load %arg0[%c0_169, %c6_170] : memref<2x8xi32, #tpu.memory_space<smem>>
    %c0_i32_171 = arith.constant 0 : i32
    %c54_i32_172 = arith.constant 54 : i32
    %600 = arith.maxsi %c0_i32_171, %599 : i32
    %601 = arith.minsi %c54_i32_172, %600 : i32
    %602 = arith.index_cast %601 : i32 to index
    %c0_173 = arith.constant 0 : index
    %c0_174 = arith.constant 0 : index
    %603 = vector.load %arg6[%602, %c0_173, %c0_174] : memref<55x1x512xf32, #tpu.memory_space<vmem>>, vector<1x1x512xf32>
    %604 = vector.shape_cast %603 : vector<1x1x512xf32> to vector<1x512xf32>
    %c1_175 = arith.constant 1 : index
    %c6_176 = arith.constant 6 : index
    %605 = memref.load %arg0[%c1_175, %c6_176] : memref<2x8xi32, #tpu.memory_space<smem>>
    %c0_i32_177 = arith.constant 0 : i32
    %c54_i32_178 = arith.constant 54 : i32
    %606 = arith.maxsi %c0_i32_177, %605 : i32
    %607 = arith.minsi %c54_i32_178, %606 : i32
    %608 = arith.index_cast %607 : i32 to index
    %c0_179 = arith.constant 0 : index
    %c0_180 = arith.constant 0 : index
    %609 = vector.load %arg6[%608, %c0_179, %c0_180] : memref<55x1x512xf32, #tpu.memory_space<vmem>>, vector<1x1x512xf32>
    %610 = vector.shape_cast %609 : vector<1x1x512xf32> to vector<1x512xf32>
    %611 = tpu.concatenate %604, %610 in 0 : vector<1x512xf32>, vector<1x512xf32> -> vector<2x512xf32>
    %612 = arith.truncf %537 : vector<2x128xf32> to vector<2x128xbf16>
    %cst_181 = arith.constant dense<0.000000e+00> : vector<2x512xf32>
    %613 = tpu.matmul %612, %15, %cst_181 {dimension_numbers = #tpu.dot_dimension_numbers<[1], [0], [0], [1], [0, 0, 1, 1], [], []>} : vector<2x128xbf16>, vector<128x512xbf16>, vector<2x512xf32> -> vector<2x512xf32>
    %614 = arith.addf %611, %613 : vector<2x512xf32>
    %615 = vector.extract_strided_slice %614 {offsets = [0, 0], sizes = [2, 384], strides = [1, 1]} : vector<2x512xf32> to vector<2x384xf32>
    %616 = arith.negf %615 : vector<2x384xf32>
    %617 = math.exp %616 : vector<2x384xf32>
    %cst_182 = arith.constant 1.000000e+00 : f32
    %618 = vector.broadcast %cst_182 : f32 to vector<2x384xf32>
    %619 = arith.addf %618, %617 : vector<2x384xf32>
    %620 = arith.divf %618, %619 : vector<2x384xf32>
    %621 = vector.extract_strided_slice %614 {offsets = [0, 384], sizes = [2, 128], strides = [1, 1]} : vector<2x512xf32> to vector<2x128xf32>
    %622 = math.tanh %621 : vector<2x128xf32>
    %623 = vector.extract_strided_slice %620 {offsets = [0, 0], sizes = [2, 128], strides = [1, 1]} : vector<2x384xf32> to vector<2x128xf32>
    %624 = vector.extract_strided_slice %620 {offsets = [0, 128], sizes = [2, 128], strides = [1, 1]} : vector<2x384xf32> to vector<2x128xf32>
    %625 = vector.extract_strided_slice %620 {offsets = [0, 256], sizes = [2, 128], strides = [1, 1]} : vector<2x384xf32> to vector<2x128xf32>
    %626 = arith.mulf %624, %535 : vector<2x128xf32>
    %627 = arith.mulf %623, %622 : vector<2x128xf32>
    %628 = arith.addf %626, %627 : vector<2x128xf32>
    %629 = math.tanh %628 : vector<2x128xf32>
    %630 = arith.mulf %625, %629 : vector<2x128xf32>
    %631 = tpu.concatenate %630, %557 in 1 : vector<2x128xf32>, vector<2x128xf32> -> vector<2x256xf32>
    %632 = arith.truncf %631 : vector<2x256xf32> to vector<2x256xbf16>
    %cst_183 = arith.constant dense<0.000000e+00> : vector<2x512xf32>
    %633 = tpu.matmul %632, %16, %cst_183 {dimension_numbers = #tpu.dot_dimension_numbers<[1], [0], [0], [1], [0, 0, 1, 1], [], []>} : vector<2x256xbf16>, vector<256x512xbf16>, vector<2x512xf32> -> vector<2x512xf32>
    %634 = arith.addf %633, %21 : vector<2x512xf32>
    %635 = vector.extract_strided_slice %634 {offsets = [0, 0], sizes = [2, 384], strides = [1, 1]} : vector<2x512xf32> to vector<2x384xf32>
    %636 = arith.negf %635 : vector<2x384xf32>
    %637 = math.exp %636 : vector<2x384xf32>
    %cst_184 = arith.constant 1.000000e+00 : f32
    %638 = vector.broadcast %cst_184 : f32 to vector<2x384xf32>
    %639 = arith.addf %638, %637 : vector<2x384xf32>
    %640 = arith.divf %638, %639 : vector<2x384xf32>
    %641 = vector.extract_strided_slice %634 {offsets = [0, 384], sizes = [2, 128], strides = [1, 1]} : vector<2x512xf32> to vector<2x128xf32>
    %642 = math.tanh %641 : vector<2x128xf32>
    %643 = vector.extract_strided_slice %640 {offsets = [0, 0], sizes = [2, 128], strides = [1, 1]} : vector<2x384xf32> to vector<2x128xf32>
    %644 = vector.extract_strided_slice %640 {offsets = [0, 128], sizes = [2, 128], strides = [1, 1]} : vector<2x384xf32> to vector<2x128xf32>
    %645 = vector.extract_strided_slice %640 {offsets = [0, 256], sizes = [2, 128], strides = [1, 1]} : vector<2x384xf32> to vector<2x128xf32>
    %646 = arith.mulf %644, %555 : vector<2x128xf32>
    %647 = arith.mulf %643, %642 : vector<2x128xf32>
    %648 = arith.addf %646, %647 : vector<2x128xf32>
    %649 = math.tanh %648 : vector<2x128xf32>
    %650 = arith.mulf %645, %649 : vector<2x128xf32>
    %651 = tpu.concatenate %650, %577 in 1 : vector<2x128xf32>, vector<2x128xf32> -> vector<2x256xf32>
    %652 = arith.truncf %651 : vector<2x256xf32> to vector<2x256xbf16>
    %cst_185 = arith.constant dense<0.000000e+00> : vector<2x512xf32>
    %653 = tpu.matmul %652, %17, %cst_185 {dimension_numbers = #tpu.dot_dimension_numbers<[1], [0], [0], [1], [0, 0, 1, 1], [], []>} : vector<2x256xbf16>, vector<256x512xbf16>, vector<2x512xf32> -> vector<2x512xf32>
    %654 = arith.addf %14, %653 : vector<2x512xf32>
    %655 = vector.extract_strided_slice %654 {offsets = [0, 0], sizes = [2, 384], strides = [1, 1]} : vector<2x512xf32> to vector<2x384xf32>
    %656 = arith.negf %655 : vector<2x384xf32>
    %657 = math.exp %656 : vector<2x384xf32>
    %cst_186 = arith.constant 1.000000e+00 : f32
    %658 = vector.broadcast %cst_186 : f32 to vector<2x384xf32>
    %659 = arith.addf %658, %657 : vector<2x384xf32>
    %660 = arith.divf %658, %659 : vector<2x384xf32>
    %661 = vector.extract_strided_slice %654 {offsets = [0, 384], sizes = [2, 128], strides = [1, 1]} : vector<2x512xf32> to vector<2x128xf32>
    %662 = math.tanh %661 : vector<2x128xf32>
    %663 = vector.extract_strided_slice %660 {offsets = [0, 0], sizes = [2, 128], strides = [1, 1]} : vector<2x384xf32> to vector<2x128xf32>
    %664 = vector.extract_strided_slice %660 {offsets = [0, 128], sizes = [2, 128], strides = [1, 1]} : vector<2x384xf32> to vector<2x128xf32>
    %665 = vector.extract_strided_slice %660 {offsets = [0, 256], sizes = [2, 128], strides = [1, 1]} : vector<2x384xf32> to vector<2x128xf32>
    %666 = arith.mulf %664, %575 : vector<2x128xf32>
    %667 = arith.mulf %663, %662 : vector<2x128xf32>
    %668 = arith.addf %666, %667 : vector<2x128xf32>
    %669 = math.tanh %668 : vector<2x128xf32>
    %670 = arith.mulf %665, %669 : vector<2x128xf32>
    %671 = tpu.concatenate %670, %597 in 1 : vector<2x128xf32>, vector<2x128xf32> -> vector<2x256xf32>
    %672 = arith.truncf %671 : vector<2x256xf32> to vector<2x256xbf16>
    %cst_187 = arith.constant dense<0.000000e+00> : vector<2x512xf32>
    %673 = tpu.matmul %672, %18, %cst_187 {dimension_numbers = #tpu.dot_dimension_numbers<[1], [0], [0], [1], [0, 0, 1, 1], [], []>} : vector<2x256xbf16>, vector<256x512xbf16>, vector<2x512xf32> -> vector<2x512xf32>
    %674 = arith.addf %673, %24 : vector<2x512xf32>
    %675 = vector.extract_strided_slice %674 {offsets = [0, 0], sizes = [2, 384], strides = [1, 1]} : vector<2x512xf32> to vector<2x384xf32>
    %676 = arith.negf %675 : vector<2x384xf32>
    %677 = math.exp %676 : vector<2x384xf32>
    %cst_188 = arith.constant 1.000000e+00 : f32
    %678 = vector.broadcast %cst_188 : f32 to vector<2x384xf32>
    %679 = arith.addf %678, %677 : vector<2x384xf32>
    %680 = arith.divf %678, %679 : vector<2x384xf32>
    %681 = vector.extract_strided_slice %674 {offsets = [0, 384], sizes = [2, 128], strides = [1, 1]} : vector<2x512xf32> to vector<2x128xf32>
    %682 = math.tanh %681 : vector<2x128xf32>
    %683 = vector.extract_strided_slice %680 {offsets = [0, 0], sizes = [2, 128], strides = [1, 1]} : vector<2x384xf32> to vector<2x128xf32>
    %684 = vector.extract_strided_slice %680 {offsets = [0, 128], sizes = [2, 128], strides = [1, 1]} : vector<2x384xf32> to vector<2x128xf32>
    %685 = vector.extract_strided_slice %680 {offsets = [0, 256], sizes = [2, 128], strides = [1, 1]} : vector<2x384xf32> to vector<2x128xf32>
    %686 = arith.mulf %684, %595 : vector<2x128xf32>
    %687 = arith.mulf %683, %682 : vector<2x128xf32>
    %688 = arith.addf %686, %687 : vector<2x128xf32>
    %689 = math.tanh %688 : vector<2x128xf32>
    %690 = arith.mulf %685, %689 : vector<2x128xf32>
    %c12 = arith.constant 12 : index
    %c0_189 = arith.constant 0 : index
    %691 = vector.load %arg24[%c12, %c0_189] : memref<16x128xf32, #tpu.memory_space<vmem>>, vector<2x128xf32>
    tpu.vector_store %arg24[%c12, %c0_189], %690 {strides = array<i32>} : memref<16x128xf32, #tpu.memory_space<vmem>>, vector<2x128xf32>,
    %c0_190 = arith.constant 0 : index
    %c7 = arith.constant 7 : index
    %692 = memref.load %arg0[%c0_190, %c7] : memref<2x8xi32, #tpu.memory_space<smem>>
    %c0_i32_191 = arith.constant 0 : i32
    %c54_i32_192 = arith.constant 54 : i32
    %693 = arith.maxsi %c0_i32_191, %692 : i32
    %694 = arith.minsi %c54_i32_192, %693 : i32
    %695 = arith.index_cast %694 : i32 to index
    %c0_193 = arith.constant 0 : index
    %c0_194 = arith.constant 0 : index
    %696 = vector.load %arg6[%695, %c0_193, %c0_194] : memref<55x1x512xf32, #tpu.memory_space<vmem>>, vector<1x1x512xf32>
    %697 = vector.shape_cast %696 : vector<1x1x512xf32> to vector<1x512xf32>
    %c1_195 = arith.constant 1 : index
    %c7_196 = arith.constant 7 : index
    %698 = memref.load %arg0[%c1_195, %c7_196] : memref<2x8xi32, #tpu.memory_space<smem>>
    %c0_i32_197 = arith.constant 0 : i32
    %c54_i32_198 = arith.constant 54 : i32
    %699 = arith.maxsi %c0_i32_197, %698 : i32
    %700 = arith.minsi %c54_i32_198, %699 : i32
    %701 = arith.index_cast %700 : i32 to index
    %c0_199 = arith.constant 0 : index
    %c0_200 = arith.constant 0 : index
    %702 = vector.load %arg6[%701, %c0_199, %c0_200] : memref<55x1x512xf32, #tpu.memory_space<vmem>>, vector<1x1x512xf32>
    %703 = vector.shape_cast %702 : vector<1x1x512xf32> to vector<1x512xf32>
    %704 = tpu.concatenate %697, %703 in 0 : vector<1x512xf32>, vector<1x512xf32> -> vector<2x512xf32>
    %705 = arith.truncf %630 : vector<2x128xf32> to vector<2x128xbf16>
    %cst_201 = arith.constant dense<0.000000e+00> : vector<2x512xf32>
    %706 = tpu.matmul %705, %15, %cst_201 {dimension_numbers = #tpu.dot_dimension_numbers<[1], [0], [0], [1], [0, 0, 1, 1], [], []>} : vector<2x128xbf16>, vector<128x512xbf16>, vector<2x512xf32> -> vector<2x512xf32>
    %707 = arith.addf %704, %706 : vector<2x512xf32>
    %708 = vector.extract_strided_slice %707 {offsets = [0, 0], sizes = [2, 384], strides = [1, 1]} : vector<2x512xf32> to vector<2x384xf32>
    %709 = arith.negf %708 : vector<2x384xf32>
    %710 = math.exp %709 : vector<2x384xf32>
    %cst_202 = arith.constant 1.000000e+00 : f32
    %711 = vector.broadcast %cst_202 : f32 to vector<2x384xf32>
    %712 = arith.addf %711, %710 : vector<2x384xf32>
    %713 = arith.divf %711, %712 : vector<2x384xf32>
    %714 = vector.extract_strided_slice %707 {offsets = [0, 384], sizes = [2, 128], strides = [1, 1]} : vector<2x512xf32> to vector<2x128xf32>
    %715 = math.tanh %714 : vector<2x128xf32>
    %716 = vector.extract_strided_slice %713 {offsets = [0, 0], sizes = [2, 128], strides = [1, 1]} : vector<2x384xf32> to vector<2x128xf32>
    %717 = vector.extract_strided_slice %713 {offsets = [0, 128], sizes = [2, 128], strides = [1, 1]} : vector<2x384xf32> to vector<2x128xf32>
    %718 = vector.extract_strided_slice %713 {offsets = [0, 256], sizes = [2, 128], strides = [1, 1]} : vector<2x384xf32> to vector<2x128xf32>
    %719 = arith.mulf %717, %628 : vector<2x128xf32>
    %720 = arith.mulf %716, %715 : vector<2x128xf32>
    %721 = arith.addf %719, %720 : vector<2x128xf32>
    %722 = math.tanh %721 : vector<2x128xf32>
    %723 = arith.mulf %718, %722 : vector<2x128xf32>
    %724 = tpu.concatenate %723, %650 in 1 : vector<2x128xf32>, vector<2x128xf32> -> vector<2x256xf32>
    %725 = arith.truncf %724 : vector<2x256xf32> to vector<2x256xbf16>
    %cst_203 = arith.constant dense<0.000000e+00> : vector<2x512xf32>
    %726 = tpu.matmul %725, %16, %cst_203 {dimension_numbers = #tpu.dot_dimension_numbers<[1], [0], [0], [1], [0, 0, 1, 1], [], []>} : vector<2x256xbf16>, vector<256x512xbf16>, vector<2x512xf32> -> vector<2x512xf32>
    %727 = arith.addf %726, %21 : vector<2x512xf32>
    %728 = vector.extract_strided_slice %727 {offsets = [0, 0], sizes = [2, 384], strides = [1, 1]} : vector<2x512xf32> to vector<2x384xf32>
    %729 = arith.negf %728 : vector<2x384xf32>
    %730 = math.exp %729 : vector<2x384xf32>
    %cst_204 = arith.constant 1.000000e+00 : f32
    %731 = vector.broadcast %cst_204 : f32 to vector<2x384xf32>
    %732 = arith.addf %731, %730 : vector<2x384xf32>
    %733 = arith.divf %731, %732 : vector<2x384xf32>
    %734 = vector.extract_strided_slice %727 {offsets = [0, 384], sizes = [2, 128], strides = [1, 1]} : vector<2x512xf32> to vector<2x128xf32>
    %735 = math.tanh %734 : vector<2x128xf32>
    %736 = vector.extract_strided_slice %733 {offsets = [0, 0], sizes = [2, 128], strides = [1, 1]} : vector<2x384xf32> to vector<2x128xf32>
    %737 = vector.extract_strided_slice %733 {offsets = [0, 128], sizes = [2, 128], strides = [1, 1]} : vector<2x384xf32> to vector<2x128xf32>
    %738 = vector.extract_strided_slice %733 {offsets = [0, 256], sizes = [2, 128], strides = [1, 1]} : vector<2x384xf32> to vector<2x128xf32>
    %739 = arith.mulf %737, %648 : vector<2x128xf32>
    %740 = arith.mulf %736, %735 : vector<2x128xf32>
    %741 = arith.addf %739, %740 : vector<2x128xf32>
    %742 = math.tanh %741 : vector<2x128xf32>
    %743 = arith.mulf %738, %742 : vector<2x128xf32>
    %744 = tpu.concatenate %743, %670 in 1 : vector<2x128xf32>, vector<2x128xf32> -> vector<2x256xf32>
    %745 = arith.truncf %744 : vector<2x256xf32> to vector<2x256xbf16>
    %cst_205 = arith.constant dense<0.000000e+00> : vector<2x512xf32>
    %746 = tpu.matmul %745, %17, %cst_205 {dimension_numbers = #tpu.dot_dimension_numbers<[1], [0], [0], [1], [0, 0, 1, 1], [], []>} : vector<2x256xbf16>, vector<256x512xbf16>, vector<2x512xf32> -> vector<2x512xf32>
    %747 = arith.addf %14, %746 : vector<2x512xf32>
    %748 = vector.extract_strided_slice %747 {offsets = [0, 0], sizes = [2, 384], strides = [1, 1]} : vector<2x512xf32> to vector<2x384xf32>
    %749 = arith.negf %748 : vector<2x384xf32>
    %750 = math.exp %749 : vector<2x384xf32>
    %cst_206 = arith.constant 1.000000e+00 : f32
    %751 = vector.broadcast %cst_206 : f32 to vector<2x384xf32>
    %752 = arith.addf %751, %750 : vector<2x384xf32>
    %753 = arith.divf %751, %752 : vector<2x384xf32>
    %754 = vector.extract_strided_slice %747 {offsets = [0, 384], sizes = [2, 128], strides = [1, 1]} : vector<2x512xf32> to vector<2x128xf32>
    %755 = math.tanh %754 : vector<2x128xf32>
    %756 = vector.extract_strided_slice %753 {offsets = [0, 0], sizes = [2, 128], strides = [1, 1]} : vector<2x384xf32> to vector<2x128xf32>
    %757 = vector.extract_strided_slice %753 {offsets = [0, 128], sizes = [2, 128], strides = [1, 1]} : vector<2x384xf32> to vector<2x128xf32>
    %758 = vector.extract_strided_slice %753 {offsets = [0, 256], sizes = [2, 128], strides = [1, 1]} : vector<2x384xf32> to vector<2x128xf32>
    %759 = arith.mulf %757, %668 : vector<2x128xf32>
    %760 = arith.mulf %756, %755 : vector<2x128xf32>
    %761 = arith.addf %759, %760 : vector<2x128xf32>
    %762 = math.tanh %761 : vector<2x128xf32>
    %763 = arith.mulf %758, %762 : vector<2x128xf32>
    %764 = tpu.concatenate %763, %690 in 1 : vector<2x128xf32>, vector<2x128xf32> -> vector<2x256xf32>
    %765 = arith.truncf %764 : vector<2x256xf32> to vector<2x256xbf16>
    %cst_207 = arith.constant dense<0.000000e+00> : vector<2x512xf32>
    %766 = tpu.matmul %765, %18, %cst_207 {dimension_numbers = #tpu.dot_dimension_numbers<[1], [0], [0], [1], [0, 0, 1, 1], [], []>} : vector<2x256xbf16>, vector<256x512xbf16>, vector<2x512xf32> -> vector<2x512xf32>
    %767 = arith.addf %766, %24 : vector<2x512xf32>
    %768 = vector.extract_strided_slice %767 {offsets = [0, 0], sizes = [2, 384], strides = [1, 1]} : vector<2x512xf32> to vector<2x384xf32>
    %769 = arith.negf %768 : vector<2x384xf32>
    %770 = math.exp %769 : vector<2x384xf32>
    %cst_208 = arith.constant 1.000000e+00 : f32
    %771 = vector.broadcast %cst_208 : f32 to vector<2x384xf32>
    %772 = arith.addf %771, %770 : vector<2x384xf32>
    %773 = arith.divf %771, %772 : vector<2x384xf32>
    %774 = vector.extract_strided_slice %767 {offsets = [0, 384], sizes = [2, 128], strides = [1, 1]} : vector<2x512xf32> to vector<2x128xf32>
    %775 = math.tanh %774 : vector<2x128xf32>
    %776 = vector.extract_strided_slice %773 {offsets = [0, 0], sizes = [2, 128], strides = [1, 1]} : vector<2x384xf32> to vector<2x128xf32>
    %777 = vector.extract_strided_slice %773 {offsets = [0, 128], sizes = [2, 128], strides = [1, 1]} : vector<2x384xf32> to vector<2x128xf32>
    %778 = vector.extract_strided_slice %773 {offsets = [0, 256], sizes = [2, 128], strides = [1, 1]} : vector<2x384xf32> to vector<2x128xf32>
    %779 = arith.mulf %777, %688 : vector<2x128xf32>
    %780 = arith.mulf %776, %775 : vector<2x128xf32>
    %781 = arith.addf %779, %780 : vector<2x128xf32>
    %782 = math.tanh %781 : vector<2x128xf32>
    %783 = arith.mulf %778, %782 : vector<2x128xf32>
    %c14 = arith.constant 14 : index
    %c0_209 = arith.constant 0 : index
    %784 = vector.load %arg24[%c14, %c0_209] : memref<16x128xf32, #tpu.memory_space<vmem>>, vector<2x128xf32>
    tpu.vector_store %arg24[%c14, %c0_209], %783 {strides = array<i32>} : memref<16x128xf32, #tpu.memory_space<vmem>>, vector<2x128xf32>,
    %c0_210 = arith.constant 0 : index
    %c0_211 = arith.constant 0 : index
    %785 = vector.load %arg14[%c0_210, %c0_211] : memref<1x128xf32, #tpu.memory_space<vmem>>, vector<1x128xf32>
    %786 = vector.shape_cast %785 : vector<1x128xf32> to vector<1x128xf32>
    %787 = vector.broadcast %786 : vector<1x128xf32> to vector<16x128xf32>
    %c0_212 = arith.constant 0 : index
    %c0_213 = arith.constant 0 : index
    %788 = vector.load %arg24[%c0_212, %c0_213] : memref<16x128xf32, #tpu.memory_space<vmem>>, vector<16x128xf32>
    %789 = arith.truncf %788 : vector<16x128xf32> to vector<16x128xbf16>
    %c0_214 = arith.constant 0 : index
    %c0_215 = arith.constant 0 : index
    %790 = vector.load %arg13[%c0_214, %c0_215] : memref<128x128xbf16, #tpu.memory_space<vmem>>, vector<128x128xbf16>
    %cst_216 = arith.constant dense<0.000000e+00> : vector<16x128xf32>
    %791 = tpu.matmul %789, %790, %cst_216 {dimension_numbers = #tpu.dot_dimension_numbers<[1], [0], [0], [1], [0, 0, 1, 1], [], []>} : vector<16x128xbf16>, vector<128x128xbf16>, vector<16x128xf32> -> vector<16x128xf32>
    %792 = arith.addf %791, %787 : vector<16x128xf32>
    %c0_217 = arith.constant 0 : index
    %c0_218 = arith.constant 0 : index
    %793 = vector.load %arg19[%c0_217, %c0_218] : memref<16x128xf32, #tpu.memory_space<vmem>>, vector<16x128xf32>
    tpu.vector_store %arg19[%c0_217, %c0_218], %792 {strides = array<i32>} : memref<16x128xf32, #tpu.memory_space<vmem>>, vector<16x128xf32>,
    %c0_219 = arith.constant 0 : index
    %c0_220 = arith.constant 0 : index
    %c0_221 = arith.constant 0 : index
    %794 = vector.load %arg20[%c0_219, %c0_220, %c0_221] : memref<2x2x128xf32, #tpu.memory_space<vmem>>, vector<1x2x128xf32>
    %795 = vector.shape_cast %794 : vector<1x2x128xf32> to vector<2x128xf32>
    %796 = vector.shape_cast %723 : vector<2x128xf32> to vector<1x2x128xf32>
    tpu.vector_store %arg20[%c0_219, %c0_220, %c0_221], %796 {strides = array<i32>} : memref<2x2x128xf32, #tpu.memory_space<vmem>>, vector<1x2x128xf32>,
    %c1_222 = arith.constant 1 : index
    %c0_223 = arith.constant 0 : index
    %c0_224 = arith.constant 0 : index
    %797 = vector.load %arg20[%c1_222, %c0_223, %c0_224] : memref<2x2x128xf32, #tpu.memory_space<vmem>>, vector<1x2x128xf32>
    %798 = vector.shape_cast %797 : vector<1x2x128xf32> to vector<2x128xf32>
    %799 = vector.shape_cast %743 : vector<2x128xf32> to vector<1x2x128xf32>
    tpu.vector_store %arg20[%c1_222, %c0_223, %c0_224], %799 {strides = array<i32>} : memref<2x2x128xf32, #tpu.memory_space<vmem>>, vector<1x2x128xf32>,
    %c0_225 = arith.constant 0 : index
    %c0_226 = arith.constant 0 : index
    %c0_227 = arith.constant 0 : index
    %800 = vector.load %arg21[%c0_225, %c0_226, %c0_227] : memref<2x2x128xf32, #tpu.memory_space<vmem>>, vector<1x2x128xf32>
    %801 = vector.shape_cast %800 : vector<1x2x128xf32> to vector<2x128xf32>
    %802 = vector.shape_cast %721 : vector<2x128xf32> to vector<1x2x128xf32>
    tpu.vector_store %arg21[%c0_225, %c0_226, %c0_227], %802 {strides = array<i32>} : memref<2x2x128xf32, #tpu.memory_space<vmem>>, vector<1x2x128xf32>,
    %c1_228 = arith.constant 1 : index
    %c0_229 = arith.constant 0 : index
    %c0_230 = arith.constant 0 : index
    %803 = vector.load %arg21[%c1_228, %c0_229, %c0_230] : memref<2x2x128xf32, #tpu.memory_space<vmem>>, vector<1x2x128xf32>
    %804 = vector.shape_cast %803 : vector<1x2x128xf32> to vector<2x128xf32>
    %805 = vector.shape_cast %741 : vector<2x128xf32> to vector<1x2x128xf32>
    tpu.vector_store %arg21[%c1_228, %c0_229, %c0_230], %805 {strides = array<i32>} : memref<2x2x128xf32, #tpu.memory_space<vmem>>, vector<1x2x128xf32>,
    %c0_231 = arith.constant 0 : index
    %c0_232 = arith.constant 0 : index
    %c0_233 = arith.constant 0 : index
    %806 = vector.load %arg22[%c0_231, %c0_232, %c0_233] : memref<2x2x128xf32, #tpu.memory_space<vmem>>, vector<1x2x128xf32>
    %807 = vector.shape_cast %806 : vector<1x2x128xf32> to vector<2x128xf32>
    %808 = vector.shape_cast %763 : vector<2x128xf32> to vector<1x2x128xf32>
    tpu.vector_store %arg22[%c0_231, %c0_232, %c0_233], %808 {strides = array<i32>} : memref<2x2x128xf32, #tpu.memory_space<vmem>>, vector<1x2x128xf32>,
    %c1_234 = arith.constant 1 : index
    %c0_235 = arith.constant 0 : index
    %c0_236 = arith.constant 0 : index
    %809 = vector.load %arg22[%c1_234, %c0_235, %c0_236] : memref<2x2x128xf32, #tpu.memory_space<vmem>>, vector<1x2x128xf32>
    %810 = vector.shape_cast %809 : vector<1x2x128xf32> to vector<2x128xf32>
    %811 = vector.shape_cast %783 : vector<2x128xf32> to vector<1x2x128xf32>
    tpu.vector_store %arg22[%c1_234, %c0_235, %c0_236], %811 {strides = array<i32>} : memref<2x2x128xf32, #tpu.memory_space<vmem>>, vector<1x2x128xf32>,
    %c0_237 = arith.constant 0 : index
    %c0_238 = arith.constant 0 : index
    %c0_239 = arith.constant 0 : index
    %812 = vector.load %arg23[%c0_237, %c0_238, %c0_239] : memref<2x2x128xf32, #tpu.memory_space<vmem>>, vector<1x2x128xf32>
    %813 = vector.shape_cast %812 : vector<1x2x128xf32> to vector<2x128xf32>
    %814 = vector.shape_cast %761 : vector<2x128xf32> to vector<1x2x128xf32>
    tpu.vector_store %arg23[%c0_237, %c0_238, %c0_239], %814 {strides = array<i32>} : memref<2x2x128xf32, #tpu.memory_space<vmem>>, vector<1x2x128xf32>,
    %c1_240 = arith.constant 1 : index
    %c0_241 = arith.constant 0 : index
    %c0_242 = arith.constant 0 : index
    %815 = vector.load %arg23[%c1_240, %c0_241, %c0_242] : memref<2x2x128xf32, #tpu.memory_space<vmem>>, vector<1x2x128xf32>
    %816 = vector.shape_cast %815 : vector<1x2x128xf32> to vector<2x128xf32>
    %817 = vector.shape_cast %781 : vector<2x128xf32> to vector<1x2x128xf32>
    tpu.vector_store %arg23[%c1_240, %c0_241, %c0_242], %817 {strides = array<i32>} : memref<2x2x128xf32, #tpu.memory_space<vmem>>, vector<1x2x128xf32>,
    return
  }
}

</mosaic_0001>

<llo_original>
// kernel: net_forward.1
$region0: #{net_forward.1}
  #allocation0 [shape = 'u32[]', space=smem, size = 0x4, offset = 0x4, fixed_abs, tag = 'smem constant byte address 0x4 - core index']
  #allocation1 [shape = 'u32[144,128]{1,0:T(1,128)}', space=vmem, size = 0x12000, scoped, tag = 'internal scratch']
  #allocation2 [shape = 'f32[16,128]{1,0:T(8,128)}', space=vmem, size = 0x2000, scoped, tag = 'scratch operand']
  %s0 = inlined_call_operand.vmem [shape: s32[2,8], index: 0, kind: input, shape index: {}]
  %s1 = inlined_call_operand.vmem [shape: f32[2,768], index: 1, kind: input, shape index: {}]
  %s2 = inlined_call_operand.hbm [shape: bf16[768,128], index: 2, kind: input, shape index: {}]
  %s3 = inlined_call_operand.vmem [shape: f32[1,128], index: 3, kind: input, shape index: {}]
  %s4 = inlined_call_operand.hbm [shape: bf16[128,512], index: 4, kind: input, shape index: {}]
  %s5 = inlined_call_operand.vmem [shape: f32[1,512], index: 5, kind: input, shape index: {}]
  %s6 = inlined_call_operand.hbm [shape: f32[55,1,512], index: 6, kind: input, shape index: {}]
  %s7 = inlined_call_operand.hbm [shape: bf16[128,512], index: 7, kind: input, shape index: {}]
  %s8 = inlined_call_operand.hbm [shape: bf16[256,512], index: 8, kind: input, shape index: {}]
  %s9 = inlined_call_operand.vmem [shape: f32[1,512], index: 9, kind: input, shape index: {}]
  %s10 = inlined_call_operand.hbm [shape: bf16[256,512], index: 10, kind: input, shape index: {}]
  %s11 = inlined_call_operand.hbm [shape: bf16[256,512], index: 11, kind: input, shape index: {}]
  %s12 = inlined_call_operand.vmem [shape: f32[1,512], index: 12, kind: input, shape index: {}]
  %s13 = inlined_call_operand.vmem [shape: bf16[128,128], index: 13, kind: input, shape index: {}]
  %s14 = inlined_call_operand.vmem [shape: f32[1,128], index: 14, kind: input, shape index: {}]
  %s15 = inlined_call_operand.vmem [shape: f32[2,2,128], index: 15, kind: input, shape index: {}, may-alias: {15,20}]
  %s16 = inlined_call_operand.vmem [shape: f32[2,2,128], index: 16, kind: input, shape index: {}, may-alias: {16,21}]
  %s17 = inlined_call_operand.vmem [shape: f32[2,2,128], index: 17, kind: input, shape index: {}, may-alias: {17,22}]
  %s18 = inlined_call_operand.vmem [shape: f32[2,2,128], index: 18, kind: input, shape index: {}, may-alias: {18,23}]
  %s19 = inlined_call_operand.vmem [shape: f32[16,128], index: 19, kind: output, shape index: {0}]
  %s20 = inlined_call_operand.vmem [shape: f32[2,2,128], index: 20, kind: output, shape index: {1}, may-alias: {15,20}]
  %s21 = inlined_call_operand.vmem [shape: f32[2,2,128], index: 21, kind: output, shape index: {2}, may-alias: {16,21}]
  %s22 = inlined_call_operand.vmem [shape: f32[2,2,128], index: 22, kind: output, shape index: {3}, may-alias: {17,22}]
  %s23 = inlined_call_operand.vmem [shape: f32[2,2,128], index: 23, kind: output, shape index: {4}, may-alias: {18,23}]
  %24 = xla_tuple %s19, %s20, %s21, %s22, %s23
  %s25 = sld [smem:[#allocation0]]
  $region150: #{net_forward.1} parent=0
    _
  %s27 = ssub.s32 1, %s25
  %s28 = scalar_select 0, %s27, %s25
  $region1: #{net_forward.1} parent=0
    #allocation3 [shape = 'u8[1024]{0}', space=smem, size = 0x400, scoped, tag = 'input window, operand 0, single buffered']
    #allocation4 [shape = 's32[1]{0}', space=sflag, size = 0x4, scoped, tag = 'scoped memory for net_forward.1']
    #allocation5 [shape = 's32[1]{0}', space=sflag, size = 0x4, scoped, tag = 'scoped memory for net_forward.1']
    #allocation6 [shape = 'u8[196608]{0}', space=vmem, size = 0x30000, scoped, tag = 'input window, operand 2, single buffered']
    #allocation7 [shape = 'u8[131072]{0}', space=vmem, size = 0x20000, scoped, tag = 'input window, operand 4, single buffered']
    #allocation8 [shape = 's32[1]{0}', space=sflag, size = 0x4, scoped, tag = 'scoped memory for net_forward.1']
    #allocation9 [shape = 'u8[112640]{0}', space=vmem, size = 0x1b800, scoped, tag = 'input window, operand 6, single buffered']
    #allocation10 [shape = 'u8[131072]{0}', space=vmem, size = 0x20000, scoped, tag = 'input window, operand 7, single buffered']
    #allocation11 [shape = 's32[1]{0}', space=sflag, size = 0x4, scoped, tag = 'scoped memory for net_forward.1']
    #allocation12 [shape = 'u8[262144]{0}', space=vmem, size = 0x40000, scoped, tag = 'input window, operand 8, single buffered']
    #allocation13 [shape = 'u8[262144]{0}', space=vmem, size = 0x40000, scoped, tag = 'input window, operand 10, single buffered']
    #allocation14 [shape = 's32[1]{0}', space=sflag, size = 0x4, scoped, tag = 'scoped memory for net_forward.1']
    #allocation15 [shape = 'u8[262144]{0}', space=vmem, size = 0x40000, scoped, tag = 'input window, operand 11, single buffered']
    %29 = vsyncpa [#allocation5], 0
    %30 = vsyncpa [#allocation4], 0
    %31 = vsyncpa [#allocation8], 0
    %32 = vsyncpa [#allocation11], 0
    %33 = vsyncpa [#allocation14], 0
    // Predicated region
    $region2: #{net_forward.1} parent=1 // pred_check
      _
    $region3: #{net_forward.1} parent=1 // pred_check_branch
      %35 = sbr.rel (0) target = $region5
    $region4: #{net_forward.1} parent=1 // pred_region
      %s37 = ssub.s32 32, 32
      %38 = vsyncadd [#allocation5], %s37
      %s40 = sshll.u32 %s0, 4
      %s41 = int_to_ptr.vmem [resolvable:$true] %s40
      %43 = dma.vmem_to_smem %s41, 32, [#allocation3], [#allocation5]
    $region5: #{net_forward.1} parent=1 // pred_fallthru
      _
    // Predicated region
    $region6: #{net_forward.1} parent=1 // pred_check
      _
    $region7: #{net_forward.1} parent=1 // pred_check_branch
      %45 = sbr.rel (0) target = $region9
    $region8: #{net_forward.1} parent=1 // pred_region
      _
    $region9: #{net_forward.1} parent=1 // pred_fallthru
      _
    // Predicated region
    $region10: #{net_forward.1} parent=1 // pred_check
      _
    $region11: #{net_forward.1} parent=1 // pred_check_branch
      %47 = sbr.rel (0) target = $region13
    $region12: #{net_forward.1} parent=1 // pred_region
      %s49 = ssub.s32 6144, 6144
      %50 = vsyncadd [#allocation4], %s49
      %s51 = sshll.u32 [#allocation6], 4
      %s52 = int_to_ptr.vmem [resolvable:$true] %s51
      %57 = dma.hbm_to_vmem [thread:$0]  %s2, 6144, %s52, [#allocation4], 64, 64, 4
    $region13: #{net_forward.1} parent=1 // pred_fallthru
      _
    // Predicated region
    $region14: #{net_forward.1} parent=1 // pred_check
      _
    $region15: #{net_forward.1} parent=1 // pred_check_branch
      %59 = sbr.rel (0) target = $region17
    $region16: #{net_forward.1} parent=1 // pred_region
      _
    $region17: #{net_forward.1} parent=1 // pred_fallthru
      _
    // Predicated region
    $region18: #{net_forward.1} parent=1 // pred_check
      _
    $region19: #{net_forward.1} parent=1 // pred_check_branch
      %61 = sbr.rel (0) target = $region21
    $region20: #{net_forward.1} parent=1 // pred_region
      %s63 = ssub.s32 4096, 4096
      %64 = vsyncadd [#allocation8], %s63
      %s65 = sshll.u32 [#allocation7], 4
      %s66 = int_to_ptr.vmem [resolvable:$true] %s65
      %71 = dma.hbm_to_vmem [thread:$0]  %s4, 4096, %s66, [#allocation8], 256, 256, 16
    $region21: #{net_forward.1} parent=1 // pred_fallthru
      _
    // Predicated region
    $region22: #{net_forward.1} parent=1 // pred_check
      _
    $region23: #{net_forward.1} parent=1 // pred_check_branch
      %73 = sbr.rel (0) target = $region25
    $region24: #{net_forward.1} parent=1 // pred_region
      _
    $region25: #{net_forward.1} parent=1 // pred_fallthru
      _
    // Predicated region
    $region26: #{net_forward.1} parent=1 // pred_check
      _
    $region27: #{net_forward.1} parent=1 // pred_check_branch
      %75 = sbr.rel (0) target = $region29
    $region28: #{net_forward.1} parent=1 // pred_region
      %s77 = ssub.s32 3520, 3520
      %78 = vsyncadd [#allocation8], %s77
      %s79 = sshll.u32 [#allocation9], 4
      %s80 = int_to_ptr.vmem [resolvable:$true] %s79
      %85 = dma.hbm_to_vmem [thread:$0]  %s6, 3520, %s80, [#allocation8], 64, 64, 4
    $region29: #{net_forward.1} parent=1 // pred_fallthru
      _
    // Predicated region
    $region30: #{net_forward.1} parent=1 // pred_check
      _
    $region31: #{net_forward.1} parent=1 // pred_check_branch
      %87 = sbr.rel (0) target = $region33
    $region32: #{net_forward.1} parent=1 // pred_region
      %s89 = ssub.s32 4096, 4096
      %90 = vsyncadd [#allocation11], %s89
      %s91 = sshll.u32 [#allocation10], 4
      %s92 = int_to_ptr.vmem [resolvable:$true] %s91
      %97 = dma.hbm_to_vmem [thread:$0]  %s7, 4096, %s92, [#allocation11], 256, 256, 16
    $region33: #{net_forward.1} parent=1 // pred_fallthru
      _
    // Predicated region
    $region34: #{net_forward.1} parent=1 // pred_check
      _
    $region35: #{net_forward.1} parent=1 // pred_check_branch
      %99 = sbr.rel (0) target = $region37
    $region36: #{net_forward.1} parent=1 // pred_region
      %s101 = ssub.s32 8192, 8192
      %102 = vsyncadd [#allocation11], %s101
      %s103 = sshll.u32 [#allocation12], 4
      %s104 = int_to_ptr.vmem [resolvable:$true] %s103
      %109 = dma.hbm_to_vmem [thread:$0]  %s8, 8192, %s104, [#allocation11], 256, 256, 16
    $region37: #{net_forward.1} parent=1 // pred_fallthru
      _
    // Predicated region
    $region38: #{net_forward.1} parent=1 // pred_check
      _
    $region39: #{net_forward.1} parent=1 // pred_check_branch
      %111 = sbr.rel (0) target = $region41
    $region40: #{net_forward.1} parent=1 // pred_region
      _
    $region41: #{net_forward.1} parent=1 // pred_fallthru
      _
    // Predicated region
    $region42: #{net_forward.1} parent=1 // pred_check
      _
    $region43: #{net_forward.1} parent=1 // pred_check_branch
      %113 = sbr.rel (0) target = $region45
    $region44: #{net_forward.1} parent=1 // pred_region
      %s115 = ssub.s32 8192, 8192
      %116 = vsyncadd [#allocation14], %s115
      %s117 = sshll.u32 [#allocation13], 4
      %s118 = int_to_ptr.vmem [resolvable:$true] %s117
      %123 = dma.hbm_to_vmem [thread:$0]  %s10, 8192, %s118, [#allocation14], 256, 256, 16
    $region45: #{net_forward.1} parent=1 // pred_fallthru
      _
    // Predicated region
    $region46: #{net_forward.1} parent=1 // pred_check
      _
    $region47: #{net_forward.1} parent=1 // pred_check_branch
      %125 = sbr.rel (0) target = $region49
    $region48: #{net_forward.1} parent=1 // pred_region
      %s127 = ssub.s32 8192, 8192
      %128 = vsyncadd [#allocation14], %s127
      %s129 = sshll.u32 [#allocation15], 4
      %s130 = int_to_ptr.vmem [resolvable:$true] %s129
      %135 = dma.hbm_to_vmem [thread:$0]  %s11, 8192, %s130, [#allocation14], 256, 256, 16
    $region49: #{net_forward.1} parent=1 // pred_fallthru
      _
    // Predicated region
    $region50: #{net_forward.1} parent=1 // pred_check
      _
    $region51: #{net_forward.1} parent=1 // pred_check_branch
      %137 = sbr.rel (0) target = $region53
    $region52: #{net_forward.1} parent=1 // pred_region
      _
    $region53: #{net_forward.1} parent=1 // pred_fallthru
      _
    // Predicated region
    $region54: #{net_forward.1} parent=1 // pred_check
      _
    $region55: #{net_forward.1} parent=1 // pred_check_branch
      %139 = sbr.rel (0) target = $region57
    $region56: #{net_forward.1} parent=1 // pred_region
      _
    $region57: #{net_forward.1} parent=1 // pred_fallthru
      _
    // Predicated region
    $region58: #{net_forward.1} parent=1 // pred_check
      _
    $region59: #{net_forward.1} parent=1 // pred_check_branch
      %141 = sbr.rel (0) target = $region61
    $region60: #{net_forward.1} parent=1 // pred_region
      _
    $region61: #{net_forward.1} parent=1 // pred_fallthru
      _
    // Predicated region
    $region62: #{net_forward.1} parent=1 // pred_check
      _
    $region63: #{net_forward.1} parent=1 // pred_check_branch
      %143 = sbr.rel (0) target = $region65
    $region64: #{net_forward.1} parent=1 // pred_region
      _
    $region65: #{net_forward.1} parent=1 // pred_fallthru
      _
    // Predicated region
    $region66: #{net_forward.1} parent=1 // pred_check
      _
    $region67: #{net_forward.1} parent=1 // pred_check_branch
      %145 = sbr.rel (0) target = $region69
    $region68: #{net_forward.1} parent=1 // pred_region
      _
    $region69: #{net_forward.1} parent=1 // pred_fallthru
      _
    // Predicated region
    $region70: #{net_forward.1} parent=1 // pred_check
      _
    $region71: #{net_forward.1} parent=1 // pred_check_branch
      %147 = sbr.rel (0) target = $region73
    $region72: #{net_forward.1} parent=1 // pred_region
      _
    $region73: #{net_forward.1} parent=1 // pred_fallthru
      _
    // Predicated region
    $region74: #{net_forward.1} parent=1 // pred_check
      _
    $region75: #{net_forward.1} parent=1 // pred_check_branch
      %149 = sbr.rel (0) target = $region77
    $region76: #{net_forward.1} parent=1 // pred_region
      _
    $region77: #{net_forward.1} parent=1 // pred_fallthru
      _
    // Predicated region
    $region78: #{net_forward.1} parent=1 // pred_check
      _
    $region79: #{net_forward.1} parent=1 // pred_check_branch
      %151 = sbr.rel (0) target = $region81
    $region80: #{net_forward.1} parent=1 // pred_region
      %152 = dma.done [#allocation5], 32
    $region81: #{net_forward.1} parent=1 // pred_fallthru
      _
    // Predicated region
    $region82: #{net_forward.1} parent=1 // pred_check
      _
    $region83: #{net_forward.1} parent=1 // pred_check_branch
      %154 = sbr.rel (0) target = $region85
    $region84: #{net_forward.1} parent=1 // pred_region
      %155 = dma.done [#allocation4], 6144
    $region85: #{net_forward.1} parent=1 // pred_fallthru
      _
    // Predicated region
    $region86: #{net_forward.1} parent=1 // pred_check
      _
    $region87: #{net_forward.1} parent=1 // pred_check_branch
      %157 = sbr.rel (0) target = $region89
    $region88: #{net_forward.1} parent=1 // pred_region
      %158 = dma.done [#allocation8], 4096
    $region89: #{net_forward.1} parent=1 // pred_fallthru
      _
    // Predicated region
    $region90: #{net_forward.1} parent=1 // pred_check
      _
    $region91: #{net_forward.1} parent=1 // pred_check_branch
      %160 = sbr.rel (0) target = $region93
    $region92: #{net_forward.1} parent=1 // pred_region
      %161 = dma.done [#allocation8], 3520
    $region93: #{net_forward.1} parent=1 // pred_fallthru
      _
    // Predicated region
    $region94: #{net_forward.1} parent=1 // pred_check
      _
    $region95: #{net_forward.1} parent=1 // pred_check_branch
      %163 = sbr.rel (0) target = $region97
    $region96: #{net_forward.1} parent=1 // pred_region
      %164 = dma.done [#allocation11], 4096
    $region97: #{net_forward.1} parent=1 // pred_fallthru
      _
    // Predicated region
    $region98: #{net_forward.1} parent=1 // pred_check
      _
    $region99: #{net_forward.1} parent=1 // pred_check_branch
      %166 = sbr.rel (0) target = $region101
    $region100: #{net_forward.1} parent=1 // pred_region
      %167 = dma.done [#allocation11], 8192
    $region101: #{net_forward.1} parent=1 // pred_fallthru
      _
    // Predicated region
    $region102: #{net_forward.1} parent=1 // pred_check
      _
    $region103: #{net_forward.1} parent=1 // pred_check_branch
      %169 = sbr.rel (0) target = $region105
    $region104: #{net_forward.1} parent=1 // pred_region
      %170 = dma.done [#allocation14], 8192
    $region105: #{net_forward.1} parent=1 // pred_fallthru
      _
    // Predicated region
    $region106: #{net_forward.1} parent=1 // pred_check
      _
    $region107: #{net_forward.1} parent=1 // pred_check_branch
      %172 = sbr.rel (0) target = $region109
    $region108: #{net_forward.1} parent=1 // pred_region
      %173 = dma.done [#allocation14], 8192
    $region109: #{net_forward.1} parent=1 // pred_fallthru
      _
    %174 = sfence
    %v176 = vld [vmem:[%s1] sm:$0xff]
    %v177 = vld [vmem:[%s1 + $0x8] sm:$0xf]
    %v180 = vcombine.high %v176, %v176
    %v182 = vunpack.c.l.s4 1983009808
    %v183 = vunpack.c.0.s8 %v182
    %v184 = vlaneseq
    %v185 = vshrl.u32 %v184, 7
    %v186 = vsub.s32 %v183, %v185
    %v187 = vrot.slane %v176, %v186
    %v189 = vunpack.c.l.s4 1983009808
    %v190 = vunpack.c.0.s8 %v189
    %v191 = vlaneseq
    %v192 = vshrl.u32 %v191, 7
    %v193 = vsub.s32 %v190, %v192
    %v194 = vrot.slane %v180, %v193
    %v195 = vcombine.high %v187, %v187
    %v196 = vcombine.high %v194, %v194
    %v198 = vunpack.c.l.s4 1983009808
    %v199 = vunpack.c.0.s8 %v198
    %v200 = vlaneseq
    %v201 = vshrl.u32 %v200, 7
    %v202 = vsub.s32 %v199, %v201
    %v203 = vrot.slane %v177, %v202
    %v204 = vcombine.high %v203, %v203
    %v211 = vpack.c.bf16 %v187, %v187
    %v212 = vpack.c.bf16 %v195, %v195
    %v213 = vpack.c.bf16 %v194, %v194
    %v214 = vpack.c.bf16 %v196, %v196
    %v215 = vpack.c.bf16 %v203, %v203
    %v216 = vpack.c.bf16 %v204, %v204
    %v217 = vld [vmem:[#allocation6] sm:$0xf]
    %v218 = vld [vmem:[#allocation6 + $0x4] sm:$0xf]
    %v219 = vld [vmem:[#allocation6 + $0x8] sm:$0xf]
    %v220 = vld [vmem:[#allocation6 + $0xc] sm:$0xf]
    %v221 = vld [vmem:[#allocation6 + $0x10] sm:$0xf]
    %v222 = vld [vmem:[#allocation6 + $0x14] sm:$0xf]
    %v223 = vld [vmem:[#allocation6 + $0x18] sm:$0xf]
    %v224 = vld [vmem:[#allocation6 + $0x1c] sm:$0xf]
    %v225 = vld [vmem:[#allocation6 + $0x20] sm:$0xf]
    %v226 = vld [vmem:[#allocation6 + $0x24] sm:$0xf]
    %v227 = vld [vmem:[#allocation6 + $0x28] sm:$0xf]
    %v228 = vld [vmem:[#allocation6 + $0x2c] sm:$0xf]
    %v229 = vld [vmem:[#allocation6 + $0x30] sm:$0xf]
    %v230 = vld [vmem:[#allocation6 + $0x34] sm:$0xf]
    %v231 = vld [vmem:[#allocation6 + $0x38] sm:$0xf]
    %v232 = vld [vmem:[#allocation6 + $0x3c] sm:$0xf]
    %v233 = vld [vmem:[#allocation6 + $0x40] sm:$0xf]
    %v234 = vld [vmem:[#allocation6 + $0x44] sm:$0xf]
    %v235 = vld [vmem:[#allocation6 + $0x48] sm:$0xf]
    %v236 = vld [vmem:[#allocation6 + $0x4c] sm:$0xf]
    %v237 = vld [vmem:[#allocation6 + $0x50] sm:$0xf]
    %v238 = vld [vmem:[#allocation6 + $0x54] sm:$0xf]
    %v239 = vld [vmem:[#allocation6 + $0x58] sm:$0xf]
    %v240 = vld [vmem:[#allocation6 + $0x5c] sm:$0xf]
    %v241 = vld [vmem:[#allocation6 + $0x60] sm:$0xf]
    %v242 = vld [vmem:[#allocation6 + $0x64] sm:$0xf]
    %v243 = vld [vmem:[#allocation6 + $0x68] sm:$0xf]
    %v244 = vld [vmem:[#allocation6 + $0x6c] sm:$0xf]
    %v245 = vld [vmem:[#allocation6 + $0x70] sm:$0xf]
    %v246 = vld [vmem:[#allocation6 + $0x74] sm:$0xf]
    %v247 = vld [vmem:[#allocation6 + $0x78] sm:$0xf]
    %v248 = vld [vmem:[#allocation6 + $0x7c] sm:$0xf]
    %v249 = vld [vmem:[#allocation6 + $0x80] sm:$0xf]
    %v250 = vld [vmem:[#allocation6 + $0x84] sm:$0xf]
    %v251 = vld [vmem:[#allocation6 + $0x88] sm:$0xf]
    %v252 = vld [vmem:[#allocation6 + $0x8c] sm:$0xf]
    %v253 = vld [vmem:[#allocation6 + $0x90] sm:$0xf]
    %v254 = vld [vmem:[#allocation6 + $0x94] sm:$0xf]
    %v255 = vld [vmem:[#allocation6 + $0x98] sm:$0xf]
    %v256 = vld [vmem:[#allocation6 + $0x9c] sm:$0xf]
    %v257 = vld [vmem:[#allocation6 + $0xa0] sm:$0xf]
    %v258 = vld [vmem:[#allocation6 + $0xa4] sm:$0xf]
    %v259 = vld [vmem:[#allocation6 + $0xa8] sm:$0xf]
    %v260 = vld [vmem:[#allocation6 + $0xac] sm:$0xf]
    %v261 = vld [vmem:[#allocation6 + $0xb0] sm:$0xf]
    %v262 = vld [vmem:[#allocation6 + $0xb4] sm:$0xf]
    %v263 = vld [vmem:[#allocation6 + $0xb8] sm:$0xf]
    %v264 = vld [vmem:[#allocation6 + $0xbc] sm:$0xf]
    %v265 = vld [vmem:[#allocation6 + $0xc0] sm:$0xf]
    %v266 = vld [vmem:[#allocation6 + $0xc4] sm:$0xf]
    %v267 = vld [vmem:[#allocation6 + $0xc8] sm:$0xf]
    %v268 = vld [vmem:[#allocation6 + $0xcc] sm:$0xf]
    %v269 = vld [vmem:[#allocation6 + $0xd0] sm:$0xf]
    %v270 = vld [vmem:[#allocation6 + $0xd4] sm:$0xf]
    %v271 = vld [vmem:[#allocation6 + $0xd8] sm:$0xf]
    %v272 = vld [vmem:[#allocation6 + $0xdc] sm:$0xf]
    %v273 = vld [vmem:[#allocation6 + $0xe0] sm:$0xf]
    %v274 = vld [vmem:[#allocation6 + $0xe4] sm:$0xf]
    %v275 = vld [vmem:[#allocation6 + $0xe8] sm:$0xf]
    %v276 = vld [vmem:[#allocation6 + $0xec] sm:$0xf]
    %v277 = vld [vmem:[#allocation6 + $0xf0] sm:$0xf]
    %v278 = vld [vmem:[#allocation6 + $0xf4] sm:$0xf]
    %v279 = vld [vmem:[#allocation6 + $0xf8] sm:$0xf]
    %v280 = vld [vmem:[#allocation6 + $0xfc] sm:$0xf]
    %v281 = vld [vmem:[#allocation6 + $0x100] sm:$0xf]
    %v282 = vld [vmem:[#allocation6 + $0x104] sm:$0xf]
    %v283 = vld [vmem:[#allocation6 + $0x108] sm:$0xf]
    %v284 = vld [vmem:[#allocation6 + $0x10c] sm:$0xf]
    %v285 = vld [vmem:[#allocation6 + $0x110] sm:$0xf]
    %v286 = vld [vmem:[#allocation6 + $0x114] sm:$0xf]
    %v287 = vld [vmem:[#allocation6 + $0x118] sm:$0xf]
    %v288 = vld [vmem:[#allocation6 + $0x11c] sm:$0xf]
    %v289 = vld [vmem:[#allocation6 + $0x120] sm:$0xf]
    %v290 = vld [vmem:[#allocation6 + $0x124] sm:$0xf]
    %v291 = vld [vmem:[#allocation6 + $0x128] sm:$0xf]
    %v292 = vld [vmem:[#allocation6 + $0x12c] sm:$0xf]
    %v293 = vld [vmem:[#allocation6 + $0x130] sm:$0xf]
    %v294 = vld [vmem:[#allocation6 + $0x134] sm:$0xf]
    %v295 = vld [vmem:[#allocation6 + $0x138] sm:$0xf]
    %v296 = vld [vmem:[#allocation6 + $0x13c] sm:$0xf]
    %v297 = vld [vmem:[#allocation6 + $0x140] sm:$0xf]
    %v298 = vld [vmem:[#allocation6 + $0x144] sm:$0xf]
    %v299 = vld [vmem:[#allocation6 + $0x148] sm:$0xf]
    %v300 = vld [vmem:[#allocation6 + $0x14c] sm:$0xf]
    %v301 = vld [vmem:[#allocation6 + $0x150] sm:$0xf]
    %v302 = vld [vmem:[#allocation6 + $0x154] sm:$0xf]
    %v303 = vld [vmem:[#allocation6 + $0x158] sm:$0xf]
    %v304 = vld [vmem:[#allocation6 + $0x15c] sm:$0xf]
    %v305 = vld [vmem:[#allocation6 + $0x160] sm:$0xf]
    %v306 = vld [vmem:[#allocation6 + $0x164] sm:$0xf]
    %v307 = vld [vmem:[#allocation6 + $0x168] sm:$0xf]
    %v308 = vld [vmem:[#allocation6 + $0x16c] sm:$0xf]
    %v309 = vld [vmem:[#allocation6 + $0x170] sm:$0xf]
    %v310 = vld [vmem:[#allocation6 + $0x174] sm:$0xf]
    %v311 = vld [vmem:[#allocation6 + $0x178] sm:$0xf]
    %v312 = vld [vmem:[#allocation6 + $0x17c] sm:$0xf]
    %v313 = vld [vmem:[%s3] sm:$0x1]
    %v315 = vlaneseq
    %v316 = vshrl.u32 %v315, 7
    %v317 = vsub.s32 0, %v316
    %v318 = vrot.slane %v313, %v317
    %v416 = vunpack.c.l.b16 %v217
    %v417 = vunpack.c.l.b16 %v218
    %v418 = vunpack.c.l.b16 %v219
    %v419 = vunpack.c.l.b16 %v220
    %v420 = vunpack.c.l.b16 %v221
    %v421 = vunpack.c.l.b16 %v222
    %v422 = vunpack.c.l.b16 %v223
    %v423 = vunpack.c.l.b16 %v224
    %v424 = vunpack.c.l.b16 %v225
    %v425 = vunpack.c.l.b16 %v226
    %v426 = vunpack.c.l.b16 %v227
    %v427 = vunpack.c.l.b16 %v228
    %v428 = vunpack.c.l.b16 %v229
    %v429 = vunpack.c.l.b16 %v230
    %v430 = vunpack.c.l.b16 %v231
    %v431 = vunpack.c.l.b16 %v232
    %v432 = vunpack.c.l.b16 %v233
    %v433 = vunpack.c.l.b16 %v234
    %v434 = vunpack.c.l.b16 %v235
    %v435 = vunpack.c.l.b16 %v236
    %v436 = vunpack.c.l.b16 %v237
    %v437 = vunpack.c.l.b16 %v238
    %v438 = vunpack.c.l.b16 %v239
    %v439 = vunpack.c.l.b16 %v240
    %v440 = vunpack.c.l.b16 %v241
    %v441 = vunpack.c.l.b16 %v242
    %v442 = vunpack.c.l.b16 %v243
    %v443 = vunpack.c.l.b16 %v244
    %v444 = vunpack.c.l.b16 %v245
    %v445 = vunpack.c.l.b16 %v246
    %v446 = vunpack.c.l.b16 %v247
    %v447 = vunpack.c.l.b16 %v248
    %v448 = vunpack.c.l.b16 %v249
    %v449 = vunpack.c.l.b16 %v250
    %v450 = vunpack.c.l.b16 %v251
    %v451 = vunpack.c.l.b16 %v252
    %v452 = vunpack.c.l.b16 %v253
    %v453 = vunpack.c.l.b16 %v254
    %v454 = vunpack.c.l.b16 %v255
    %v455 = vunpack.c.l.b16 %v256
    %v456 = vunpack.c.l.b16 %v257
    %v457 = vunpack.c.l.b16 %v258
    %v458 = vunpack.c.l.b16 %v259
    %v459 = vunpack.c.l.b16 %v260
    %v460 = vunpack.c.l.b16 %v261
    %v461 = vunpack.c.l.b16 %v262
    %v462 = vunpack.c.l.b16 %v263
    %v463 = vunpack.c.l.b16 %v264
    %v464 = vunpack.c.l.b16 %v265
    %v465 = vunpack.c.l.b16 %v266
    %v466 = vunpack.c.l.b16 %v267
    %v467 = vunpack.c.l.b16 %v268
    %v468 = vunpack.c.l.b16 %v269
    %v469 = vunpack.c.l.b16 %v270
    %v470 = vunpack.c.l.b16 %v271
    %v471 = vunpack.c.l.b16 %v272
    %v472 = vunpack.c.l.b16 %v273
    %v473 = vunpack.c.l.b16 %v274
    %v474 = vunpack.c.l.b16 %v275
    %v475 = vunpack.c.l.b16 %v276
    %v476 = vunpack.c.l.b16 %v277
    %v477 = vunpack.c.l.b16 %v278
    %v478 = vunpack.c.l.b16 %v279
    %v479 = vunpack.c.l.b16 %v280
    %v480 = vunpack.c.l.b16 %v281
    %v481 = vunpack.c.l.b16 %v282
    %v482 = vunpack.c.l.b16 %v283
    %v483 = vunpack.c.l.b16 %v284
    %v484 = vunpack.c.l.b16 %v285
    %v485 = vunpack.c.l.b16 %v286
    %v486 = vunpack.c.l.b16 %v287
    %v487 = vunpack.c.l.b16 %v288
    %v488 = vunpack.c.l.b16 %v289
    %v489 = vunpack.c.l.b16 %v290
    %v490 = vunpack.c.l.b16 %v291
    %v491 = vunpack.c.l.b16 %v292
    %v492 = vunpack.c.l.b16 %v293
    %v493 = vunpack.c.l.b16 %v294
    %v494 = vunpack.c.l.b16 %v295
    %v495 = vunpack.c.l.b16 %v296
    %v496 = vunpack.c.l.b16 %v297
    %v497 = vunpack.c.l.b16 %v298
    %v498 = vunpack.c.l.b16 %v299
    %v499 = vunpack.c.l.b16 %v300
    %v500 = vunpack.c.l.b16 %v301
    %v501 = vunpack.c.l.b16 %v302
    %v502 = vunpack.c.l.b16 %v303
    %v503 = vunpack.c.l.b16 %v304
    %v504 = vunpack.c.l.b16 %v305
    %v505 = vunpack.c.l.b16 %v306
    %v506 = vunpack.c.l.b16 %v307
    %v507 = vunpack.c.l.b16 %v308
    %v508 = vunpack.c.l.b16 %v309
    %v509 = vunpack.c.l.b16 %v310
    %v510 = vunpack.c.l.b16 %v311
    %v511 = vunpack.c.l.b16 %v312
    %v512 = vpack.c.b16 %v417, %v416
    %v513 = vpack.c.b16 %v419, %v418
    %v514 = vpack.c.b16 %v421, %v420
    %v515 = vpack.c.b16 %v423, %v422
    %v516 = vpack.c.b16 %v425, %v424
    %v517 = vpack.c.b16 %v427, %v426
    %v518 = vpack.c.b16 %v429, %v428
    %v519 = vpack.c.b16 %v431, %v430
    %v520 = vpack.c.b16 %v433, %v432
    %v521 = vpack.c.b16 %v435, %v434
    %v522 = vpack.c.b16 %v437, %v436
    %v523 = vpack.c.b16 %v439, %v438
    %v524 = vpack.c.b16 %v441, %v440
    %v525 = vpack.c.b16 %v443, %v442
    %v526 = vpack.c.b16 %v445, %v444
    %v527 = vpack.c.b16 %v447, %v446
    %v528 = vpack.c.b16 %v449, %v448
    %v529 = vpack.c.b16 %v451, %v450
    %v530 = vpack.c.b16 %v453, %v452
    %v531 = vpack.c.b16 %v455, %v454
    %v532 = vpack.c.b16 %v457, %v456
    %v533 = vpack.c.b16 %v459, %v458
    %v534 = vpack.c.b16 %v461, %v460
    %v535 = vpack.c.b16 %v463, %v462
    %v536 = vpack.c.b16 %v465, %v464
    %v537 = vpack.c.b16 %v467, %v466
    %v538 = vpack.c.b16 %v469, %v468
    %v539 = vpack.c.b16 %v471, %v470
    %v540 = vpack.c.b16 %v473, %v472
    %v541 = vpack.c.b16 %v475, %v474
    %v542 = vpack.c.b16 %v477, %v476
    %v543 = vpack.c.b16 %v479, %v478
    %v544 = vpack.c.b16 %v481, %v480
    %v545 = vpack.c.b16 %v483, %v482
    %v546 = vpack.c.b16 %v485, %v484
    %v547 = vpack.c.b16 %v487, %v486
    %v548 = vpack.c.b16 %v489, %v488
    %v549 = vpack.c.b16 %v491, %v490
    %v550 = vpack.c.b16 %v493, %v492
    %v551 = vpack.c.b16 %v495, %v494
    %v552 = vpack.c.b16 %v497, %v496
    %v553 = vpack.c.b16 %v499, %v498
    %v554 = vpack.c.b16 %v501, %v500
    %v555 = vpack.c.b16 %v503, %v502
    %v556 = vpack.c.b16 %v505, %v504
    %v557 = vpack.c.b16 %v507, %v506
    %v558 = vpack.c.b16 %v509, %v508
    %v559 = vpack.c.b16 %v511, %v510
    %608 = vmatprep.subr.bf16.mxu0 0
    %609 = vmatpush1.bf16.msra.mxu0 %v519
    %610 = vmatprep.subr.bf16.mxu0 0
    %611 = vmatpush1.bf16.msra.mxu0 %v518
    %612 = vmatprep.subr.bf16.mxu0 0
    %613 = vmatpush1.bf16.msra.mxu0 %v517
    %614 = vmatprep.subr.bf16.mxu0 0
    %615 = vmatpush1.bf16.msra.mxu0 %v516
    %616 = vmatprep.subr.bf16.mxu0 0
    %617 = vmatpush1.bf16.msra.mxu0 %v515
    %618 = vmatprep.subr.bf16.mxu0 0
    %619 = vmatpush1.bf16.msra.mxu0 %v514
    %620 = vmatprep.subr.bf16.mxu0 0
    %621 = vmatpush1.bf16.msra.mxu0 %v513
    %622 = vmatprep.subr.bf16.mxu0 0
    %623 = vmatpush1.bf16.msra.mxu0 %v512
    %624 = vmatprep.subr.bf16.mxu0 0
    %625 = vmatpush2.bf16.msra.mxu0 %v527
    %626 = vmatprep.subr.bf16.mxu0 0
    %627 = vmatpush2.bf16.msra.mxu0 %v526
    %628 = vmatprep.subr.bf16.mxu0 0
    %629 = vmatpush2.bf16.msra.mxu0 %v525
    %630 = vmatprep.subr.bf16.mxu0 0
    %631 = vmatpush2.bf16.msra.mxu0 %v524
    %632 = vmatprep.subr.bf16.mxu0 0
    %633 = vmatpush2.bf16.msra.mxu0 %v523
    %634 = vmatprep.subr.bf16.mxu0 0
    %635 = vmatpush2.bf16.msra.mxu0 %v522
    %636 = vmatprep.subr.bf16.mxu0 0
    %637 = vmatpush2.bf16.msra.mxu0 %v521
    %638 = vmatprep.subr.bf16.mxu0 0
    %639 = vmatpush2.bf16.msra.mxu0 %v520
    %640 = vmatprep.mubr.bf16.mxu0 %v212
    %641 = vmatmul.mubr.bf16.gmra.mxu0 %v211
    %v642 = vpop.f32.mrf.mxu0
    %v643 = vadd.f32 %v318, %v642
    %v644 = vpop.f32.mrf.mxu0
    %v645 = vpop.f32.mrf.mxu0
    %v646 = vpop.f32.mrf.mxu0
    %647 = vdwg.mxu0
    %648 = vmatprep.subr.bf16.mxu0 0
    %649 = vmatpush1.bf16.msra.mxu0 %v535
    %650 = vmatprep.subr.bf16.mxu0 0
    %651 = vmatpush1.bf16.msra.mxu0 %v534
    %652 = vmatprep.subr.bf16.mxu0 0
    %653 = vmatpush1.bf16.msra.mxu0 %v533
    %654 = vmatprep.subr.bf16.mxu0 0
    %655 = vmatpush1.bf16.msra.mxu0 %v532
    %656 = vmatprep.subr.bf16.mxu0 0
    %657 = vmatpush1.bf16.msra.mxu0 %v531
    %658 = vmatprep.subr.bf16.mxu0 0
    %659 = vmatpush1.bf16.msra.mxu0 %v530
    %660 = vmatprep.subr.bf16.mxu0 0
    %661 = vmatpush1.bf16.msra.mxu0 %v529
    %662 = vmatprep.subr.bf16.mxu0 0
    %663 = vmatpush1.bf16.msra.mxu0 %v528
    %664 = vmatprep.subr.bf16.mxu0 0
    %665 = vmatpush2.bf16.msra.mxu0 %v543
    %666 = vmatprep.subr.bf16.mxu0 0
    %667 = vmatpush2.bf16.msra.mxu0 %v542
    %668 = vmatprep.subr.bf16.mxu0 0
    %669 = vmatpush2.bf16.msra.mxu0 %v541
    %670 = vmatprep.subr.bf16.mxu0 0
    %671 = vmatpush2.bf16.msra.mxu0 %v540
    %672 = vmatprep.subr.bf16.mxu0 0
    %673 = vmatpush2.bf16.msra.mxu0 %v539
    %674 = vmatprep.subr.bf16.mxu0 0
    %675 = vmatpush2.bf16.msra.mxu0 %v538
    %676 = vmatprep.subr.bf16.mxu0 0
    %677 = vmatpush2.bf16.msra.mxu0 %v537
    %678 = vmatprep.subr.bf16.mxu0 0
    %679 = vmatpush2.bf16.msra.mxu0 %v536
    %680 = vmatprep.mubr.bf16.mxu0 %v214
    %681 = vmatmul.mubr.bf16.gmra.mxu0 %v213
    %v682 = vpop.f32.mrf.mxu0
    %v683 = vadd.f32 %v643, %v682
    %v684 = vpop.f32.mrf.mxu0
    %v685 = vpop.f32.mrf.mxu0
    %v686 = vpop.f32.mrf.mxu0
    %687 = vdwg.mxu0
    %688 = vmatprep.subr.bf16.mxu0 0
    %689 = vmatpush1.bf16.msra.mxu0 %v551
    %690 = vmatprep.subr.bf16.mxu0 0
    %691 = vmatpush1.bf16.msra.mxu0 %v550
    %692 = vmatprep.subr.bf16.mxu0 0
    %693 = vmatpush1.bf16.msra.mxu0 %v549
    %694 = vmatprep.subr.bf16.mxu0 0
    %695 = vmatpush1.bf16.msra.mxu0 %v548
    %696 = vmatprep.subr.bf16.mxu0 0
    %697 = vmatpush1.bf16.msra.mxu0 %v547
    %698 = vmatprep.subr.bf16.mxu0 0
    %699 = vmatpush1.bf16.msra.mxu0 %v546
    %700 = vmatprep.subr.bf16.mxu0 0
    %701 = vmatpush1.bf16.msra.mxu0 %v545
    %702 = vmatprep.subr.bf16.mxu0 0
    %703 = vmatpush1.bf16.msra.mxu0 %v544
    %704 = vmatprep.subr.bf16.mxu0 0
    %705 = vmatpush2.bf16.msra.mxu0 %v559
    %706 = vmatprep.subr.bf16.mxu0 0
    %707 = vmatpush2.bf16.msra.mxu0 %v558
    %708 = vmatprep.subr.bf16.mxu0 0
    %709 = vmatpush2.bf16.msra.mxu0 %v557
    %710 = vmatprep.subr.bf16.mxu0 0
    %711 = vmatpush2.bf16.msra.mxu0 %v556
    %712 = vmatprep.subr.bf16.mxu0 0
    %713 = vmatpush2.bf16.msra.mxu0 %v555
    %714 = vmatprep.subr.bf16.mxu0 0
    %715 = vmatpush2.bf16.msra.mxu0 %v554
    %716 = vmatprep.subr.bf16.mxu0 0
    %717 = vmatpush2.bf16.msra.mxu0 %v553
    %718 = vmatprep.subr.bf16.mxu0 0
    %719 = vmatpush2.bf16.msra.mxu0 %v552
    %720 = vmatprep.mubr.bf16.mxu0 %v216
    %721 = vmatmul.mubr.bf16.gmra.mxu0 %v215
    %v722 = vpop.f32.mrf.mxu0
    %v723 = vadd.f32 %v683, %v722
    %v724 = vpop.f32.mrf.mxu0
    %v725 = vpop.f32.mrf.mxu0
    %v726 = vpop.f32.mrf.mxu0
    %727 = vdwg.mxu0
    %v728 = vmax.f32 %v723, 0.0
    %v729 = vpack.c.bf16 %v728, %v728
    %v730 = vld [vmem:[#allocation7] sm:$0xff]
    %v731 = vld [vmem:[#allocation7 + $0x8] sm:$0xff]
    %v732 = vld [vmem:[#allocation7 + $0x10] sm:$0xff]
    %v733 = vld [vmem:[#allocation7 + $0x18] sm:$0xff]
    %v734 = vld [vmem:[#allocation7 + $0x20] sm:$0xff]
    %v735 = vld [vmem:[#allocation7 + $0x28] sm:$0xff]
    %v736 = vld [vmem:[#allocation7 + $0x30] sm:$0xff]
    %v737 = vld [vmem:[#allocation7 + $0x38] sm:$0xff]
    %v738 = vld [vmem:[#allocation7 + $0x40] sm:$0xff]
    %v739 = vld [vmem:[#allocation7 + $0x48] sm:$0xff]
    %v740 = vld [vmem:[#allocation7 + $0x50] sm:$0xff]
    %v741 = vld [vmem:[#allocation7 + $0x58] sm:$0xff]
    %v742 = vld [vmem:[#allocation7 + $0x60] sm:$0xff]
    %v743 = vld [vmem:[#allocation7 + $0x68] sm:$0xff]
    %v744 = vld [vmem:[#allocation7 + $0x70] sm:$0xff]
    %v745 = vld [vmem:[#allocation7 + $0x78] sm:$0xff]
    %v746 = vld [vmem:[#allocation7 + $0x80] sm:$0xff]
    %v747 = vld [vmem:[#allocation7 + $0x88] sm:$0xff]
    %v748 = vld [vmem:[#allocation7 + $0x90] sm:$0xff]
    %v749 = vld [vmem:[#allocation7 + $0x98] sm:$0xff]
    %v750 = vld [vmem:[#allocation7 + $0xa0] sm:$0xff]
    %v751 = vld [vmem:[#allocation7 + $0xa8] sm:$0xff]
    %v752 = vld [vmem:[#allocation7 + $0xb0] sm:$0xff]
    %v753 = vld [vmem:[#allocation7 + $0xb8] sm:$0xff]
    %v754 = vld [vmem:[#allocation7 + $0xc0] sm:$0xff]
    %v755 = vld [vmem:[#allocation7 + $0xc8] sm:$0xff]
    %v756 = vld [vmem:[#allocation7 + $0xd0] sm:$0xff]
    %v757 = vld [vmem:[#allocation7 + $0xd8] sm:$0xff]
    %v758 = vld [vmem:[#allocation7 + $0xe0] sm:$0xff]
    %v759 = vld [vmem:[#allocation7 + $0xe8] sm:$0xff]
    %v760 = vld [vmem:[#allocation7 + $0xf0] sm:$0xff]
    %v761 = vld [vmem:[#allocation7 + $0xf8] sm:$0xff]
    %v762 = vld [vmem:[%s5] sm:$0xf]
    %v764 = vlaneseq
    %v765 = vshrl.u32 %v764, 7
    %v766 = vsub.s32 0, %v765
    %v767 = vrot.slane %v762, %v766
    %v768 = vlaneseq
    %v769 = vshrl.u32 %v768, 7
    %v770 = vsub.s32 1, %v769
    %v771 = vrot.slane %v762, %v770
    %v772 = vlaneseq
    %v773 = vshrl.u32 %v772, 7
    %v774 = vsub.s32 2, %v773
    %v775 = vrot.slane %v762, %v774
    %v776 = vlaneseq
    %v777 = vshrl.u32 %v776, 7
    %v778 = vsub.s32 3, %v777
    %v779 = vrot.slane %v762, %v778
    %v816 = vunpack.c.l.b16 %v730
    %v817 = vunpack.c.h.b16 %v730
    %v818 = vunpack.c.l.b16 %v731
    %v819 = vunpack.c.h.b16 %v731
    %v820 = vunpack.c.l.b16 %v732
    %v821 = vunpack.c.h.b16 %v732
    %v822 = vunpack.c.l.b16 %v733
    %v823 = vunpack.c.h.b16 %v733
    %v824 = vunpack.c.l.b16 %v734
    %v825 = vunpack.c.h.b16 %v734
    %v826 = vunpack.c.l.b16 %v735
    %v827 = vunpack.c.h.b16 %v735
    %v828 = vunpack.c.l.b16 %v736
    %v829 = vunpack.c.h.b16 %v736
    %v830 = vunpack.c.l.b16 %v737
    %v831 = vunpack.c.h.b16 %v737
    %v832 = vunpack.c.l.b16 %v738
    %v833 = vunpack.c.h.b16 %v738
    %v834 = vunpack.c.l.b16 %v739
    %v835 = vunpack.c.h.b16 %v739
    %v836 = vunpack.c.l.b16 %v740
    %v837 = vunpack.c.h.b16 %v740
    %v838 = vunpack.c.l.b16 %v741
    %v839 = vunpack.c.h.b16 %v741
    %v840 = vunpack.c.l.b16 %v742
    %v841 = vunpack.c.h.b16 %v742
    %v842 = vunpack.c.l.b16 %v743
    %v843 = vunpack.c.h.b16 %v743
    %v844 = vunpack.c.l.b16 %v744
    %v845 = vunpack.c.h.b16 %v744
    %v846 = vunpack.c.l.b16 %v745
    %v847 = vunpack.c.h.b16 %v745
    %v848 = vunpack.c.l.b16 %v746
    %v849 = vunpack.c.h.b16 %v746
    %v850 = vunpack.c.l.b16 %v747
    %v851 = vunpack.c.h.b16 %v747
    %v852 = vunpack.c.l.b16 %v748
    %v853 = vunpack.c.h.b16 %v748
    %v854 = vunpack.c.l.b16 %v749
    %v855 = vunpack.c.h.b16 %v749
    %v856 = vunpack.c.l.b16 %v750
    %v857 = vunpack.c.h.b16 %v750
    %v858 = vunpack.c.l.b16 %v751
    %v859 = vunpack.c.h.b16 %v751
    %v860 = vunpack.c.l.b16 %v752
    %v861 = vunpack.c.h.b16 %v752
    %v862 = vunpack.c.l.b16 %v753
    %v863 = vunpack.c.h.b16 %v753
    %v864 = vunpack.c.l.b16 %v754
    %v865 = vunpack.c.h.b16 %v754
    %v866 = vunpack.c.l.b16 %v755
    %v867 = vunpack.c.h.b16 %v755
    %v868 = vunpack.c.l.b16 %v756
    %v869 = vunpack.c.h.b16 %v756
    %v870 = vunpack.c.l.b16 %v757
    %v871 = vunpack.c.h.b16 %v757
    %v872 = vunpack.c.l.b16 %v758
    %v873 = vunpack.c.h.b16 %v758
    %v874 = vunpack.c.l.b16 %v759
    %v875 = vunpack.c.h.b16 %v759
    %v876 = vunpack.c.l.b16 %v760
    %v877 = vunpack.c.h.b16 %v760
    %v878 = vunpack.c.l.b16 %v761
    %v879 = vunpack.c.h.b16 %v761
    %v880 = vpack.c.b16 %v820, %v816
    %v881 = vpack.c.b16 %v821, %v817
    %v882 = vpack.c.b16 %v822, %v818
    %v883 = vpack.c.b16 %v823, %v819
    %v884 = vpack.c.b16 %v828, %v824
    %v885 = vpack.c.b16 %v829, %v825
    %v886 = vpack.c.b16 %v830, %v826
    %v887 = vpack.c.b16 %v831, %v827
    %v888 = vpack.c.b16 %v836, %v832
    %v889 = vpack.c.b16 %v837, %v833
    %v890 = vpack.c.b16 %v838, %v834
    %v891 = vpack.c.b16 %v839, %v835
    %v892 = vpack.c.b16 %v844, %v840
    %v893 = vpack.c.b16 %v845, %v841
    %v894 = vpack.c.b16 %v846, %v842
    %v895 = vpack.c.b16 %v847, %v843
    %v896 = vpack.c.b16 %v852, %v848
    %v897 = vpack.c.b16 %v853, %v849
    %v898 = vpack.c.b16 %v854, %v850
    %v899 = vpack.c.b16 %v855, %v851
    %v900 = vpack.c.b16 %v860, %v856
    %v901 = vpack.c.b16 %v861, %v857
    %v902 = vpack.c.b16 %v862, %v858
    %v903 = vpack.c.b16 %v863, %v859
    %v904 = vpack.c.b16 %v868, %v864
    %v905 = vpack.c.b16 %v869, %v865
    %v906 = vpack.c.b16 %v870, %v866
    %v907 = vpack.c.b16 %v871, %v867
    %v908 = vpack.c.b16 %v876, %v872
    %v909 = vpack.c.b16 %v877, %v873
    %v910 = vpack.c.b16 %v878, %v874
    %v911 = vpack.c.b16 %v879, %v875
    %944 = vmatprep.subr.bf16.mxu0 %v909
    %945 = vmatpush1.bf16.msra.mxu0 %v908
    %946 = vmatprep.subr.bf16.mxu0 %v905
    %947 = vmatpush1.bf16.msra.mxu0 %v904
    %948 = vmatprep.subr.bf16.mxu0 %v901
    %949 = vmatpush1.bf16.msra.mxu0 %v900
    %950 = vmatprep.subr.bf16.mxu0 %v897
    %951 = vmatpush1.bf16.msra.mxu0 %v896
    %952 = vmatprep.subr.bf16.mxu0 %v893
    %953 = vmatpush1.bf16.msra.mxu0 %v892
    %954 = vmatprep.subr.bf16.mxu0 %v889
    %955 = vmatpush1.bf16.msra.mxu0 %v888
    %956 = vmatprep.subr.bf16.mxu0 %v885
    %957 = vmatpush1.bf16.msra.mxu0 %v884
    %958 = vmatprep.subr.bf16.mxu0 %v881
    %959 = vmatpush1.bf16.msra.mxu0 %v880
    %960 = vmatprep.subr.bf16.mxu0 0
    %961 = vmatpush2.bf16.msra.mxu0 0
    %962 = vmatprep.subr.bf16.mxu0 0
    %963 = vmatpush2.bf16.msra.mxu0 0
    %964 = vmatprep.subr.bf16.mxu0 0
    %965 = vmatpush2.bf16.msra.mxu0 0
    %966 = vmatprep.subr.bf16.mxu0 0
    %967 = vmatpush2.bf16.msra.mxu0 0
    %968 = vmatprep.subr.bf16.mxu0 0
    %969 = vmatpush2.bf16.msra.mxu0 0
    %970 = vmatprep.subr.bf16.mxu0 0
    %971 = vmatpush2.bf16.msra.mxu0 0
    %972 = vmatprep.subr.bf16.mxu0 0
    %973 = vmatpush2.bf16.msra.mxu0 0
    %974 = vmatprep.subr.bf16.mxu0 0
    %975 = vmatpush2.bf16.msra.mxu0 0
    %976 = vmatprep.mubr.bf16.mxu0 0
    %977 = vmatmul.mubr.bf16.gmra.mxu0 %v729
    %v978 = vpop.f32.mrf.mxu0
    %v979 = vadd.f32 %v767, %v978
    %v980 = vpop.f32.mrf.mxu0
    %v981 = vadd.f32 %v771, %v980
    %v982 = vpop.f32.mrf.mxu0
    %v983 = vpop.f32.mrf.mxu0
    %984 = vdwg.mxu0
    %985 = vmatprep.subr.bf16.mxu0 %v911
    %986 = vmatpush1.bf16.msra.mxu0 %v910
    %987 = vmatprep.subr.bf16.mxu0 %v907
    %988 = vmatpush1.bf16.msra.mxu0 %v906
    %989 = vmatprep.subr.bf16.mxu0 %v903
    %990 = vmatpush1.bf16.msra.mxu0 %v902
    %991 = vmatprep.subr.bf16.mxu0 %v899
    %992 = vmatpush1.bf16.msra.mxu0 %v898
    %993 = vmatprep.subr.bf16.mxu0 %v895
    %994 = vmatpush1.bf16.msra.mxu0 %v894
    %995 = vmatprep.subr.bf16.mxu0 %v891
    %996 = vmatpush1.bf16.msra.mxu0 %v890
    %997 = vmatprep.subr.bf16.mxu0 %v887
    %998 = vmatpush1.bf16.msra.mxu0 %v886
    %999 = vmatprep.subr.bf16.mxu0 %v883
    %1000 = vmatpush1.bf16.msra.mxu0 %v882
    %1001 = vmatprep.subr.bf16.mxu0 0
    %1002 = vmatpush2.bf16.msra.mxu0 0
    %1003 = vmatprep.subr.bf16.mxu0 0
    %1004 = vmatpush2.bf16.msra.mxu0 0
    %1005 = vmatprep.subr.bf16.mxu0 0
    %1006 = vmatpush2.bf16.msra.mxu0 0
    %1007 = vmatprep.subr.bf16.mxu0 0
    %1008 = vmatpush2.bf16.msra.mxu0 0
    %1009 = vmatprep.subr.bf16.mxu0 0
    %1010 = vmatpush2.bf16.msra.mxu0 0
    %1011 = vmatprep.subr.bf16.mxu0 0
    %1012 = vmatpush2.bf16.msra.mxu0 0
    %1013 = vmatprep.subr.bf16.mxu0 0
    %1014 = vmatpush2.bf16.msra.mxu0 0
    %1015 = vmatprep.subr.bf16.mxu0 0
    %1016 = vmatpush2.bf16.msra.mxu0 0
    %1017 = vmatprep.mubr.bf16.mxu0 0
    %1018 = vmatmul.mubr.bf16.gmra.mxu0 %v729
    %v1019 = vpop.f32.mrf.mxu0
    %v1020 = vadd.f32 %v775, %v1019
    %v1021 = vpop.f32.mrf.mxu0
    %v1022 = vadd.f32 %v779, %v1021
    %v1023 = vpop.f32.mrf.mxu0
    %v1024 = vpop.f32.mrf.mxu0
    %1025 = vdwg.mxu0
    %v1026 = vld [vmem:[#allocation10] sm:$0xff]
    %v1027 = vld [vmem:[#allocation10 + $0x8] sm:$0xff]
    %v1028 = vld [vmem:[#allocation10 + $0x10] sm:$0xff]
    %v1029 = vld [vmem:[#allocation10 + $0x18] sm:$0xff]
    %v1030 = vld [vmem:[#allocation10 + $0x20] sm:$0xff]
    %v1031 = vld [vmem:[#allocation10 + $0x28] sm:$0xff]
    %v1032 = vld [vmem:[#allocation10 + $0x30] sm:$0xff]
    %v1033 = vld [vmem:[#allocation10 + $0x38] sm:$0xff]
    %v1034 = vld [vmem:[#allocation10 + $0x40] sm:$0xff]
    %v1035 = vld [vmem:[#allocation10 + $0x48] sm:$0xff]
    %v1036 = vld [vmem:[#allocation10 + $0x50] sm:$0xff]
    %v1037 = vld [vmem:[#allocation10 + $0x58] sm:$0xff]
    %v1038 = vld [vmem:[#allocation10 + $0x60] sm:$0xff]
    %v1039 = vld [vmem:[#allocation10 + $0x68] sm:$0xff]
    %v1040 = vld [vmem:[#allocation10 + $0x70] sm:$0xff]
    %v1041 = vld [vmem:[#allocation10 + $0x78] sm:$0xff]
    %v1042 = vld [vmem:[#allocation10 + $0x80] sm:$0xff]
    %v1043 = vld [vmem:[#allocation10 + $0x88] sm:$0xff]
    %v1044 = vld [vmem:[#allocation10 + $0x90] sm:$0xff]
    %v1045 = vld [vmem:[#allocation10 + $0x98] sm:$0xff]
    %v1046 = vld [vmem:[#allocation10 + $0xa0] sm:$0xff]
    %v1047 = vld [vmem:[#allocation10 + $0xa8] sm:$0xff]
    %v1048 = vld [vmem:[#allocation10 + $0xb0] sm:$0xff]
    %v1049 = vld [vmem:[#allocation10 + $0xb8] sm:$0xff]
    %v1050 = vld [vmem:[#allocation10 + $0xc0] sm:$0xff]
    %v1051 = vld [vmem:[#allocation10 + $0xc8] sm:$0xff]
    %v1052 = vld [vmem:[#allocation10 + $0xd0] sm:$0xff]
    %v1053 = vld [vmem:[#allocation10 + $0xd8] sm:$0xff]
    %v1054 = vld [vmem:[#allocation10 + $0xe0] sm:$0xff]
    %v1055 = vld [vmem:[#allocation10 + $0xe8] sm:$0xff]
    %v1056 = vld [vmem:[#allocation10 + $0xf0] sm:$0xff]
    %v1057 = vld [vmem:[#allocation10 + $0xf8] sm:$0xff]
    %v1058 = vld [vmem:[#allocation12] sm:$0xff]
    %v1059 = vld [vmem:[#allocation12 + $0x8] sm:$0xff]
    %v1060 = vld [vmem:[#allocation12 + $0x10] sm:$0xff]
    %v1061 = vld [vmem:[#allocation12 + $0x18] sm:$0xff]
    %v1062 = vld [vmem:[#allocation12 + $0x20] sm:$0xff]
    %v1063 = vld [vmem:[#allocation12 + $0x28] sm:$0xff]
    %v1064 = vld [vmem:[#allocation12 + $0x30] sm:$0xff]
    %v1065 = vld [vmem:[#allocation12 + $0x38] sm:$0xff]
    %v1066 = vld [vmem:[#allocation12 + $0x40] sm:$0xff]
    %v1067 = vld [vmem:[#allocation12 + $0x48] sm:$0xff]
    %v1068 = vld [vmem:[#allocation12 + $0x50] sm:$0xff]
    %v1069 = vld [vmem:[#allocation12 + $0x58] sm:$0xff]
    %v1070 = vld [vmem:[#allocation12 + $0x60] sm:$0xff]
    %v1071 = vld [vmem:[#allocation12 + $0x68] sm:$0xff]
    %v1072 = vld [vmem:[#allocation12 + $0x70] sm:$0xff]
    %v1073 = vld [vmem:[#allocation12 + $0x78] sm:$0xff]
    %v1074 = vld [vmem:[#allocation12 + $0x80] sm:$0xff]
    %v1075 = vld [vmem:[#allocation12 + $0x88] sm:$0xff]
    %v1076 = vld [vmem:[#allocation12 + $0x90] sm:$0xff]
    %v1077 = vld [vmem:[#allocation12 + $0x98] sm:$0xff]
    %v1078 = vld [vmem:[#allocation12 + $0xa0] sm:$0xff]
    %v1079 = vld [vmem:[#allocation12 + $0xa8] sm:$0xff]
    %v1080 = vld [vmem:[#allocation12 + $0xb0] sm:$0xff]
    %v1081 = vld [vmem:[#allocation12 + $0xb8] sm:$0xff]
    %v1082 = vld [vmem:[#allocation12 + $0xc0] sm:$0xff]
    %v1083 = vld [vmem:[#allocation12 + $0xc8] sm:$0xff]
    %v1084 = vld [vmem:[#allocation12 + $0xd0] sm:$0xff]
    %v1085 = vld [vmem:[#allocation12 + $0xd8] sm:$0xff]
    %v1086 = vld [vmem:[#allocation12 + $0xe0] sm:$0xff]
    %v1087 = vld [vmem:[#allocation12 + $0xe8] sm:$0xff]
    %v1088 = vld [vmem:[#allocation12 + $0xf0] sm:$0xff]
    %v1089 = vld [vmem:[#allocation12 + $0xf8] sm:$0xff]
    %v1090 = vld [vmem:[#allocation12 + $0x100] sm:$0xff]
    %v1091 = vld [vmem:[#allocation12 + $0x108] sm:$0xff]
    %v1092 = vld [vmem:[#allocation12 + $0x110] sm:$0xff]
    %v1093 = vld [vmem:[#allocation12 + $0x118] sm:$0xff]
    %v1094 = vld [vmem:[#allocation12 + $0x120] sm:$0xff]
    %v1095 = vld [vmem:[#allocation12 + $0x128] sm:$0xff]
    %v1096 = vld [vmem:[#allocation12 + $0x130] sm:$0xff]
    %v1097 = vld [vmem:[#allocation12 + $0x138] sm:$0xff]
    %v1098 = vld [vmem:[#allocation12 + $0x140] sm:$0xff]
    %v1099 = vld [vmem:[#allocation12 + $0x148] sm:$0xff]
    %v1100 = vld [vmem:[#allocation12 + $0x150] sm:$0xff]
    %v1101 = vld [vmem:[#allocation12 + $0x158] sm:$0xff]
    %v1102 = vld [vmem:[#allocation12 + $0x160] sm:$0xff]
    %v1103 = vld [vmem:[#allocation12 + $0x168] sm:$0xff]
    %v1104 = vld [vmem:[#allocation12 + $0x170] sm:$0xff]
    %v1105 = vld [vmem:[#allocation12 + $0x178] sm:$0xff]
    %v1106 = vld [vmem:[#allocation12 + $0x180] sm:$0xff]
    %v1107 = vld [vmem:[#allocation12 + $0x188] sm:$0xff]
    %v1108 = vld [vmem:[#allocation12 + $0x190] sm:$0xff]
    %v1109 = vld [vmem:[#allocation12 + $0x198] sm:$0xff]
    %v1110 = vld [vmem:[#allocation12 + $0x1a0] sm:$0xff]
    %v1111 = vld [vmem:[#allocation12 + $0x1a8] sm:$0xff]
    %v1112 = vld [vmem:[#allocation12 + $0x1b0] sm:$0xff]
    %v1113 = vld [vmem:[#allocation12 + $0x1b8] sm:$0xff]
    %v1114 = vld [vmem:[#allocation12 + $0x1c0] sm:$0xff]
    %v1115 = vld [vmem:[#allocation12 + $0x1c8] sm:$0xff]
    %v1116 = vld [vmem:[#allocation12 + $0x1d0] sm:$0xff]
    %v1117 = vld [vmem:[#allocation12 + $0x1d8] sm:$0xff]
    %v1118 = vld [vmem:[#allocation12 + $0x1e0] sm:$0xff]
    %v1119 = vld [vmem:[#allocation12 + $0x1e8] sm:$0xff]
    %v1120 = vld [vmem:[#allocation12 + $0x1f0] sm:$0xff]
    %v1121 = vld [vmem:[#allocation12 + $0x1f8] sm:$0xff]
    %v1122 = vld [vmem:[#allocation13] sm:$0xff]
    %v1123 = vld [vmem:[#allocation13 + $0x8] sm:$0xff]
    %v1124 = vld [vmem:[#allocation13 + $0x10] sm:$0xff]
    %v1125 = vld [vmem:[#allocation13 + $0x18] sm:$0xff]
    %v1126 = vld [vmem:[#allocation13 + $0x20] sm:$0xff]
    %v1127 = vld [vmem:[#allocation13 + $0x28] sm:$0xff]
    %v1128 = vld [vmem:[#allocation13 + $0x30] sm:$0xff]
    %v1129 = vld [vmem:[#allocation13 + $0x38] sm:$0xff]
    %v1130 = vld [vmem:[#allocation13 + $0x40] sm:$0xff]
    %v1131 = vld [vmem:[#allocation13 + $0x48] sm:$0xff]
    %v1132 = vld [vmem:[#allocation13 + $0x50] sm:$0xff]
    %v1133 = vld [vmem:[#allocation13 + $0x58] sm:$0xff]
    %v1134 = vld [vmem:[#allocation13 + $0x60] sm:$0xff]
    %v1135 = vld [vmem:[#allocation13 + $0x68] sm:$0xff]
    %v1136 = vld [vmem:[#allocation13 + $0x70] sm:$0xff]
    %v1137 = vld [vmem:[#allocation13 + $0x78] sm:$0xff]
    %v1138 = vld [vmem:[#allocation13 + $0x80] sm:$0xff]
    %v1139 = vld [vmem:[#allocation13 + $0x88] sm:$0xff]
    %v1140 = vld [vmem:[#allocation13 + $0x90] sm:$0xff]
    %v1141 = vld [vmem:[#allocation13 + $0x98] sm:$0xff]
    %v1142 = vld [vmem:[#allocation13 + $0xa0] sm:$0xff]
    %v1143 = vld [vmem:[#allocation13 + $0xa8] sm:$0xff]
    %v1144 = vld [vmem:[#allocation13 + $0xb0] sm:$0xff]
    %v1145 = vld [vmem:[#allocation13 + $0xb8] sm:$0xff]
    %v1146 = vld [vmem:[#allocation13 + $0xc0] sm:$0xff]
    %v1147 = vld [vmem:[#allocation13 + $0xc8] sm:$0xff]
    %v1148 = vld [vmem:[#allocation13 + $0xd0] sm:$0xff]
    %v1149 = vld [vmem:[#allocation13 + $0xd8] sm:$0xff]
    %v1150 = vld [vmem:[#allocation13 + $0xe0] sm:$0xff]
    %v1151 = vld [vmem:[#allocation13 + $0xe8] sm:$0xff]
    %v1152 = vld [vmem:[#allocation13 + $0xf0] sm:$0xff]
    %v1153 = vld [vmem:[#allocation13 + $0xf8] sm:$0xff]
    %v1154 = vld [vmem:[#allocation13 + $0x100] sm:$0xff]
    %v1155 = vld [vmem:[#allocation13 + $0x108] sm:$0xff]
    %v1156 = vld [vmem:[#allocation13 + $0x110] sm:$0xff]
    %v1157 = vld [vmem:[#allocation13 + $0x118] sm:$0xff]
    %v1158 = vld [vmem:[#allocation13 + $0x120] sm:$0xff]
    %v1159 = vld [vmem:[#allocation13 + $0x128] sm:$0xff]
    %v1160 = vld [vmem:[#allocation13 + $0x130] sm:$0xff]
    %v1161 = vld [vmem:[#allocation13 + $0x138] sm:$0xff]
    %v1162 = vld [vmem:[#allocation13 + $0x140] sm:$0xff]
    %v1163 = vld [vmem:[#allocation13 + $0x148] sm:$0xff]
    %v1164 = vld [vmem:[#allocation13 + $0x150] sm:$0xff]
    %v1165 = vld [vmem:[#allocation13 + $0x158] sm:$0xff]
    %v1166 = vld [vmem:[#allocation13 + $0x160] sm:$0xff]
    %v1167 = vld [vmem:[#allocation13 + $0x168] sm:$0xff]
    %v1168 = vld [vmem:[#allocation13 + $0x170] sm:$0xff]
    %v1169 = vld [vmem:[#allocation13 + $0x178] sm:$0xff]
    %v1170 = vld [vmem:[#allocation13 + $0x180] sm:$0xff]
    %v1171 = vld [vmem:[#allocation13 + $0x188] sm:$0xff]
    %v1172 = vld [vmem:[#allocation13 + $0x190] sm:$0xff]
    %v1173 = vld [vmem:[#allocation13 + $0x198] sm:$0xff]
    %v1174 = vld [vmem:[#allocation13 + $0x1a0] sm:$0xff]
    %v1175 = vld [vmem:[#allocation13 + $0x1a8] sm:$0xff]
    %v1176 = vld [vmem:[#allocation13 + $0x1b0] sm:$0xff]
    %v1177 = vld [vmem:[#allocation13 + $0x1b8] sm:$0xff]
    %v1178 = vld [vmem:[#allocation13 + $0x1c0] sm:$0xff]
    %v1179 = vld [vmem:[#allocation13 + $0x1c8] sm:$0xff]
    %v1180 = vld [vmem:[#allocation13 + $0x1d0] sm:$0xff]
    %v1181 = vld [vmem:[#allocation13 + $0x1d8] sm:$0xff]
    %v1182 = vld [vmem:[#allocation13 + $0x1e0] sm:$0xff]
    %v1183 = vld [vmem:[#allocation13 + $0x1e8] sm:$0xff]
    %v1184 = vld [vmem:[#allocation13 + $0x1f0] sm:$0xff]
    %v1185 = vld [vmem:[#allocation13 + $0x1f8] sm:$0xff]
    %v1186 = vld [vmem:[#allocation15] sm:$0xff]
    %v1187 = vld [vmem:[#allocation15 + $0x8] sm:$0xff]
    %v1188 = vld [vmem:[#allocation15 + $0x10] sm:$0xff]
    %v1189 = vld [vmem:[#allocation15 + $0x18] sm:$0xff]
    %v1190 = vld [vmem:[#allocation15 + $0x20] sm:$0xff]
    %v1191 = vld [vmem:[#allocation15 + $0x28] sm:$0xff]
    %v1192 = vld [vmem:[#allocation15 + $0x30] sm:$0xff]
    %v1193 = vld [vmem:[#allocation15 + $0x38] sm:$0xff]
    %v1194 = vld [vmem:[#allocation15 + $0x40] sm:$0xff]
    %v1195 = vld [vmem:[#allocation15 + $0x48] sm:$0xff]
    %v1196 = vld [vmem:[#allocation15 + $0x50] sm:$0xff]
    %v1197 = vld [vmem:[#allocation15 + $0x58] sm:$0xff]
    %v1198 = vld [vmem:[#allocation15 + $0x60] sm:$0xff]
    %v1199 = vld [vmem:[#allocation15 + $0x68] sm:$0xff]
    %v1200 = vld [vmem:[#allocation15 + $0x70] sm:$0xff]
    %v1201 = vld [vmem:[#allocation15 + $0x78] sm:$0xff]
    %v1202 = vld [vmem:[#allocation15 + $0x80] sm:$0xff]
    %v1203 = vld [vmem:[#allocation15 + $0x88] sm:$0xff]
    %v1204 = vld [vmem:[#allocation15 + $0x90] sm:$0xff]
    %v1205 = vld [vmem:[#allocation15 + $0x98] sm:$0xff]
    %v1206 = vld [vmem:[#allocation15 + $0xa0] sm:$0xff]
    %v1207 = vld [vmem:[#allocation15 + $0xa8] sm:$0xff]
    %v1208 = vld [vmem:[#allocation15 + $0xb0] sm:$0xff]
    %v1209 = vld [vmem:[#allocation15 + $0xb8] sm:$0xff]
    %v1210 = vld [vmem:[#allocation15 + $0xc0] sm:$0xff]
    %v1211 = vld [vmem:[#allocation15 + $0xc8] sm:$0xff]
    %v1212 = vld [vmem:[#allocation15 + $0xd0] sm:$0xff]
    %v1213 = vld [vmem:[#allocation15 + $0xd8] sm:$0xff]
    %v1214 = vld [vmem:[#allocation15 + $0xe0] sm:$0xff]
    %v1215 = vld [vmem:[#allocation15 + $0xe8] sm:$0xff]
    %v1216 = vld [vmem:[#allocation15 + $0xf0] sm:$0xff]
    %v1217 = vld [vmem:[#allocation15 + $0xf8] sm:$0xff]
    %v1218 = vld [vmem:[#allocation15 + $0x100] sm:$0xff]
    %v1219 = vld [vmem:[#allocation15 + $0x108] sm:$0xff]
    %v1220 = vld [vmem:[#allocation15 + $0x110] sm:$0xff]
    %v1221 = vld [vmem:[#allocation15 + $0x118] sm:$0xff]
    %v1222 = vld [vmem:[#allocation15 + $0x120] sm:$0xff]
    %v1223 = vld [vmem:[#allocation15 + $0x128] sm:$0xff]
    %v1224 = vld [vmem:[#allocation15 + $0x130] sm:$0xff]
    %v1225 = vld [vmem:[#allocation15 + $0x138] sm:$0xff]
    %v1226 = vld [vmem:[#allocation15 + $0x140] sm:$0xff]
    %v1227 = vld [vmem:[#allocation15 + $0x148] sm:$0xff]
    %v1228 = vld [vmem:[#allocation15 + $0x150] sm:$0xff]
    %v1229 = vld [vmem:[#allocation15 + $0x158] sm:$0xff]
    %v1230 = vld [vmem:[#allocation15 + $0x160] sm:$0xff]
    %v1231 = vld [vmem:[#allocation15 + $0x168] sm:$0xff]
    %v1232 = vld [vmem:[#allocation15 + $0x170] sm:$0xff]
    %v1233 = vld [vmem:[#allocation15 + $0x178] sm:$0xff]
    %v1234 = vld [vmem:[#allocation15 + $0x180] sm:$0xff]
    %v1235 = vld [vmem:[#allocation15 + $0x188] sm:$0xff]
    %v1236 = vld [vmem:[#allocation15 + $0x190] sm:$0xff]
    %v1237 = vld [vmem:[#allocation15 + $0x198] sm:$0xff]
    %v1238 = vld [vmem:[#allocation15 + $0x1a0] sm:$0xff]
    %v1239 = vld [vmem:[#allocation15 + $0x1a8] sm:$0xff]
    %v1240 = vld [vmem:[#allocation15 + $0x1b0] sm:$0xff]
    %v1241 = vld [vmem:[#allocation15 + $0x1b8] sm:$0xff]
    %v1242 = vld [vmem:[#allocation15 + $0x1c0] sm:$0xff]
    %v1243 = vld [vmem:[#allocation15 + $0x1c8] sm:$0xff]
    %v1244 = vld [vmem:[#allocation15 + $0x1d0] sm:$0xff]
    %v1245 = vld [vmem:[#allocation15 + $0x1d8] sm:$0xff]
    %v1246 = vld [vmem:[#allocation15 + $0x1e0] sm:$0xff]
    %v1247 = vld [vmem:[#allocation15 + $0x1e8] sm:$0xff]
    %v1248 = vld [vmem:[#allocation15 + $0x1f0] sm:$0xff]
    %v1249 = vld [vmem:[#allocation15 + $0x1f8] sm:$0xff]
    %v1250 = vld [vmem:[%s9] sm:$0xf]
    %v1252 = vlaneseq
    %v1253 = vshrl.u32 %v1252, 7
    %v1254 = vsub.s32 0, %v1253
    %v1255 = vrot.slane %v1250, %v1254
    %v1256 = vlaneseq
    %v1257 = vshrl.u32 %v1256, 7
    %v1258 = vsub.s32 1, %v1257
    %v1259 = vrot.slane %v1250, %v1258
    %v1260 = vlaneseq
    %v1261 = vshrl.u32 %v1260, 7
    %v1262 = vsub.s32 2, %v1261
    %v1263 = vrot.slane %v1250, %v1262
    %v1264 = vlaneseq
    %v1265 = vshrl.u32 %v1264, 7
    %v1266 = vsub.s32 3, %v1265
    %v1267 = vrot.slane %v1250, %v1266
    %v1272 = vld [vmem:[%s12] sm:$0xf]
    %v1274 = vlaneseq
    %v1275 = vshrl.u32 %v1274, 7
    %v1276 = vsub.s32 0, %v1275
    %v1277 = vrot.slane %v1272, %v1276
    %v1278 = vlaneseq
    %v1279 = vshrl.u32 %v1278, 7
    %v1280 = vsub.s32 1, %v1279
    %v1281 = vrot.slane %v1272, %v1280
    %v1282 = vlaneseq
    %v1283 = vshrl.u32 %v1282, 7
    %v1284 = vsub.s32 2, %v1283
    %v1285 = vrot.slane %v1272, %v1284
    %v1286 = vlaneseq
    %v1287 = vshrl.u32 %v1286, 7
    %v1288 = vsub.s32 3, %v1287
    %v1289 = vrot.slane %v1272, %v1288
    %v1294 = vld [vmem:[%s15] sm:$0x3]
    %v1295 = vld [vmem:[%s16] sm:$0x3]
    %s1296 = scalar_lea.vmem %s15, 2
    %v1297 = vld [vmem:[%s1296] sm:$0x3]
    %s1298 = scalar_lea.vmem %s16, 2
    %v1299 = vld [vmem:[%s1298] sm:$0x3]
    %v1300 = vld [vmem:[%s17] sm:$0x3]
    %v1301 = vld [vmem:[%s18] sm:$0x3]
    %s1302 = scalar_lea.vmem %s17, 2
    %v1303 = vld [vmem:[%s1302] sm:$0x3]
    %s1304 = scalar_lea.vmem %s18, 2
    %v1305 = vld [vmem:[%s1304] sm:$0x3]
    %s1306 = sld [smem:[#allocation3]]
    %p1307 = scmp.gt.s32.totalorder %s1306, 0
    %s1308 = scalar_select %p1307, %s1306, 0
    %p1309 = scmp.lt.s32.totalorder %s1308, 54
    %s1310 = scalar_select %p1309, %s1308, 54
    %s1311 = smul.u32 %s1310, 4
    %s1312 = scalar_lea.vmem [#allocation9], %s1311
    %v1313 = vld [vmem:[%s1312] sm:$0xf]
    %s1314 = sld [smem:[#allocation3 + $0x80]]
    %p1315 = scmp.gt.s32.totalorder %s1314, 0
    %s1316 = scalar_select %p1315, %s1314, 0
    %p1317 = scmp.lt.s32.totalorder %s1316, 54
    %s1318 = scalar_select %p1317, %s1316, 54
    %s1319 = smul.u32 %s1318, 4
    %s1320 = scalar_lea.vmem [#allocation9], %s1319
    %v1321 = vld [vmem:[%s1320] sm:$0xf]
    %v1323 = vlaneseq
    %v1324 = vshrl.u32 %v1323, 7
    %v1325 = vsub.s32 0, %v1324
    %v1326 = vrot.slane %v1313, %v1325
    %v1327 = vlaneseq
    %v1328 = vshrl.u32 %v1327, 7
    %v1329 = vsub.s32 1, %v1328
    %v1330 = vrot.slane %v1313, %v1329
    %v1331 = vlaneseq
    %v1332 = vshrl.u32 %v1331, 7
    %v1333 = vsub.s32 2, %v1332
    %v1334 = vrot.slane %v1313, %v1333
    %v1335 = vlaneseq
    %v1336 = vshrl.u32 %v1335, 7
    %v1337 = vsub.s32 3, %v1336
    %v1338 = vrot.slane %v1313, %v1337
    %v1344 = vlaneseq
    %v1345 = vshrl.u32 %v1344, 7
    %v1346 = vsub.s32 0, %v1345
    %v1347 = vrot.slane %v1321, %v1346
    %v1348 = vlaneseq
    %v1349 = vshrl.u32 %v1348, 7
    %v1350 = vsub.s32 1, %v1349
    %v1351 = vrot.slane %v1321, %v1350
    %v1352 = vlaneseq
    %v1353 = vshrl.u32 %v1352, 7
    %v1354 = vsub.s32 2, %v1353
    %v1355 = vrot.slane %v1321, %v1354
    %v1356 = vlaneseq
    %v1357 = vshrl.u32 %v1356, 7
    %v1358 = vsub.s32 3, %v1357
    %v1359 = vrot.slane %v1321, %v1358
    %vm1364 = vcmask 1040384
    %v1365 = vsel %vm1364, %v1326, %v1347
    %v1366 = vsel %vm1364, %v1330, %v1351
    %v1367 = vsel %vm1364, %v1334, %v1355
    %v1368 = vsel %vm1364, %v1338, %v1359
    %v1369 = vpack.c.bf16 %v1294, %v1294
    %v1402 = vunpack.c.l.b16 %v1026
    %v1403 = vunpack.c.h.b16 %v1026
    %v1404 = vunpack.c.l.b16 %v1027
    %v1405 = vunpack.c.h.b16 %v1027
    %v1406 = vunpack.c.l.b16 %v1028
    %v1407 = vunpack.c.h.b16 %v1028
    %v1408 = vunpack.c.l.b16 %v1029
    %v1409 = vunpack.c.h.b16 %v1029
    %v1410 = vunpack.c.l.b16 %v1030
    %v1411 = vunpack.c.h.b16 %v1030
    %v1412 = vunpack.c.l.b16 %v1031
    %v1413 = vunpack.c.h.b16 %v1031
    %v1414 = vunpack.c.l.b16 %v1032
    %v1415 = vunpack.c.h.b16 %v1032
    %v1416 = vunpack.c.l.b16 %v1033
    %v1417 = vunpack.c.h.b16 %v1033
    %v1418 = vunpack.c.l.b16 %v1034
    %v1419 = vunpack.c.h.b16 %v1034
    %v1420 = vunpack.c.l.b16 %v1035
    %v1421 = vunpack.c.h.b16 %v1035
    %v1422 = vunpack.c.l.b16 %v1036
    %v1423 = vunpack.c.h.b16 %v1036
    %v1424 = vunpack.c.l.b16 %v1037
    %v1425 = vunpack.c.h.b16 %v1037
    %v1426 = vunpack.c.l.b16 %v1038
    %v1427 = vunpack.c.h.b16 %v1038
    %v1428 = vunpack.c.l.b16 %v1039
    %v1429 = vunpack.c.h.b16 %v1039
    %v1430 = vunpack.c.l.b16 %v1040
    %v1431 = vunpack.c.h.b16 %v1040
    %v1432 = vunpack.c.l.b16 %v1041
    %v1433 = vunpack.c.h.b16 %v1041
    %v1434 = vunpack.c.l.b16 %v1042
    %v1435 = vunpack.c.h.b16 %v1042
    %v1436 = vunpack.c.l.b16 %v1043
    %v1437 = vunpack.c.h.b16 %v1043
    %v1438 = vunpack.c.l.b16 %v1044
    %v1439 = vunpack.c.h.b16 %v1044
    %v1440 = vunpack.c.l.b16 %v1045
    %v1441 = vunpack.c.h.b16 %v1045
    %v1442 = vunpack.c.l.b16 %v1046
    %v1443 = vunpack.c.h.b16 %v1046
    %v1444 = vunpack.c.l.b16 %v1047
    %v1445 = vunpack.c.h.b16 %v1047
    %v1446 = vunpack.c.l.b16 %v1048
    %v1447 = vunpack.c.h.b16 %v1048
    %v1448 = vunpack.c.l.b16 %v1049
    %v1449 = vunpack.c.h.b16 %v1049
    %v1450 = vunpack.c.l.b16 %v1050
    %v1451 = vunpack.c.h.b16 %v1050
    %v1452 = vunpack.c.l.b16 %v1051
    %v1453 = vunpack.c.h.b16 %v1051
    %v1454 = vunpack.c.l.b16 %v1052
    %v1455 = vunpack.c.h.b16 %v1052
    %v1456 = vunpack.c.l.b16 %v1053
    %v1457 = vunpack.c.h.b16 %v1053
    %v1458 = vunpack.c.l.b16 %v1054
    %v1459 = vunpack.c.h.b16 %v1054
    %v1460 = vunpack.c.l.b16 %v1055
    %v1461 = vunpack.c.h.b16 %v1055
    %v1462 = vunpack.c.l.b16 %v1056
    %v1463 = vunpack.c.h.b16 %v1056
    %v1464 = vunpack.c.l.b16 %v1057
    %v1465 = vunpack.c.h.b16 %v1057
    %v1466 = vpack.c.b16 %v1406, %v1402
    %v1467 = vpack.c.b16 %v1407, %v1403
    %v1468 = vpack.c.b16 %v1408, %v1404
    %v1469 = vpack.c.b16 %v1409, %v1405
    %v1470 = vpack.c.b16 %v1414, %v1410
    %v1471 = vpack.c.b16 %v1415, %v1411
    %v1472 = vpack.c.b16 %v1416, %v1412
    %v1473 = vpack.c.b16 %v1417, %v1413
    %v1474 = vpack.c.b16 %v1422, %v1418
    %v1475 = vpack.c.b16 %v1423, %v1419
    %v1476 = vpack.c.b16 %v1424, %v1420
    %v1477 = vpack.c.b16 %v1425, %v1421
    %v1478 = vpack.c.b16 %v1430, %v1426
    %v1479 = vpack.c.b16 %v1431, %v1427
    %v1480 = vpack.c.b16 %v1432, %v1428
    %v1481 = vpack.c.b16 %v1433, %v1429
    %v1482 = vpack.c.b16 %v1438, %v1434
    %v1483 = vpack.c.b16 %v1439, %v1435
    %v1484 = vpack.c.b16 %v1440, %v1436
    %v1485 = vpack.c.b16 %v1441, %v1437
    %v1486 = vpack.c.b16 %v1446, %v1442
    %v1487 = vpack.c.b16 %v1447, %v1443
    %v1488 = vpack.c.b16 %v1448, %v1444
    %v1489 = vpack.c.b16 %v1449, %v1445
    %v1490 = vpack.c.b16 %v1454, %v1450
    %v1491 = vpack.c.b16 %v1455, %v1451
    %v1492 = vpack.c.b16 %v1456, %v1452
    %v1493 = vpack.c.b16 %v1457, %v1453
    %v1494 = vpack.c.b16 %v1462, %v1458
    %v1495 = vpack.c.b16 %v1463, %v1459
    %v1496 = vpack.c.b16 %v1464, %v1460
    %v1497 = vpack.c.b16 %v1465, %v1461
    %1530 = vmatprep.subr.bf16.mxu0 %v1495
    %1531 = vmatpush1.bf16.msra.mxu0 %v1494
    %1532 = vmatprep.subr.bf16.mxu0 %v1491
    %1533 = vmatpush1.bf16.msra.mxu0 %v1490
    %1534 = vmatprep.subr.bf16.mxu0 %v1487
    %1535 = vmatpush1.bf16.msra.mxu0 %v1486
    %1536 = vmatprep.subr.bf16.mxu0 %v1483
    %1537 = vmatpush1.bf16.msra.mxu0 %v1482
    %1538 = vmatprep.subr.bf16.mxu0 %v1479
    %1539 = vmatpush1.bf16.msra.mxu0 %v1478
    %1540 = vmatprep.subr.bf16.mxu0 %v1475
    %1541 = vmatpush1.bf16.msra.mxu0 %v1474
    %1542 = vmatprep.subr.bf16.mxu0 %v1471
    %1543 = vmatpush1.bf16.msra.mxu0 %v1470
    %1544 = vmatprep.subr.bf16.mxu0 %v1467
    %1545 = vmatpush1.bf16.msra.mxu0 %v1466
    %1546 = vmatprep.subr.bf16.mxu0 0
    %1547 = vmatpush2.bf16.msra.mxu0 0
    %1548 = vmatprep.subr.bf16.mxu0 0
    %1549 = vmatpush2.bf16.msra.mxu0 0
    %1550 = vmatprep.subr.bf16.mxu0 0
    %1551 = vmatpush2.bf16.msra.mxu0 0
    %1552 = vmatprep.subr.bf16.mxu0 0
    %1553 = vmatpush2.bf16.msra.mxu0 0
    %1554 = vmatprep.subr.bf16.mxu0 0
    %1555 = vmatpush2.bf16.msra.mxu0 0
    %1556 = vmatprep.subr.bf16.mxu0 0
    %1557 = vmatpush2.bf16.msra.mxu0 0
    %1558 = vmatprep.subr.bf16.mxu0 0
    %1559 = vmatpush2.bf16.msra.mxu0 0
    %1560 = vmatprep.subr.bf16.mxu0 0
    %1561 = vmatpush2.bf16.msra.mxu0 0
    %1562 = vmatprep.mubr.bf16.mxu0 0
    %1563 = vmatmul.mubr.bf16.gmra.mxu0 %v1369
    %v1564 = vpop.f32.mrf.mxu0
    %v1565 = vadd.f32 0.0, %v1564
    %v1566 = vpop.f32.mrf.mxu0
    %v1567 = vadd.f32 0.0, %v1566
    %v1568 = vpop.f32.mrf.mxu0
    %v1569 = vpop.f32.mrf.mxu0
    %1570 = vdwg.mxu0
    %1571 = vmatprep.subr.bf16.mxu0 %v1497
    %1572 = vmatpush1.bf16.msra.mxu0 %v1496
    %1573 = vmatprep.subr.bf16.mxu0 %v1493
    %1574 = vmatpush1.bf16.msra.mxu0 %v1492
    %1575 = vmatprep.subr.bf16.mxu0 %v1489
    %1576 = vmatpush1.bf16.msra.mxu0 %v1488
    %1577 = vmatprep.subr.bf16.mxu0 %v1485
    %1578 = vmatpush1.bf16.msra.mxu0 %v1484
    %1579 = vmatprep.subr.bf16.mxu0 %v1481
    %1580 = vmatpush1.bf16.msra.mxu0 %v1480
    %1581 = vmatprep.subr.bf16.mxu0 %v1477
    %1582 = vmatpush1.bf16.msra.mxu0 %v1476
    %1583 = vmatprep.subr.bf16.mxu0 %v1473
    %1584 = vmatpush1.bf16.msra.mxu0 %v1472
    %1585 = vmatprep.subr.bf16.mxu0 %v1469
    %1586 = vmatpush1.bf16.msra.mxu0 %v1468
    %1587 = vmatprep.subr.bf16.mxu0 0
    %1588 = vmatpush2.bf16.msra.mxu0 0
    %1589 = vmatprep.subr.bf16.mxu0 0
    %1590 = vmatpush2.bf16.msra.mxu0 0
    %1591 = vmatprep.subr.bf16.mxu0 0
    %1592 = vmatpush2.bf16.msra.mxu0 0
    %1593 = vmatprep.subr.bf16.mxu0 0
    %1594 = vmatpush2.bf16.msra.mxu0 0
    %1595 = vmatprep.subr.bf16.mxu0 0
    %1596 = vmatpush2.bf16.msra.mxu0 0
    %1597 = vmatprep.subr.bf16.mxu0 0
    %1598 = vmatpush2.bf16.msra.mxu0 0
    %1599 = vmatprep.subr.bf16.mxu0 0
    %1600 = vmatpush2.bf16.msra.mxu0 0
    %1601 = vmatprep.subr.bf16.mxu0 0
    %1602 = vmatpush2.bf16.msra.mxu0 0
    %1603 = vmatprep.mubr.bf16.mxu0 0
    %1604 = vmatmul.mubr.bf16.gmra.mxu0 %v1369
    %v1605 = vpop.f32.mrf.mxu0
    %v1606 = vadd.f32 0.0, %v1605
    %v1607 = vpop.f32.mrf.mxu0
    %v1608 = vadd.f32 0.0, %v1607
    %v1609 = vpop.f32.mrf.mxu0
    %v1610 = vpop.f32.mrf.mxu0
    %1611 = vdwg.mxu0
    %v1612 = vadd.f32 %v1365, %v1565
    %v1613 = vadd.f32 %v1366, %v1567
    %v1614 = vadd.f32 %v1367, %v1606
    %v1615 = vadd.f32 %v1368, %v1608
    %v1616 = vxor.u32 %v1612, 2147483648
    %v1617 = vxor.u32 %v1613, 2147483648
    %v1618 = vxor.u32 %v1614, 2147483648
    %v1619 = vmul.f32 %v1616, 1.442695
    %v1620 = vpow.pop %v1619
    %v1621 = vmul.f32 %v1617, 1.442695
    %v1622 = vpow.pop %v1621
    %v1623 = vmul.f32 %v1618, 1.442695
    %v1624 = vpow.pop %v1623
    %v1625 = vadd.f32 %v1620, 1.0
    %v1626 = vadd.f32 %v1622, 1.0
    %v1627 = vadd.f32 %v1624, 1.0
    %v1628 = vrcp.pop %v1625
    %v1629 = vmul.f32 1.0, %v1628
    %v1630 = vrcp.pop %v1626
    %v1631 = vmul.f32 1.0, %v1630
    %v1632 = vrcp.pop %v1627
    %v1633 = vmul.f32 1.0, %v1632
    %v1634 = vtanh.pop %v1615
    %v1635 = vmul.f32 %v1631, %v1295
    %v1636 = vmul.f32 %v1629, %v1634
    %v1637 = vadd.f32 %v1635, %v1636
    %v1638 = vtanh.pop %v1637
    %v1639 = vmul.f32 %v1633, %v1638
    %v1640 = vpack.c.bf16 %v1639, %v1639
    %v1641 = vpack.c.bf16 %v1297, %v1297
    %v1706 = vunpack.c.l.b16 %v1058
    %v1707 = vunpack.c.h.b16 %v1058
    %v1708 = vunpack.c.l.b16 %v1059
    %v1709 = vunpack.c.h.b16 %v1059
    %v1710 = vunpack.c.l.b16 %v1060
    %v1711 = vunpack.c.h.b16 %v1060
    %v1712 = vunpack.c.l.b16 %v1061
    %v1713 = vunpack.c.h.b16 %v1061
    %v1714 = vunpack.c.l.b16 %v1062
    %v1715 = vunpack.c.h.b16 %v1062
    %v1716 = vunpack.c.l.b16 %v1063
    %v1717 = vunpack.c.h.b16 %v1063
    %v1718 = vunpack.c.l.b16 %v1064
    %v1719 = vunpack.c.h.b16 %v1064
    %v1720 = vunpack.c.l.b16 %v1065
    %v1721 = vunpack.c.h.b16 %v1065
    %v1722 = vunpack.c.l.b16 %v1066
    %v1723 = vunpack.c.h.b16 %v1066
    %v1724 = vunpack.c.l.b16 %v1067
    %v1725 = vunpack.c.h.b16 %v1067
    %v1726 = vunpack.c.l.b16 %v1068
    %v1727 = vunpack.c.h.b16 %v1068
    %v1728 = vunpack.c.l.b16 %v1069
    %v1729 = vunpack.c.h.b16 %v1069
    %v1730 = vunpack.c.l.b16 %v1070
    %v1731 = vunpack.c.h.b16 %v1070
    %v1732 = vunpack.c.l.b16 %v1071
    %v1733 = vunpack.c.h.b16 %v1071
    %v1734 = vunpack.c.l.b16 %v1072
    %v1735 = vunpack.c.h.b16 %v1072
    %v1736 = vunpack.c.l.b16 %v1073
    %v1737 = vunpack.c.h.b16 %v1073
    %v1738 = vunpack.c.l.b16 %v1074
    %v1739 = vunpack.c.h.b16 %v1074
    %v1740 = vunpack.c.l.b16 %v1075
    %v1741 = vunpack.c.h.b16 %v1075
    %v1742 = vunpack.c.l.b16 %v1076
    %v1743 = vunpack.c.h.b16 %v1076
    %v1744 = vunpack.c.l.b16 %v1077
    %v1745 = vunpack.c.h.b16 %v1077
    %v1746 = vunpack.c.l.b16 %v1078
    %v1747 = vunpack.c.h.b16 %v1078
    %v1748 = vunpack.c.l.b16 %v1079
    %v1749 = vunpack.c.h.b16 %v1079
    %v1750 = vunpack.c.l.b16 %v1080
    %v1751 = vunpack.c.h.b16 %v1080
    %v1752 = vunpack.c.l.b16 %v1081
    %v1753 = vunpack.c.h.b16 %v1081
    %v1754 = vunpack.c.l.b16 %v1082
    %v1755 = vunpack.c.h.b16 %v1082
    %v1756 = vunpack.c.l.b16 %v1083
    %v1757 = vunpack.c.h.b16 %v1083
    %v1758 = vunpack.c.l.b16 %v1084
    %v1759 = vunpack.c.h.b16 %v1084
    %v1760 = vunpack.c.l.b16 %v1085
    %v1761 = vunpack.c.h.b16 %v1085
    %v1762 = vunpack.c.l.b16 %v1086
    %v1763 = vunpack.c.h.b16 %v1086
    %v1764 = vunpack.c.l.b16 %v1087
    %v1765 = vunpack.c.h.b16 %v1087
    %v1766 = vunpack.c.l.b16 %v1088
    %v1767 = vunpack.c.h.b16 %v1088
    %v1768 = vunpack.c.l.b16 %v1089
    %v1769 = vunpack.c.h.b16 %v1089
    %v1770 = vunpack.c.l.b16 %v1090
    %v1771 = vunpack.c.h.b16 %v1090
    %v1772 = vunpack.c.l.b16 %v1091
    %v1773 = vunpack.c.h.b16 %v1091
    %v1774 = vunpack.c.l.b16 %v1092
    %v1775 = vunpack.c.h.b16 %v1092
    %v1776 = vunpack.c.l.b16 %v1093
    %v1777 = vunpack.c.h.b16 %v1093
    %v1778 = vunpack.c.l.b16 %v1094
    %v1779 = vunpack.c.h.b16 %v1094
    %v1780 = vunpack.c.l.b16 %v1095
    %v1781 = vunpack.c.h.b16 %v1095
    %v1782 = vunpack.c.l.b16 %v1096
    %v1783 = vunpack.c.h.b16 %v1096
    %v1784 = vunpack.c.l.b16 %v1097
    %v1785 = vunpack.c.h.b16 %v1097
    %v1786 = vunpack.c.l.b16 %v1098
    %v1787 = vunpack.c.h.b16 %v1098
    %v1788 = vunpack.c.l.b16 %v1099
    %v1789 = vunpack.c.h.b16 %v1099
    %v1790 = vunpack.c.l.b16 %v1100
    %v1791 = vunpack.c.h.b16 %v1100
    %v1792 = vunpack.c.l.b16 %v1101
    %v1793 = vunpack.c.h.b16 %v1101
    %v1794 = vunpack.c.l.b16 %v1102
    %v1795 = vunpack.c.h.b16 %v1102
    %v1796 = vunpack.c.l.b16 %v1103
    %v1797 = vunpack.c.h.b16 %v1103
    %v1798 = vunpack.c.l.b16 %v1104
    %v1799 = vunpack.c.h.b16 %v1104
    %v1800 = vunpack.c.l.b16 %v1105
    %v1801 = vunpack.c.h.b16 %v1105
    %v1802 = vunpack.c.l.b16 %v1106
    %v1803 = vunpack.c.h.b16 %v1106
    %v1804 = vunpack.c.l.b16 %v1107
    %v1805 = vunpack.c.h.b16 %v1107
    %v1806 = vunpack.c.l.b16 %v1108
    %v1807 = vunpack.c.h.b16 %v1108
    %v1808 = vunpack.c.l.b16 %v1109
    %v1809 = vunpack.c.h.b16 %v1109
    %v1810 = vunpack.c.l.b16 %v1110
    %v1811 = vunpack.c.h.b16 %v1110
    %v1812 = vunpack.c.l.b16 %v1111
    %v1813 = vunpack.c.h.b16 %v1111
    %v1814 = vunpack.c.l.b16 %v1112
    %v1815 = vunpack.c.h.b16 %v1112
    %v1816 = vunpack.c.l.b16 %v1113
    %v1817 = vunpack.c.h.b16 %v1113
    %v1818 = vunpack.c.l.b16 %v1114
    %v1819 = vunpack.c.h.b16 %v1114
    %v1820 = vunpack.c.l.b16 %v1115
    %v1821 = vunpack.c.h.b16 %v1115
    %v1822 = vunpack.c.l.b16 %v1116
    %v1823 = vunpack.c.h.b16 %v1116
    %v1824 = vunpack.c.l.b16 %v1117
    %v1825 = vunpack.c.h.b16 %v1117
    %v1826 = vunpack.c.l.b16 %v1118
    %v1827 = vunpack.c.h.b16 %v1118
    %v1828 = vunpack.c.l.b16 %v1119
    %v1829 = vunpack.c.h.b16 %v1119
    %v1830 = vunpack.c.l.b16 %v1120
    %v1831 = vunpack.c.h.b16 %v1120
    %v1832 = vunpack.c.l.b16 %v1121
    %v1833 = vunpack.c.h.b16 %v1121
    %v1834 = vpack.c.b16 %v1710, %v1706
    %v1835 = vpack.c.b16 %v1711, %v1707
    %v1836 = vpack.c.b16 %v1712, %v1708
    %v1837 = vpack.c.b16 %v1713, %v1709
    %v1838 = vpack.c.b16 %v1718, %v1714
    %v1839 = vpack.c.b16 %v1719, %v1715
    %v1840 = vpack.c.b16 %v1720, %v1716
    %v1841 = vpack.c.b16 %v1721, %v1717
    %v1842 = vpack.c.b16 %v1726, %v1722
    %v1843 = vpack.c.b16 %v1727, %v1723
    %v1844 = vpack.c.b16 %v1728, %v1724
    %v1845 = vpack.c.b16 %v1729, %v1725
    %v1846 = vpack.c.b16 %v1734, %v1730
    %v1847 = vpack.c.b16 %v1735, %v1731
    %v1848 = vpack.c.b16 %v1736, %v1732
    %v1849 = vpack.c.b16 %v1737, %v1733
    %v1850 = vpack.c.b16 %v1742, %v1738
    %v1851 = vpack.c.b16 %v1743, %v1739
    %v1852 = vpack.c.b16 %v1744, %v1740
    %v1853 = vpack.c.b16 %v1745, %v1741
    %v1854 = vpack.c.b16 %v1750, %v1746
    %v1855 = vpack.c.b16 %v1751, %v1747
    %v1856 = vpack.c.b16 %v1752, %v1748
    %v1857 = vpack.c.b16 %v1753, %v1749
    %v1858 = vpack.c.b16 %v1758, %v1754
    %v1859 = vpack.c.b16 %v1759, %v1755
    %v1860 = vpack.c.b16 %v1760, %v1756
    %v1861 = vpack.c.b16 %v1761, %v1757
    %v1862 = vpack.c.b16 %v1766, %v1762
    %v1863 = vpack.c.b16 %v1767, %v1763
    %v1864 = vpack.c.b16 %v1768, %v1764
    %v1865 = vpack.c.b16 %v1769, %v1765
    %v1866 = vpack.c.b16 %v1774, %v1770
    %v1867 = vpack.c.b16 %v1775, %v1771
    %v1868 = vpack.c.b16 %v1776, %v1772
    %v1869 = vpack.c.b16 %v1777, %v1773
    %v1870 = vpack.c.b16 %v1782, %v1778
    %v1871 = vpack.c.b16 %v1783, %v1779
    %v1872 = vpack.c.b16 %v1784, %v1780
    %v1873 = vpack.c.b16 %v1785, %v1781
    %v1874 = vpack.c.b16 %v1790, %v1786
    %v1875 = vpack.c.b16 %v1791, %v1787
    %v1876 = vpack.c.b16 %v1792, %v1788
    %v1877 = vpack.c.b16 %v1793, %v1789
    %v1878 = vpack.c.b16 %v1798, %v1794
    %v1879 = vpack.c.b16 %v1799, %v1795
    %v1880 = vpack.c.b16 %v1800, %v1796
    %v1881 = vpack.c.b16 %v1801, %v1797
    %v1882 = vpack.c.b16 %v1806, %v1802
    %v1883 = vpack.c.b16 %v1807, %v1803
    %v1884 = vpack.c.b16 %v1808, %v1804
    %v1885 = vpack.c.b16 %v1809, %v1805
    %v1886 = vpack.c.b16 %v1814, %v1810
    %v1887 = vpack.c.b16 %v1815, %v1811
    %v1888 = vpack.c.b16 %v1816, %v1812
    %v1889 = vpack.c.b16 %v1817, %v1813
    %v1890 = vpack.c.b16 %v1822, %v1818
    %v1891 = vpack.c.b16 %v1823, %v1819
    %v1892 = vpack.c.b16 %v1824, %v1820
    %v1893 = vpack.c.b16 %v1825, %v1821
    %v1894 = vpack.c.b16 %v1830, %v1826
    %v1895 = vpack.c.b16 %v1831, %v1827
    %v1896 = vpack.c.b16 %v1832, %v1828
    %v1897 = vpack.c.b16 %v1833, %v1829
    %1962 = vmatprep.subr.bf16.mxu0 %v1863
    %1963 = vmatpush1.bf16.msra.mxu0 %v1862
    %1964 = vmatprep.subr.bf16.mxu0 %v1859
    %1965 = vmatpush1.bf16.msra.mxu0 %v1858
    %1966 = vmatprep.subr.bf16.mxu0 %v1855
    %1967 = vmatpush1.bf16.msra.mxu0 %v1854
    %1968 = vmatprep.subr.bf16.mxu0 %v1851
    %1969 = vmatpush1.bf16.msra.mxu0 %v1850
    %1970 = vmatprep.subr.bf16.mxu0 %v1847
    %1971 = vmatpush1.bf16.msra.mxu0 %v1846
    %1972 = vmatprep.subr.bf16.mxu0 %v1843
    %1973 = vmatpush1.bf16.msra.mxu0 %v1842
    %1974 = vmatprep.subr.bf16.mxu0 %v1839
    %1975 = vmatpush1.bf16.msra.mxu0 %v1838
    %1976 = vmatprep.subr.bf16.mxu0 %v1835
    %1977 = vmatpush1.bf16.msra.mxu0 %v1834
    %1978 = vmatprep.subr.bf16.mxu0 %v1895
    %1979 = vmatpush2.bf16.msra.mxu0 %v1894
    %1980 = vmatprep.subr.bf16.mxu0 %v1891
    %1981 = vmatpush2.bf16.msra.mxu0 %v1890
    %1982 = vmatprep.subr.bf16.mxu0 %v1887
    %1983 = vmatpush2.bf16.msra.mxu0 %v1886
    %1984 = vmatprep.subr.bf16.mxu0 %v1883
    %1985 = vmatpush2.bf16.msra.mxu0 %v1882
    %1986 = vmatprep.subr.bf16.mxu0 %v1879
    %1987 = vmatpush2.bf16.msra.mxu0 %v1878
    %1988 = vmatprep.subr.bf16.mxu0 %v1875
    %1989 = vmatpush2.bf16.msra.mxu0 %v1874
    %1990 = vmatprep.subr.bf16.mxu0 %v1871
    %1991 = vmatpush2.bf16.msra.mxu0 %v1870
    %1992 = vmatprep.subr.bf16.mxu0 %v1867
    %1993 = vmatpush2.bf16.msra.mxu0 %v1866
    %1994 = vmatprep.mubr.bf16.mxu0 %v1641
    %1995 = vmatmul.mubr.bf16.gmra.mxu0 %v1640
    %v1996 = vpop.f32.mrf.mxu0
    %v1997 = vadd.f32 %v1255, %v1996
    %v1998 = vpop.f32.mrf.mxu0
    %v1999 = vadd.f32 %v1259, %v1998
    %v2000 = vpop.f32.mrf.mxu0
    %v2001 = vpop.f32.mrf.mxu0
    %2002 = vdwg.mxu0
    %2003 = vmatprep.subr.bf16.mxu0 %v1865
    %2004 = vmatpush1.bf16.msra.mxu0 %v1864
    %2005 = vmatprep.subr.bf16.mxu0 %v1861
    %2006 = vmatpush1.bf16.msra.mxu0 %v1860
    %2007 = vmatprep.subr.bf16.mxu0 %v1857
    %2008 = vmatpush1.bf16.msra.mxu0 %v1856
    %2009 = vmatprep.subr.bf16.mxu0 %v1853
    %2010 = vmatpush1.bf16.msra.mxu0 %v1852
    %2011 = vmatprep.subr.bf16.mxu0 %v1849
    %2012 = vmatpush1.bf16.msra.mxu0 %v1848
    %2013 = vmatprep.subr.bf16.mxu0 %v1845
    %2014 = vmatpush1.bf16.msra.mxu0 %v1844
    %2015 = vmatprep.subr.bf16.mxu0 %v1841
    %2016 = vmatpush1.bf16.msra.mxu0 %v1840
    %2017 = vmatprep.subr.bf16.mxu0 %v1837
    %2018 = vmatpush1.bf16.msra.mxu0 %v1836
    %2019 = vmatprep.subr.bf16.mxu0 %v1897
    %2020 = vmatpush2.bf16.msra.mxu0 %v1896
    %2021 = vmatprep.subr.bf16.mxu0 %v1893
    %2022 = vmatpush2.bf16.msra.mxu0 %v1892
    %2023 = vmatprep.subr.bf16.mxu0 %v1889
    %2024 = vmatpush2.bf16.msra.mxu0 %v1888
    %2025 = vmatprep.subr.bf16.mxu0 %v1885
    %2026 = vmatpush2.bf16.msra.mxu0 %v1884
    %2027 = vmatprep.subr.bf16.mxu0 %v1881
    %2028 = vmatpush2.bf16.msra.mxu0 %v1880
    %2029 = vmatprep.subr.bf16.mxu0 %v1877
    %2030 = vmatpush2.bf16.msra.mxu0 %v1876
    %2031 = vmatprep.subr.bf16.mxu0 %v1873
    %2032 = vmatpush2.bf16.msra.mxu0 %v1872
    %2033 = vmatprep.subr.bf16.mxu0 %v1869
    %2034 = vmatpush2.bf16.msra.mxu0 %v1868
    %2035 = vmatprep.mubr.bf16.mxu0 %v1641
    %2036 = vmatmul.mubr.bf16.gmra.mxu0 %v1640
    %v2037 = vpop.f32.mrf.mxu0
    %v2038 = vadd.f32 %v1263, %v2037
    %v2039 = vpop.f32.mrf.mxu0
    %v2040 = vadd.f32 %v1267, %v2039
    %v2041 = vpop.f32.mrf.mxu0
    %v2042 = vpop.f32.mrf.mxu0
    %2043 = vdwg.mxu0
    %v2044 = vxor.u32 %v1997, 2147483648
    %v2045 = vxor.u32 %v1999, 2147483648
    %v2046 = vxor.u32 %v2038, 2147483648
    %v2047 = vmul.f32 %v2044, 1.442695
    %v2048 = vpow.pop %v2047
    %v2049 = vmul.f32 %v2045, 1.442695
    %v2050 = vpow.pop %v2049
    %v2051 = vmul.f32 %v2046, 1.442695
    %v2052 = vpow.pop %v2051
    %v2053 = vadd.f32 %v2048, 1.0
    %v2054 = vadd.f32 %v2050, 1.0
    %v2055 = vadd.f32 %v2052, 1.0
    %v2056 = vrcp.pop %v2053
    %v2057 = vmul.f32 1.0, %v2056
    %v2058 = vrcp.pop %v2054
    %v2059 = vmul.f32 1.0, %v2058
    %v2060 = vrcp.pop %v2055
    %v2061 = vmul.f32 1.0, %v2060
    %v2062 = vtanh.pop %v2040
    %v2063 = vmul.f32 %v2059, %v1299
    %v2064 = vmul.f32 %v2057, %v2062
    %v2065 = vadd.f32 %v2063, %v2064
    %v2066 = vtanh.pop %v2065
    %v2067 = vmul.f32 %v2061, %v2066
    %v2068 = vpack.c.bf16 %v2067, %v2067
    %v2069 = vpack.c.bf16 %v1300, %v1300
    %v2134 = vunpack.c.l.b16 %v1122
    %v2135 = vunpack.c.h.b16 %v1122
    %v2136 = vunpack.c.l.b16 %v1123
    %v2137 = vunpack.c.h.b16 %v1123
    %v2138 = vunpack.c.l.b16 %v1124
    %v2139 = vunpack.c.h.b16 %v1124
    %v2140 = vunpack.c.l.b16 %v1125
    %v2141 = vunpack.c.h.b16 %v1125
    %v2142 = vunpack.c.l.b16 %v1126
    %v2143 = vunpack.c.h.b16 %v1126
    %v2144 = vunpack.c.l.b16 %v1127
    %v2145 = vunpack.c.h.b16 %v1127
    %v2146 = vunpack.c.l.b16 %v1128
    %v2147 = vunpack.c.h.b16 %v1128
    %v2148 = vunpack.c.l.b16 %v1129
    %v2149 = vunpack.c.h.b16 %v1129
    %v2150 = vunpack.c.l.b16 %v1130
    %v2151 = vunpack.c.h.b16 %v1130
    %v2152 = vunpack.c.l.b16 %v1131
    %v2153 = vunpack.c.h.b16 %v1131
    %v2154 = vunpack.c.l.b16 %v1132
    %v2155 = vunpack.c.h.b16 %v1132
    %v2156 = vunpack.c.l.b16 %v1133
    %v2157 = vunpack.c.h.b16 %v1133
    %v2158 = vunpack.c.l.b16 %v1134
    %v2159 = vunpack.c.h.b16 %v1134
    %v2160 = vunpack.c.l.b16 %v1135
    %v2161 = vunpack.c.h.b16 %v1135
    %v2162 = vunpack.c.l.b16 %v1136
    %v2163 = vunpack.c.h.b16 %v1136
    %v2164 = vunpack.c.l.b16 %v1137
    %v2165 = vunpack.c.h.b16 %v1137
    %v2166 = vunpack.c.l.b16 %v1138
    %v2167 = vunpack.c.h.b16 %v1138
    %v2168 = vunpack.c.l.b16 %v1139
    %v2169 = vunpack.c.h.b16 %v1139
    %v2170 = vunpack.c.l.b16 %v1140
    %v2171 = vunpack.c.h.b16 %v1140
    %v2172 = vunpack.c.l.b16 %v1141
    %v2173 = vunpack.c.h.b16 %v1141
    %v2174 = vunpack.c.l.b16 %v1142
    %v2175 = vunpack.c.h.b16 %v1142
    %v2176 = vunpack.c.l.b16 %v1143
    %v2177 = vunpack.c.h.b16 %v1143
    %v2178 = vunpack.c.l.b16 %v1144
    %v2179 = vunpack.c.h.b16 %v1144
    %v2180 = vunpack.c.l.b16 %v1145
    %v2181 = vunpack.c.h.b16 %v1145
    %v2182 = vunpack.c.l.b16 %v1146
    %v2183 = vunpack.c.h.b16 %v1146
    %v2184 = vunpack.c.l.b16 %v1147
    %v2185 = vunpack.c.h.b16 %v1147
    %v2186 = vunpack.c.l.b16 %v1148
    %v2187 = vunpack.c.h.b16 %v1148
    %v2188 = vunpack.c.l.b16 %v1149
    %v2189 = vunpack.c.h.b16 %v1149
    %v2190 = vunpack.c.l.b16 %v1150
    %v2191 = vunpack.c.h.b16 %v1150
    %v2192 = vunpack.c.l.b16 %v1151
    %v2193 = vunpack.c.h.b16 %v1151
    %v2194 = vunpack.c.l.b16 %v1152
    %v2195 = vunpack.c.h.b16 %v1152
    %v2196 = vunpack.c.l.b16 %v1153
    %v2197 = vunpack.c.h.b16 %v1153
    %v2198 = vunpack.c.l.b16 %v1154
    %v2199 = vunpack.c.h.b16 %v1154
    %v2200 = vunpack.c.l.b16 %v1155
    %v2201 = vunpack.c.h.b16 %v1155
    %v2202 = vunpack.c.l.b16 %v1156
    %v2203 = vunpack.c.h.b16 %v1156
    %v2204 = vunpack.c.l.b16 %v1157
    %v2205 = vunpack.c.h.b16 %v1157
    %v2206 = vunpack.c.l.b16 %v1158
    %v2207 = vunpack.c.h.b16 %v1158
    %v2208 = vunpack.c.l.b16 %v1159
    %v2209 = vunpack.c.h.b16 %v1159
    %v2210 = vunpack.c.l.b16 %v1160
    %v2211 = vunpack.c.h.b16 %v1160
    %v2212 = vunpack.c.l.b16 %v1161
    %v2213 = vunpack.c.h.b16 %v1161
    %v2214 = vunpack.c.l.b16 %v1162
    %v2215 = vunpack.c.h.b16 %v1162
    %v2216 = vunpack.c.l.b16 %v1163
    %v2217 = vunpack.c.h.b16 %v1163
    %v2218 = vunpack.c.l.b16 %v1164
    %v2219 = vunpack.c.h.b16 %v1164
    %v2220 = vunpack.c.l.b16 %v1165
    %v2221 = vunpack.c.h.b16 %v1165
    %v2222 = vunpack.c.l.b16 %v1166
    %v2223 = vunpack.c.h.b16 %v1166
    %v2224 = vunpack.c.l.b16 %v1167
    %v2225 = vunpack.c.h.b16 %v1167
    %v2226 = vunpack.c.l.b16 %v1168
    %v2227 = vunpack.c.h.b16 %v1168
    %v2228 = vunpack.c.l.b16 %v1169
    %v2229 = vunpack.c.h.b16 %v1169
    %v2230 = vunpack.c.l.b16 %v1170
    %v2231 = vunpack.c.h.b16 %v1170
    %v2232 = vunpack.c.l.b16 %v1171
    %v2233 = vunpack.c.h.b16 %v1171
    %v2234 = vunpack.c.l.b16 %v1172
    %v2235 = vunpack.c.h.b16 %v1172
    %v2236 = vunpack.c.l.b16 %v1173
    %v2237 = vunpack.c.h.b16 %v1173
    %v2238 = vunpack.c.l.b16 %v1174
    %v2239 = vunpack.c.h.b16 %v1174
    %v2240 = vunpack.c.l.b16 %v1175
    %v2241 = vunpack.c.h.b16 %v1175
    %v2242 = vunpack.c.l.b16 %v1176
    %v2243 = vunpack.c.h.b16 %v1176
    %v2244 = vunpack.c.l.b16 %v1177
    %v2245 = vunpack.c.h.b16 %v1177
    %v2246 = vunpack.c.l.b16 %v1178
    %v2247 = vunpack.c.h.b16 %v1178
    %v2248 = vunpack.c.l.b16 %v1179
    %v2249 = vunpack.c.h.b16 %v1179
    %v2250 = vunpack.c.l.b16 %v1180
    %v2251 = vunpack.c.h.b16 %v1180
    %v2252 = vunpack.c.l.b16 %v1181
    %v2253 = vunpack.c.h.b16 %v1181
    %v2254 = vunpack.c.l.b16 %v1182
    %v2255 = vunpack.c.h.b16 %v1182
    %v2256 = vunpack.c.l.b16 %v1183
    %v2257 = vunpack.c.h.b16 %v1183
    %v2258 = vunpack.c.l.b16 %v1184
    %v2259 = vunpack.c.h.b16 %v1184
    %v2260 = vunpack.c.l.b16 %v1185
    %v2261 = vunpack.c.h.b16 %v1185
    %v2262 = vpack.c.b16 %v2138, %v2134
    %v2263 = vpack.c.b16 %v2139, %v2135
    %v2264 = vpack.c.b16 %v2140, %v2136
    %v2265 = vpack.c.b16 %v2141, %v2137
    %v2266 = vpack.c.b16 %v2146, %v2142
    %v2267 = vpack.c.b16 %v2147, %v2143
    %v2268 = vpack.c.b16 %v2148, %v2144
    %v2269 = vpack.c.b16 %v2149, %v2145
    %v2270 = vpack.c.b16 %v2154, %v2150
    %v2271 = vpack.c.b16 %v2155, %v2151
    %v2272 = vpack.c.b16 %v2156, %v2152
    %v2273 = vpack.c.b16 %v2157, %v2153
    %v2274 = vpack.c.b16 %v2162, %v2158
    %v2275 = vpack.c.b16 %v2163, %v2159
    %v2276 = vpack.c.b16 %v2164, %v2160
    %v2277 = vpack.c.b16 %v2165, %v2161
    %v2278 = vpack.c.b16 %v2170, %v2166
    %v2279 = vpack.c.b16 %v2171, %v2167
    %v2280 = vpack.c.b16 %v2172, %v2168
    %v2281 = vpack.c.b16 %v2173, %v2169
    %v2282 = vpack.c.b16 %v2178, %v2174
    %v2283 = vpack.c.b16 %v2179, %v2175
    %v2284 = vpack.c.b16 %v2180, %v2176
    %v2285 = vpack.c.b16 %v2181, %v2177
    %v2286 = vpack.c.b16 %v2186, %v2182
    %v2287 = vpack.c.b16 %v2187, %v2183
    %v2288 = vpack.c.b16 %v2188, %v2184
    %v2289 = vpack.c.b16 %v2189, %v2185
    %v2290 = vpack.c.b16 %v2194, %v2190
    %v2291 = vpack.c.b16 %v2195, %v2191
    %v2292 = vpack.c.b16 %v2196, %v2192
    %v2293 = vpack.c.b16 %v2197, %v2193
    %v2294 = vpack.c.b16 %v2202, %v2198
    %v2295 = vpack.c.b16 %v2203, %v2199
    %v2296 = vpack.c.b16 %v2204, %v2200
    %v2297 = vpack.c.b16 %v2205, %v2201
    %v2298 = vpack.c.b16 %v2210, %v2206
    %v2299 = vpack.c.b16 %v2211, %v2207
    %v2300 = vpack.c.b16 %v2212, %v2208
    %v2301 = vpack.c.b16 %v2213, %v2209
    %v2302 = vpack.c.b16 %v2218, %v2214
    %v2303 = vpack.c.b16 %v2219, %v2215
    %v2304 = vpack.c.b16 %v2220, %v2216
    %v2305 = vpack.c.b16 %v2221, %v2217
    %v2306 = vpack.c.b16 %v2226, %v2222
    %v2307 = vpack.c.b16 %v2227, %v2223
    %v2308 = vpack.c.b16 %v2228, %v2224
    %v2309 = vpack.c.b16 %v2229, %v2225
    %v2310 = vpack.c.b16 %v2234, %v2230
    %v2311 = vpack.c.b16 %v2235, %v2231
    %v2312 = vpack.c.b16 %v2236, %v2232
    %v2313 = vpack.c.b16 %v2237, %v2233
    %v2314 = vpack.c.b16 %v2242, %v2238
    %v2315 = vpack.c.b16 %v2243, %v2239
    %v2316 = vpack.c.b16 %v2244, %v2240
    %v2317 = vpack.c.b16 %v2245, %v2241
    %v2318 = vpack.c.b16 %v2250, %v2246
    %v2319 = vpack.c.b16 %v2251, %v2247
    %v2320 = vpack.c.b16 %v2252, %v2248
    %v2321 = vpack.c.b16 %v2253, %v2249
    %v2322 = vpack.c.b16 %v2258, %v2254
    %v2323 = vpack.c.b16 %v2259, %v2255
    %v2324 = vpack.c.b16 %v2260, %v2256
    %v2325 = vpack.c.b16 %v2261, %v2257
    %2390 = vmatprep.subr.bf16.mxu0 %v2291
    %2391 = vmatpush1.bf16.msra.mxu0 %v2290
    %2392 = vmatprep.subr.bf16.mxu0 %v2287
    %2393 = vmatpush1.bf16.msra.mxu0 %v2286
    %2394 = vmatprep.subr.bf16.mxu0 %v2283
    %2395 = vmatpush1.bf16.msra.mxu0 %v2282
    %2396 = vmatprep.subr.bf16.mxu0 %v2279
    %2397 = vmatpush1.bf16.msra.mxu0 %v2278
    %2398 = vmatprep.subr.bf16.mxu0 %v2275
    %2399 = vmatpush1.bf16.msra.mxu0 %v2274
    %2400 = vmatprep.subr.bf16.mxu0 %v2271
    %2401 = vmatpush1.bf16.msra.mxu0 %v2270
    %2402 = vmatprep.subr.bf16.mxu0 %v2267
    %2403 = vmatpush1.bf16.msra.mxu0 %v2266
    %2404 = vmatprep.subr.bf16.mxu0 %v2263
    %2405 = vmatpush1.bf16.msra.mxu0 %v2262
    %2406 = vmatprep.subr.bf16.mxu0 %v2323
    %2407 = vmatpush2.bf16.msra.mxu0 %v2322
    %2408 = vmatprep.subr.bf16.mxu0 %v2319
    %2409 = vmatpush2.bf16.msra.mxu0 %v2318
    %2410 = vmatprep.subr.bf16.mxu0 %v2315
    %2411 = vmatpush2.bf16.msra.mxu0 %v2314
    %2412 = vmatprep.subr.bf16.mxu0 %v2311
    %2413 = vmatpush2.bf16.msra.mxu0 %v2310
    %2414 = vmatprep.subr.bf16.mxu0 %v2307
    %2415 = vmatpush2.bf16.msra.mxu0 %v2306
    %2416 = vmatprep.subr.bf16.mxu0 %v2303
    %2417 = vmatpush2.bf16.msra.mxu0 %v2302
    %2418 = vmatprep.subr.bf16.mxu0 %v2299
    %2419 = vmatpush2.bf16.msra.mxu0 %v2298
    %2420 = vmatprep.subr.bf16.mxu0 %v2295
    %2421 = vmatpush2.bf16.msra.mxu0 %v2294
    %2422 = vmatprep.mubr.bf16.mxu0 %v2069
    %2423 = vmatmul.mubr.bf16.gmra.mxu0 %v2068
    %v2424 = vpop.f32.mrf.mxu0
    %v2425 = vadd.f32 0.0, %v2424
    %v2426 = vpop.f32.mrf.mxu0
    %v2427 = vadd.f32 0.0, %v2426
    %v2428 = vpop.f32.mrf.mxu0
    %v2429 = vpop.f32.mrf.mxu0
    %2430 = vdwg.mxu0
    %2431 = vmatprep.subr.bf16.mxu0 %v2293
    %2432 = vmatpush1.bf16.msra.mxu0 %v2292
    %2433 = vmatprep.subr.bf16.mxu0 %v2289
    %2434 = vmatpush1.bf16.msra.mxu0 %v2288
    %2435 = vmatprep.subr.bf16.mxu0 %v2285
    %2436 = vmatpush1.bf16.msra.mxu0 %v2284
    %2437 = vmatprep.subr.bf16.mxu0 %v2281
    %2438 = vmatpush1.bf16.msra.mxu0 %v2280
    %2439 = vmatprep.subr.bf16.mxu0 %v2277
    %2440 = vmatpush1.bf16.msra.mxu0 %v2276
    %2441 = vmatprep.subr.bf16.mxu0 %v2273
    %2442 = vmatpush1.bf16.msra.mxu0 %v2272
    %2443 = vmatprep.subr.bf16.mxu0 %v2269
    %2444 = vmatpush1.bf16.msra.mxu0 %v2268
    %2445 = vmatprep.subr.bf16.mxu0 %v2265
    %2446 = vmatpush1.bf16.msra.mxu0 %v2264
    %2447 = vmatprep.subr.bf16.mxu0 %v2325
    %2448 = vmatpush2.bf16.msra.mxu0 %v2324
    %2449 = vmatprep.subr.bf16.mxu0 %v2321
    %2450 = vmatpush2.bf16.msra.mxu0 %v2320
    %2451 = vmatprep.subr.bf16.mxu0 %v2317
    %2452 = vmatpush2.bf16.msra.mxu0 %v2316
    %2453 = vmatprep.subr.bf16.mxu0 %v2313
    %2454 = vmatpush2.bf16.msra.mxu0 %v2312
    %2455 = vmatprep.subr.bf16.mxu0 %v2309
    %2456 = vmatpush2.bf16.msra.mxu0 %v2308
    %2457 = vmatprep.subr.bf16.mxu0 %v2305
    %2458 = vmatpush2.bf16.msra.mxu0 %v2304
    %2459 = vmatprep.subr.bf16.mxu0 %v2301
    %2460 = vmatpush2.bf16.msra.mxu0 %v2300
    %2461 = vmatprep.subr.bf16.mxu0 %v2297
    %2462 = vmatpush2.bf16.msra.mxu0 %v2296
    %2463 = vmatprep.mubr.bf16.mxu0 %v2069
    %2464 = vmatmul.mubr.bf16.gmra.mxu0 %v2068
    %v2465 = vpop.f32.mrf.mxu0
    %v2466 = vadd.f32 0.0, %v2465
    %v2467 = vpop.f32.mrf.mxu0
    %v2468 = vadd.f32 0.0, %v2467
    %v2469 = vpop.f32.mrf.mxu0
    %v2470 = vpop.f32.mrf.mxu0
    %2471 = vdwg.mxu0
    %v2472 = vadd.f32 %v979, %v2425
    %v2473 = vadd.f32 %v981, %v2427
    %v2474 = vadd.f32 %v1020, %v2466
    %v2475 = vadd.f32 %v1022, %v2468
    %v2476 = vxor.u32 %v2472, 2147483648
    %v2477 = vxor.u32 %v2473, 2147483648
    %v2478 = vxor.u32 %v2474, 2147483648
    %v2479 = vmul.f32 %v2476, 1.442695
    %v2480 = vpow.pop %v2479
    %v2481 = vmul.f32 %v2477, 1.442695
    %v2482 = vpow.pop %v2481
    %v2483 = vmul.f32 %v2478, 1.442695
    %v2484 = vpow.pop %v2483
    %v2485 = vadd.f32 %v2480, 1.0
    %v2486 = vadd.f32 %v2482, 1.0
    %v2487 = vadd.f32 %v2484, 1.0
    %v2488 = vrcp.pop %v2485
    %v2489 = vmul.f32 1.0, %v2488
    %v2490 = vrcp.pop %v2486
    %v2491 = vmul.f32 1.0, %v2490
    %v2492 = vrcp.pop %v2487
    %v2493 = vmul.f32 1.0, %v2492
    %v2494 = vtanh.pop %v2475
    %v2495 = vmul.f32 %v2491, %v1301
    %v2496 = vmul.f32 %v2489, %v2494
    %v2497 = vadd.f32 %v2495, %v2496
    %v2498 = vtanh.pop %v2497
    %v2499 = vmul.f32 %v2493, %v2498
    %v2500 = vpack.c.bf16 %v2499, %v2499
    %v2501 = vpack.c.bf16 %v1303, %v1303
    %v2566 = vunpack.c.l.b16 %v1186
    %v2567 = vunpack.c.h.b16 %v1186
    %v2568 = vunpack.c.l.b16 %v1187
    %v2569 = vunpack.c.h.b16 %v1187
    %v2570 = vunpack.c.l.b16 %v1188
    %v2571 = vunpack.c.h.b16 %v1188
    %v2572 = vunpack.c.l.b16 %v1189
    %v2573 = vunpack.c.h.b16 %v1189
    %v2574 = vunpack.c.l.b16 %v1190
    %v2575 = vunpack.c.h.b16 %v1190
    %v2576 = vunpack.c.l.b16 %v1191
    %v2577 = vunpack.c.h.b16 %v1191
    %v2578 = vunpack.c.l.b16 %v1192
    %v2579 = vunpack.c.h.b16 %v1192
    %v2580 = vunpack.c.l.b16 %v1193
    %v2581 = vunpack.c.h.b16 %v1193
    %v2582 = vunpack.c.l.b16 %v1194
    %v2583 = vunpack.c.h.b16 %v1194
    %v2584 = vunpack.c.l.b16 %v1195
    %v2585 = vunpack.c.h.b16 %v1195
    %v2586 = vunpack.c.l.b16 %v1196
    %v2587 = vunpack.c.h.b16 %v1196
    %v2588 = vunpack.c.l.b16 %v1197
    %v2589 = vunpack.c.h.b16 %v1197
    %v2590 = vunpack.c.l.b16 %v1198
    %v2591 = vunpack.c.h.b16 %v1198
    %v2592 = vunpack.c.l.b16 %v1199
    %v2593 = vunpack.c.h.b16 %v1199
    %v2594 = vunpack.c.l.b16 %v1200
    %v2595 = vunpack.c.h.b16 %v1200
    %v2596 = vunpack.c.l.b16 %v1201
    %v2597 = vunpack.c.h.b16 %v1201
    %v2598 = vunpack.c.l.b16 %v1202
    %v2599 = vunpack.c.h.b16 %v1202
    %v2600 = vunpack.c.l.b16 %v1203
    %v2601 = vunpack.c.h.b16 %v1203
    %v2602 = vunpack.c.l.b16 %v1204
    %v2603 = vunpack.c.h.b16 %v1204
    %v2604 = vunpack.c.l.b16 %v1205
    %v2605 = vunpack.c.h.b16 %v1205
    %v2606 = vunpack.c.l.b16 %v1206
    %v2607 = vunpack.c.h.b16 %v1206
    %v2608 = vunpack.c.l.b16 %v1207
    %v2609 = vunpack.c.h.b16 %v1207
    %v2610 = vunpack.c.l.b16 %v1208
    %v2611 = vunpack.c.h.b16 %v1208
    %v2612 = vunpack.c.l.b16 %v1209
    %v2613 = vunpack.c.h.b16 %v1209
    %v2614 = vunpack.c.l.b16 %v1210
    %v2615 = vunpack.c.h.b16 %v1210
    %v2616 = vunpack.c.l.b16 %v1211
    %v2617 = vunpack.c.h.b16 %v1211
    %v2618 = vunpack.c.l.b16 %v1212
    %v2619 = vunpack.c.h.b16 %v1212
    %v2620 = vunpack.c.l.b16 %v1213
    %v2621 = vunpack.c.h.b16 %v1213
    %v2622 = vunpack.c.l.b16 %v1214
    %v2623 = vunpack.c.h.b16 %v1214
    %v2624 = vunpack.c.l.b16 %v1215
    %v2625 = vunpack.c.h.b16 %v1215
    %v2626 = vunpack.c.l.b16 %v1216
    %v2627 = vunpack.c.h.b16 %v1216
    %v2628 = vunpack.c.l.b16 %v1217
    %v2629 = vunpack.c.h.b16 %v1217
    %v2630 = vunpack.c.l.b16 %v1218
    %v2631 = vunpack.c.h.b16 %v1218
    %v2632 = vunpack.c.l.b16 %v1219
    %v2633 = vunpack.c.h.b16 %v1219
    %v2634 = vunpack.c.l.b16 %v1220
    %v2635 = vunpack.c.h.b16 %v1220
    %v2636 = vunpack.c.l.b16 %v1221
    %v2637 = vunpack.c.h.b16 %v1221
    %v2638 = vunpack.c.l.b16 %v1222
    %v2639 = vunpack.c.h.b16 %v1222
    %v2640 = vunpack.c.l.b16 %v1223
    %v2641 = vunpack.c.h.b16 %v1223
    %v2642 = vunpack.c.l.b16 %v1224
    %v2643 = vunpack.c.h.b16 %v1224
    %v2644 = vunpack.c.l.b16 %v1225
    %v2645 = vunpack.c.h.b16 %v1225
    %v2646 = vunpack.c.l.b16 %v1226
    %v2647 = vunpack.c.h.b16 %v1226
    %v2648 = vunpack.c.l.b16 %v1227
    %v2649 = vunpack.c.h.b16 %v1227
    %v2650 = vunpack.c.l.b16 %v1228
    %v2651 = vunpack.c.h.b16 %v1228
    %v2652 = vunpack.c.l.b16 %v1229
    %v2653 = vunpack.c.h.b16 %v1229
    %v2654 = vunpack.c.l.b16 %v1230
    %v2655 = vunpack.c.h.b16 %v1230
    %v2656 = vunpack.c.l.b16 %v1231
    %v2657 = vunpack.c.h.b16 %v1231
    %v2658 = vunpack.c.l.b16 %v1232
    %v2659 = vunpack.c.h.b16 %v1232
    %v2660 = vunpack.c.l.b16 %v1233
    %v2661 = vunpack.c.h.b16 %v1233
    %v2662 = vunpack.c.l.b16 %v1234
    %v2663 = vunpack.c.h.b16 %v1234
    %v2664 = vunpack.c.l.b16 %v1235
    %v2665 = vunpack.c.h.b16 %v1235
    %v2666 = vunpack.c.l.b16 %v1236
    %v2667 = vunpack.c.h.b16 %v1236
    %v2668 = vunpack.c.l.b16 %v1237
    %v2669 = vunpack.c.h.b16 %v1237
    %v2670 = vunpack.c.l.b16 %v1238
    %v2671 = vunpack.c.h.b16 %v1238
    %v2672 = vunpack.c.l.b16 %v1239
    %v2673 = vunpack.c.h.b16 %v1239
    %v2674 = vunpack.c.l.b16 %v1240
    %v2675 = vunpack.c.h.b16 %v1240
    %v2676 = vunpack.c.l.b16 %v1241
    %v2677 = vunpack.c.h.b16 %v1241
    %v2678 = vunpack.c.l.b16 %v1242
    %v2679 = vunpack.c.h.b16 %v1242
    %v2680 = vunpack.c.l.b16 %v1243
    %v2681 = vunpack.c.h.b16 %v1243
    %v2682 = vunpack.c.l.b16 %v1244
    %v2683 = vunpack.c.h.b16 %v1244
    %v2684 = vunpack.c.l.b16 %v1245
    %v2685 = vunpack.c.h.b16 %v1245
    %v2686 = vunpack.c.l.b16 %v1246
    %v2687 = vunpack.c.h.b16 %v1246
    %v2688 = vunpack.c.l.b16 %v1247
    %v2689 = vunpack.c.h.b16 %v1247
    %v2690 = vunpack.c.l.b16 %v1248
    %v2691 = vunpack.c.h.b16 %v1248
    %v2692 = vunpack.c.l.b16 %v1249
    %v2693 = vunpack.c.h.b16 %v1249
    %v2694 = vpack.c.b16 %v2570, %v2566
    %v2695 = vpack.c.b16 %v2571, %v2567
    %v2696 = vpack.c.b16 %v2572, %v2568
    %v2697 = vpack.c.b16 %v2573, %v2569
    %v2698 = vpack.c.b16 %v2578, %v2574
    %v2699 = vpack.c.b16 %v2579, %v2575
    %v2700 = vpack.c.b16 %v2580, %v2576
    %v2701 = vpack.c.b16 %v2581, %v2577
    %v2702 = vpack.c.b16 %v2586, %v2582
    %v2703 = vpack.c.b16 %v2587, %v2583
    %v2704 = vpack.c.b16 %v2588, %v2584
    %v2705 = vpack.c.b16 %v2589, %v2585
    %v2706 = vpack.c.b16 %v2594, %v2590
    %v2707 = vpack.c.b16 %v2595, %v2591
    %v2708 = vpack.c.b16 %v2596, %v2592
    %v2709 = vpack.c.b16 %v2597, %v2593
    %v2710 = vpack.c.b16 %v2602, %v2598
    %v2711 = vpack.c.b16 %v2603, %v2599
    %v2712 = vpack.c.b16 %v2604, %v2600
    %v2713 = vpack.c.b16 %v2605, %v2601
    %v2714 = vpack.c.b16 %v2610, %v2606
    %v2715 = vpack.c.b16 %v2611, %v2607
    %v2716 = vpack.c.b16 %v2612, %v2608
    %v2717 = vpack.c.b16 %v2613, %v2609
    %v2718 = vpack.c.b16 %v2618, %v2614
    %v2719 = vpack.c.b16 %v2619, %v2615
    %v2720 = vpack.c.b16 %v2620, %v2616
    %v2721 = vpack.c.b16 %v2621, %v2617
    %v2722 = vpack.c.b16 %v2626, %v2622
    %v2723 = vpack.c.b16 %v2627, %v2623
    %v2724 = vpack.c.b16 %v2628, %v2624
    %v2725 = vpack.c.b16 %v2629, %v2625
    %v2726 = vpack.c.b16 %v2634, %v2630
    %v2727 = vpack.c.b16 %v2635, %v2631
    %v2728 = vpack.c.b16 %v2636, %v2632
    %v2729 = vpack.c.b16 %v2637, %v2633
    %v2730 = vpack.c.b16 %v2642, %v2638
    %v2731 = vpack.c.b16 %v2643, %v2639
    %v2732 = vpack.c.b16 %v2644, %v2640
    %v2733 = vpack.c.b16 %v2645, %v2641
    %v2734 = vpack.c.b16 %v2650, %v2646
    %v2735 = vpack.c.b16 %v2651, %v2647
    %v2736 = vpack.c.b16 %v2652, %v2648
    %v2737 = vpack.c.b16 %v2653, %v2649
    %v2738 = vpack.c.b16 %v2658, %v2654
    %v2739 = vpack.c.b16 %v2659, %v2655
    %v2740 = vpack.c.b16 %v2660, %v2656
    %v2741 = vpack.c.b16 %v2661, %v2657
    %v2742 = vpack.c.b16 %v2666, %v2662
    %v2743 = vpack.c.b16 %v2667, %v2663
    %v2744 = vpack.c.b16 %v2668, %v2664
    %v2745 = vpack.c.b16 %v2669, %v2665
    %v2746 = vpack.c.b16 %v2674, %v2670
    %v2747 = vpack.c.b16 %v2675, %v2671
    %v2748 = vpack.c.b16 %v2676, %v2672
    %v2749 = vpack.c.b16 %v2677, %v2673
    %v2750 = vpack.c.b16 %v2682, %v2678
    %v2751 = vpack.c.b16 %v2683, %v2679
    %v2752 = vpack.c.b16 %v2684, %v2680
    %v2753 = vpack.c.b16 %v2685, %v2681
    %v2754 = vpack.c.b16 %v2690, %v2686
    %v2755 = vpack.c.b16 %v2691, %v2687
    %v2756 = vpack.c.b16 %v2692, %v2688
    %v2757 = vpack.c.b16 %v2693, %v2689
    %2822 = vmatprep.subr.bf16.mxu0 %v2723
    %2823 = vmatpush1.bf16.msra.mxu0 %v2722
    %2824 = vmatprep.subr.bf16.mxu0 %v2719
    %2825 = vmatpush1.bf16.msra.mxu0 %v2718
    %2826 = vmatprep.subr.bf16.mxu0 %v2715
    %2827 = vmatpush1.bf16.msra.mxu0 %v2714
    %2828 = vmatprep.subr.bf16.mxu0 %v2711
    %2829 = vmatpush1.bf16.msra.mxu0 %v2710
    %2830 = vmatprep.subr.bf16.mxu0 %v2707
    %2831 = vmatpush1.bf16.msra.mxu0 %v2706
    %2832 = vmatprep.subr.bf16.mxu0 %v2703
    %2833 = vmatpush1.bf16.msra.mxu0 %v2702
    %2834 = vmatprep.subr.bf16.mxu0 %v2699
    %2835 = vmatpush1.bf16.msra.mxu0 %v2698
    %2836 = vmatprep.subr.bf16.mxu0 %v2695
    %2837 = vmatpush1.bf16.msra.mxu0 %v2694
    %2838 = vmatprep.subr.bf16.mxu0 %v2755
    %2839 = vmatpush2.bf16.msra.mxu0 %v2754
    %2840 = vmatprep.subr.bf16.mxu0 %v2751
    %2841 = vmatpush2.bf16.msra.mxu0 %v2750
    %2842 = vmatprep.subr.bf16.mxu0 %v2747
    %2843 = vmatpush2.bf16.msra.mxu0 %v2746
    %2844 = vmatprep.subr.bf16.mxu0 %v2743
    %2845 = vmatpush2.bf16.msra.mxu0 %v2742
    %2846 = vmatprep.subr.bf16.mxu0 %v2739
    %2847 = vmatpush2.bf16.msra.mxu0 %v2738
    %2848 = vmatprep.subr.bf16.mxu0 %v2735
    %2849 = vmatpush2.bf16.msra.mxu0 %v2734
    %2850 = vmatprep.subr.bf16.mxu0 %v2731
    %2851 = vmatpush2.bf16.msra.mxu0 %v2730
    %2852 = vmatprep.subr.bf16.mxu0 %v2727
    %2853 = vmatpush2.bf16.msra.mxu0 %v2726
    %2854 = vmatprep.mubr.bf16.mxu0 %v2501
    %2855 = vmatmul.mubr.bf16.gmra.mxu0 %v2500
    %v2856 = vpop.f32.mrf.mxu0
    %v2857 = vadd.f32 %v1277, %v2856
    %v2858 = vpop.f32.mrf.mxu0
    %v2859 = vadd.f32 %v1281, %v2858
    %v2860 = vpop.f32.mrf.mxu0
    %v2861 = vpop.f32.mrf.mxu0
    %2862 = vdwg.mxu0
    %2863 = vmatprep.subr.bf16.mxu0 %v2725
    %2864 = vmatpush1.bf16.msra.mxu0 %v2724
    %2865 = vmatprep.subr.bf16.mxu0 %v2721
    %2866 = vmatpush1.bf16.msra.mxu0 %v2720
    %2867 = vmatprep.subr.bf16.mxu0 %v2717
    %2868 = vmatpush1.bf16.msra.mxu0 %v2716
    %2869 = vmatprep.subr.bf16.mxu0 %v2713
    %2870 = vmatpush1.bf16.msra.mxu0 %v2712
    %2871 = vmatprep.subr.bf16.mxu0 %v2709
    %2872 = vmatpush1.bf16.msra.mxu0 %v2708
    %2873 = vmatprep.subr.bf16.mxu0 %v2705
    %2874 = vmatpush1.bf16.msra.mxu0 %v2704
    %2875 = vmatprep.subr.bf16.mxu0 %v2701
    %2876 = vmatpush1.bf16.msra.mxu0 %v2700
    %2877 = vmatprep.subr.bf16.mxu0 %v2697
    %2878 = vmatpush1.bf16.msra.mxu0 %v2696
    %2879 = vmatprep.subr.bf16.mxu0 %v2757
    %2880 = vmatpush2.bf16.msra.mxu0 %v2756
    %2881 = vmatprep.subr.bf16.mxu0 %v2753
    %2882 = vmatpush2.bf16.msra.mxu0 %v2752
    %2883 = vmatprep.subr.bf16.mxu0 %v2749
    %2884 = vmatpush2.bf16.msra.mxu0 %v2748
    %2885 = vmatprep.subr.bf16.mxu0 %v2745
    %2886 = vmatpush2.bf16.msra.mxu0 %v2744
    %2887 = vmatprep.subr.bf16.mxu0 %v2741
    %2888 = vmatpush2.bf16.msra.mxu0 %v2740
    %2889 = vmatprep.subr.bf16.mxu0 %v2737
    %2890 = vmatpush2.bf16.msra.mxu0 %v2736
    %2891 = vmatprep.subr.bf16.mxu0 %v2733
    %2892 = vmatpush2.bf16.msra.mxu0 %v2732
    %2893 = vmatprep.subr.bf16.mxu0 %v2729
    %2894 = vmatpush2.bf16.msra.mxu0 %v2728
    %2895 = vmatprep.mubr.bf16.mxu0 %v2501
    %2896 = vmatmul.mubr.bf16.gmra.mxu0 %v2500
    %v2897 = vpop.f32.mrf.mxu0
    %v2898 = vadd.f32 %v1285, %v2897
    %v2899 = vpop.f32.mrf.mxu0
    %v2900 = vadd.f32 %v1289, %v2899
    %v2901 = vpop.f32.mrf.mxu0
    %v2902 = vpop.f32.mrf.mxu0
    %2903 = vdwg.mxu0
    %v2904 = vxor.u32 %v2857, 2147483648
    %v2905 = vxor.u32 %v2859, 2147483648
    %v2906 = vxor.u32 %v2898, 2147483648
    %v2907 = vmul.f32 %v2904, 1.442695
    %v2908 = vpow.pop %v2907
    %v2909 = vmul.f32 %v2905, 1.442695
    %v2910 = vpow.pop %v2909
    %v2911 = vmul.f32 %v2906, 1.442695
    %v2912 = vpow.pop %v2911
    %v2913 = vadd.f32 %v2908, 1.0
    %v2914 = vadd.f32 %v2910, 1.0
    %v2915 = vadd.f32 %v2912, 1.0
    %v2916 = vrcp.pop %v2913
    %v2917 = vmul.f32 1.0, %v2916
    %v2918 = vrcp.pop %v2914
    %v2919 = vmul.f32 1.0, %v2918
    %v2920 = vrcp.pop %v2915
    %v2921 = vmul.f32 1.0, %v2920
    %v2922 = vtanh.pop %v2900
    %v2923 = vmul.f32 %v2919, %v1305
    %v2924 = vmul.f32 %v2917, %v2922
    %v2925 = vadd.f32 %v2923, %v2924
    %v2926 = vtanh.pop %v2925
    %v2927 = vmul.f32 %v2921, %v2926
    %2928 = vst [vmem:[#allocation2] sm:$0x3] %v2927
    %s2929 = sld [smem:[#allocation3 + $0x1]]
    %p2930 = scmp.gt.s32.totalorder %s2929, 0
    %s2931 = scalar_select %p2930, %s2929, 0
    %p2932 = scmp.lt.s32.totalorder %s2931, 54
    %s2933 = scalar_select %p2932, %s2931, 54
    %s2934 = smul.u32 %s2933, 4
    %s2935 = scalar_lea.vmem [#allocation9], %s2934
    %v2936 = vld [vmem:[%s2935] sm:$0xf]
    %s2937 = sld [smem:[#allocation3 + $0x81]]
    %p2938 = scmp.gt.s32.totalorder %s2937, 0
    %s2939 = scalar_select %p2938, %s2937, 0
    %p2940 = scmp.lt.s32.totalorder %s2939, 54
    %s2941 = scalar_select %p2940, %s2939, 54
    %s2942 = smul.u32 %s2941, 4
    %s2943 = scalar_lea.vmem [#allocation9], %s2942
    %v2944 = vld [vmem:[%s2943] sm:$0xf]
    %v2946 = vlaneseq
    %v2947 = vshrl.u32 %v2946, 7
    %v2948 = vsub.s32 0, %v2947
    %v2949 = vrot.slane %v2936, %v2948
    %v2950 = vlaneseq
    %v2951 = vshrl.u32 %v2950, 7
    %v2952 = vsub.s32 1, %v2951
    %v2953 = vrot.slane %v2936, %v2952
    %v2954 = vlaneseq
    %v2955 = vshrl.u32 %v2954, 7
    %v2956 = vsub.s32 2, %v2955
    %v2957 = vrot.slane %v2936, %v2956
    %v2958 = vlaneseq
    %v2959 = vshrl.u32 %v2958, 7
    %v2960 = vsub.s32 3, %v2959
    %v2961 = vrot.slane %v2936, %v2960
    %v2967 = vlaneseq
    %v2968 = vshrl.u32 %v2967, 7
    %v2969 = vsub.s32 0, %v2968
    %v2970 = vrot.slane %v2944, %v2969
    %v2971 = vlaneseq
    %v2972 = vshrl.u32 %v2971, 7
    %v2973 = vsub.s32 1, %v2972
    %v2974 = vrot.slane %v2944, %v2973
    %v2975 = vlaneseq
    %v2976 = vshrl.u32 %v2975, 7
    %v2977 = vsub.s32 2, %v2976
    %v2978 = vrot.slane %v2944, %v2977
    %v2979 = vlaneseq
    %v2980 = vshrl.u32 %v2979, 7
    %v2981 = vsub.s32 3, %v2980
    %v2982 = vrot.slane %v2944, %v2981
    %v2987 = vsel %vm1364, %v2949, %v2970
    %v2988 = vsel %vm1364, %v2953, %v2974
    %v2989 = vsel %vm1364, %v2957, %v2978
    %v2990 = vsel %vm1364, %v2961, %v2982
    %2991 = vmatprep.subr.bf16.mxu0 %v1495
    %2992 = vmatpush1.bf16.msra.mxu0 %v1494
    %2993 = vmatprep.subr.bf16.mxu0 %v1491
    %2994 = vmatpush1.bf16.msra.mxu0 %v1490
    %2995 = vmatprep.subr.bf16.mxu0 %v1487
    %2996 = vmatpush1.bf16.msra.mxu0 %v1486
    %2997 = vmatprep.subr.bf16.mxu0 %v1483
    %2998 = vmatpush1.bf16.msra.mxu0 %v1482
    %2999 = vmatprep.subr.bf16.mxu0 %v1479
    %3000 = vmatpush1.bf16.msra.mxu0 %v1478
    %3001 = vmatprep.subr.bf16.mxu0 %v1475
    %3002 = vmatpush1.bf16.msra.mxu0 %v1474
    %3003 = vmatprep.subr.bf16.mxu0 %v1471
    %3004 = vmatpush1.bf16.msra.mxu0 %v1470
    %3005 = vmatprep.subr.bf16.mxu0 %v1467
    %3006 = vmatpush1.bf16.msra.mxu0 %v1466
    %3007 = vmatprep.subr.bf16.mxu0 0
    %3008 = vmatpush2.bf16.msra.mxu0 0
    %3009 = vmatprep.subr.bf16.mxu0 0
    %3010 = vmatpush2.bf16.msra.mxu0 0
    %3011 = vmatprep.subr.bf16.mxu0 0
    %3012 = vmatpush2.bf16.msra.mxu0 0
    %3013 = vmatprep.subr.bf16.mxu0 0
    %3014 = vmatpush2.bf16.msra.mxu0 0
    %3015 = vmatprep.subr.bf16.mxu0 0
    %3016 = vmatpush2.bf16.msra.mxu0 0
    %3017 = vmatprep.subr.bf16.mxu0 0
    %3018 = vmatpush2.bf16.msra.mxu0 0
    %3019 = vmatprep.subr.bf16.mxu0 0
    %3020 = vmatpush2.bf16.msra.mxu0 0
    %3021 = vmatprep.subr.bf16.mxu0 0
    %3022 = vmatpush2.bf16.msra.mxu0 0
    %3023 = vmatprep.mubr.bf16.mxu0 0
    %3024 = vmatmul.mubr.bf16.gmra.mxu0 %v1640
    %v3025 = vpop.f32.mrf.mxu0
    %v3026 = vadd.f32 0.0, %v3025
    %v3027 = vpop.f32.mrf.mxu0
    %v3028 = vadd.f32 0.0, %v3027
    %v3029 = vpop.f32.mrf.mxu0
    %v3030 = vpop.f32.mrf.mxu0
    %3031 = vdwg.mxu0
    %3032 = vmatprep.subr.bf16.mxu0 %v1497
    %3033 = vmatpush1.bf16.msra.mxu0 %v1496
    %3034 = vmatprep.subr.bf16.mxu0 %v1493
    %3035 = vmatpush1.bf16.msra.mxu0 %v1492
    %3036 = vmatprep.subr.bf16.mxu0 %v1489
    %3037 = vmatpush1.bf16.msra.mxu0 %v1488
    %3038 = vmatprep.subr.bf16.mxu0 %v1485
    %3039 = vmatpush1.bf16.msra.mxu0 %v1484
    %3040 = vmatprep.subr.bf16.mxu0 %v1481
    %3041 = vmatpush1.bf16.msra.mxu0 %v1480
    %3042 = vmatprep.subr.bf16.mxu0 %v1477
    %3043 = vmatpush1.bf16.msra.mxu0 %v1476
    %3044 = vmatprep.subr.bf16.mxu0 %v1473
    %3045 = vmatpush1.bf16.msra.mxu0 %v1472
    %3046 = vmatprep.subr.bf16.mxu0 %v1469
    %3047 = vmatpush1.bf16.msra.mxu0 %v1468
    %3048 = vmatprep.subr.bf16.mxu0 0
    %3049 = vmatpush2.bf16.msra.mxu0 0
    %3050 = vmatprep.subr.bf16.mxu0 0
    %3051 = vmatpush2.bf16.msra.mxu0 0
    %3052 = vmatprep.subr.bf16.mxu0 0
    %3053 = vmatpush2.bf16.msra.mxu0 0
    %3054 = vmatprep.subr.bf16.mxu0 0
    %3055 = vmatpush2.bf16.msra.mxu0 0
    %3056 = vmatprep.subr.bf16.mxu0 0
    %3057 = vmatpush2.bf16.msra.mxu0 0
    %3058 = vmatprep.subr.bf16.mxu0 0
    %3059 = vmatpush2.bf16.msra.mxu0 0
    %3060 = vmatprep.subr.bf16.mxu0 0
    %3061 = vmatpush2.bf16.msra.mxu0 0
    %3062 = vmatprep.subr.bf16.mxu0 0
    %3063 = vmatpush2.bf16.msra.mxu0 0
    %3064 = vmatprep.mubr.bf16.mxu0 0
    %3065 = vmatmul.mubr.bf16.gmra.mxu0 %v1640
    %v3066 = vpop.f32.mrf.mxu0
    %v3067 = vadd.f32 0.0, %v3066
    %v3068 = vpop.f32.mrf.mxu0
    %v3069 = vadd.f32 0.0, %v3068
    %v3070 = vpop.f32.mrf.mxu0
    %v3071 = vpop.f32.mrf.mxu0
    %3072 = vdwg.mxu0
    %v3073 = vadd.f32 %v2987, %v3026
    %v3074 = vadd.f32 %v2988, %v3028
    %v3075 = vadd.f32 %v2989, %v3067
    %v3076 = vadd.f32 %v2990, %v3069
    %v3077 = vxor.u32 %v3073, 2147483648
    %v3078 = vxor.u32 %v3074, 2147483648
    %v3079 = vxor.u32 %v3075, 2147483648
    %v3080 = vmul.f32 %v3077, 1.442695
    %v3081 = vpow.pop %v3080
    %v3082 = vmul.f32 %v3078, 1.442695
    %v3083 = vpow.pop %v3082
    %v3084 = vmul.f32 %v3079, 1.442695
    %v3085 = vpow.pop %v3084
    %v3086 = vadd.f32 %v3081, 1.0
    %v3087 = vadd.f32 %v3083, 1.0
    %v3088 = vadd.f32 %v3085, 1.0
    %v3089 = vrcp.pop %v3086
    %v3090 = vmul.f32 1.0, %v3089
    %v3091 = vrcp.pop %v3087
    %v3092 = vmul.f32 1.0, %v3091
    %v3093 = vrcp.pop %v3088
    %v3094 = vmul.f32 1.0, %v3093
    %v3095 = vtanh.pop %v3076
    %v3096 = vmul.f32 %v3092, %v1637
    %v3097 = vmul.f32 %v3090, %v3095
    %v3098 = vadd.f32 %v3096, %v3097
    %v3099 = vtanh.pop %v3098
    %v3100 = vmul.f32 %v3094, %v3099
    %v3101 = vpack.c.bf16 %v3100, %v3100
    %3102 = vmatprep.subr.bf16.mxu0 %v1863
    %3103 = vmatpush1.bf16.msra.mxu0 %v1862
    %3104 = vmatprep.subr.bf16.mxu0 %v1859
    %3105 = vmatpush1.bf16.msra.mxu0 %v1858
    %3106 = vmatprep.subr.bf16.mxu0 %v1855
    %3107 = vmatpush1.bf16.msra.mxu0 %v1854
    %3108 = vmatprep.subr.bf16.mxu0 %v1851
    %3109 = vmatpush1.bf16.msra.mxu0 %v1850
    %3110 = vmatprep.subr.bf16.mxu0 %v1847
    %3111 = vmatpush1.bf16.msra.mxu0 %v1846
    %3112 = vmatprep.subr.bf16.mxu0 %v1843
    %3113 = vmatpush1.bf16.msra.mxu0 %v1842
    %3114 = vmatprep.subr.bf16.mxu0 %v1839
    %3115 = vmatpush1.bf16.msra.mxu0 %v1838
    %3116 = vmatprep.subr.bf16.mxu0 %v1835
    %3117 = vmatpush1.bf16.msra.mxu0 %v1834
    %3118 = vmatprep.subr.bf16.mxu0 %v1895
    %3119 = vmatpush2.bf16.msra.mxu0 %v1894
    %3120 = vmatprep.subr.bf16.mxu0 %v1891
    %3121 = vmatpush2.bf16.msra.mxu0 %v1890
    %3122 = vmatprep.subr.bf16.mxu0 %v1887
    %3123 = vmatpush2.bf16.msra.mxu0 %v1886
    %3124 = vmatprep.subr.bf16.mxu0 %v1883
    %3125 = vmatpush2.bf16.msra.mxu0 %v1882
    %3126 = vmatprep.subr.bf16.mxu0 %v1879
    %3127 = vmatpush2.bf16.msra.mxu0 %v1878
    %3128 = vmatprep.subr.bf16.mxu0 %v1875
    %3129 = vmatpush2.bf16.msra.mxu0 %v1874
    %3130 = vmatprep.subr.bf16.mxu0 %v1871
    %3131 = vmatpush2.bf16.msra.mxu0 %v1870
    %3132 = vmatprep.subr.bf16.mxu0 %v1867
    %3133 = vmatpush2.bf16.msra.mxu0 %v1866
    %3134 = vmatprep.mubr.bf16.mxu0 %v2068
    %3135 = vmatmul.mubr.bf16.gmra.mxu0 %v3101
    %v3136 = vpop.f32.mrf.mxu0
    %v3137 = vadd.f32 %v1255, %v3136
    %v3138 = vpop.f32.mrf.mxu0
    %v3139 = vadd.f32 %v1259, %v3138
    %v3140 = vpop.f32.mrf.mxu0
    %v3141 = vpop.f32.mrf.mxu0
    %3142 = vdwg.mxu0
    %3143 = vmatprep.subr.bf16.mxu0 %v1865
    %3144 = vmatpush1.bf16.msra.mxu0 %v1864
    %3145 = vmatprep.subr.bf16.mxu0 %v1861
    %3146 = vmatpush1.bf16.msra.mxu0 %v1860
    %3147 = vmatprep.subr.bf16.mxu0 %v1857
    %3148 = vmatpush1.bf16.msra.mxu0 %v1856
    %3149 = vmatprep.subr.bf16.mxu0 %v1853
    %3150 = vmatpush1.bf16.msra.mxu0 %v1852
    %3151 = vmatprep.subr.bf16.mxu0 %v1849
    %3152 = vmatpush1.bf16.msra.mxu0 %v1848
    %3153 = vmatprep.subr.bf16.mxu0 %v1845
    %3154 = vmatpush1.bf16.msra.mxu0 %v1844
    %3155 = vmatprep.subr.bf16.mxu0 %v1841
    %3156 = vmatpush1.bf16.msra.mxu0 %v1840
    %3157 = vmatprep.subr.bf16.mxu0 %v1837
    %3158 = vmatpush1.bf16.msra.mxu0 %v1836
    %3159 = vmatprep.subr.bf16.mxu0 %v1897
    %3160 = vmatpush2.bf16.msra.mxu0 %v1896
    %3161 = vmatprep.subr.bf16.mxu0 %v1893
    %3162 = vmatpush2.bf16.msra.mxu0 %v1892
    %3163 = vmatprep.subr.bf16.mxu0 %v1889
    %3164 = vmatpush2.bf16.msra.mxu0 %v1888
    %3165 = vmatprep.subr.bf16.mxu0 %v1885
    %3166 = vmatpush2.bf16.msra.mxu0 %v1884
    %3167 = vmatprep.subr.bf16.mxu0 %v1881
    %3168 = vmatpush2.bf16.msra.mxu0 %v1880
    %3169 = vmatprep.subr.bf16.mxu0 %v1877
    %3170 = vmatpush2.bf16.msra.mxu0 %v1876
    %3171 = vmatprep.subr.bf16.mxu0 %v1873
    %3172 = vmatpush2.bf16.msra.mxu0 %v1872
    %3173 = vmatprep.subr.bf16.mxu0 %v1869
    %3174 = vmatpush2.bf16.msra.mxu0 %v1868
    %3175 = vmatprep.mubr.bf16.mxu0 %v2068
    %3176 = vmatmul.mubr.bf16.gmra.mxu0 %v3101
    %v3177 = vpop.f32.mrf.mxu0
    %v3178 = vadd.f32 %v1263, %v3177
    %v3179 = vpop.f32.mrf.mxu0
    %v3180 = vadd.f32 %v1267, %v3179
    %v3181 = vpop.f32.mrf.mxu0
    %v3182 = vpop.f32.mrf.mxu0
    %3183 = vdwg.mxu0
    %v3184 = vxor.u32 %v3137, 2147483648
    %v3185 = vxor.u32 %v3139, 2147483648
    %v3186 = vxor.u32 %v3178, 2147483648
    %v3187 = vmul.f32 %v3184, 1.442695
    %v3188 = vpow.pop %v3187
    %v3189 = vmul.f32 %v3185, 1.442695
    %v3190 = vpow.pop %v3189
    %v3191 = vmul.f32 %v3186, 1.442695
    %v3192 = vpow.pop %v3191
    %v3193 = vadd.f32 %v3188, 1.0
    %v3194 = vadd.f32 %v3190, 1.0
    %v3195 = vadd.f32 %v3192, 1.0
    %v3196 = vrcp.pop %v3193
    %v3197 = vmul.f32 1.0, %v3196
    %v3198 = vrcp.pop %v3194
    %v3199 = vmul.f32 1.0, %v3198
    %v3200 = vrcp.pop %v3195
    %v3201 = vmul.f32 1.0, %v3200
    %v3202 = vtanh.pop %v3180
    %v3203 = vmul.f32 %v3199, %v2065
    %v3204 = vmul.f32 %v3197, %v3202
    %v3205 = vadd.f32 %v3203, %v3204
    %v3206 = vtanh.pop %v3205
    %v3207 = vmul.f32 %v3201, %v3206
    %v3208 = vpack.c.bf16 %v3207, %v3207
    %3209 = vmatprep.subr.bf16.mxu0 %v2291
    %3210 = vmatpush1.bf16.msra.mxu0 %v2290
    %3211 = vmatprep.subr.bf16.mxu0 %v2287
    %3212 = vmatpush1.bf16.msra.mxu0 %v2286
    %3213 = vmatprep.subr.bf16.mxu0 %v2283
    %3214 = vmatpush1.bf16.msra.mxu0 %v2282
    %3215 = vmatprep.subr.bf16.mxu0 %v2279
    %3216 = vmatpush1.bf16.msra.mxu0 %v2278
    %3217 = vmatprep.subr.bf16.mxu0 %v2275
    %3218 = vmatpush1.bf16.msra.mxu0 %v2274
    %3219 = vmatprep.subr.bf16.mxu0 %v2271
    %3220 = vmatpush1.bf16.msra.mxu0 %v2270
    %3221 = vmatprep.subr.bf16.mxu0 %v2267
    %3222 = vmatpush1.bf16.msra.mxu0 %v2266
    %3223 = vmatprep.subr.bf16.mxu0 %v2263
    %3224 = vmatpush1.bf16.msra.mxu0 %v2262
    %3225 = vmatprep.subr.bf16.mxu0 %v2323
    %3226 = vmatpush2.bf16.msra.mxu0 %v2322
    %3227 = vmatprep.subr.bf16.mxu0 %v2319
    %3228 = vmatpush2.bf16.msra.mxu0 %v2318
    %3229 = vmatprep.subr.bf16.mxu0 %v2315
    %3230 = vmatpush2.bf16.msra.mxu0 %v2314
    %3231 = vmatprep.subr.bf16.mxu0 %v2311
    %3232 = vmatpush2.bf16.msra.mxu0 %v2310
    %3233 = vmatprep.subr.bf16.mxu0 %v2307
    %3234 = vmatpush2.bf16.msra.mxu0 %v2306
    %3235 = vmatprep.subr.bf16.mxu0 %v2303
    %3236 = vmatpush2.bf16.msra.mxu0 %v2302
    %3237 = vmatprep.subr.bf16.mxu0 %v2299
    %3238 = vmatpush2.bf16.msra.mxu0 %v2298
    %3239 = vmatprep.subr.bf16.mxu0 %v2295
    %3240 = vmatpush2.bf16.msra.mxu0 %v2294
    %3241 = vmatprep.mubr.bf16.mxu0 %v2500
    %3242 = vmatmul.mubr.bf16.gmra.mxu0 %v3208
    %v3243 = vpop.f32.mrf.mxu0
    %v3244 = vadd.f32 0.0, %v3243
    %v3245 = vpop.f32.mrf.mxu0
    %v3246 = vadd.f32 0.0, %v3245
    %v3247 = vpop.f32.mrf.mxu0
    %v3248 = vpop.f32.mrf.mxu0
    %3249 = vdwg.mxu0
    %3250 = vmatprep.subr.bf16.mxu0 %v2293
    %3251 = vmatpush1.bf16.msra.mxu0 %v2292
    %3252 = vmatprep.subr.bf16.mxu0 %v2289
    %3253 = vmatpush1.bf16.msra.mxu0 %v2288
    %3254 = vmatprep.subr.bf16.mxu0 %v2285
    %3255 = vmatpush1.bf16.msra.mxu0 %v2284
    %3256 = vmatprep.subr.bf16.mxu0 %v2281
    %3257 = vmatpush1.bf16.msra.mxu0 %v2280
    %3258 = vmatprep.subr.bf16.mxu0 %v2277
    %3259 = vmatpush1.bf16.msra.mxu0 %v2276
    %3260 = vmatprep.subr.bf16.mxu0 %v2273
    %3261 = vmatpush1.bf16.msra.mxu0 %v2272
    %3262 = vmatprep.subr.bf16.mxu0 %v2269
    %3263 = vmatpush1.bf16.msra.mxu0 %v2268
    %3264 = vmatprep.subr.bf16.mxu0 %v2265
    %3265 = vmatpush1.bf16.msra.mxu0 %v2264
    %3266 = vmatprep.subr.bf16.mxu0 %v2325
    %3267 = vmatpush2.bf16.msra.mxu0 %v2324
    %3268 = vmatprep.subr.bf16.mxu0 %v2321
    %3269 = vmatpush2.bf16.msra.mxu0 %v2320
    %3270 = vmatprep.subr.bf16.mxu0 %v2317
    %3271 = vmatpush2.bf16.msra.mxu0 %v2316
    %3272 = vmatprep.subr.bf16.mxu0 %v2313
    %3273 = vmatpush2.bf16.msra.mxu0 %v2312
    %3274 = vmatprep.subr.bf16.mxu0 %v2309
    %3275 = vmatpush2.bf16.msra.mxu0 %v2308
    %3276 = vmatprep.subr.bf16.mxu0 %v2305
    %3277 = vmatpush2.bf16.msra.mxu0 %v2304
    %3278 = vmatprep.subr.bf16.mxu0 %v2301
    %3279 = vmatpush2.bf16.msra.mxu0 %v2300
    %3280 = vmatprep.subr.bf16.mxu0 %v2297
    %3281 = vmatpush2.bf16.msra.mxu0 %v2296
    %3282 = vmatprep.mubr.bf16.mxu0 %v2500
    %3283 = vmatmul.mubr.bf16.gmra.mxu0 %v3208
    %v3284 = vpop.f32.mrf.mxu0
    %v3285 = vadd.f32 0.0, %v3284
    %v3286 = vpop.f32.mrf.mxu0
    %v3287 = vadd.f32 0.0, %v3286
    %v3288 = vpop.f32.mrf.mxu0
    %v3289 = vpop.f32.mrf.mxu0
    %3290 = vdwg.mxu0
    %v3291 = vadd.f32 %v979, %v3244
    %v3292 = vadd.f32 %v981, %v3246
    %v3293 = vadd.f32 %v1020, %v3285
    %v3294 = vadd.f32 %v1022, %v3287
    %v3295 = vxor.u32 %v3291, 2147483648
    %v3296 = vxor.u32 %v3292, 2147483648
    %v3297 = vxor.u32 %v3293, 2147483648
    %v3298 = vmul.f32 %v3295, 1.442695
    %v3299 = vpow.pop %v3298
    %v3300 = vmul.f32 %v3296, 1.442695
    %v3301 = vpow.pop %v3300
    %v3302 = vmul.f32 %v3297, 1.442695
    %v3303 = vpow.pop %v3302
    %v3304 = vadd.f32 %v3299, 1.0
    %v3305 = vadd.f32 %v3301, 1.0
    %v3306 = vadd.f32 %v3303, 1.0
    %v3307 = vrcp.pop %v3304
    %v3308 = vmul.f32 1.0, %v3307
    %v3309 = vrcp.pop %v3305
    %v3310 = vmul.f32 1.0, %v3309
    %v3311 = vrcp.pop %v3306
    %v3312 = vmul.f32 1.0, %v3311
    %v3313 = vtanh.pop %v3294
    %v3314 = vmul.f32 %v3310, %v2497
    %v3315 = vmul.f32 %v3308, %v3313
    %v3316 = vadd.f32 %v3314, %v3315
    %v3317 = vtanh.pop %v3316
    %v3318 = vmul.f32 %v3312, %v3317
    %v3319 = vpack.c.bf16 %v3318, %v3318
    %v3320 = vpack.c.bf16 %v2927, %v2927
    %3321 = vmatprep.subr.bf16.mxu0 %v2723
    %3322 = vmatpush1.bf16.msra.mxu0 %v2722
    %3323 = vmatprep.subr.bf16.mxu0 %v2719
    %3324 = vmatpush1.bf16.msra.mxu0 %v2718
    %3325 = vmatprep.subr.bf16.mxu0 %v2715
    %3326 = vmatpush1.bf16.msra.mxu0 %v2714
    %3327 = vmatprep.subr.bf16.mxu0 %v2711
    %3328 = vmatpush1.bf16.msra.mxu0 %v2710
    %3329 = vmatprep.subr.bf16.mxu0 %v2707
    %3330 = vmatpush1.bf16.msra.mxu0 %v2706
    %3331 = vmatprep.subr.bf16.mxu0 %v2703
    %3332 = vmatpush1.bf16.msra.mxu0 %v2702
    %3333 = vmatprep.subr.bf16.mxu0 %v2699
    %3334 = vmatpush1.bf16.msra.mxu0 %v2698
    %3335 = vmatprep.subr.bf16.mxu0 %v2695
    %3336 = vmatpush1.bf16.msra.mxu0 %v2694
    %3337 = vmatprep.subr.bf16.mxu0 %v2755
    %3338 = vmatpush2.bf16.msra.mxu0 %v2754
    %3339 = vmatprep.subr.bf16.mxu0 %v2751
    %3340 = vmatpush2.bf16.msra.mxu0 %v2750
    %3341 = vmatprep.subr.bf16.mxu0 %v2747
    %3342 = vmatpush2.bf16.msra.mxu0 %v2746
    %3343 = vmatprep.subr.bf16.mxu0 %v2743
    %3344 = vmatpush2.bf16.msra.mxu0 %v2742
    %3345 = vmatprep.subr.bf16.mxu0 %v2739
    %3346 = vmatpush2.bf16.msra.mxu0 %v2738
    %3347 = vmatprep.subr.bf16.mxu0 %v2735
    %3348 = vmatpush2.bf16.msra.mxu0 %v2734
    %3349 = vmatprep.subr.bf16.mxu0 %v2731
    %3350 = vmatpush2.bf16.msra.mxu0 %v2730
    %3351 = vmatprep.subr.bf16.mxu0 %v2727
    %3352 = vmatpush2.bf16.msra.mxu0 %v2726
    %3353 = vmatprep.mubr.bf16.mxu0 %v3320
    %3354 = vmatmul.mubr.bf16.gmra.mxu0 %v3319
    %v3355 = vpop.f32.mrf.mxu0
    %v3356 = vadd.f32 %v1277, %v3355
    %v3357 = vpop.f32.mrf.mxu0
    %v3358 = vadd.f32 %v1281, %v3357
    %v3359 = vpop.f32.mrf.mxu0
    %v3360 = vpop.f32.mrf.mxu0
    %3361 = vdwg.mxu0
    %3362 = vmatprep.subr.bf16.mxu0 %v2725
    %3363 = vmatpush1.bf16.msra.mxu0 %v2724
    %3364 = vmatprep.subr.bf16.mxu0 %v2721
    %3365 = vmatpush1.bf16.msra.mxu0 %v2720
    %3366 = vmatprep.subr.bf16.mxu0 %v2717
    %3367 = vmatpush1.bf16.msra.mxu0 %v2716
    %3368 = vmatprep.subr.bf16.mxu0 %v2713
    %3369 = vmatpush1.bf16.msra.mxu0 %v2712
    %3370 = vmatprep.subr.bf16.mxu0 %v2709
    %3371 = vmatpush1.bf16.msra.mxu0 %v2708
    %3372 = vmatprep.subr.bf16.mxu0 %v2705
    %3373 = vmatpush1.bf16.msra.mxu0 %v2704
    %3374 = vmatprep.subr.bf16.mxu0 %v2701
    %3375 = vmatpush1.bf16.msra.mxu0 %v2700
    %3376 = vmatprep.subr.bf16.mxu0 %v2697
    %3377 = vmatpush1.bf16.msra.mxu0 %v2696
    %3378 = vmatprep.subr.bf16.mxu0 %v2757
    %3379 = vmatpush2.bf16.msra.mxu0 %v2756
    %3380 = vmatprep.subr.bf16.mxu0 %v2753
    %3381 = vmatpush2.bf16.msra.mxu0 %v2752
    %3382 = vmatprep.subr.bf16.mxu0 %v2749
    %3383 = vmatpush2.bf16.msra.mxu0 %v2748
    %3384 = vmatprep.subr.bf16.mxu0 %v2745
    %3385 = vmatpush2.bf16.msra.mxu0 %v2744
    %3386 = vmatprep.subr.bf16.mxu0 %v2741
    %3387 = vmatpush2.bf16.msra.mxu0 %v2740
    %3388 = vmatprep.subr.bf16.mxu0 %v2737
    %3389 = vmatpush2.bf16.msra.mxu0 %v2736
    %3390 = vmatprep.subr.bf16.mxu0 %v2733
    %3391 = vmatpush2.bf16.msra.mxu0 %v2732
    %3392 = vmatprep.subr.bf16.mxu0 %v2729
    %3393 = vmatpush2.bf16.msra.mxu0 %v2728
    %3394 = vmatprep.mubr.bf16.mxu0 %v3320
    %3395 = vmatmul.mubr.bf16.gmra.mxu0 %v3319
    %v3396 = vpop.f32.mrf.mxu0
    %v3397 = vadd.f32 %v1285, %v3396
    %v3398 = vpop.f32.mrf.mxu0
    %v3399 = vadd.f32 %v1289, %v3398
    %v3400 = vpop.f32.mrf.mxu0
    %v3401 = vpop.f32.mrf.mxu0
    %3402 = vdwg.mxu0
    %v3403 = vxor.u32 %v3356, 2147483648
    %v3404 = vxor.u32 %v3358, 2147483648
    %v3405 = vxor.u32 %v3397, 2147483648
    %v3406 = vmul.f32 %v3403, 1.442695
    %v3407 = vpow.pop %v3406
    %v3408 = vmul.f32 %v3404, 1.442695
    %v3409 = vpow.pop %v3408
    %v3410 = vmul.f32 %v3405, 1.442695
    %v3411 = vpow.pop %v3410
    %v3412 = vadd.f32 %v3407, 1.0
    %v3413 = vadd.f32 %v3409, 1.0
    %v3414 = vadd.f32 %v3411, 1.0
    %v3415 = vrcp.pop %v3412
    %v3416 = vmul.f32 1.0, %v3415
    %v3417 = vrcp.pop %v3413
    %v3418 = vmul.f32 1.0, %v3417
    %v3419 = vrcp.pop %v3414
    %v3420 = vmul.f32 1.0, %v3419
    %v3421 = vtanh.pop %v3399
    %v3422 = vmul.f32 %v3418, %v2925
    %v3423 = vmul.f32 %v3416, %v3421
    %v3424 = vadd.f32 %v3422, %v3423
    %v3425 = vtanh.pop %v3424
    %v3426 = vmul.f32 %v3420, %v3425
    %3427 = vst [vmem:[#allocation2 + $0x2] sm:$0x3] %v3426
    %s3428 = sld [smem:[#allocation3 + $0x2]]
    %p3429 = scmp.gt.s32.totalorder %s3428, 0
    %s3430 = scalar_select %p3429, %s3428, 0
    %p3431 = scmp.lt.s32.totalorder %s3430, 54
    %s3432 = scalar_select %p3431, %s3430, 54
    %s3433 = smul.u32 %s3432, 4
    %s3434 = scalar_lea.vmem [#allocation9], %s3433
    %v3435 = vld [vmem:[%s3434] sm:$0xf]
    %s3436 = sld [smem:[#allocation3 + $0x82]]
    %p3437 = scmp.gt.s32.totalorder %s3436, 0
    %s3438 = scalar_select %p3437, %s3436, 0
    %p3439 = scmp.lt.s32.totalorder %s3438, 54
    %s3440 = scalar_select %p3439, %s3438, 54
    %s3441 = smul.u32 %s3440, 4
    %s3442 = scalar_lea.vmem [#allocation9], %s3441
    %v3443 = vld [vmem:[%s3442] sm:$0xf]
    %v3445 = vlaneseq
    %v3446 = vshrl.u32 %v3445, 7
    %v3447 = vsub.s32 0, %v3446
    %v3448 = vrot.slane %v3435, %v3447
    %v3449 = vlaneseq
    %v3450 = vshrl.u32 %v3449, 7
    %v3451 = vsub.s32 1, %v3450
    %v3452 = vrot.slane %v3435, %v3451
    %v3453 = vlaneseq
    %v3454 = vshrl.u32 %v3453, 7
    %v3455 = vsub.s32 2, %v3454
    %v3456 = vrot.slane %v3435, %v3455
    %v3457 = vlaneseq
    %v3458 = vshrl.u32 %v3457, 7
    %v3459 = vsub.s32 3, %v3458
    %v3460 = vrot.slane %v3435, %v3459
    %v3466 = vlaneseq
    %v3467 = vshrl.u32 %v3466, 7
    %v3468 = vsub.s32 0, %v3467
    %v3469 = vrot.slane %v3443, %v3468
    %v3470 = vlaneseq
    %v3471 = vshrl.u32 %v3470, 7
    %v3472 = vsub.s32 1, %v3471
    %v3473 = vrot.slane %v3443, %v3472
    %v3474 = vlaneseq
    %v3475 = vshrl.u32 %v3474, 7
    %v3476 = vsub.s32 2, %v3475
    %v3477 = vrot.slane %v3443, %v3476
    %v3478 = vlaneseq
    %v3479 = vshrl.u32 %v3478, 7
    %v3480 = vsub.s32 3, %v3479
    %v3481 = vrot.slane %v3443, %v3480
    %v3486 = vsel %vm1364, %v3448, %v3469
    %v3487 = vsel %vm1364, %v3452, %v3473
    %v3488 = vsel %vm1364, %v3456, %v3477
    %v3489 = vsel %vm1364, %v3460, %v3481
    %3490 = vmatprep.subr.bf16.mxu0 %v1495
    %3491 = vmatpush1.bf16.msra.mxu0 %v1494
    %3492 = vmatprep.subr.bf16.mxu0 %v1491
    %3493 = vmatpush1.bf16.msra.mxu0 %v1490
    %3494 = vmatprep.subr.bf16.mxu0 %v1487
    %3495 = vmatpush1.bf16.msra.mxu0 %v1486
    %3496 = vmatprep.subr.bf16.mxu0 %v1483
    %3497 = vmatpush1.bf16.msra.mxu0 %v1482
    %3498 = vmatprep.subr.bf16.mxu0 %v1479
    %3499 = vmatpush1.bf16.msra.mxu0 %v1478
    %3500 = vmatprep.subr.bf16.mxu0 %v1475
    %3501 = vmatpush1.bf16.msra.mxu0 %v1474
    %3502 = vmatprep.subr.bf16.mxu0 %v1471
    %3503 = vmatpush1.bf16.msra.mxu0 %v1470
    %3504 = vmatprep.subr.bf16.mxu0 %v1467
    %3505 = vmatpush1.bf16.msra.mxu0 %v1466
    %3506 = vmatprep.subr.bf16.mxu0 0
    %3507 = vmatpush2.bf16.msra.mxu0 0
    %3508 = vmatprep.subr.bf16.mxu0 0
    %3509 = vmatpush2.bf16.msra.mxu0 0
    %3510 = vmatprep.subr.bf16.mxu0 0
    %3511 = vmatpush2.bf16.msra.mxu0 0
    %3512 = vmatprep.subr.bf16.mxu0 0
    %3513 = vmatpush2.bf16.msra.mxu0 0
    %3514 = vmatprep.subr.bf16.mxu0 0
    %3515 = vmatpush2.bf16.msra.mxu0 0
    %3516 = vmatprep.subr.bf16.mxu0 0
    %3517 = vmatpush2.bf16.msra.mxu0 0
    %3518 = vmatprep.subr.bf16.mxu0 0
    %3519 = vmatpush2.bf16.msra.mxu0 0
    %3520 = vmatprep.subr.bf16.mxu0 0
    %3521 = vmatpush2.bf16.msra.mxu0 0
    %3522 = vmatprep.mubr.bf16.mxu0 0
    %3523 = vmatmul.mubr.bf16.gmra.mxu0 %v3101
    %v3524 = vpop.f32.mrf.mxu0
    %v3525 = vadd.f32 0.0, %v3524
    %v3526 = vpop.f32.mrf.mxu0
    %v3527 = vadd.f32 0.0, %v3526
    %v3528 = vpop.f32.mrf.mxu0
    %v3529 = vpop.f32.mrf.mxu0
    %3530 = vdwg.mxu0
    %3531 = vmatprep.subr.bf16.mxu0 %v1497
    %3532 = vmatpush1.bf16.msra.mxu0 %v1496
    %3533 = vmatprep.subr.bf16.mxu0 %v1493
    %3534 = vmatpush1.bf16.msra.mxu0 %v1492
    %3535 = vmatprep.subr.bf16.mxu0 %v1489
    %3536 = vmatpush1.bf16.msra.mxu0 %v1488
    %3537 = vmatprep.subr.bf16.mxu0 %v1485
    %3538 = vmatpush1.bf16.msra.mxu0 %v1484
    %3539 = vmatprep.subr.bf16.mxu0 %v1481
    %3540 = vmatpush1.bf16.msra.mxu0 %v1480
    %3541 = vmatprep.subr.bf16.mxu0 %v1477
    %3542 = vmatpush1.bf16.msra.mxu0 %v1476
    %3543 = vmatprep.subr.bf16.mxu0 %v1473
    %3544 = vmatpush1.bf16.msra.mxu0 %v1472
    %3545 = vmatprep.subr.bf16.mxu0 %v1469
    %3546 = vmatpush1.bf16.msra.mxu0 %v1468
    %3547 = vmatprep.subr.bf16.mxu0 0
    %3548 = vmatpush2.bf16.msra.mxu0 0
    %3549 = vmatprep.subr.bf16.mxu0 0
    %3550 = vmatpush2.bf16.msra.mxu0 0
    %3551 = vmatprep.subr.bf16.mxu0 0
    %3552 = vmatpush2.bf16.msra.mxu0 0
    %3553 = vmatprep.subr.bf16.mxu0 0
    %3554 = vmatpush2.bf16.msra.mxu0 0
    %3555 = vmatprep.subr.bf16.mxu0 0
    %3556 = vmatpush2.bf16.msra.mxu0 0
    %3557 = vmatprep.subr.bf16.mxu0 0
    %3558 = vmatpush2.bf16.msra.mxu0 0
    %3559 = vmatprep.subr.bf16.mxu0 0
    %3560 = vmatpush2.bf16.msra.mxu0 0
    %3561 = vmatprep.subr.bf16.mxu0 0
    %3562 = vmatpush2.bf16.msra.mxu0 0
    %3563 = vmatprep.mubr.bf16.mxu0 0
    %3564 = vmatmul.mubr.bf16.gmra.mxu0 %v3101
    %v3565 = vpop.f32.mrf.mxu0
    %v3566 = vadd.f32 0.0, %v3565
    %v3567 = vpop.f32.mrf.mxu0
    %v3568 = vadd.f32 0.0, %v3567
    %v3569 = vpop.f32.mrf.mxu0
    %v3570 = vpop.f32.mrf.mxu0
    %3571 = vdwg.mxu0
    %v3572 = vadd.f32 %v3486, %v3525
    %v3573 = vadd.f32 %v3487, %v3527
    %v3574 = vadd.f32 %v3488, %v3566
    %v3575 = vadd.f32 %v3489, %v3568
    %v3576 = vxor.u32 %v3572, 2147483648
    %v3577 = vxor.u32 %v3573, 2147483648
    %v3578 = vxor.u32 %v3574, 2147483648
    %v3579 = vmul.f32 %v3576, 1.442695
    %v3580 = vpow.pop %v3579
    %v3581 = vmul.f32 %v3577, 1.442695
    %v3582 = vpow.pop %v3581
    %v3583 = vmul.f32 %v3578, 1.442695
    %v3584 = vpow.pop %v3583
    %v3585 = vadd.f32 %v3580, 1.0
    %v3586 = vadd.f32 %v3582, 1.0
    %v3587 = vadd.f32 %v3584, 1.0
    %v3588 = vrcp.pop %v3585
    %v3589 = vmul.f32 1.0, %v3588
    %v3590 = vrcp.pop %v3586
    %v3591 = vmul.f32 1.0, %v3590
    %v3592 = vrcp.pop %v3587
    %v3593 = vmul.f32 1.0, %v3592
    %v3594 = vtanh.pop %v3575
    %v3595 = vmul.f32 %v3591, %v3098
    %v3596 = vmul.f32 %v3589, %v3594
    %v3597 = vadd.f32 %v3595, %v3596
    %v3598 = vtanh.pop %v3597
    %v3599 = vmul.f32 %v3593, %v3598
    %v3600 = vpack.c.bf16 %v3599, %v3599
    %3601 = vmatprep.subr.bf16.mxu0 %v1863
    %3602 = vmatpush1.bf16.msra.mxu0 %v1862
    %3603 = vmatprep.subr.bf16.mxu0 %v1859
    %3604 = vmatpush1.bf16.msra.mxu0 %v1858
    %3605 = vmatprep.subr.bf16.mxu0 %v1855
    %3606 = vmatpush1.bf16.msra.mxu0 %v1854
    %3607 = vmatprep.subr.bf16.mxu0 %v1851
    %3608 = vmatpush1.bf16.msra.mxu0 %v1850
    %3609 = vmatprep.subr.bf16.mxu0 %v1847
    %3610 = vmatpush1.bf16.msra.mxu0 %v1846
    %3611 = vmatprep.subr.bf16.mxu0 %v1843
    %3612 = vmatpush1.bf16.msra.mxu0 %v1842
    %3613 = vmatprep.subr.bf16.mxu0 %v1839
    %3614 = vmatpush1.bf16.msra.mxu0 %v1838
    %3615 = vmatprep.subr.bf16.mxu0 %v1835
    %3616 = vmatpush1.bf16.msra.mxu0 %v1834
    %3617 = vmatprep.subr.bf16.mxu0 %v1895
    %3618 = vmatpush2.bf16.msra.mxu0 %v1894
    %3619 = vmatprep.subr.bf16.mxu0 %v1891
    %3620 = vmatpush2.bf16.msra.mxu0 %v1890
    %3621 = vmatprep.subr.bf16.mxu0 %v1887
    %3622 = vmatpush2.bf16.msra.mxu0 %v1886
    %3623 = vmatprep.subr.bf16.mxu0 %v1883
    %3624 = vmatpush2.bf16.msra.mxu0 %v1882
    %3625 = vmatprep.subr.bf16.mxu0 %v1879
    %3626 = vmatpush2.bf16.msra.mxu0 %v1878
    %3627 = vmatprep.subr.bf16.mxu0 %v1875
    %3628 = vmatpush2.bf16.msra.mxu0 %v1874
    %3629 = vmatprep.subr.bf16.mxu0 %v1871
    %3630 = vmatpush2.bf16.msra.mxu0 %v1870
    %3631 = vmatprep.subr.bf16.mxu0 %v1867
    %3632 = vmatpush2.bf16.msra.mxu0 %v1866
    %3633 = vmatprep.mubr.bf16.mxu0 %v3208
    %3634 = vmatmul.mubr.bf16.gmra.mxu0 %v3600
    %v3635 = vpop.f32.mrf.mxu0
    %v3636 = vadd.f32 %v1255, %v3635
    %v3637 = vpop.f32.mrf.mxu0
    %v3638 = vadd.f32 %v1259, %v3637
    %v3639 = vpop.f32.mrf.mxu0
    %v3640 = vpop.f32.mrf.mxu0
    %3641 = vdwg.mxu0
    %3642 = vmatprep.subr.bf16.mxu0 %v1865
    %3643 = vmatpush1.bf16.msra.mxu0 %v1864
    %3644 = vmatprep.subr.bf16.mxu0 %v1861
    %3645 = vmatpush1.bf16.msra.mxu0 %v1860
    %3646 = vmatprep.subr.bf16.mxu0 %v1857
    %3647 = vmatpush1.bf16.msra.mxu0 %v1856
    %3648 = vmatprep.subr.bf16.mxu0 %v1853
    %3649 = vmatpush1.bf16.msra.mxu0 %v1852
    %3650 = vmatprep.subr.bf16.mxu0 %v1849
    %3651 = vmatpush1.bf16.msra.mxu0 %v1848
    %3652 = vmatprep.subr.bf16.mxu0 %v1845
    %3653 = vmatpush1.bf16.msra.mxu0 %v1844
    %3654 = vmatprep.subr.bf16.mxu0 %v1841
    %3655 = vmatpush1.bf16.msra.mxu0 %v1840
    %3656 = vmatprep.subr.bf16.mxu0 %v1837
    %3657 = vmatpush1.bf16.msra.mxu0 %v1836
    %3658 = vmatprep.subr.bf16.mxu0 %v1897
    %3659 = vmatpush2.bf16.msra.mxu0 %v1896
    %3660 = vmatprep.subr.bf16.mxu0 %v1893
    %3661 = vmatpush2.bf16.msra.mxu0 %v1892
    %3662 = vmatprep.subr.bf16.mxu0 %v1889
    %3663 = vmatpush2.bf16.msra.mxu0 %v1888
    %3664 = vmatprep.subr.bf16.mxu0 %v1885
    %3665 = vmatpush2.bf16.msra.mxu0 %v1884
    %3666 = vmatprep.subr.bf16.mxu0 %v1881
    %3667 = vmatpush2.bf16.msra.mxu0 %v1880
    %3668 = vmatprep.subr.bf16.mxu0 %v1877
    %3669 = vmatpush2.bf16.msra.mxu0 %v1876
    %3670 = vmatprep.subr.bf16.mxu0 %v1873
    %3671 = vmatpush2.bf16.msra.mxu0 %v1872
    %3672 = vmatprep.subr.bf16.mxu0 %v1869
    %3673 = vmatpush2.bf16.msra.mxu0 %v1868
    %3674 = vmatprep.mubr.bf16.mxu0 %v3208
    %3675 = vmatmul.mubr.bf16.gmra.mxu0 %v3600
    %v3676 = vpop.f32.mrf.mxu0
    %v3677 = vadd.f32 %v1263, %v3676
    %v3678 = vpop.f32.mrf.mxu0
    %v3679 = vadd.f32 %v1267, %v3678
    %v3680 = vpop.f32.mrf.mxu0
    %v3681 = vpop.f32.mrf.mxu0
    %3682 = vdwg.mxu0
    %v3683 = vxor.u32 %v3636, 2147483648
    %v3684 = vxor.u32 %v3638, 2147483648
    %v3685 = vxor.u32 %v3677, 2147483648
    %v3686 = vmul.f32 %v3683, 1.442695
    %v3687 = vpow.pop %v3686
    %v3688 = vmul.f32 %v3684, 1.442695
    %v3689 = vpow.pop %v3688
    %v3690 = vmul.f32 %v3685, 1.442695
    %v3691 = vpow.pop %v3690
    %v3692 = vadd.f32 %v3687, 1.0
    %v3693 = vadd.f32 %v3689, 1.0
    %v3694 = vadd.f32 %v3691, 1.0
    %v3695 = vrcp.pop %v3692
    %v3696 = vmul.f32 1.0, %v3695
    %v3697 = vrcp.pop %v3693
    %v3698 = vmul.f32 1.0, %v3697
    %v3699 = vrcp.pop %v3694
    %v3700 = vmul.f32 1.0, %v3699
    %v3701 = vtanh.pop %v3679
    %v3702 = vmul.f32 %v3698, %v3205
    %v3703 = vmul.f32 %v3696, %v3701
    %v3704 = vadd.f32 %v3702, %v3703
    %v3705 = vtanh.pop %v3704
    %v3706 = vmul.f32 %v3700, %v3705
    %v3707 = vpack.c.bf16 %v3706, %v3706
    %3708 = vmatprep.subr.bf16.mxu0 %v2291
    %3709 = vmatpush1.bf16.msra.mxu0 %v2290
    %3710 = vmatprep.subr.bf16.mxu0 %v2287
    %3711 = vmatpush1.bf16.msra.mxu0 %v2286
    %3712 = vmatprep.subr.bf16.mxu0 %v2283
    %3713 = vmatpush1.bf16.msra.mxu0 %v2282
    %3714 = vmatprep.subr.bf16.mxu0 %v2279
    %3715 = vmatpush1.bf16.msra.mxu0 %v2278
    %3716 = vmatprep.subr.bf16.mxu0 %v2275
    %3717 = vmatpush1.bf16.msra.mxu0 %v2274
    %3718 = vmatprep.subr.bf16.mxu0 %v2271
    %3719 = vmatpush1.bf16.msra.mxu0 %v2270
    %3720 = vmatprep.subr.bf16.mxu0 %v2267
    %3721 = vmatpush1.bf16.msra.mxu0 %v2266
    %3722 = vmatprep.subr.bf16.mxu0 %v2263
    %3723 = vmatpush1.bf16.msra.mxu0 %v2262
    %3724 = vmatprep.subr.bf16.mxu0 %v2323
    %3725 = vmatpush2.bf16.msra.mxu0 %v2322
    %3726 = vmatprep.subr.bf16.mxu0 %v2319
    %3727 = vmatpush2.bf16.msra.mxu0 %v2318
    %3728 = vmatprep.subr.bf16.mxu0 %v2315
    %3729 = vmatpush2.bf16.msra.mxu0 %v2314
    %3730 = vmatprep.subr.bf16.mxu0 %v2311
    %3731 = vmatpush2.bf16.msra.mxu0 %v2310
    %3732 = vmatprep.subr.bf16.mxu0 %v2307
    %3733 = vmatpush2.bf16.msra.mxu0 %v2306
    %3734 = vmatprep.subr.bf16.mxu0 %v2303
    %3735 = vmatpush2.bf16.msra.mxu0 %v2302
    %3736 = vmatprep.subr.bf16.mxu0 %v2299
    %3737 = vmatpush2.bf16.msra.mxu0 %v2298
    %3738 = vmatprep.subr.bf16.mxu0 %v2295
    %3739 = vmatpush2.bf16.msra.mxu0 %v2294
    %3740 = vmatprep.mubr.bf16.mxu0 %v3319
    %3741 = vmatmul.mubr.bf16.gmra.mxu0 %v3707
    %v3742 = vpop.f32.mrf.mxu0
    %v3743 = vadd.f32 0.0, %v3742
    %v3744 = vpop.f32.mrf.mxu0
    %v3745 = vadd.f32 0.0, %v3744
    %v3746 = vpop.f32.mrf.mxu0
    %v3747 = vpop.f32.mrf.mxu0
    %3748 = vdwg.mxu0
    %3749 = vmatprep.subr.bf16.mxu0 %v2293
    %3750 = vmatpush1.bf16.msra.mxu0 %v2292
    %3751 = vmatprep.subr.bf16.mxu0 %v2289
    %3752 = vmatpush1.bf16.msra.mxu0 %v2288
    %3753 = vmatprep.subr.bf16.mxu0 %v2285
    %3754 = vmatpush1.bf16.msra.mxu0 %v2284
    %3755 = vmatprep.subr.bf16.mxu0 %v2281
    %3756 = vmatpush1.bf16.msra.mxu0 %v2280
    %3757 = vmatprep.subr.bf16.mxu0 %v2277
    %3758 = vmatpush1.bf16.msra.mxu0 %v2276
    %3759 = vmatprep.subr.bf16.mxu0 %v2273
    %3760 = vmatpush1.bf16.msra.mxu0 %v2272
    %3761 = vmatprep.subr.bf16.mxu0 %v2269
    %3762 = vmatpush1.bf16.msra.mxu0 %v2268
    %3763 = vmatprep.subr.bf16.mxu0 %v2265
    %3764 = vmatpush1.bf16.msra.mxu0 %v2264
    %3765 = vmatprep.subr.bf16.mxu0 %v2325
    %3766 = vmatpush2.bf16.msra.mxu0 %v2324
    %3767 = vmatprep.subr.bf16.mxu0 %v2321
    %3768 = vmatpush2.bf16.msra.mxu0 %v2320
    %3769 = vmatprep.subr.bf16.mxu0 %v2317
    %3770 = vmatpush2.bf16.msra.mxu0 %v2316
    %3771 = vmatprep.subr.bf16.mxu0 %v2313
    %3772 = vmatpush2.bf16.msra.mxu0 %v2312
    %3773 = vmatprep.subr.bf16.mxu0 %v2309
    %3774 = vmatpush2.bf16.msra.mxu0 %v2308
    %3775 = vmatprep.subr.bf16.mxu0 %v2305
    %3776 = vmatpush2.bf16.msra.mxu0 %v2304
    %3777 = vmatprep.subr.bf16.mxu0 %v2301
    %3778 = vmatpush2.bf16.msra.mxu0 %v2300
    %3779 = vmatprep.subr.bf16.mxu0 %v2297
    %3780 = vmatpush2.bf16.msra.mxu0 %v2296
    %3781 = vmatprep.mubr.bf16.mxu0 %v3319
    %3782 = vmatmul.mubr.bf16.gmra.mxu0 %v3707
    %v3783 = vpop.f32.mrf.mxu0
    %v3784 = vadd.f32 0.0, %v3783
    %v3785 = vpop.f32.mrf.mxu0
    %v3786 = vadd.f32 0.0, %v3785
    %v3787 = vpop.f32.mrf.mxu0
    %v3788 = vpop.f32.mrf.mxu0
    %3789 = vdwg.mxu0
    %v3790 = vadd.f32 %v979, %v3743
    %v3791 = vadd.f32 %v981, %v3745
    %v3792 = vadd.f32 %v1020, %v3784
    %v3793 = vadd.f32 %v1022, %v3786
    %v3794 = vxor.u32 %v3790, 2147483648
    %v3795 = vxor.u32 %v3791, 2147483648
    %v3796 = vxor.u32 %v3792, 2147483648
    %v3797 = vmul.f32 %v3794, 1.442695
    %v3798 = vpow.pop %v3797
    %v3799 = vmul.f32 %v3795, 1.442695
    %v3800 = vpow.pop %v3799
    %v3801 = vmul.f32 %v3796, 1.442695
    %v3802 = vpow.pop %v3801
    %v3803 = vadd.f32 %v3798, 1.0
    %v3804 = vadd.f32 %v3800, 1.0
    %v3805 = vadd.f32 %v3802, 1.0
    %v3806 = vrcp.pop %v3803
    %v3807 = vmul.f32 1.0, %v3806
    %v3808 = vrcp.pop %v3804
    %v3809 = vmul.f32 1.0, %v3808
    %v3810 = vrcp.pop %v3805
    %v3811 = vmul.f32 1.0, %v3810
    %v3812 = vtanh.pop %v3793
    %v3813 = vmul.f32 %v3809, %v3316
    %v3814 = vmul.f32 %v3807, %v3812
    %v3815 = vadd.f32 %v3813, %v3814
    %v3816 = vtanh.pop %v3815
    %v3817 = vmul.f32 %v3811, %v3816
    %v3818 = vpack.c.bf16 %v3817, %v3817
    %v3819 = vpack.c.bf16 %v3426, %v3426
    %3820 = vmatprep.subr.bf16.mxu0 %v2723
    %3821 = vmatpush1.bf16.msra.mxu0 %v2722
    %3822 = vmatprep.subr.bf16.mxu0 %v2719
    %3823 = vmatpush1.bf16.msra.mxu0 %v2718
    %3824 = vmatprep.subr.bf16.mxu0 %v2715
    %3825 = vmatpush1.bf16.msra.mxu0 %v2714
    %3826 = vmatprep.subr.bf16.mxu0 %v2711
    %3827 = vmatpush1.bf16.msra.mxu0 %v2710
    %3828 = vmatprep.subr.bf16.mxu0 %v2707
    %3829 = vmatpush1.bf16.msra.mxu0 %v2706
    %3830 = vmatprep.subr.bf16.mxu0 %v2703
    %3831 = vmatpush1.bf16.msra.mxu0 %v2702
    %3832 = vmatprep.subr.bf16.mxu0 %v2699
    %3833 = vmatpush1.bf16.msra.mxu0 %v2698
    %3834 = vmatprep.subr.bf16.mxu0 %v2695
    %3835 = vmatpush1.bf16.msra.mxu0 %v2694
    %3836 = vmatprep.subr.bf16.mxu0 %v2755
    %3837 = vmatpush2.bf16.msra.mxu0 %v2754
    %3838 = vmatprep.subr.bf16.mxu0 %v2751
    %3839 = vmatpush2.bf16.msra.mxu0 %v2750
    %3840 = vmatprep.subr.bf16.mxu0 %v2747
    %3841 = vmatpush2.bf16.msra.mxu0 %v2746
    %3842 = vmatprep.subr.bf16.mxu0 %v2743
    %3843 = vmatpush2.bf16.msra.mxu0 %v2742
    %3844 = vmatprep.subr.bf16.mxu0 %v2739
    %3845 = vmatpush2.bf16.msra.mxu0 %v2738
    %3846 = vmatprep.subr.bf16.mxu0 %v2735
    %3847 = vmatpush2.bf16.msra.mxu0 %v2734
    %3848 = vmatprep.subr.bf16.mxu0 %v2731
    %3849 = vmatpush2.bf16.msra.mxu0 %v2730
    %3850 = vmatprep.subr.bf16.mxu0 %v2727
    %3851 = vmatpush2.bf16.msra.mxu0 %v2726
    %3852 = vmatprep.mubr.bf16.mxu0 %v3819
    %3853 = vmatmul.mubr.bf16.gmra.mxu0 %v3818
    %v3854 = vpop.f32.mrf.mxu0
    %v3855 = vadd.f32 %v1277, %v3854
    %v3856 = vpop.f32.mrf.mxu0
    %v3857 = vadd.f32 %v1281, %v3856
    %v3858 = vpop.f32.mrf.mxu0
    %v3859 = vpop.f32.mrf.mxu0
    %3860 = vdwg.mxu0
    %3861 = vmatprep.subr.bf16.mxu0 %v2725
    %3862 = vmatpush1.bf16.msra.mxu0 %v2724
    %3863 = vmatprep.subr.bf16.mxu0 %v2721
    %3864 = vmatpush1.bf16.msra.mxu0 %v2720
    %3865 = vmatprep.subr.bf16.mxu0 %v2717
    %3866 = vmatpush1.bf16.msra.mxu0 %v2716
    %3867 = vmatprep.subr.bf16.mxu0 %v2713
    %3868 = vmatpush1.bf16.msra.mxu0 %v2712
    %3869 = vmatprep.subr.bf16.mxu0 %v2709
    %3870 = vmatpush1.bf16.msra.mxu0 %v2708
    %3871 = vmatprep.subr.bf16.mxu0 %v2705
    %3872 = vmatpush1.bf16.msra.mxu0 %v2704
    %3873 = vmatprep.subr.bf16.mxu0 %v2701
    %3874 = vmatpush1.bf16.msra.mxu0 %v2700
    %3875 = vmatprep.subr.bf16.mxu0 %v2697
    %3876 = vmatpush1.bf16.msra.mxu0 %v2696
    %3877 = vmatprep.subr.bf16.mxu0 %v2757
    %3878 = vmatpush2.bf16.msra.mxu0 %v2756
    %3879 = vmatprep.subr.bf16.mxu0 %v2753
    %3880 = vmatpush2.bf16.msra.mxu0 %v2752
    %3881 = vmatprep.subr.bf16.mxu0 %v2749
    %3882 = vmatpush2.bf16.msra.mxu0 %v2748
    %3883 = vmatprep.subr.bf16.mxu0 %v2745
    %3884 = vmatpush2.bf16.msra.mxu0 %v2744
    %3885 = vmatprep.subr.bf16.mxu0 %v2741
    %3886 = vmatpush2.bf16.msra.mxu0 %v2740
    %3887 = vmatprep.subr.bf16.mxu0 %v2737
    %3888 = vmatpush2.bf16.msra.mxu0 %v2736
    %3889 = vmatprep.subr.bf16.mxu0 %v2733
    %3890 = vmatpush2.bf16.msra.mxu0 %v2732
    %3891 = vmatprep.subr.bf16.mxu0 %v2729
    %3892 = vmatpush2.bf16.msra.mxu0 %v2728
    %3893 = vmatprep.mubr.bf16.mxu0 %v3819
    %3894 = vmatmul.mubr.bf16.gmra.mxu0 %v3818
    %v3895 = vpop.f32.mrf.mxu0
    %v3896 = vadd.f32 %v1285, %v3895
    %v3897 = vpop.f32.mrf.mxu0
    %v3898 = vadd.f32 %v1289, %v3897
    %v3899 = vpop.f32.mrf.mxu0
    %v3900 = vpop.f32.mrf.mxu0
    %3901 = vdwg.mxu0
    %v3902 = vxor.u32 %v3855, 2147483648
    %v3903 = vxor.u32 %v3857, 2147483648
    %v3904 = vxor.u32 %v3896, 2147483648
    %v3905 = vmul.f32 %v3902, 1.442695
    %v3906 = vpow.pop %v3905
    %v3907 = vmul.f32 %v3903, 1.442695
    %v3908 = vpow.pop %v3907
    %v3909 = vmul.f32 %v3904, 1.442695
    %v3910 = vpow.pop %v3909
    %v3911 = vadd.f32 %v3906, 1.0
    %v3912 = vadd.f32 %v3908, 1.0
    %v3913 = vadd.f32 %v3910, 1.0
    %v3914 = vrcp.pop %v3911
    %v3915 = vmul.f32 1.0, %v3914
    %v3916 = vrcp.pop %v3912
    %v3917 = vmul.f32 1.0, %v3916
    %v3918 = vrcp.pop %v3913
    %v3919 = vmul.f32 1.0, %v3918
    %v3920 = vtanh.pop %v3898
    %v3921 = vmul.f32 %v3917, %v3424
    %v3922 = vmul.f32 %v3915, %v3920
    %v3923 = vadd.f32 %v3921, %v3922
    %v3924 = vtanh.pop %v3923
    %v3925 = vmul.f32 %v3919, %v3924
    %3926 = vst [vmem:[#allocation2 + $0x4] sm:$0x3] %v3925
    %s3927 = sld [smem:[#allocation3 + $0x3]]
    %p3928 = scmp.gt.s32.totalorder %s3927, 0
    %s3929 = scalar_select %p3928, %s3927, 0
    %p3930 = scmp.lt.s32.totalorder %s3929, 54
    %s3931 = scalar_select %p3930, %s3929, 54
    %s3932 = smul.u32 %s3931, 4
    %s3933 = scalar_lea.vmem [#allocation9], %s3932
    %v3934 = vld [vmem:[%s3933] sm:$0xf]
    %s3935 = sld [smem:[#allocation3 + $0x83]]
    %p3936 = scmp.gt.s32.totalorder %s3935, 0
    %s3937 = scalar_select %p3936, %s3935, 0
    %p3938 = scmp.lt.s32.totalorder %s3937, 54
    %s3939 = scalar_select %p3938, %s3937, 54
    %s3940 = smul.u32 %s3939, 4
    %s3941 = scalar_lea.vmem [#allocation9], %s3940
    %v3942 = vld [vmem:[%s3941] sm:$0xf]
    %v3944 = vlaneseq
    %v3945 = vshrl.u32 %v3944, 7
    %v3946 = vsub.s32 0, %v3945
    %v3947 = vrot.slane %v3934, %v3946
    %v3948 = vlaneseq
    %v3949 = vshrl.u32 %v3948, 7
    %v3950 = vsub.s32 1, %v3949
    %v3951 = vrot.slane %v3934, %v3950
    %v3952 = vlaneseq
    %v3953 = vshrl.u32 %v3952, 7
    %v3954 = vsub.s32 2, %v3953
    %v3955 = vrot.slane %v3934, %v3954
    %v3956 = vlaneseq
    %v3957 = vshrl.u32 %v3956, 7
    %v3958 = vsub.s32 3, %v3957
    %v3959 = vrot.slane %v3934, %v3958
    %v3965 = vlaneseq
    %v3966 = vshrl.u32 %v3965, 7
    %v3967 = vsub.s32 0, %v3966
    %v3968 = vrot.slane %v3942, %v3967
    %v3969 = vlaneseq
    %v3970 = vshrl.u32 %v3969, 7
    %v3971 = vsub.s32 1, %v3970
    %v3972 = vrot.slane %v3942, %v3971
    %v3973 = vlaneseq
    %v3974 = vshrl.u32 %v3973, 7
    %v3975 = vsub.s32 2, %v3974
    %v3976 = vrot.slane %v3942, %v3975
    %v3977 = vlaneseq
    %v3978 = vshrl.u32 %v3977, 7
    %v3979 = vsub.s32 3, %v3978
    %v3980 = vrot.slane %v3942, %v3979
    %v3985 = vsel %vm1364, %v3947, %v3968
    %v3986 = vsel %vm1364, %v3951, %v3972
    %v3987 = vsel %vm1364, %v3955, %v3976
    %v3988 = vsel %vm1364, %v3959, %v3980
    %3989 = vmatprep.subr.bf16.mxu0 %v1495
    %3990 = vmatpush1.bf16.msra.mxu0 %v1494
    %3991 = vmatprep.subr.bf16.mxu0 %v1491
    %3992 = vmatpush1.bf16.msra.mxu0 %v1490
    %3993 = vmatprep.subr.bf16.mxu0 %v1487
    %3994 = vmatpush1.bf16.msra.mxu0 %v1486
    %3995 = vmatprep.subr.bf16.mxu0 %v1483
    %3996 = vmatpush1.bf16.msra.mxu0 %v1482
    %3997 = vmatprep.subr.bf16.mxu0 %v1479
    %3998 = vmatpush1.bf16.msra.mxu0 %v1478
    %3999 = vmatprep.subr.bf16.mxu0 %v1475
    %4000 = vmatpush1.bf16.msra.mxu0 %v1474
    %4001 = vmatprep.subr.bf16.mxu0 %v1471
    %4002 = vmatpush1.bf16.msra.mxu0 %v1470
    %4003 = vmatprep.subr.bf16.mxu0 %v1467
    %4004 = vmatpush1.bf16.msra.mxu0 %v1466
    %4005 = vmatprep.subr.bf16.mxu0 0
    %4006 = vmatpush2.bf16.msra.mxu0 0
    %4007 = vmatprep.subr.bf16.mxu0 0
    %4008 = vmatpush2.bf16.msra.mxu0 0
    %4009 = vmatprep.subr.bf16.mxu0 0
    %4010 = vmatpush2.bf16.msra.mxu0 0
    %4011 = vmatprep.subr.bf16.mxu0 0
    %4012 = vmatpush2.bf16.msra.mxu0 0
    %4013 = vmatprep.subr.bf16.mxu0 0
    %4014 = vmatpush2.bf16.msra.mxu0 0
    %4015 = vmatprep.subr.bf16.mxu0 0
    %4016 = vmatpush2.bf16.msra.mxu0 0
    %4017 = vmatprep.subr.bf16.mxu0 0
    %4018 = vmatpush2.bf16.msra.mxu0 0
    %4019 = vmatprep.subr.bf16.mxu0 0
    %4020 = vmatpush2.bf16.msra.mxu0 0
    %4021 = vmatprep.mubr.bf16.mxu0 0
    %4022 = vmatmul.mubr.bf16.gmra.mxu0 %v3600
    %v4023 = vpop.f32.mrf.mxu0
    %v4024 = vadd.f32 0.0, %v4023
    %v4025 = vpop.f32.mrf.mxu0
    %v4026 = vadd.f32 0.0, %v4025
    %v4027 = vpop.f32.mrf.mxu0
    %v4028 = vpop.f32.mrf.mxu0
    %4029 = vdwg.mxu0
    %4030 = vmatprep.subr.bf16.mxu0 %v1497
    %4031 = vmatpush1.bf16.msra.mxu0 %v1496
    %4032 = vmatprep.subr.bf16.mxu0 %v1493
    %4033 = vmatpush1.bf16.msra.mxu0 %v1492
    %4034 = vmatprep.subr.bf16.mxu0 %v1489
    %4035 = vmatpush1.bf16.msra.mxu0 %v1488
    %4036 = vmatprep.subr.bf16.mxu0 %v1485
    %4037 = vmatpush1.bf16.msra.mxu0 %v1484
    %4038 = vmatprep.subr.bf16.mxu0 %v1481
    %4039 = vmatpush1.bf16.msra.mxu0 %v1480
    %4040 = vmatprep.subr.bf16.mxu0 %v1477
    %4041 = vmatpush1.bf16.msra.mxu0 %v1476
    %4042 = vmatprep.subr.bf16.mxu0 %v1473
    %4043 = vmatpush1.bf16.msra.mxu0 %v1472
    %4044 = vmatprep.subr.bf16.mxu0 %v1469
    %4045 = vmatpush1.bf16.msra.mxu0 %v1468
    %4046 = vmatprep.subr.bf16.mxu0 0
    %4047 = vmatpush2.bf16.msra.mxu0 0
    %4048 = vmatprep.subr.bf16.mxu0 0
    %4049 = vmatpush2.bf16.msra.mxu0 0
    %4050 = vmatprep.subr.bf16.mxu0 0
    %4051 = vmatpush2.bf16.msra.mxu0 0
    %4052 = vmatprep.subr.bf16.mxu0 0
    %4053 = vmatpush2.bf16.msra.mxu0 0
    %4054 = vmatprep.subr.bf16.mxu0 0
    %4055 = vmatpush2.bf16.msra.mxu0 0
    %4056 = vmatprep.subr.bf16.mxu0 0
    %4057 = vmatpush2.bf16.msra.mxu0 0
    %4058 = vmatprep.subr.bf16.mxu0 0
    %4059 = vmatpush2.bf16.msra.mxu0 0
    %4060 = vmatprep.subr.bf16.mxu0 0
    %4061 = vmatpush2.bf16.msra.mxu0 0
    %4062 = vmatprep.mubr.bf16.mxu0 0
    %4063 = vmatmul.mubr.bf16.gmra.mxu0 %v3600
    %v4064 = vpop.f32.mrf.mxu0
    %v4065 = vadd.f32 0.0, %v4064
    %v4066 = vpop.f32.mrf.mxu0
    %v4067 = vadd.f32 0.0, %v4066
    %v4068 = vpop.f32.mrf.mxu0
    %v4069 = vpop.f32.mrf.mxu0
    %4070 = vdwg.mxu0
    %v4071 = vadd.f32 %v3985, %v4024
    %v4072 = vadd.f32 %v3986, %v4026
    %v4073 = vadd.f32 %v3987, %v4065
    %v4074 = vadd.f32 %v3988, %v4067
    %v4075 = vxor.u32 %v4071, 2147483648
    %v4076 = vxor.u32 %v4072, 2147483648
    %v4077 = vxor.u32 %v4073, 2147483648
    %v4078 = vmul.f32 %v4075, 1.442695
    %v4079 = vpow.pop %v4078
    %v4080 = vmul.f32 %v4076, 1.442695
    %v4081 = vpow.pop %v4080
    %v4082 = vmul.f32 %v4077, 1.442695
    %v4083 = vpow.pop %v4082
    %v4084 = vadd.f32 %v4079, 1.0
    %v4085 = vadd.f32 %v4081, 1.0
    %v4086 = vadd.f32 %v4083, 1.0
    %v4087 = vrcp.pop %v4084
    %v4088 = vmul.f32 1.0, %v4087
    %v4089 = vrcp.pop %v4085
    %v4090 = vmul.f32 1.0, %v4089
    %v4091 = vrcp.pop %v4086
    %v4092 = vmul.f32 1.0, %v4091
    %v4093 = vtanh.pop %v4074
    %v4094 = vmul.f32 %v4090, %v3597
    %v4095 = vmul.f32 %v4088, %v4093
    %v4096 = vadd.f32 %v4094, %v4095
    %v4097 = vtanh.pop %v4096
    %v4098 = vmul.f32 %v4092, %v4097
    %v4099 = vpack.c.bf16 %v4098, %v4098
    %4100 = vmatprep.subr.bf16.mxu0 %v1863
    %4101 = vmatpush1.bf16.msra.mxu0 %v1862
    %4102 = vmatprep.subr.bf16.mxu0 %v1859
    %4103 = vmatpush1.bf16.msra.mxu0 %v1858
    %4104 = vmatprep.subr.bf16.mxu0 %v1855
    %4105 = vmatpush1.bf16.msra.mxu0 %v1854
    %4106 = vmatprep.subr.bf16.mxu0 %v1851
    %4107 = vmatpush1.bf16.msra.mxu0 %v1850
    %4108 = vmatprep.subr.bf16.mxu0 %v1847
    %4109 = vmatpush1.bf16.msra.mxu0 %v1846
    %4110 = vmatprep.subr.bf16.mxu0 %v1843
    %4111 = vmatpush1.bf16.msra.mxu0 %v1842
    %4112 = vmatprep.subr.bf16.mxu0 %v1839
    %4113 = vmatpush1.bf16.msra.mxu0 %v1838
    %4114 = vmatprep.subr.bf16.mxu0 %v1835
    %4115 = vmatpush1.bf16.msra.mxu0 %v1834
    %4116 = vmatprep.subr.bf16.mxu0 %v1895
    %4117 = vmatpush2.bf16.msra.mxu0 %v1894
    %4118 = vmatprep.subr.bf16.mxu0 %v1891
    %4119 = vmatpush2.bf16.msra.mxu0 %v1890
    %4120 = vmatprep.subr.bf16.mxu0 %v1887
    %4121 = vmatpush2.bf16.msra.mxu0 %v1886
    %4122 = vmatprep.subr.bf16.mxu0 %v1883
    %4123 = vmatpush2.bf16.msra.mxu0 %v1882
    %4124 = vmatprep.subr.bf16.mxu0 %v1879
    %4125 = vmatpush2.bf16.msra.mxu0 %v1878
    %4126 = vmatprep.subr.bf16.mxu0 %v1875
    %4127 = vmatpush2.bf16.msra.mxu0 %v1874
    %4128 = vmatprep.subr.bf16.mxu0 %v1871
    %4129 = vmatpush2.bf16.msra.mxu0 %v1870
    %4130 = vmatprep.subr.bf16.mxu0 %v1867
    %4131 = vmatpush2.bf16.msra.mxu0 %v1866
    %4132 = vmatprep.mubr.bf16.mxu0 %v3707
    %4133 = vmatmul.mubr.bf16.gmra.mxu0 %v4099
    %v4134 = vpop.f32.mrf.mxu0
    %v4135 = vadd.f32 %v1255, %v4134
    %v4136 = vpop.f32.mrf.mxu0
    %v4137 = vadd.f32 %v1259, %v4136
    %v4138 = vpop.f32.mrf.mxu0
    %v4139 = vpop.f32.mrf.mxu0
    %4140 = vdwg.mxu0
    %4141 = vmatprep.subr.bf16.mxu0 %v1865
    %4142 = vmatpush1.bf16.msra.mxu0 %v1864
    %4143 = vmatprep.subr.bf16.mxu0 %v1861
    %4144 = vmatpush1.bf16.msra.mxu0 %v1860
    %4145 = vmatprep.subr.bf16.mxu0 %v1857
    %4146 = vmatpush1.bf16.msra.mxu0 %v1856
    %4147 = vmatprep.subr.bf16.mxu0 %v1853
    %4148 = vmatpush1.bf16.msra.mxu0 %v1852
    %4149 = vmatprep.subr.bf16.mxu0 %v1849
    %4150 = vmatpush1.bf16.msra.mxu0 %v1848
    %4151 = vmatprep.subr.bf16.mxu0 %v1845
    %4152 = vmatpush1.bf16.msra.mxu0 %v1844
    %4153 = vmatprep.subr.bf16.mxu0 %v1841
    %4154 = vmatpush1.bf16.msra.mxu0 %v1840
    %4155 = vmatprep.subr.bf16.mxu0 %v1837
    %4156 = vmatpush1.bf16.msra.mxu0 %v1836
    %4157 = vmatprep.subr.bf16.mxu0 %v1897
    %4158 = vmatpush2.bf16.msra.mxu0 %v1896
    %4159 = vmatprep.subr.bf16.mxu0 %v1893
    %4160 = vmatpush2.bf16.msra.mxu0 %v1892
    %4161 = vmatprep.subr.bf16.mxu0 %v1889
    %4162 = vmatpush2.bf16.msra.mxu0 %v1888
    %4163 = vmatprep.subr.bf16.mxu0 %v1885
    %4164 = vmatpush2.bf16.msra.mxu0 %v1884
    %4165 = vmatprep.subr.bf16.mxu0 %v1881
    %4166 = vmatpush2.bf16.msra.mxu0 %v1880
    %4167 = vmatprep.subr.bf16.mxu0 %v1877
    %4168 = vmatpush2.bf16.msra.mxu0 %v1876
    %4169 = vmatprep.subr.bf16.mxu0 %v1873
    %4170 = vmatpush2.bf16.msra.mxu0 %v1872
    %4171 = vmatprep.subr.bf16.mxu0 %v1869
    %4172 = vmatpush2.bf16.msra.mxu0 %v1868
    %4173 = vmatprep.mubr.bf16.mxu0 %v3707
    %4174 = vmatmul.mubr.bf16.gmra.mxu0 %v4099
    %v4175 = vpop.f32.mrf.mxu0
    %v4176 = vadd.f32 %v1263, %v4175
    %v4177 = vpop.f32.mrf.mxu0
    %v4178 = vadd.f32 %v1267, %v4177
    %v4179 = vpop.f32.mrf.mxu0
    %v4180 = vpop.f32.mrf.mxu0
    %4181 = vdwg.mxu0
    %v4182 = vxor.u32 %v4135, 2147483648
    %v4183 = vxor.u32 %v4137, 2147483648
    %v4184 = vxor.u32 %v4176, 2147483648
    %v4185 = vmul.f32 %v4182, 1.442695
    %v4186 = vpow.pop %v4185
    %v4187 = vmul.f32 %v4183, 1.442695
    %v4188 = vpow.pop %v4187
    %v4189 = vmul.f32 %v4184, 1.442695
    %v4190 = vpow.pop %v4189
    %v4191 = vadd.f32 %v4186, 1.0
    %v4192 = vadd.f32 %v4188, 1.0
    %v4193 = vadd.f32 %v4190, 1.0
    %v4194 = vrcp.pop %v4191
    %v4195 = vmul.f32 1.0, %v4194
    %v4196 = vrcp.pop %v4192
    %v4197 = vmul.f32 1.0, %v4196
    %v4198 = vrcp.pop %v4193
    %v4199 = vmul.f32 1.0, %v4198
    %v4200 = vtanh.pop %v4178
    %v4201 = vmul.f32 %v4197, %v3704
    %v4202 = vmul.f32 %v4195, %v4200
    %v4203 = vadd.f32 %v4201, %v4202
    %v4204 = vtanh.pop %v4203
    %v4205 = vmul.f32 %v4199, %v4204
    %v4206 = vpack.c.bf16 %v4205, %v4205
    %4207 = vmatprep.subr.bf16.mxu0 %v2291
    %4208 = vmatpush1.bf16.msra.mxu0 %v2290
    %4209 = vmatprep.subr.bf16.mxu0 %v2287
    %4210 = vmatpush1.bf16.msra.mxu0 %v2286
    %4211 = vmatprep.subr.bf16.mxu0 %v2283
    %4212 = vmatpush1.bf16.msra.mxu0 %v2282
    %4213 = vmatprep.subr.bf16.mxu0 %v2279
    %4214 = vmatpush1.bf16.msra.mxu0 %v2278
    %4215 = vmatprep.subr.bf16.mxu0 %v2275
    %4216 = vmatpush1.bf16.msra.mxu0 %v2274
    %4217 = vmatprep.subr.bf16.mxu0 %v2271
    %4218 = vmatpush1.bf16.msra.mxu0 %v2270
    %4219 = vmatprep.subr.bf16.mxu0 %v2267
    %4220 = vmatpush1.bf16.msra.mxu0 %v2266
    %4221 = vmatprep.subr.bf16.mxu0 %v2263
    %4222 = vmatpush1.bf16.msra.mxu0 %v2262
    %4223 = vmatprep.subr.bf16.mxu0 %v2323
    %4224 = vmatpush2.bf16.msra.mxu0 %v2322
    %4225 = vmatprep.subr.bf16.mxu0 %v2319
    %4226 = vmatpush2.bf16.msra.mxu0 %v2318
    %4227 = vmatprep.subr.bf16.mxu0 %v2315
    %4228 = vmatpush2.bf16.msra.mxu0 %v2314
    %4229 = vmatprep.subr.bf16.mxu0 %v2311
    %4230 = vmatpush2.bf16.msra.mxu0 %v2310
    %4231 = vmatprep.subr.bf16.mxu0 %v2307
    %4232 = vmatpush2.bf16.msra.mxu0 %v2306
    %4233 = vmatprep.subr.bf16.mxu0 %v2303
    %4234 = vmatpush2.bf16.msra.mxu0 %v2302
    %4235 = vmatprep.subr.bf16.mxu0 %v2299
    %4236 = vmatpush2.bf16.msra.mxu0 %v2298
    %4237 = vmatprep.subr.bf16.mxu0 %v2295
    %4238 = vmatpush2.bf16.msra.mxu0 %v2294
    %4239 = vmatprep.mubr.bf16.mxu0 %v3818
    %4240 = vmatmul.mubr.bf16.gmra.mxu0 %v4206
    %v4241 = vpop.f32.mrf.mxu0
    %v4242 = vadd.f32 0.0, %v4241
    %v4243 = vpop.f32.mrf.mxu0
    %v4244 = vadd.f32 0.0, %v4243
    %v4245 = vpop.f32.mrf.mxu0
    %v4246 = vpop.f32.mrf.mxu0
    %4247 = vdwg.mxu0
    %4248 = vmatprep.subr.bf16.mxu0 %v2293
    %4249 = vmatpush1.bf16.msra.mxu0 %v2292
    %4250 = vmatprep.subr.bf16.mxu0 %v2289
    %4251 = vmatpush1.bf16.msra.mxu0 %v2288
    %4252 = vmatprep.subr.bf16.mxu0 %v2285
    %4253 = vmatpush1.bf16.msra.mxu0 %v2284
    %4254 = vmatprep.subr.bf16.mxu0 %v2281
    %4255 = vmatpush1.bf16.msra.mxu0 %v2280
    %4256 = vmatprep.subr.bf16.mxu0 %v2277
    %4257 = vmatpush1.bf16.msra.mxu0 %v2276
    %4258 = vmatprep.subr.bf16.mxu0 %v2273
    %4259 = vmatpush1.bf16.msra.mxu0 %v2272
    %4260 = vmatprep.subr.bf16.mxu0 %v2269
    %4261 = vmatpush1.bf16.msra.mxu0 %v2268
    %4262 = vmatprep.subr.bf16.mxu0 %v2265
    %4263 = vmatpush1.bf16.msra.mxu0 %v2264
    %4264 = vmatprep.subr.bf16.mxu0 %v2325
    %4265 = vmatpush2.bf16.msra.mxu0 %v2324
    %4266 = vmatprep.subr.bf16.mxu0 %v2321
    %4267 = vmatpush2.bf16.msra.mxu0 %v2320
    %4268 = vmatprep.subr.bf16.mxu0 %v2317
    %4269 = vmatpush2.bf16.msra.mxu0 %v2316
    %4270 = vmatprep.subr.bf16.mxu0 %v2313
    %4271 = vmatpush2.bf16.msra.mxu0 %v2312
    %4272 = vmatprep.subr.bf16.mxu0 %v2309
    %4273 = vmatpush2.bf16.msra.mxu0 %v2308
    %4274 = vmatprep.subr.bf16.mxu0 %v2305
    %4275 = vmatpush2.bf16.msra.mxu0 %v2304
    %4276 = vmatprep.subr.bf16.mxu0 %v2301
    %4277 = vmatpush2.bf16.msra.mxu0 %v2300
    %4278 = vmatprep.subr.bf16.mxu0 %v2297
    %4279 = vmatpush2.bf16.msra.mxu0 %v2296
    %4280 = vmatprep.mubr.bf16.mxu0 %v3818
    %4281 = vmatmul.mubr.bf16.gmra.mxu0 %v4206
    %v4282 = vpop.f32.mrf.mxu0
    %v4283 = vadd.f32 0.0, %v4282
    %v4284 = vpop.f32.mrf.mxu0
    %v4285 = vadd.f32 0.0, %v4284
    %v4286 = vpop.f32.mrf.mxu0
    %v4287 = vpop.f32.mrf.mxu0
    %4288 = vdwg.mxu0
    %v4289 = vadd.f32 %v979, %v4242
    %v4290 = vadd.f32 %v981, %v4244
    %v4291 = vadd.f32 %v1020, %v4283
    %v4292 = vadd.f32 %v1022, %v4285
    %v4293 = vxor.u32 %v4289, 2147483648
    %v4294 = vxor.u32 %v4290, 2147483648
    %v4295 = vxor.u32 %v4291, 2147483648
    %v4296 = vmul.f32 %v4293, 1.442695
    %v4297 = vpow.pop %v4296
    %v4298 = vmul.f32 %v4294, 1.442695
    %v4299 = vpow.pop %v4298
    %v4300 = vmul.f32 %v4295, 1.442695
    %v4301 = vpow.pop %v4300
    %v4302 = vadd.f32 %v4297, 1.0
    %v4303 = vadd.f32 %v4299, 1.0
    %v4304 = vadd.f32 %v4301, 1.0
    %v4305 = vrcp.pop %v4302
    %v4306 = vmul.f32 1.0, %v4305
    %v4307 = vrcp.pop %v4303
    %v4308 = vmul.f32 1.0, %v4307
    %v4309 = vrcp.pop %v4304
    %v4310 = vmul.f32 1.0, %v4309
    %v4311 = vtanh.pop %v4292
    %v4312 = vmul.f32 %v4308, %v3815
    %v4313 = vmul.f32 %v4306, %v4311
    %v4314 = vadd.f32 %v4312, %v4313
    %v4315 = vtanh.pop %v4314
    %v4316 = vmul.f32 %v4310, %v4315
    %v4317 = vpack.c.bf16 %v4316, %v4316
    %v4318 = vpack.c.bf16 %v3925, %v3925
    %4319 = vmatprep.subr.bf16.mxu0 %v2723
    %4320 = vmatpush1.bf16.msra.mxu0 %v2722
    %4321 = vmatprep.subr.bf16.mxu0 %v2719
    %4322 = vmatpush1.bf16.msra.mxu0 %v2718
    %4323 = vmatprep.subr.bf16.mxu0 %v2715
    %4324 = vmatpush1.bf16.msra.mxu0 %v2714
    %4325 = vmatprep.subr.bf16.mxu0 %v2711
    %4326 = vmatpush1.bf16.msra.mxu0 %v2710
    %4327 = vmatprep.subr.bf16.mxu0 %v2707
    %4328 = vmatpush1.bf16.msra.mxu0 %v2706
    %4329 = vmatprep.subr.bf16.mxu0 %v2703
    %4330 = vmatpush1.bf16.msra.mxu0 %v2702
    %4331 = vmatprep.subr.bf16.mxu0 %v2699
    %4332 = vmatpush1.bf16.msra.mxu0 %v2698
    %4333 = vmatprep.subr.bf16.mxu0 %v2695
    %4334 = vmatpush1.bf16.msra.mxu0 %v2694
    %4335 = vmatprep.subr.bf16.mxu0 %v2755
    %4336 = vmatpush2.bf16.msra.mxu0 %v2754
    %4337 = vmatprep.subr.bf16.mxu0 %v2751
    %4338 = vmatpush2.bf16.msra.mxu0 %v2750
    %4339 = vmatprep.subr.bf16.mxu0 %v2747
    %4340 = vmatpush2.bf16.msra.mxu0 %v2746
    %4341 = vmatprep.subr.bf16.mxu0 %v2743
    %4342 = vmatpush2.bf16.msra.mxu0 %v2742
    %4343 = vmatprep.subr.bf16.mxu0 %v2739
    %4344 = vmatpush2.bf16.msra.mxu0 %v2738
    %4345 = vmatprep.subr.bf16.mxu0 %v2735
    %4346 = vmatpush2.bf16.msra.mxu0 %v2734
    %4347 = vmatprep.subr.bf16.mxu0 %v2731
    %4348 = vmatpush2.bf16.msra.mxu0 %v2730
    %4349 = vmatprep.subr.bf16.mxu0 %v2727
    %4350 = vmatpush2.bf16.msra.mxu0 %v2726
    %4351 = vmatprep.mubr.bf16.mxu0 %v4318
    %4352 = vmatmul.mubr.bf16.gmra.mxu0 %v4317
    %v4353 = vpop.f32.mrf.mxu0
    %v4354 = vadd.f32 %v1277, %v4353
    %v4355 = vpop.f32.mrf.mxu0
    %v4356 = vadd.f32 %v1281, %v4355
    %v4357 = vpop.f32.mrf.mxu0
    %v4358 = vpop.f32.mrf.mxu0
    %4359 = vdwg.mxu0
    %4360 = vmatprep.subr.bf16.mxu0 %v2725
    %4361 = vmatpush1.bf16.msra.mxu0 %v2724
    %4362 = vmatprep.subr.bf16.mxu0 %v2721
    %4363 = vmatpush1.bf16.msra.mxu0 %v2720
    %4364 = vmatprep.subr.bf16.mxu0 %v2717
    %4365 = vmatpush1.bf16.msra.mxu0 %v2716
    %4366 = vmatprep.subr.bf16.mxu0 %v2713
    %4367 = vmatpush1.bf16.msra.mxu0 %v2712
    %4368 = vmatprep.subr.bf16.mxu0 %v2709
    %4369 = vmatpush1.bf16.msra.mxu0 %v2708
    %4370 = vmatprep.subr.bf16.mxu0 %v2705
    %4371 = vmatpush1.bf16.msra.mxu0 %v2704
    %4372 = vmatprep.subr.bf16.mxu0 %v2701
    %4373 = vmatpush1.bf16.msra.mxu0 %v2700
    %4374 = vmatprep.subr.bf16.mxu0 %v2697
    %4375 = vmatpush1.bf16.msra.mxu0 %v2696
    %4376 = vmatprep.subr.bf16.mxu0 %v2757
    %4377 = vmatpush2.bf16.msra.mxu0 %v2756
    %4378 = vmatprep.subr.bf16.mxu0 %v2753
    %4379 = vmatpush2.bf16.msra.mxu0 %v2752
    %4380 = vmatprep.subr.bf16.mxu0 %v2749
    %4381 = vmatpush2.bf16.msra.mxu0 %v2748
    %4382 = vmatprep.subr.bf16.mxu0 %v2745
    %4383 = vmatpush2.bf16.msra.mxu0 %v2744
    %4384 = vmatprep.subr.bf16.mxu0 %v2741
    %4385 = vmatpush2.bf16.msra.mxu0 %v2740
    %4386 = vmatprep.subr.bf16.mxu0 %v2737
    %4387 = vmatpush2.bf16.msra.mxu0 %v2736
    %4388 = vmatprep.subr.bf16.mxu0 %v2733
    %4389 = vmatpush2.bf16.msra.mxu0 %v2732
    %4390 = vmatprep.subr.bf16.mxu0 %v2729
    %4391 = vmatpush2.bf16.msra.mxu0 %v2728
    %4392 = vmatprep.mubr.bf16.mxu0 %v4318
    %4393 = vmatmul.mubr.bf16.gmra.mxu0 %v4317
    %v4394 = vpop.f32.mrf.mxu0
    %v4395 = vadd.f32 %v1285, %v4394
    %v4396 = vpop.f32.mrf.mxu0
    %v4397 = vadd.f32 %v1289, %v4396
    %v4398 = vpop.f32.mrf.mxu0
    %v4399 = vpop.f32.mrf.mxu0
    %4400 = vdwg.mxu0
    %v4401 = vxor.u32 %v4354, 2147483648
    %v4402 = vxor.u32 %v4356, 2147483648
    %v4403 = vxor.u32 %v4395, 2147483648
    %v4404 = vmul.f32 %v4401, 1.442695
    %v4405 = vpow.pop %v4404
    %v4406 = vmul.f32 %v4402, 1.442695
    %v4407 = vpow.pop %v4406
    %v4408 = vmul.f32 %v4403, 1.442695
    %v4409 = vpow.pop %v4408
    %v4410 = vadd.f32 %v4405, 1.0
    %v4411 = vadd.f32 %v4407, 1.0
    %v4412 = vadd.f32 %v4409, 1.0
    %v4413 = vrcp.pop %v4410
    %v4414 = vmul.f32 1.0, %v4413
    %v4415 = vrcp.pop %v4411
    %v4416 = vmul.f32 1.0, %v4415
    %v4417 = vrcp.pop %v4412
    %v4418 = vmul.f32 1.0, %v4417
    %v4419 = vtanh.pop %v4397
    %v4420 = vmul.f32 %v4416, %v3923
    %v4421 = vmul.f32 %v4414, %v4419
    %v4422 = vadd.f32 %v4420, %v4421
    %v4423 = vtanh.pop %v4422
    %v4424 = vmul.f32 %v4418, %v4423
    %4425 = vst [vmem:[#allocation2 + $0x6] sm:$0x3] %v4424
    %s4426 = sld [smem:[#allocation3 + $0x4]]
    %p4427 = scmp.gt.s32.totalorder %s4426, 0
    %s4428 = scalar_select %p4427, %s4426, 0
    %p4429 = scmp.lt.s32.totalorder %s4428, 54
    %s4430 = scalar_select %p4429, %s4428, 54
    %s4431 = smul.u32 %s4430, 4
    %s4432 = scalar_lea.vmem [#allocation9], %s4431
    %v4433 = vld [vmem:[%s4432] sm:$0xf]
    %s4434 = sld [smem:[#allocation3 + $0x84]]
    %p4435 = scmp.gt.s32.totalorder %s4434, 0
    %s4436 = scalar_select %p4435, %s4434, 0
    %p4437 = scmp.lt.s32.totalorder %s4436, 54
    %s4438 = scalar_select %p4437, %s4436, 54
    %s4439 = smul.u32 %s4438, 4
    %s4440 = scalar_lea.vmem [#allocation9], %s4439
    %v4441 = vld [vmem:[%s4440] sm:$0xf]
    %v4443 = vlaneseq
    %v4444 = vshrl.u32 %v4443, 7
    %v4445 = vsub.s32 0, %v4444
    %v4446 = vrot.slane %v4433, %v4445
    %v4447 = vlaneseq
    %v4448 = vshrl.u32 %v4447, 7
    %v4449 = vsub.s32 1, %v4448
    %v4450 = vrot.slane %v4433, %v4449
    %v4451 = vlaneseq
    %v4452 = vshrl.u32 %v4451, 7
    %v4453 = vsub.s32 2, %v4452
    %v4454 = vrot.slane %v4433, %v4453
    %v4455 = vlaneseq
    %v4456 = vshrl.u32 %v4455, 7
    %v4457 = vsub.s32 3, %v4456
    %v4458 = vrot.slane %v4433, %v4457
    %v4464 = vlaneseq
    %v4465 = vshrl.u32 %v4464, 7
    %v4466 = vsub.s32 0, %v4465
    %v4467 = vrot.slane %v4441, %v4466
    %v4468 = vlaneseq
    %v4469 = vshrl.u32 %v4468, 7
    %v4470 = vsub.s32 1, %v4469
    %v4471 = vrot.slane %v4441, %v4470
    %v4472 = vlaneseq
    %v4473 = vshrl.u32 %v4472, 7
    %v4474 = vsub.s32 2, %v4473
    %v4475 = vrot.slane %v4441, %v4474
    %v4476 = vlaneseq
    %v4477 = vshrl.u32 %v4476, 7
    %v4478 = vsub.s32 3, %v4477
    %v4479 = vrot.slane %v4441, %v4478
    %v4484 = vsel %vm1364, %v4446, %v4467
    %v4485 = vsel %vm1364, %v4450, %v4471
    %v4486 = vsel %vm1364, %v4454, %v4475
    %v4487 = vsel %vm1364, %v4458, %v4479
    %4488 = vmatprep.subr.bf16.mxu0 %v1495
    %4489 = vmatpush1.bf16.msra.mxu0 %v1494
    %4490 = vmatprep.subr.bf16.mxu0 %v1491
    %4491 = vmatpush1.bf16.msra.mxu0 %v1490
    %4492 = vmatprep.subr.bf16.mxu0 %v1487
    %4493 = vmatpush1.bf16.msra.mxu0 %v1486
    %4494 = vmatprep.subr.bf16.mxu0 %v1483
    %4495 = vmatpush1.bf16.msra.mxu0 %v1482
    %4496 = vmatprep.subr.bf16.mxu0 %v1479
    %4497 = vmatpush1.bf16.msra.mxu0 %v1478
    %4498 = vmatprep.subr.bf16.mxu0 %v1475
    %4499 = vmatpush1.bf16.msra.mxu0 %v1474
    %4500 = vmatprep.subr.bf16.mxu0 %v1471
    %4501 = vmatpush1.bf16.msra.mxu0 %v1470
    %4502 = vmatprep.subr.bf16.mxu0 %v1467
    %4503 = vmatpush1.bf16.msra.mxu0 %v1466
    %4504 = vmatprep.subr.bf16.mxu0 0
    %4505 = vmatpush2.bf16.msra.mxu0 0
    %4506 = vmatprep.subr.bf16.mxu0 0
    %4507 = vmatpush2.bf16.msra.mxu0 0
    %4508 = vmatprep.subr.bf16.mxu0 0
    %4509 = vmatpush2.bf16.msra.mxu0 0
    %4510 = vmatprep.subr.bf16.mxu0 0
    %4511 = vmatpush2.bf16.msra.mxu0 0
    %4512 = vmatprep.subr.bf16.mxu0 0
    %4513 = vmatpush2.bf16.msra.mxu0 0
    %4514 = vmatprep.subr.bf16.mxu0 0
    %4515 = vmatpush2.bf16.msra.mxu0 0
    %4516 = vmatprep.subr.bf16.mxu0 0
    %4517 = vmatpush2.bf16.msra.mxu0 0
    %4518 = vmatprep.subr.bf16.mxu0 0
    %4519 = vmatpush2.bf16.msra.mxu0 0
    %4520 = vmatprep.mubr.bf16.mxu0 0
    %4521 = vmatmul.mubr.bf16.gmra.mxu0 %v4099
    %v4522 = vpop.f32.mrf.mxu0
    %v4523 = vadd.f32 0.0, %v4522
    %v4524 = vpop.f32.mrf.mxu0
    %v4525 = vadd.f32 0.0, %v4524
    %v4526 = vpop.f32.mrf.mxu0
    %v4527 = vpop.f32.mrf.mxu0
    %4528 = vdwg.mxu0
    %4529 = vmatprep.subr.bf16.mxu0 %v1497
    %4530 = vmatpush1.bf16.msra.mxu0 %v1496
    %4531 = vmatprep.subr.bf16.mxu0 %v1493
    %4532 = vmatpush1.bf16.msra.mxu0 %v1492
    %4533 = vmatprep.subr.bf16.mxu0 %v1489
    %4534 = vmatpush1.bf16.msra.mxu0 %v1488
    %4535 = vmatprep.subr.bf16.mxu0 %v1485
    %4536 = vmatpush1.bf16.msra.mxu0 %v1484
    %4537 = vmatprep.subr.bf16.mxu0 %v1481
    %4538 = vmatpush1.bf16.msra.mxu0 %v1480
    %4539 = vmatprep.subr.bf16.mxu0 %v1477
    %4540 = vmatpush1.bf16.msra.mxu0 %v1476
    %4541 = vmatprep.subr.bf16.mxu0 %v1473
    %4542 = vmatpush1.bf16.msra.mxu0 %v1472
    %4543 = vmatprep.subr.bf16.mxu0 %v1469
    %4544 = vmatpush1.bf16.msra.mxu0 %v1468
    %4545 = vmatprep.subr.bf16.mxu0 0
    %4546 = vmatpush2.bf16.msra.mxu0 0
    %4547 = vmatprep.subr.bf16.mxu0 0
    %4548 = vmatpush2.bf16.msra.mxu0 0
    %4549 = vmatprep.subr.bf16.mxu0 0
    %4550 = vmatpush2.bf16.msra.mxu0 0
    %4551 = vmatprep.subr.bf16.mxu0 0
    %4552 = vmatpush2.bf16.msra.mxu0 0
    %4553 = vmatprep.subr.bf16.mxu0 0
    %4554 = vmatpush2.bf16.msra.mxu0 0
    %4555 = vmatprep.subr.bf16.mxu0 0
    %4556 = vmatpush2.bf16.msra.mxu0 0
    %4557 = vmatprep.subr.bf16.mxu0 0
    %4558 = vmatpush2.bf16.msra.mxu0 0
    %4559 = vmatprep.subr.bf16.mxu0 0
    %4560 = vmatpush2.bf16.msra.mxu0 0
    %4561 = vmatprep.mubr.bf16.mxu0 0
    %4562 = vmatmul.mubr.bf16.gmra.mxu0 %v4099
    %v4563 = vpop.f32.mrf.mxu0
    %v4564 = vadd.f32 0.0, %v4563
    %v4565 = vpop.f32.mrf.mxu0
    %v4566 = vadd.f32 0.0, %v4565
    %v4567 = vpop.f32.mrf.mxu0
    %v4568 = vpop.f32.mrf.mxu0
    %4569 = vdwg.mxu0
    %v4570 = vadd.f32 %v4484, %v4523
    %v4571 = vadd.f32 %v4485, %v4525
    %v4572 = vadd.f32 %v4486, %v4564
    %v4573 = vadd.f32 %v4487, %v4566
    %v4574 = vxor.u32 %v4570, 2147483648
    %v4575 = vxor.u32 %v4571, 2147483648
    %v4576 = vxor.u32 %v4572, 2147483648
    %v4577 = vmul.f32 %v4574, 1.442695
    %v4578 = vpow.pop %v4577
    %v4579 = vmul.f32 %v4575, 1.442695
    %v4580 = vpow.pop %v4579
    %v4581 = vmul.f32 %v4576, 1.442695
    %v4582 = vpow.pop %v4581
    %v4583 = vadd.f32 %v4578, 1.0
    %v4584 = vadd.f32 %v4580, 1.0
    %v4585 = vadd.f32 %v4582, 1.0
    %v4586 = vrcp.pop %v4583
    %v4587 = vmul.f32 1.0, %v4586
    %v4588 = vrcp.pop %v4584
    %v4589 = vmul.f32 1.0, %v4588
    %v4590 = vrcp.pop %v4585
    %v4591 = vmul.f32 1.0, %v4590
    %v4592 = vtanh.pop %v4573
    %v4593 = vmul.f32 %v4589, %v4096
    %v4594 = vmul.f32 %v4587, %v4592
    %v4595 = vadd.f32 %v4593, %v4594
    %v4596 = vtanh.pop %v4595
    %v4597 = vmul.f32 %v4591, %v4596
    %v4598 = vpack.c.bf16 %v4597, %v4597
    %4599 = vmatprep.subr.bf16.mxu0 %v1863
    %4600 = vmatpush1.bf16.msra.mxu0 %v1862
    %4601 = vmatprep.subr.bf16.mxu0 %v1859
    %4602 = vmatpush1.bf16.msra.mxu0 %v1858
    %4603 = vmatprep.subr.bf16.mxu0 %v1855
    %4604 = vmatpush1.bf16.msra.mxu0 %v1854
    %4605 = vmatprep.subr.bf16.mxu0 %v1851
    %4606 = vmatpush1.bf16.msra.mxu0 %v1850
    %4607 = vmatprep.subr.bf16.mxu0 %v1847
    %4608 = vmatpush1.bf16.msra.mxu0 %v1846
    %4609 = vmatprep.subr.bf16.mxu0 %v1843
    %4610 = vmatpush1.bf16.msra.mxu0 %v1842
    %4611 = vmatprep.subr.bf16.mxu0 %v1839
    %4612 = vmatpush1.bf16.msra.mxu0 %v1838
    %4613 = vmatprep.subr.bf16.mxu0 %v1835
    %4614 = vmatpush1.bf16.msra.mxu0 %v1834
    %4615 = vmatprep.subr.bf16.mxu0 %v1895
    %4616 = vmatpush2.bf16.msra.mxu0 %v1894
    %4617 = vmatprep.subr.bf16.mxu0 %v1891
    %4618 = vmatpush2.bf16.msra.mxu0 %v1890
    %4619 = vmatprep.subr.bf16.mxu0 %v1887
    %4620 = vmatpush2.bf16.msra.mxu0 %v1886
    %4621 = vmatprep.subr.bf16.mxu0 %v1883
    %4622 = vmatpush2.bf16.msra.mxu0 %v1882
    %4623 = vmatprep.subr.bf16.mxu0 %v1879
    %4624 = vmatpush2.bf16.msra.mxu0 %v1878
    %4625 = vmatprep.subr.bf16.mxu0 %v1875
    %4626 = vmatpush2.bf16.msra.mxu0 %v1874
    %4627 = vmatprep.subr.bf16.mxu0 %v1871
    %4628 = vmatpush2.bf16.msra.mxu0 %v1870
    %4629 = vmatprep.subr.bf16.mxu0 %v1867
    %4630 = vmatpush2.bf16.msra.mxu0 %v1866
    %4631 = vmatprep.mubr.bf16.mxu0 %v4206
    %4632 = vmatmul.mubr.bf16.gmra.mxu0 %v4598
    %v4633 = vpop.f32.mrf.mxu0
    %v4634 = vadd.f32 %v1255, %v4633
    %v4635 = vpop.f32.mrf.mxu0
    %v4636 = vadd.f32 %v1259, %v4635
    %v4637 = vpop.f32.mrf.mxu0
    %v4638 = vpop.f32.mrf.mxu0
    %4639 = vdwg.mxu0
    %4640 = vmatprep.subr.bf16.mxu0 %v1865
    %4641 = vmatpush1.bf16.msra.mxu0 %v1864
    %4642 = vmatprep.subr.bf16.mxu0 %v1861
    %4643 = vmatpush1.bf16.msra.mxu0 %v1860
    %4644 = vmatprep.subr.bf16.mxu0 %v1857
    %4645 = vmatpush1.bf16.msra.mxu0 %v1856
    %4646 = vmatprep.subr.bf16.mxu0 %v1853
    %4647 = vmatpush1.bf16.msra.mxu0 %v1852
    %4648 = vmatprep.subr.bf16.mxu0 %v1849
    %4649 = vmatpush1.bf16.msra.mxu0 %v1848
    %4650 = vmatprep.subr.bf16.mxu0 %v1845
    %4651 = vmatpush1.bf16.msra.mxu0 %v1844
    %4652 = vmatprep.subr.bf16.mxu0 %v1841
    %4653 = vmatpush1.bf16.msra.mxu0 %v1840
    %4654 = vmatprep.subr.bf16.mxu0 %v1837
    %4655 = vmatpush1.bf16.msra.mxu0 %v1836
    %4656 = vmatprep.subr.bf16.mxu0 %v1897
    %4657 = vmatpush2.bf16.msra.mxu0 %v1896
    %4658 = vmatprep.subr.bf16.mxu0 %v1893
    %4659 = vmatpush2.bf16.msra.mxu0 %v1892
    %4660 = vmatprep.subr.bf16.mxu0 %v1889
    %4661 = vmatpush2.bf16.msra.mxu0 %v1888
    %4662 = vmatprep.subr.bf16.mxu0 %v1885
    %4663 = vmatpush2.bf16.msra.mxu0 %v1884
    %4664 = vmatprep.subr.bf16.mxu0 %v1881
    %4665 = vmatpush2.bf16.msra.mxu0 %v1880
    %4666 = vmatprep.subr.bf16.mxu0 %v1877
    %4667 = vmatpush2.bf16.msra.mxu0 %v1876
    %4668 = vmatprep.subr.bf16.mxu0 %v1873
    %4669 = vmatpush2.bf16.msra.mxu0 %v1872
    %4670 = vmatprep.subr.bf16.mxu0 %v1869
    %4671 = vmatpush2.bf16.msra.mxu0 %v1868
    %4672 = vmatprep.mubr.bf16.mxu0 %v4206
    %4673 = vmatmul.mubr.bf16.gmra.mxu0 %v4598
    %v4674 = vpop.f32.mrf.mxu0
    %v4675 = vadd.f32 %v1263, %v4674
    %v4676 = vpop.f32.mrf.mxu0
    %v4677 = vadd.f32 %v1267, %v4676
    %v4678 = vpop.f32.mrf.mxu0
    %v4679 = vpop.f32.mrf.mxu0
    %4680 = vdwg.mxu0
    %v4681 = vxor.u32 %v4634, 2147483648
    %v4682 = vxor.u32 %v4636, 2147483648
    %v4683 = vxor.u32 %v4675, 2147483648
    %v4684 = vmul.f32 %v4681, 1.442695
    %v4685 = vpow.pop %v4684
    %v4686 = vmul.f32 %v4682, 1.442695
    %v4687 = vpow.pop %v4686
    %v4688 = vmul.f32 %v4683, 1.442695
    %v4689 = vpow.pop %v4688
    %v4690 = vadd.f32 %v4685, 1.0
    %v4691 = vadd.f32 %v4687, 1.0
    %v4692 = vadd.f32 %v4689, 1.0
    %v4693 = vrcp.pop %v4690
    %v4694 = vmul.f32 1.0, %v4693
    %v4695 = vrcp.pop %v4691
    %v4696 = vmul.f32 1.0, %v4695
    %v4697 = vrcp.pop %v4692
    %v4698 = vmul.f32 1.0, %v4697
    %v4699 = vtanh.pop %v4677
    %v4700 = vmul.f32 %v4696, %v4203
    %v4701 = vmul.f32 %v4694, %v4699
    %v4702 = vadd.f32 %v4700, %v4701
    %v4703 = vtanh.pop %v4702
    %v4704 = vmul.f32 %v4698, %v4703
    %v4705 = vpack.c.bf16 %v4704, %v4704
    %4706 = vmatprep.subr.bf16.mxu0 %v2291
    %4707 = vmatpush1.bf16.msra.mxu0 %v2290
    %4708 = vmatprep.subr.bf16.mxu0 %v2287
    %4709 = vmatpush1.bf16.msra.mxu0 %v2286
    %4710 = vmatprep.subr.bf16.mxu0 %v2283
    %4711 = vmatpush1.bf16.msra.mxu0 %v2282
    %4712 = vmatprep.subr.bf16.mxu0 %v2279
    %4713 = vmatpush1.bf16.msra.mxu0 %v2278
    %4714 = vmatprep.subr.bf16.mxu0 %v2275
    %4715 = vmatpush1.bf16.msra.mxu0 %v2274
    %4716 = vmatprep.subr.bf16.mxu0 %v2271
    %4717 = vmatpush1.bf16.msra.mxu0 %v2270
    %4718 = vmatprep.subr.bf16.mxu0 %v2267
    %4719 = vmatpush1.bf16.msra.mxu0 %v2266
    %4720 = vmatprep.subr.bf16.mxu0 %v2263
    %4721 = vmatpush1.bf16.msra.mxu0 %v2262
    %4722 = vmatprep.subr.bf16.mxu0 %v2323
    %4723 = vmatpush2.bf16.msra.mxu0 %v2322
    %4724 = vmatprep.subr.bf16.mxu0 %v2319
    %4725 = vmatpush2.bf16.msra.mxu0 %v2318
    %4726 = vmatprep.subr.bf16.mxu0 %v2315
    %4727 = vmatpush2.bf16.msra.mxu0 %v2314
    %4728 = vmatprep.subr.bf16.mxu0 %v2311
    %4729 = vmatpush2.bf16.msra.mxu0 %v2310
    %4730 = vmatprep.subr.bf16.mxu0 %v2307
    %4731 = vmatpush2.bf16.msra.mxu0 %v2306
    %4732 = vmatprep.subr.bf16.mxu0 %v2303
    %4733 = vmatpush2.bf16.msra.mxu0 %v2302
    %4734 = vmatprep.subr.bf16.mxu0 %v2299
    %4735 = vmatpush2.bf16.msra.mxu0 %v2298
    %4736 = vmatprep.subr.bf16.mxu0 %v2295
    %4737 = vmatpush2.bf16.msra.mxu0 %v2294
    %4738 = vmatprep.mubr.bf16.mxu0 %v4317
    %4739 = vmatmul.mubr.bf16.gmra.mxu0 %v4705
    %v4740 = vpop.f32.mrf.mxu0
    %v4741 = vadd.f32 0.0, %v4740
    %v4742 = vpop.f32.mrf.mxu0
    %v4743 = vadd.f32 0.0, %v4742
    %v4744 = vpop.f32.mrf.mxu0
    %v4745 = vpop.f32.mrf.mxu0
    %4746 = vdwg.mxu0
    %4747 = vmatprep.subr.bf16.mxu0 %v2293
    %4748 = vmatpush1.bf16.msra.mxu0 %v2292
    %4749 = vmatprep.subr.bf16.mxu0 %v2289
    %4750 = vmatpush1.bf16.msra.mxu0 %v2288
    %4751 = vmatprep.subr.bf16.mxu0 %v2285
    %4752 = vmatpush1.bf16.msra.mxu0 %v2284
    %4753 = vmatprep.subr.bf16.mxu0 %v2281
    %4754 = vmatpush1.bf16.msra.mxu0 %v2280
    %4755 = vmatprep.subr.bf16.mxu0 %v2277
    %4756 = vmatpush1.bf16.msra.mxu0 %v2276
    %4757 = vmatprep.subr.bf16.mxu0 %v2273
    %4758 = vmatpush1.bf16.msra.mxu0 %v2272
    %4759 = vmatprep.subr.bf16.mxu0 %v2269
    %4760 = vmatpush1.bf16.msra.mxu0 %v2268
    %4761 = vmatprep.subr.bf16.mxu0 %v2265
    %4762 = vmatpush1.bf16.msra.mxu0 %v2264
    %4763 = vmatprep.subr.bf16.mxu0 %v2325
    %4764 = vmatpush2.bf16.msra.mxu0 %v2324
    %4765 = vmatprep.subr.bf16.mxu0 %v2321
    %4766 = vmatpush2.bf16.msra.mxu0 %v2320
    %4767 = vmatprep.subr.bf16.mxu0 %v2317
    %4768 = vmatpush2.bf16.msra.mxu0 %v2316
    %4769 = vmatprep.subr.bf16.mxu0 %v2313
    %4770 = vmatpush2.bf16.msra.mxu0 %v2312
    %4771 = vmatprep.subr.bf16.mxu0 %v2309
    %4772 = vmatpush2.bf16.msra.mxu0 %v2308
    %4773 = vmatprep.subr.bf16.mxu0 %v2305
    %4774 = vmatpush2.bf16.msra.mxu0 %v2304
    %4775 = vmatprep.subr.bf16.mxu0 %v2301
    %4776 = vmatpush2.bf16.msra.mxu0 %v2300
    %4777 = vmatprep.subr.bf16.mxu0 %v2297
    %4778 = vmatpush2.bf16.msra.mxu0 %v2296
    %4779 = vmatprep.mubr.bf16.mxu0 %v4317
    %4780 = vmatmul.mubr.bf16.gmra.mxu0 %v4705
    %v4781 = vpop.f32.mrf.mxu0
    %v4782 = vadd.f32 0.0, %v4781
    %v4783 = vpop.f32.mrf.mxu0
    %v4784 = vadd.f32 0.0, %v4783
    %v4785 = vpop.f32.mrf.mxu0
    %v4786 = vpop.f32.mrf.mxu0
    %4787 = vdwg.mxu0
    %v4788 = vadd.f32 %v979, %v4741
    %v4789 = vadd.f32 %v981, %v4743
    %v4790 = vadd.f32 %v1020, %v4782
    %v4791 = vadd.f32 %v1022, %v4784
    %v4792 = vxor.u32 %v4788, 2147483648
    %v4793 = vxor.u32 %v4789, 2147483648
    %v4794 = vxor.u32 %v4790, 2147483648
    %v4795 = vmul.f32 %v4792, 1.442695
    %v4796 = vpow.pop %v4795
    %v4797 = vmul.f32 %v4793, 1.442695
    %v4798 = vpow.pop %v4797
    %v4799 = vmul.f32 %v4794, 1.442695
    %v4800 = vpow.pop %v4799
    %v4801 = vadd.f32 %v4796, 1.0
    %v4802 = vadd.f32 %v4798, 1.0
    %v4803 = vadd.f32 %v4800, 1.0
    %v4804 = vrcp.pop %v4801
    %v4805 = vmul.f32 1.0, %v4804
    %v4806 = vrcp.pop %v4802
    %v4807 = vmul.f32 1.0, %v4806
    %v4808 = vrcp.pop %v4803
    %v4809 = vmul.f32 1.0, %v4808
    %v4810 = vtanh.pop %v4791
    %v4811 = vmul.f32 %v4807, %v4314
    %v4812 = vmul.f32 %v4805, %v4810
    %v4813 = vadd.f32 %v4811, %v4812
    %v4814 = vtanh.pop %v4813
    %v4815 = vmul.f32 %v4809, %v4814
    %v4816 = vpack.c.bf16 %v4815, %v4815
    %v4817 = vpack.c.bf16 %v4424, %v4424
    %4818 = vmatprep.subr.bf16.mxu0 %v2723
    %4819 = vmatpush1.bf16.msra.mxu0 %v2722
    %4820 = vmatprep.subr.bf16.mxu0 %v2719
    %4821 = vmatpush1.bf16.msra.mxu0 %v2718
    %4822 = vmatprep.subr.bf16.mxu0 %v2715
    %4823 = vmatpush1.bf16.msra.mxu0 %v2714
    %4824 = vmatprep.subr.bf16.mxu0 %v2711
    %4825 = vmatpush1.bf16.msra.mxu0 %v2710
    %4826 = vmatprep.subr.bf16.mxu0 %v2707
    %4827 = vmatpush1.bf16.msra.mxu0 %v2706
    %4828 = vmatprep.subr.bf16.mxu0 %v2703
    %4829 = vmatpush1.bf16.msra.mxu0 %v2702
    %4830 = vmatprep.subr.bf16.mxu0 %v2699
    %4831 = vmatpush1.bf16.msra.mxu0 %v2698
    %4832 = vmatprep.subr.bf16.mxu0 %v2695
    %4833 = vmatpush1.bf16.msra.mxu0 %v2694
    %4834 = vmatprep.subr.bf16.mxu0 %v2755
    %4835 = vmatpush2.bf16.msra.mxu0 %v2754
    %4836 = vmatprep.subr.bf16.mxu0 %v2751
    %4837 = vmatpush2.bf16.msra.mxu0 %v2750
    %4838 = vmatprep.subr.bf16.mxu0 %v2747
    %4839 = vmatpush2.bf16.msra.mxu0 %v2746
    %4840 = vmatprep.subr.bf16.mxu0 %v2743
    %4841 = vmatpush2.bf16.msra.mxu0 %v2742
    %4842 = vmatprep.subr.bf16.mxu0 %v2739
    %4843 = vmatpush2.bf16.msra.mxu0 %v2738
    %4844 = vmatprep.subr.bf16.mxu0 %v2735
    %4845 = vmatpush2.bf16.msra.mxu0 %v2734
    %4846 = vmatprep.subr.bf16.mxu0 %v2731
    %4847 = vmatpush2.bf16.msra.mxu0 %v2730
    %4848 = vmatprep.subr.bf16.mxu0 %v2727
    %4849 = vmatpush2.bf16.msra.mxu0 %v2726
    %4850 = vmatprep.mubr.bf16.mxu0 %v4817
    %4851 = vmatmul.mubr.bf16.gmra.mxu0 %v4816
    %v4852 = vpop.f32.mrf.mxu0
    %v4853 = vadd.f32 %v1277, %v4852
    %v4854 = vpop.f32.mrf.mxu0
    %v4855 = vadd.f32 %v1281, %v4854
    %v4856 = vpop.f32.mrf.mxu0
    %v4857 = vpop.f32.mrf.mxu0
    %4858 = vdwg.mxu0
    %4859 = vmatprep.subr.bf16.mxu0 %v2725
    %4860 = vmatpush1.bf16.msra.mxu0 %v2724
    %4861 = vmatprep.subr.bf16.mxu0 %v2721
    %4862 = vmatpush1.bf16.msra.mxu0 %v2720
    %4863 = vmatprep.subr.bf16.mxu0 %v2717
    %4864 = vmatpush1.bf16.msra.mxu0 %v2716
    %4865 = vmatprep.subr.bf16.mxu0 %v2713
    %4866 = vmatpush1.bf16.msra.mxu0 %v2712
    %4867 = vmatprep.subr.bf16.mxu0 %v2709
    %4868 = vmatpush1.bf16.msra.mxu0 %v2708
    %4869 = vmatprep.subr.bf16.mxu0 %v2705
    %4870 = vmatpush1.bf16.msra.mxu0 %v2704
    %4871 = vmatprep.subr.bf16.mxu0 %v2701
    %4872 = vmatpush1.bf16.msra.mxu0 %v2700
    %4873 = vmatprep.subr.bf16.mxu0 %v2697
    %4874 = vmatpush1.bf16.msra.mxu0 %v2696
    %4875 = vmatprep.subr.bf16.mxu0 %v2757
    %4876 = vmatpush2.bf16.msra.mxu0 %v2756
    %4877 = vmatprep.subr.bf16.mxu0 %v2753
    %4878 = vmatpush2.bf16.msra.mxu0 %v2752
    %4879 = vmatprep.subr.bf16.mxu0 %v2749
    %4880 = vmatpush2.bf16.msra.mxu0 %v2748
    %4881 = vmatprep.subr.bf16.mxu0 %v2745
    %4882 = vmatpush2.bf16.msra.mxu0 %v2744
    %4883 = vmatprep.subr.bf16.mxu0 %v2741
    %4884 = vmatpush2.bf16.msra.mxu0 %v2740
    %4885 = vmatprep.subr.bf16.mxu0 %v2737
    %4886 = vmatpush2.bf16.msra.mxu0 %v2736
    %4887 = vmatprep.subr.bf16.mxu0 %v2733
    %4888 = vmatpush2.bf16.msra.mxu0 %v2732
    %4889 = vmatprep.subr.bf16.mxu0 %v2729
    %4890 = vmatpush2.bf16.msra.mxu0 %v2728
    %4891 = vmatprep.mubr.bf16.mxu0 %v4817
    %4892 = vmatmul.mubr.bf16.gmra.mxu0 %v4816
    %v4893 = vpop.f32.mrf.mxu0
    %v4894 = vadd.f32 %v1285, %v4893
    %v4895 = vpop.f32.mrf.mxu0
    %v4896 = vadd.f32 %v1289, %v4895
    %v4897 = vpop.f32.mrf.mxu0
    %v4898 = vpop.f32.mrf.mxu0
    %4899 = vdwg.mxu0
    %v4900 = vxor.u32 %v4853, 2147483648
    %v4901 = vxor.u32 %v4855, 2147483648
    %v4902 = vxor.u32 %v4894, 2147483648
    %v4903 = vmul.f32 %v4900, 1.442695
    %v4904 = vpow.pop %v4903
    %v4905 = vmul.f32 %v4901, 1.442695
    %v4906 = vpow.pop %v4905
    %v4907 = vmul.f32 %v4902, 1.442695
    %v4908 = vpow.pop %v4907
    %v4909 = vadd.f32 %v4904, 1.0
    %v4910 = vadd.f32 %v4906, 1.0
    %v4911 = vadd.f32 %v4908, 1.0
    %v4912 = vrcp.pop %v4909
    %v4913 = vmul.f32 1.0, %v4912
    %v4914 = vrcp.pop %v4910
    %v4915 = vmul.f32 1.0, %v4914
    %v4916 = vrcp.pop %v4911
    %v4917 = vmul.f32 1.0, %v4916
    %v4918 = vtanh.pop %v4896
    %v4919 = vmul.f32 %v4915, %v4422
    %v4920 = vmul.f32 %v4913, %v4918
    %v4921 = vadd.f32 %v4919, %v4920
    %v4922 = vtanh.pop %v4921
    %v4923 = vmul.f32 %v4917, %v4922
    %4924 = vst [vmem:[#allocation2 + $0x8] sm:$0x3] %v4923
    %s4925 = sld [smem:[#allocation3 + $0x5]]
    %p4926 = scmp.gt.s32.totalorder %s4925, 0
    %s4927 = scalar_select %p4926, %s4925, 0
    %p4928 = scmp.lt.s32.totalorder %s4927, 54
    %s4929 = scalar_select %p4928, %s4927, 54
    %s4930 = smul.u32 %s4929, 4
    %s4931 = scalar_lea.vmem [#allocation9], %s4930
    %v4932 = vld [vmem:[%s4931] sm:$0xf]
    %s4933 = sld [smem:[#allocation3 + $0x85]]
    %p4934 = scmp.gt.s32.totalorder %s4933, 0
    %s4935 = scalar_select %p4934, %s4933, 0
    %p4936 = scmp.lt.s32.totalorder %s4935, 54
    %s4937 = scalar_select %p4936, %s4935, 54
    %s4938 = smul.u32 %s4937, 4
    %s4939 = scalar_lea.vmem [#allocation9], %s4938
    %v4940 = vld [vmem:[%s4939] sm:$0xf]
    %v4942 = vlaneseq
    %v4943 = vshrl.u32 %v4942, 7
    %v4944 = vsub.s32 0, %v4943
    %v4945 = vrot.slane %v4932, %v4944
    %v4946 = vlaneseq
    %v4947 = vshrl.u32 %v4946, 7
    %v4948 = vsub.s32 1, %v4947
    %v4949 = vrot.slane %v4932, %v4948
    %v4950 = vlaneseq
    %v4951 = vshrl.u32 %v4950, 7
    %v4952 = vsub.s32 2, %v4951
    %v4953 = vrot.slane %v4932, %v4952
    %v4954 = vlaneseq
    %v4955 = vshrl.u32 %v4954, 7
    %v4956 = vsub.s32 3, %v4955
    %v4957 = vrot.slane %v4932, %v4956
    %v4963 = vlaneseq
    %v4964 = vshrl.u32 %v4963, 7
    %v4965 = vsub.s32 0, %v4964
    %v4966 = vrot.slane %v4940, %v4965
    %v4967 = vlaneseq
    %v4968 = vshrl.u32 %v4967, 7
    %v4969 = vsub.s32 1, %v4968
    %v4970 = vrot.slane %v4940, %v4969
    %v4971 = vlaneseq
    %v4972 = vshrl.u32 %v4971, 7
    %v4973 = vsub.s32 2, %v4972
    %v4974 = vrot.slane %v4940, %v4973
    %v4975 = vlaneseq
    %v4976 = vshrl.u32 %v4975, 7
    %v4977 = vsub.s32 3, %v4976
    %v4978 = vrot.slane %v4940, %v4977
    %v4983 = vsel %vm1364, %v4945, %v4966
    %v4984 = vsel %vm1364, %v4949, %v4970
    %v4985 = vsel %vm1364, %v4953, %v4974
    %v4986 = vsel %vm1364, %v4957, %v4978
    %4987 = vmatprep.subr.bf16.mxu0 %v1495
    %4988 = vmatpush1.bf16.msra.mxu0 %v1494
    %4989 = vmatprep.subr.bf16.mxu0 %v1491
    %4990 = vmatpush1.bf16.msra.mxu0 %v1490
    %4991 = vmatprep.subr.bf16.mxu0 %v1487
    %4992 = vmatpush1.bf16.msra.mxu0 %v1486
    %4993 = vmatprep.subr.bf16.mxu0 %v1483
    %4994 = vmatpush1.bf16.msra.mxu0 %v1482
    %4995 = vmatprep.subr.bf16.mxu0 %v1479
    %4996 = vmatpush1.bf16.msra.mxu0 %v1478
    %4997 = vmatprep.subr.bf16.mxu0 %v1475
    %4998 = vmatpush1.bf16.msra.mxu0 %v1474
    %4999 = vmatprep.subr.bf16.mxu0 %v1471
    %5000 = vmatpush1.bf16.msra.mxu0 %v1470
    %5001 = vmatprep.subr.bf16.mxu0 %v1467
    %5002 = vmatpush1.bf16.msra.mxu0 %v1466
    %5003 = vmatprep.subr.bf16.mxu0 0
    %5004 = vmatpush2.bf16.msra.mxu0 0
    %5005 = vmatprep.subr.bf16.mxu0 0
    %5006 = vmatpush2.bf16.msra.mxu0 0
    %5007 = vmatprep.subr.bf16.mxu0 0
    %5008 = vmatpush2.bf16.msra.mxu0 0
    %5009 = vmatprep.subr.bf16.mxu0 0
    %5010 = vmatpush2.bf16.msra.mxu0 0
    %5011 = vmatprep.subr.bf16.mxu0 0
    %5012 = vmatpush2.bf16.msra.mxu0 0
    %5013 = vmatprep.subr.bf16.mxu0 0
    %5014 = vmatpush2.bf16.msra.mxu0 0
    %5015 = vmatprep.subr.bf16.mxu0 0
    %5016 = vmatpush2.bf16.msra.mxu0 0
    %5017 = vmatprep.subr.bf16.mxu0 0
    %5018 = vmatpush2.bf16.msra.mxu0 0
    %5019 = vmatprep.mubr.bf16.mxu0 0
    %5020 = vmatmul.mubr.bf16.gmra.mxu0 %v4598
    %v5021 = vpop.f32.mrf.mxu0
    %v5022 = vadd.f32 0.0, %v5021
    %v5023 = vpop.f32.mrf.mxu0
    %v5024 = vadd.f32 0.0, %v5023
    %v5025 = vpop.f32.mrf.mxu0
    %v5026 = vpop.f32.mrf.mxu0
    %5027 = vdwg.mxu0
    %5028 = vmatprep.subr.bf16.mxu0 %v1497
    %5029 = vmatpush1.bf16.msra.mxu0 %v1496
    %5030 = vmatprep.subr.bf16.mxu0 %v1493
    %5031 = vmatpush1.bf16.msra.mxu0 %v1492
    %5032 = vmatprep.subr.bf16.mxu0 %v1489
    %5033 = vmatpush1.bf16.msra.mxu0 %v1488
    %5034 = vmatprep.subr.bf16.mxu0 %v1485
    %5035 = vmatpush1.bf16.msra.mxu0 %v1484
    %5036 = vmatprep.subr.bf16.mxu0 %v1481
    %5037 = vmatpush1.bf16.msra.mxu0 %v1480
    %5038 = vmatprep.subr.bf16.mxu0 %v1477
    %5039 = vmatpush1.bf16.msra.mxu0 %v1476
    %5040 = vmatprep.subr.bf16.mxu0 %v1473
    %5041 = vmatpush1.bf16.msra.mxu0 %v1472
    %5042 = vmatprep.subr.bf16.mxu0 %v1469
    %5043 = vmatpush1.bf16.msra.mxu0 %v1468
    %5044 = vmatprep.subr.bf16.mxu0 0
    %5045 = vmatpush2.bf16.msra.mxu0 0
    %5046 = vmatprep.subr.bf16.mxu0 0
    %5047 = vmatpush2.bf16.msra.mxu0 0
    %5048 = vmatprep.subr.bf16.mxu0 0
    %5049 = vmatpush2.bf16.msra.mxu0 0
    %5050 = vmatprep.subr.bf16.mxu0 0
    %5051 = vmatpush2.bf16.msra.mxu0 0
    %5052 = vmatprep.subr.bf16.mxu0 0
    %5053 = vmatpush2.bf16.msra.mxu0 0
    %5054 = vmatprep.subr.bf16.mxu0 0
    %5055 = vmatpush2.bf16.msra.mxu0 0
    %5056 = vmatprep.subr.bf16.mxu0 0
    %5057 = vmatpush2.bf16.msra.mxu0 0
    %5058 = vmatprep.subr.bf16.mxu0 0
    %5059 = vmatpush2.bf16.msra.mxu0 0
    %5060 = vmatprep.mubr.bf16.mxu0 0
    %5061 = vmatmul.mubr.bf16.gmra.mxu0 %v4598
    %v5062 = vpop.f32.mrf.mxu0
    %v5063 = vadd.f32 0.0, %v5062
    %v5064 = vpop.f32.mrf.mxu0
    %v5065 = vadd.f32 0.0, %v5064
    %v5066 = vpop.f32.mrf.mxu0
    %v5067 = vpop.f32.mrf.mxu0
    %5068 = vdwg.mxu0
    %v5069 = vadd.f32 %v4983, %v5022
    %v5070 = vadd.f32 %v4984, %v5024
    %v5071 = vadd.f32 %v4985, %v5063
    %v5072 = vadd.f32 %v4986, %v5065
    %v5073 = vxor.u32 %v5069, 2147483648
    %v5074 = vxor.u32 %v5070, 2147483648
    %v5075 = vxor.u32 %v5071, 2147483648
    %v5076 = vmul.f32 %v5073, 1.442695
    %v5077 = vpow.pop %v5076
    %v5078 = vmul.f32 %v5074, 1.442695
    %v5079 = vpow.pop %v5078
    %v5080 = vmul.f32 %v5075, 1.442695
    %v5081 = vpow.pop %v5080
    %v5082 = vadd.f32 %v5077, 1.0
    %v5083 = vadd.f32 %v5079, 1.0
    %v5084 = vadd.f32 %v5081, 1.0
    %v5085 = vrcp.pop %v5082
    %v5086 = vmul.f32 1.0, %v5085
    %v5087 = vrcp.pop %v5083
    %v5088 = vmul.f32 1.0, %v5087
    %v5089 = vrcp.pop %v5084
    %v5090 = vmul.f32 1.0, %v5089
    %v5091 = vtanh.pop %v5072
    %v5092 = vmul.f32 %v5088, %v4595
    %v5093 = vmul.f32 %v5086, %v5091
    %v5094 = vadd.f32 %v5092, %v5093
    %v5095 = vtanh.pop %v5094
    %v5096 = vmul.f32 %v5090, %v5095
    %v5097 = vpack.c.bf16 %v5096, %v5096
    %5098 = vmatprep.subr.bf16.mxu0 %v1863
    %5099 = vmatpush1.bf16.msra.mxu0 %v1862
    %5100 = vmatprep.subr.bf16.mxu0 %v1859
    %5101 = vmatpush1.bf16.msra.mxu0 %v1858
    %5102 = vmatprep.subr.bf16.mxu0 %v1855
    %5103 = vmatpush1.bf16.msra.mxu0 %v1854
    %5104 = vmatprep.subr.bf16.mxu0 %v1851
    %5105 = vmatpush1.bf16.msra.mxu0 %v1850
    %5106 = vmatprep.subr.bf16.mxu0 %v1847
    %5107 = vmatpush1.bf16.msra.mxu0 %v1846
    %5108 = vmatprep.subr.bf16.mxu0 %v1843
    %5109 = vmatpush1.bf16.msra.mxu0 %v1842
    %5110 = vmatprep.subr.bf16.mxu0 %v1839
    %5111 = vmatpush1.bf16.msra.mxu0 %v1838
    %5112 = vmatprep.subr.bf16.mxu0 %v1835
    %5113 = vmatpush1.bf16.msra.mxu0 %v1834
    %5114 = vmatprep.subr.bf16.mxu0 %v1895
    %5115 = vmatpush2.bf16.msra.mxu0 %v1894
    %5116 = vmatprep.subr.bf16.mxu0 %v1891
    %5117 = vmatpush2.bf16.msra.mxu0 %v1890
    %5118 = vmatprep.subr.bf16.mxu0 %v1887
    %5119 = vmatpush2.bf16.msra.mxu0 %v1886
    %5120 = vmatprep.subr.bf16.mxu0 %v1883
    %5121 = vmatpush2.bf16.msra.mxu0 %v1882
    %5122 = vmatprep.subr.bf16.mxu0 %v1879
    %5123 = vmatpush2.bf16.msra.mxu0 %v1878
    %5124 = vmatprep.subr.bf16.mxu0 %v1875
    %5125 = vmatpush2.bf16.msra.mxu0 %v1874
    %5126 = vmatprep.subr.bf16.mxu0 %v1871
    %5127 = vmatpush2.bf16.msra.mxu0 %v1870
    %5128 = vmatprep.subr.bf16.mxu0 %v1867
    %5129 = vmatpush2.bf16.msra.mxu0 %v1866
    %5130 = vmatprep.mubr.bf16.mxu0 %v4705
    %5131 = vmatmul.mubr.bf16.gmra.mxu0 %v5097
    %v5132 = vpop.f32.mrf.mxu0
    %v5133 = vadd.f32 %v1255, %v5132
    %v5134 = vpop.f32.mrf.mxu0
    %v5135 = vadd.f32 %v1259, %v5134
    %v5136 = vpop.f32.mrf.mxu0
    %v5137 = vpop.f32.mrf.mxu0
    %5138 = vdwg.mxu0
    %5139 = vmatprep.subr.bf16.mxu0 %v1865
    %5140 = vmatpush1.bf16.msra.mxu0 %v1864
    %5141 = vmatprep.subr.bf16.mxu0 %v1861
    %5142 = vmatpush1.bf16.msra.mxu0 %v1860
    %5143 = vmatprep.subr.bf16.mxu0 %v1857
    %5144 = vmatpush1.bf16.msra.mxu0 %v1856
    %5145 = vmatprep.subr.bf16.mxu0 %v1853
    %5146 = vmatpush1.bf16.msra.mxu0 %v1852
    %5147 = vmatprep.subr.bf16.mxu0 %v1849
    %5148 = vmatpush1.bf16.msra.mxu0 %v1848
    %5149 = vmatprep.subr.bf16.mxu0 %v1845
    %5150 = vmatpush1.bf16.msra.mxu0 %v1844
    %5151 = vmatprep.subr.bf16.mxu0 %v1841
    %5152 = vmatpush1.bf16.msra.mxu0 %v1840
    %5153 = vmatprep.subr.bf16.mxu0 %v1837
    %5154 = vmatpush1.bf16.msra.mxu0 %v1836
    %5155 = vmatprep.subr.bf16.mxu0 %v1897
    %5156 = vmatpush2.bf16.msra.mxu0 %v1896
    %5157 = vmatprep.subr.bf16.mxu0 %v1893
    %5158 = vmatpush2.bf16.msra.mxu0 %v1892
    %5159 = vmatprep.subr.bf16.mxu0 %v1889
    %5160 = vmatpush2.bf16.msra.mxu0 %v1888
    %5161 = vmatprep.subr.bf16.mxu0 %v1885
    %5162 = vmatpush2.bf16.msra.mxu0 %v1884
    %5163 = vmatprep.subr.bf16.mxu0 %v1881
    %5164 = vmatpush2.bf16.msra.mxu0 %v1880
    %5165 = vmatprep.subr.bf16.mxu0 %v1877
    %5166 = vmatpush2.bf16.msra.mxu0 %v1876
    %5167 = vmatprep.subr.bf16.mxu0 %v1873
    %5168 = vmatpush2.bf16.msra.mxu0 %v1872
    %5169 = vmatprep.subr.bf16.mxu0 %v1869
    %5170 = vmatpush2.bf16.msra.mxu0 %v1868
    %5171 = vmatprep.mubr.bf16.mxu0 %v4705
    %5172 = vmatmul.mubr.bf16.gmra.mxu0 %v5097
    %v5173 = vpop.f32.mrf.mxu0
    %v5174 = vadd.f32 %v1263, %v5173
    %v5175 = vpop.f32.mrf.mxu0
    %v5176 = vadd.f32 %v1267, %v5175
    %v5177 = vpop.f32.mrf.mxu0
    %v5178 = vpop.f32.mrf.mxu0
    %5179 = vdwg.mxu0
    %v5180 = vxor.u32 %v5133, 2147483648
    %v5181 = vxor.u32 %v5135, 2147483648
    %v5182 = vxor.u32 %v5174, 2147483648
    %v5183 = vmul.f32 %v5180, 1.442695
    %v5184 = vpow.pop %v5183
    %v5185 = vmul.f32 %v5181, 1.442695
    %v5186 = vpow.pop %v5185
    %v5187 = vmul.f32 %v5182, 1.442695
    %v5188 = vpow.pop %v5187
    %v5189 = vadd.f32 %v5184, 1.0
    %v5190 = vadd.f32 %v5186, 1.0
    %v5191 = vadd.f32 %v5188, 1.0
    %v5192 = vrcp.pop %v5189
    %v5193 = vmul.f32 1.0, %v5192
    %v5194 = vrcp.pop %v5190
    %v5195 = vmul.f32 1.0, %v5194
    %v5196 = vrcp.pop %v5191
    %v5197 = vmul.f32 1.0, %v5196
    %v5198 = vtanh.pop %v5176
    %v5199 = vmul.f32 %v5195, %v4702
    %v5200 = vmul.f32 %v5193, %v5198
    %v5201 = vadd.f32 %v5199, %v5200
    %v5202 = vtanh.pop %v5201
    %v5203 = vmul.f32 %v5197, %v5202
    %v5204 = vpack.c.bf16 %v5203, %v5203
    %5205 = vmatprep.subr.bf16.mxu0 %v2291
    %5206 = vmatpush1.bf16.msra.mxu0 %v2290
    %5207 = vmatprep.subr.bf16.mxu0 %v2287
    %5208 = vmatpush1.bf16.msra.mxu0 %v2286
    %5209 = vmatprep.subr.bf16.mxu0 %v2283
    %5210 = vmatpush1.bf16.msra.mxu0 %v2282
    %5211 = vmatprep.subr.bf16.mxu0 %v2279
    %5212 = vmatpush1.bf16.msra.mxu0 %v2278
    %5213 = vmatprep.subr.bf16.mxu0 %v2275
    %5214 = vmatpush1.bf16.msra.mxu0 %v2274
    %5215 = vmatprep.subr.bf16.mxu0 %v2271
    %5216 = vmatpush1.bf16.msra.mxu0 %v2270
    %5217 = vmatprep.subr.bf16.mxu0 %v2267
    %5218 = vmatpush1.bf16.msra.mxu0 %v2266
    %5219 = vmatprep.subr.bf16.mxu0 %v2263
    %5220 = vmatpush1.bf16.msra.mxu0 %v2262
    %5221 = vmatprep.subr.bf16.mxu0 %v2323
    %5222 = vmatpush2.bf16.msra.mxu0 %v2322
    %5223 = vmatprep.subr.bf16.mxu0 %v2319
    %5224 = vmatpush2.bf16.msra.mxu0 %v2318
    %5225 = vmatprep.subr.bf16.mxu0 %v2315
    %5226 = vmatpush2.bf16.msra.mxu0 %v2314
    %5227 = vmatprep.subr.bf16.mxu0 %v2311
    %5228 = vmatpush2.bf16.msra.mxu0 %v2310
    %5229 = vmatprep.subr.bf16.mxu0 %v2307
    %5230 = vmatpush2.bf16.msra.mxu0 %v2306
    %5231 = vmatprep.subr.bf16.mxu0 %v2303
    %5232 = vmatpush2.bf16.msra.mxu0 %v2302
    %5233 = vmatprep.subr.bf16.mxu0 %v2299
    %5234 = vmatpush2.bf16.msra.mxu0 %v2298
    %5235 = vmatprep.subr.bf16.mxu0 %v2295
    %5236 = vmatpush2.bf16.msra.mxu0 %v2294
    %5237 = vmatprep.mubr.bf16.mxu0 %v4816
    %5238 = vmatmul.mubr.bf16.gmra.mxu0 %v5204
    %v5239 = vpop.f32.mrf.mxu0
    %v5240 = vadd.f32 0.0, %v5239
    %v5241 = vpop.f32.mrf.mxu0
    %v5242 = vadd.f32 0.0, %v5241
    %v5243 = vpop.f32.mrf.mxu0
    %v5244 = vpop.f32.mrf.mxu0
    %5245 = vdwg.mxu0
    %5246 = vmatprep.subr.bf16.mxu0 %v2293
    %5247 = vmatpush1.bf16.msra.mxu0 %v2292
    %5248 = vmatprep.subr.bf16.mxu0 %v2289
    %5249 = vmatpush1.bf16.msra.mxu0 %v2288
    %5250 = vmatprep.subr.bf16.mxu0 %v2285
    %5251 = vmatpush1.bf16.msra.mxu0 %v2284
    %5252 = vmatprep.subr.bf16.mxu0 %v2281
    %5253 = vmatpush1.bf16.msra.mxu0 %v2280
    %5254 = vmatprep.subr.bf16.mxu0 %v2277
    %5255 = vmatpush1.bf16.msra.mxu0 %v2276
    %5256 = vmatprep.subr.bf16.mxu0 %v2273
    %5257 = vmatpush1.bf16.msra.mxu0 %v2272
    %5258 = vmatprep.subr.bf16.mxu0 %v2269
    %5259 = vmatpush1.bf16.msra.mxu0 %v2268
    %5260 = vmatprep.subr.bf16.mxu0 %v2265
    %5261 = vmatpush1.bf16.msra.mxu0 %v2264
    %5262 = vmatprep.subr.bf16.mxu0 %v2325
    %5263 = vmatpush2.bf16.msra.mxu0 %v2324
    %5264 = vmatprep.subr.bf16.mxu0 %v2321
    %5265 = vmatpush2.bf16.msra.mxu0 %v2320
    %5266 = vmatprep.subr.bf16.mxu0 %v2317
    %5267 = vmatpush2.bf16.msra.mxu0 %v2316
    %5268 = vmatprep.subr.bf16.mxu0 %v2313
    %5269 = vmatpush2.bf16.msra.mxu0 %v2312
    %5270 = vmatprep.subr.bf16.mxu0 %v2309
    %5271 = vmatpush2.bf16.msra.mxu0 %v2308
    %5272 = vmatprep.subr.bf16.mxu0 %v2305
    %5273 = vmatpush2.bf16.msra.mxu0 %v2304
    %5274 = vmatprep.subr.bf16.mxu0 %v2301
    %5275 = vmatpush2.bf16.msra.mxu0 %v2300
    %5276 = vmatprep.subr.bf16.mxu0 %v2297
    %5277 = vmatpush2.bf16.msra.mxu0 %v2296
    %5278 = vmatprep.mubr.bf16.mxu0 %v4816
    %5279 = vmatmul.mubr.bf16.gmra.mxu0 %v5204
    %v5280 = vpop.f32.mrf.mxu0
    %v5281 = vadd.f32 0.0, %v5280
    %v5282 = vpop.f32.mrf.mxu0
    %v5283 = vadd.f32 0.0, %v5282
    %v5284 = vpop.f32.mrf.mxu0
    %v5285 = vpop.f32.mrf.mxu0
    %5286 = vdwg.mxu0
    %v5287 = vadd.f32 %v979, %v5240
    %v5288 = vadd.f32 %v981, %v5242
    %v5289 = vadd.f32 %v1020, %v5281
    %v5290 = vadd.f32 %v1022, %v5283
    %v5291 = vxor.u32 %v5287, 2147483648
    %v5292 = vxor.u32 %v5288, 2147483648
    %v5293 = vxor.u32 %v5289, 2147483648
    %v5294 = vmul.f32 %v5291, 1.442695
    %v5295 = vpow.pop %v5294
    %v5296 = vmul.f32 %v5292, 1.442695
    %v5297 = vpow.pop %v5296
    %v5298 = vmul.f32 %v5293, 1.442695
    %v5299 = vpow.pop %v5298
    %v5300 = vadd.f32 %v5295, 1.0
    %v5301 = vadd.f32 %v5297, 1.0
    %v5302 = vadd.f32 %v5299, 1.0
    %v5303 = vrcp.pop %v5300
    %v5304 = vmul.f32 1.0, %v5303
    %v5305 = vrcp.pop %v5301
    %v5306 = vmul.f32 1.0, %v5305
    %v5307 = vrcp.pop %v5302
    %v5308 = vmul.f32 1.0, %v5307
    %v5309 = vtanh.pop %v5290
    %v5310 = vmul.f32 %v5306, %v4813
    %v5311 = vmul.f32 %v5304, %v5309
    %v5312 = vadd.f32 %v5310, %v5311
    %v5313 = vtanh.pop %v5312
    %v5314 = vmul.f32 %v5308, %v5313
    %v5315 = vpack.c.bf16 %v5314, %v5314
    %v5316 = vpack.c.bf16 %v4923, %v4923
    %5317 = vmatprep.subr.bf16.mxu0 %v2723
    %5318 = vmatpush1.bf16.msra.mxu0 %v2722
    %5319 = vmatprep.subr.bf16.mxu0 %v2719
    %5320 = vmatpush1.bf16.msra.mxu0 %v2718
    %5321 = vmatprep.subr.bf16.mxu0 %v2715
    %5322 = vmatpush1.bf16.msra.mxu0 %v2714
    %5323 = vmatprep.subr.bf16.mxu0 %v2711
    %5324 = vmatpush1.bf16.msra.mxu0 %v2710
    %5325 = vmatprep.subr.bf16.mxu0 %v2707
    %5326 = vmatpush1.bf16.msra.mxu0 %v2706
    %5327 = vmatprep.subr.bf16.mxu0 %v2703
    %5328 = vmatpush1.bf16.msra.mxu0 %v2702
    %5329 = vmatprep.subr.bf16.mxu0 %v2699
    %5330 = vmatpush1.bf16.msra.mxu0 %v2698
    %5331 = vmatprep.subr.bf16.mxu0 %v2695
    %5332 = vmatpush1.bf16.msra.mxu0 %v2694
    %5333 = vmatprep.subr.bf16.mxu0 %v2755
    %5334 = vmatpush2.bf16.msra.mxu0 %v2754
    %5335 = vmatprep.subr.bf16.mxu0 %v2751
    %5336 = vmatpush2.bf16.msra.mxu0 %v2750
    %5337 = vmatprep.subr.bf16.mxu0 %v2747
    %5338 = vmatpush2.bf16.msra.mxu0 %v2746
    %5339 = vmatprep.subr.bf16.mxu0 %v2743
    %5340 = vmatpush2.bf16.msra.mxu0 %v2742
    %5341 = vmatprep.subr.bf16.mxu0 %v2739
    %5342 = vmatpush2.bf16.msra.mxu0 %v2738
    %5343 = vmatprep.subr.bf16.mxu0 %v2735
    %5344 = vmatpush2.bf16.msra.mxu0 %v2734
    %5345 = vmatprep.subr.bf16.mxu0 %v2731
    %5346 = vmatpush2.bf16.msra.mxu0 %v2730
    %5347 = vmatprep.subr.bf16.mxu0 %v2727
    %5348 = vmatpush2.bf16.msra.mxu0 %v2726
    %5349 = vmatprep.mubr.bf16.mxu0 %v5316
    %5350 = vmatmul.mubr.bf16.gmra.mxu0 %v5315
    %v5351 = vpop.f32.mrf.mxu0
    %v5352 = vadd.f32 %v1277, %v5351
    %v5353 = vpop.f32.mrf.mxu0
    %v5354 = vadd.f32 %v1281, %v5353
    %v5355 = vpop.f32.mrf.mxu0
    %v5356 = vpop.f32.mrf.mxu0
    %5357 = vdwg.mxu0
    %5358 = vmatprep.subr.bf16.mxu0 %v2725
    %5359 = vmatpush1.bf16.msra.mxu0 %v2724
    %5360 = vmatprep.subr.bf16.mxu0 %v2721
    %5361 = vmatpush1.bf16.msra.mxu0 %v2720
    %5362 = vmatprep.subr.bf16.mxu0 %v2717
    %5363 = vmatpush1.bf16.msra.mxu0 %v2716
    %5364 = vmatprep.subr.bf16.mxu0 %v2713
    %5365 = vmatpush1.bf16.msra.mxu0 %v2712
    %5366 = vmatprep.subr.bf16.mxu0 %v2709
    %5367 = vmatpush1.bf16.msra.mxu0 %v2708
    %5368 = vmatprep.subr.bf16.mxu0 %v2705
    %5369 = vmatpush1.bf16.msra.mxu0 %v2704
    %5370 = vmatprep.subr.bf16.mxu0 %v2701
    %5371 = vmatpush1.bf16.msra.mxu0 %v2700
    %5372 = vmatprep.subr.bf16.mxu0 %v2697
    %5373 = vmatpush1.bf16.msra.mxu0 %v2696
    %5374 = vmatprep.subr.bf16.mxu0 %v2757
    %5375 = vmatpush2.bf16.msra.mxu0 %v2756
    %5376 = vmatprep.subr.bf16.mxu0 %v2753
    %5377 = vmatpush2.bf16.msra.mxu0 %v2752
    %5378 = vmatprep.subr.bf16.mxu0 %v2749
    %5379 = vmatpush2.bf16.msra.mxu0 %v2748
    %5380 = vmatprep.subr.bf16.mxu0 %v2745
    %5381 = vmatpush2.bf16.msra.mxu0 %v2744
    %5382 = vmatprep.subr.bf16.mxu0 %v2741
    %5383 = vmatpush2.bf16.msra.mxu0 %v2740
    %5384 = vmatprep.subr.bf16.mxu0 %v2737
    %5385 = vmatpush2.bf16.msra.mxu0 %v2736
    %5386 = vmatprep.subr.bf16.mxu0 %v2733
    %5387 = vmatpush2.bf16.msra.mxu0 %v2732
    %5388 = vmatprep.subr.bf16.mxu0 %v2729
    %5389 = vmatpush2.bf16.msra.mxu0 %v2728
    %5390 = vmatprep.mubr.bf16.mxu0 %v5316
    %5391 = vmatmul.mubr.bf16.gmra.mxu0 %v5315
    %v5392 = vpop.f32.mrf.mxu0
    %v5393 = vadd.f32 %v1285, %v5392
    %v5394 = vpop.f32.mrf.mxu0
    %v5395 = vadd.f32 %v1289, %v5394
    %v5396 = vpop.f32.mrf.mxu0
    %v5397 = vpop.f32.mrf.mxu0
    %5398 = vdwg.mxu0
    %v5399 = vxor.u32 %v5352, 2147483648
    %v5400 = vxor.u32 %v5354, 2147483648
    %v5401 = vxor.u32 %v5393, 2147483648
    %v5402 = vmul.f32 %v5399, 1.442695
    %v5403 = vpow.pop %v5402
    %v5404 = vmul.f32 %v5400, 1.442695
    %v5405 = vpow.pop %v5404
    %v5406 = vmul.f32 %v5401, 1.442695
    %v5407 = vpow.pop %v5406
    %v5408 = vadd.f32 %v5403, 1.0
    %v5409 = vadd.f32 %v5405, 1.0
    %v5410 = vadd.f32 %v5407, 1.0
    %v5411 = vrcp.pop %v5408
    %v5412 = vmul.f32 1.0, %v5411
    %v5413 = vrcp.pop %v5409
    %v5414 = vmul.f32 1.0, %v5413
    %v5415 = vrcp.pop %v5410
    %v5416 = vmul.f32 1.0, %v5415
    %v5417 = vtanh.pop %v5395
    %v5418 = vmul.f32 %v5414, %v4921
    %v5419 = vmul.f32 %v5412, %v5417
    %v5420 = vadd.f32 %v5418, %v5419
    %v5421 = vtanh.pop %v5420
    %v5422 = vmul.f32 %v5416, %v5421
    %5423 = vst [vmem:[#allocation2 + $0xa] sm:$0x3] %v5422
    %s5424 = sld [smem:[#allocation3 + $0x6]]
    %p5425 = scmp.gt.s32.totalorder %s5424, 0
    %s5426 = scalar_select %p5425, %s5424, 0
    %p5427 = scmp.lt.s32.totalorder %s5426, 54
    %s5428 = scalar_select %p5427, %s5426, 54
    %s5429 = smul.u32 %s5428, 4
    %s5430 = scalar_lea.vmem [#allocation9], %s5429
    %v5431 = vld [vmem:[%s5430] sm:$0xf]
    %s5432 = sld [smem:[#allocation3 + $0x86]]
    %p5433 = scmp.gt.s32.totalorder %s5432, 0
    %s5434 = scalar_select %p5433, %s5432, 0
    %p5435 = scmp.lt.s32.totalorder %s5434, 54
    %s5436 = scalar_select %p5435, %s5434, 54
    %s5437 = smul.u32 %s5436, 4
    %s5438 = scalar_lea.vmem [#allocation9], %s5437
    %v5439 = vld [vmem:[%s5438] sm:$0xf]
    %v5441 = vlaneseq
    %v5442 = vshrl.u32 %v5441, 7
    %v5443 = vsub.s32 0, %v5442
    %v5444 = vrot.slane %v5431, %v5443
    %v5445 = vlaneseq
    %v5446 = vshrl.u32 %v5445, 7
    %v5447 = vsub.s32 1, %v5446
    %v5448 = vrot.slane %v5431, %v5447
    %v5449 = vlaneseq
    %v5450 = vshrl.u32 %v5449, 7
    %v5451 = vsub.s32 2, %v5450
    %v5452 = vrot.slane %v5431, %v5451
    %v5453 = vlaneseq
    %v5454 = vshrl.u32 %v5453, 7
    %v5455 = vsub.s32 3, %v5454
    %v5456 = vrot.slane %v5431, %v5455
    %v5462 = vlaneseq
    %v5463 = vshrl.u32 %v5462, 7
    %v5464 = vsub.s32 0, %v5463
    %v5465 = vrot.slane %v5439, %v5464
    %v5466 = vlaneseq
    %v5467 = vshrl.u32 %v5466, 7
    %v5468 = vsub.s32 1, %v5467
    %v5469 = vrot.slane %v5439, %v5468
    %v5470 = vlaneseq
    %v5471 = vshrl.u32 %v5470, 7
    %v5472 = vsub.s32 2, %v5471
    %v5473 = vrot.slane %v5439, %v5472
    %v5474 = vlaneseq
    %v5475 = vshrl.u32 %v5474, 7
    %v5476 = vsub.s32 3, %v5475
    %v5477 = vrot.slane %v5439, %v5476
    %v5482 = vsel %vm1364, %v5444, %v5465
    %v5483 = vsel %vm1364, %v5448, %v5469
    %v5484 = vsel %vm1364, %v5452, %v5473
    %v5485 = vsel %vm1364, %v5456, %v5477
    %5486 = vmatprep.subr.bf16.mxu0 %v1495
    %5487 = vmatpush1.bf16.msra.mxu0 %v1494
    %5488 = vmatprep.subr.bf16.mxu0 %v1491
    %5489 = vmatpush1.bf16.msra.mxu0 %v1490
    %5490 = vmatprep.subr.bf16.mxu0 %v1487
    %5491 = vmatpush1.bf16.msra.mxu0 %v1486
    %5492 = vmatprep.subr.bf16.mxu0 %v1483
    %5493 = vmatpush1.bf16.msra.mxu0 %v1482
    %5494 = vmatprep.subr.bf16.mxu0 %v1479
    %5495 = vmatpush1.bf16.msra.mxu0 %v1478
    %5496 = vmatprep.subr.bf16.mxu0 %v1475
    %5497 = vmatpush1.bf16.msra.mxu0 %v1474
    %5498 = vmatprep.subr.bf16.mxu0 %v1471
    %5499 = vmatpush1.bf16.msra.mxu0 %v1470
    %5500 = vmatprep.subr.bf16.mxu0 %v1467
    %5501 = vmatpush1.bf16.msra.mxu0 %v1466
    %5502 = vmatprep.subr.bf16.mxu0 0
    %5503 = vmatpush2.bf16.msra.mxu0 0
    %5504 = vmatprep.subr.bf16.mxu0 0
    %5505 = vmatpush2.bf16.msra.mxu0 0
    %5506 = vmatprep.subr.bf16.mxu0 0
    %5507 = vmatpush2.bf16.msra.mxu0 0
    %5508 = vmatprep.subr.bf16.mxu0 0
    %5509 = vmatpush2.bf16.msra.mxu0 0
    %5510 = vmatprep.subr.bf16.mxu0 0
    %5511 = vmatpush2.bf16.msra.mxu0 0
    %5512 = vmatprep.subr.bf16.mxu0 0
    %5513 = vmatpush2.bf16.msra.mxu0 0
    %5514 = vmatprep.subr.bf16.mxu0 0
    %5515 = vmatpush2.bf16.msra.mxu0 0
    %5516 = vmatprep.subr.bf16.mxu0 0
    %5517 = vmatpush2.bf16.msra.mxu0 0
    %5518 = vmatprep.mubr.bf16.mxu0 0
    %5519 = vmatmul.mubr.bf16.gmra.mxu0 %v5097
    %v5520 = vpop.f32.mrf.mxu0
    %v5521 = vadd.f32 0.0, %v5520
    %v5522 = vpop.f32.mrf.mxu0
    %v5523 = vadd.f32 0.0, %v5522
    %v5524 = vpop.f32.mrf.mxu0
    %v5525 = vpop.f32.mrf.mxu0
    %5526 = vdwg.mxu0
    %5527 = vmatprep.subr.bf16.mxu0 %v1497
    %5528 = vmatpush1.bf16.msra.mxu0 %v1496
    %5529 = vmatprep.subr.bf16.mxu0 %v1493
    %5530 = vmatpush1.bf16.msra.mxu0 %v1492
    %5531 = vmatprep.subr.bf16.mxu0 %v1489
    %5532 = vmatpush1.bf16.msra.mxu0 %v1488
    %5533 = vmatprep.subr.bf16.mxu0 %v1485
    %5534 = vmatpush1.bf16.msra.mxu0 %v1484
    %5535 = vmatprep.subr.bf16.mxu0 %v1481
    %5536 = vmatpush1.bf16.msra.mxu0 %v1480
    %5537 = vmatprep.subr.bf16.mxu0 %v1477
    %5538 = vmatpush1.bf16.msra.mxu0 %v1476
    %5539 = vmatprep.subr.bf16.mxu0 %v1473
    %5540 = vmatpush1.bf16.msra.mxu0 %v1472
    %5541 = vmatprep.subr.bf16.mxu0 %v1469
    %5542 = vmatpush1.bf16.msra.mxu0 %v1468
    %5543 = vmatprep.subr.bf16.mxu0 0
    %5544 = vmatpush2.bf16.msra.mxu0 0
    %5545 = vmatprep.subr.bf16.mxu0 0
    %5546 = vmatpush2.bf16.msra.mxu0 0
    %5547 = vmatprep.subr.bf16.mxu0 0
    %5548 = vmatpush2.bf16.msra.mxu0 0
    %5549 = vmatprep.subr.bf16.mxu0 0
    %5550 = vmatpush2.bf16.msra.mxu0 0
    %5551 = vmatprep.subr.bf16.mxu0 0
    %5552 = vmatpush2.bf16.msra.mxu0 0
    %5553 = vmatprep.subr.bf16.mxu0 0
    %5554 = vmatpush2.bf16.msra.mxu0 0
    %5555 = vmatprep.subr.bf16.mxu0 0
    %5556 = vmatpush2.bf16.msra.mxu0 0
    %5557 = vmatprep.subr.bf16.mxu0 0
    %5558 = vmatpush2.bf16.msra.mxu0 0
    %5559 = vmatprep.mubr.bf16.mxu0 0
    %5560 = vmatmul.mubr.bf16.gmra.mxu0 %v5097
    %v5561 = vpop.f32.mrf.mxu0
    %v5562 = vadd.f32 0.0, %v5561
    %v5563 = vpop.f32.mrf.mxu0
    %v5564 = vadd.f32 0.0, %v5563
    %v5565 = vpop.f32.mrf.mxu0
    %v5566 = vpop.f32.mrf.mxu0
    %5567 = vdwg.mxu0
    %v5568 = vadd.f32 %v5482, %v5521
    %v5569 = vadd.f32 %v5483, %v5523
    %v5570 = vadd.f32 %v5484, %v5562
    %v5571 = vadd.f32 %v5485, %v5564
    %v5572 = vxor.u32 %v5568, 2147483648
    %v5573 = vxor.u32 %v5569, 2147483648
    %v5574 = vxor.u32 %v5570, 2147483648
    %v5575 = vmul.f32 %v5572, 1.442695
    %v5576 = vpow.pop %v5575
    %v5577 = vmul.f32 %v5573, 1.442695
    %v5578 = vpow.pop %v5577
    %v5579 = vmul.f32 %v5574, 1.442695
    %v5580 = vpow.pop %v5579
    %v5581 = vadd.f32 %v5576, 1.0
    %v5582 = vadd.f32 %v5578, 1.0
    %v5583 = vadd.f32 %v5580, 1.0
    %v5584 = vrcp.pop %v5581
    %v5585 = vmul.f32 1.0, %v5584
    %v5586 = vrcp.pop %v5582
    %v5587 = vmul.f32 1.0, %v5586
    %v5588 = vrcp.pop %v5583
    %v5589 = vmul.f32 1.0, %v5588
    %v5590 = vtanh.pop %v5571
    %v5591 = vmul.f32 %v5587, %v5094
    %v5592 = vmul.f32 %v5585, %v5590
    %v5593 = vadd.f32 %v5591, %v5592
    %v5594 = vtanh.pop %v5593
    %v5595 = vmul.f32 %v5589, %v5594
    %v5596 = vpack.c.bf16 %v5595, %v5595
    %5597 = vmatprep.subr.bf16.mxu0 %v1863
    %5598 = vmatpush1.bf16.msra.mxu0 %v1862
    %5599 = vmatprep.subr.bf16.mxu0 %v1859
    %5600 = vmatpush1.bf16.msra.mxu0 %v1858
    %5601 = vmatprep.subr.bf16.mxu0 %v1855
    %5602 = vmatpush1.bf16.msra.mxu0 %v1854
    %5603 = vmatprep.subr.bf16.mxu0 %v1851
    %5604 = vmatpush1.bf16.msra.mxu0 %v1850
    %5605 = vmatprep.subr.bf16.mxu0 %v1847
    %5606 = vmatpush1.bf16.msra.mxu0 %v1846
    %5607 = vmatprep.subr.bf16.mxu0 %v1843
    %5608 = vmatpush1.bf16.msra.mxu0 %v1842
    %5609 = vmatprep.subr.bf16.mxu0 %v1839
    %5610 = vmatpush1.bf16.msra.mxu0 %v1838
    %5611 = vmatprep.subr.bf16.mxu0 %v1835
    %5612 = vmatpush1.bf16.msra.mxu0 %v1834
    %5613 = vmatprep.subr.bf16.mxu0 %v1895
    %5614 = vmatpush2.bf16.msra.mxu0 %v1894
    %5615 = vmatprep.subr.bf16.mxu0 %v1891
    %5616 = vmatpush2.bf16.msra.mxu0 %v1890
    %5617 = vmatprep.subr.bf16.mxu0 %v1887
    %5618 = vmatpush2.bf16.msra.mxu0 %v1886
    %5619 = vmatprep.subr.bf16.mxu0 %v1883
    %5620 = vmatpush2.bf16.msra.mxu0 %v1882
    %5621 = vmatprep.subr.bf16.mxu0 %v1879
    %5622 = vmatpush2.bf16.msra.mxu0 %v1878
    %5623 = vmatprep.subr.bf16.mxu0 %v1875
    %5624 = vmatpush2.bf16.msra.mxu0 %v1874
    %5625 = vmatprep.subr.bf16.mxu0 %v1871
    %5626 = vmatpush2.bf16.msra.mxu0 %v1870
    %5627 = vmatprep.subr.bf16.mxu0 %v1867
    %5628 = vmatpush2.bf16.msra.mxu0 %v1866
    %5629 = vmatprep.mubr.bf16.mxu0 %v5204
    %5630 = vmatmul.mubr.bf16.gmra.mxu0 %v5596
    %v5631 = vpop.f32.mrf.mxu0
    %v5632 = vadd.f32 %v1255, %v5631
    %v5633 = vpop.f32.mrf.mxu0
    %v5634 = vadd.f32 %v1259, %v5633
    %v5635 = vpop.f32.mrf.mxu0
    %v5636 = vpop.f32.mrf.mxu0
    %5637 = vdwg.mxu0
    %5638 = vmatprep.subr.bf16.mxu0 %v1865
    %5639 = vmatpush1.bf16.msra.mxu0 %v1864
    %5640 = vmatprep.subr.bf16.mxu0 %v1861
    %5641 = vmatpush1.bf16.msra.mxu0 %v1860
    %5642 = vmatprep.subr.bf16.mxu0 %v1857
    %5643 = vmatpush1.bf16.msra.mxu0 %v1856
    %5644 = vmatprep.subr.bf16.mxu0 %v1853
    %5645 = vmatpush1.bf16.msra.mxu0 %v1852
    %5646 = vmatprep.subr.bf16.mxu0 %v1849
    %5647 = vmatpush1.bf16.msra.mxu0 %v1848
    %5648 = vmatprep.subr.bf16.mxu0 %v1845
    %5649 = vmatpush1.bf16.msra.mxu0 %v1844
    %5650 = vmatprep.subr.bf16.mxu0 %v1841
    %5651 = vmatpush1.bf16.msra.mxu0 %v1840
    %5652 = vmatprep.subr.bf16.mxu0 %v1837
    %5653 = vmatpush1.bf16.msra.mxu0 %v1836
    %5654 = vmatprep.subr.bf16.mxu0 %v1897
    %5655 = vmatpush2.bf16.msra.mxu0 %v1896
    %5656 = vmatprep.subr.bf16.mxu0 %v1893
    %5657 = vmatpush2.bf16.msra.mxu0 %v1892
    %5658 = vmatprep.subr.bf16.mxu0 %v1889
    %5659 = vmatpush2.bf16.msra.mxu0 %v1888
    %5660 = vmatprep.subr.bf16.mxu0 %v1885
    %5661 = vmatpush2.bf16.msra.mxu0 %v1884
    %5662 = vmatprep.subr.bf16.mxu0 %v1881
    %5663 = vmatpush2.bf16.msra.mxu0 %v1880
    %5664 = vmatprep.subr.bf16.mxu0 %v1877
    %5665 = vmatpush2.bf16.msra.mxu0 %v1876
    %5666 = vmatprep.subr.bf16.mxu0 %v1873
    %5667 = vmatpush2.bf16.msra.mxu0 %v1872
    %5668 = vmatprep.subr.bf16.mxu0 %v1869
    %5669 = vmatpush2.bf16.msra.mxu0 %v1868
    %5670 = vmatprep.mubr.bf16.mxu0 %v5204
    %5671 = vmatmul.mubr.bf16.gmra.mxu0 %v5596
    %v5672 = vpop.f32.mrf.mxu0
    %v5673 = vadd.f32 %v1263, %v5672
    %v5674 = vpop.f32.mrf.mxu0
    %v5675 = vadd.f32 %v1267, %v5674
    %v5676 = vpop.f32.mrf.mxu0
    %v5677 = vpop.f32.mrf.mxu0
    %5678 = vdwg.mxu0
    %v5679 = vxor.u32 %v5632, 2147483648
    %v5680 = vxor.u32 %v5634, 2147483648
    %v5681 = vxor.u32 %v5673, 2147483648
    %v5682 = vmul.f32 %v5679, 1.442695
    %v5683 = vpow.pop %v5682
    %v5684 = vmul.f32 %v5680, 1.442695
    %v5685 = vpow.pop %v5684
    %v5686 = vmul.f32 %v5681, 1.442695
    %v5687 = vpow.pop %v5686
    %v5688 = vadd.f32 %v5683, 1.0
    %v5689 = vadd.f32 %v5685, 1.0
    %v5690 = vadd.f32 %v5687, 1.0
    %v5691 = vrcp.pop %v5688
    %v5692 = vmul.f32 1.0, %v5691
    %v5693 = vrcp.pop %v5689
    %v5694 = vmul.f32 1.0, %v5693
    %v5695 = vrcp.pop %v5690
    %v5696 = vmul.f32 1.0, %v5695
    %v5697 = vtanh.pop %v5675
    %v5698 = vmul.f32 %v5694, %v5201
    %v5699 = vmul.f32 %v5692, %v5697
    %v5700 = vadd.f32 %v5698, %v5699
    %v5701 = vtanh.pop %v5700
    %v5702 = vmul.f32 %v5696, %v5701
    %v5703 = vpack.c.bf16 %v5702, %v5702
    %5704 = vmatprep.subr.bf16.mxu0 %v2291
    %5705 = vmatpush1.bf16.msra.mxu0 %v2290
    %5706 = vmatprep.subr.bf16.mxu0 %v2287
    %5707 = vmatpush1.bf16.msra.mxu0 %v2286
    %5708 = vmatprep.subr.bf16.mxu0 %v2283
    %5709 = vmatpush1.bf16.msra.mxu0 %v2282
    %5710 = vmatprep.subr.bf16.mxu0 %v2279
    %5711 = vmatpush1.bf16.msra.mxu0 %v2278
    %5712 = vmatprep.subr.bf16.mxu0 %v2275
    %5713 = vmatpush1.bf16.msra.mxu0 %v2274
    %5714 = vmatprep.subr.bf16.mxu0 %v2271
    %5715 = vmatpush1.bf16.msra.mxu0 %v2270
    %5716 = vmatprep.subr.bf16.mxu0 %v2267
    %5717 = vmatpush1.bf16.msra.mxu0 %v2266
    %5718 = vmatprep.subr.bf16.mxu0 %v2263
    %5719 = vmatpush1.bf16.msra.mxu0 %v2262
    %5720 = vmatprep.subr.bf16.mxu0 %v2323
    %5721 = vmatpush2.bf16.msra.mxu0 %v2322
    %5722 = vmatprep.subr.bf16.mxu0 %v2319
    %5723 = vmatpush2.bf16.msra.mxu0 %v2318
    %5724 = vmatprep.subr.bf16.mxu0 %v2315
    %5725 = vmatpush2.bf16.msra.mxu0 %v2314
    %5726 = vmatprep.subr.bf16.mxu0 %v2311
    %5727 = vmatpush2.bf16.msra.mxu0 %v2310
    %5728 = vmatprep.subr.bf16.mxu0 %v2307
    %5729 = vmatpush2.bf16.msra.mxu0 %v2306
    %5730 = vmatprep.subr.bf16.mxu0 %v2303
    %5731 = vmatpush2.bf16.msra.mxu0 %v2302
    %5732 = vmatprep.subr.bf16.mxu0 %v2299
    %5733 = vmatpush2.bf16.msra.mxu0 %v2298
    %5734 = vmatprep.subr.bf16.mxu0 %v2295
    %5735 = vmatpush2.bf16.msra.mxu0 %v2294
    %5736 = vmatprep.mubr.bf16.mxu0 %v5315
    %5737 = vmatmul.mubr.bf16.gmra.mxu0 %v5703
    %v5738 = vpop.f32.mrf.mxu0
    %v5739 = vadd.f32 0.0, %v5738
    %v5740 = vpop.f32.mrf.mxu0
    %v5741 = vadd.f32 0.0, %v5740
    %v5742 = vpop.f32.mrf.mxu0
    %v5743 = vpop.f32.mrf.mxu0
    %5744 = vdwg.mxu0
    %5745 = vmatprep.subr.bf16.mxu0 %v2293
    %5746 = vmatpush1.bf16.msra.mxu0 %v2292
    %5747 = vmatprep.subr.bf16.mxu0 %v2289
    %5748 = vmatpush1.bf16.msra.mxu0 %v2288
    %5749 = vmatprep.subr.bf16.mxu0 %v2285
    %5750 = vmatpush1.bf16.msra.mxu0 %v2284
    %5751 = vmatprep.subr.bf16.mxu0 %v2281
    %5752 = vmatpush1.bf16.msra.mxu0 %v2280
    %5753 = vmatprep.subr.bf16.mxu0 %v2277
    %5754 = vmatpush1.bf16.msra.mxu0 %v2276
    %5755 = vmatprep.subr.bf16.mxu0 %v2273
    %5756 = vmatpush1.bf16.msra.mxu0 %v2272
    %5757 = vmatprep.subr.bf16.mxu0 %v2269
    %5758 = vmatpush1.bf16.msra.mxu0 %v2268
    %5759 = vmatprep.subr.bf16.mxu0 %v2265
    %5760 = vmatpush1.bf16.msra.mxu0 %v2264
    %5761 = vmatprep.subr.bf16.mxu0 %v2325
    %5762 = vmatpush2.bf16.msra.mxu0 %v2324
    %5763 = vmatprep.subr.bf16.mxu0 %v2321
    %5764 = vmatpush2.bf16.msra.mxu0 %v2320
    %5765 = vmatprep.subr.bf16.mxu0 %v2317
    %5766 = vmatpush2.bf16.msra.mxu0 %v2316
    %5767 = vmatprep.subr.bf16.mxu0 %v2313
    %5768 = vmatpush2.bf16.msra.mxu0 %v2312
    %5769 = vmatprep.subr.bf16.mxu0 %v2309
    %5770 = vmatpush2.bf16.msra.mxu0 %v2308
    %5771 = vmatprep.subr.bf16.mxu0 %v2305
    %5772 = vmatpush2.bf16.msra.mxu0 %v2304
    %5773 = vmatprep.subr.bf16.mxu0 %v2301
    %5774 = vmatpush2.bf16.msra.mxu0 %v2300
    %5775 = vmatprep.subr.bf16.mxu0 %v2297
    %5776 = vmatpush2.bf16.msra.mxu0 %v2296
    %5777 = vmatprep.mubr.bf16.mxu0 %v5315
    %5778 = vmatmul.mubr.bf16.gmra.mxu0 %v5703
    %v5779 = vpop.f32.mrf.mxu0
    %v5780 = vadd.f32 0.0, %v5779
    %v5781 = vpop.f32.mrf.mxu0
    %v5782 = vadd.f32 0.0, %v5781
    %v5783 = vpop.f32.mrf.mxu0
    %v5784 = vpop.f32.mrf.mxu0
    %5785 = vdwg.mxu0
    %v5786 = vadd.f32 %v979, %v5739
    %v5787 = vadd.f32 %v981, %v5741
    %v5788 = vadd.f32 %v1020, %v5780
    %v5789 = vadd.f32 %v1022, %v5782
    %v5790 = vxor.u32 %v5786, 2147483648
    %v5791 = vxor.u32 %v5787, 2147483648
    %v5792 = vxor.u32 %v5788, 2147483648
    %v5793 = vmul.f32 %v5790, 1.442695
    %v5794 = vpow.pop %v5793
    %v5795 = vmul.f32 %v5791, 1.442695
    %v5796 = vpow.pop %v5795
    %v5797 = vmul.f32 %v5792, 1.442695
    %v5798 = vpow.pop %v5797
    %v5799 = vadd.f32 %v5794, 1.0
    %v5800 = vadd.f32 %v5796, 1.0
    %v5801 = vadd.f32 %v5798, 1.0
    %v5802 = vrcp.pop %v5799
    %v5803 = vmul.f32 1.0, %v5802
    %v5804 = vrcp.pop %v5800
    %v5805 = vmul.f32 1.0, %v5804
    %v5806 = vrcp.pop %v5801
    %v5807 = vmul.f32 1.0, %v5806
    %v5808 = vtanh.pop %v5789
    %v5809 = vmul.f32 %v5805, %v5312
    %v5810 = vmul.f32 %v5803, %v5808
    %v5811 = vadd.f32 %v5809, %v5810
    %v5812 = vtanh.pop %v5811
    %v5813 = vmul.f32 %v5807, %v5812
    %v5814 = vpack.c.bf16 %v5813, %v5813
    %v5815 = vpack.c.bf16 %v5422, %v5422
    %5816 = vmatprep.subr.bf16.mxu0 %v2723
    %5817 = vmatpush1.bf16.msra.mxu0 %v2722
    %5818 = vmatprep.subr.bf16.mxu0 %v2719
    %5819 = vmatpush1.bf16.msra.mxu0 %v2718
    %5820 = vmatprep.subr.bf16.mxu0 %v2715
    %5821 = vmatpush1.bf16.msra.mxu0 %v2714
    %5822 = vmatprep.subr.bf16.mxu0 %v2711
    %5823 = vmatpush1.bf16.msra.mxu0 %v2710
    %5824 = vmatprep.subr.bf16.mxu0 %v2707
    %5825 = vmatpush1.bf16.msra.mxu0 %v2706
    %5826 = vmatprep.subr.bf16.mxu0 %v2703
    %5827 = vmatpush1.bf16.msra.mxu0 %v2702
    %5828 = vmatprep.subr.bf16.mxu0 %v2699
    %5829 = vmatpush1.bf16.msra.mxu0 %v2698
    %5830 = vmatprep.subr.bf16.mxu0 %v2695
    %5831 = vmatpush1.bf16.msra.mxu0 %v2694
    %5832 = vmatprep.subr.bf16.mxu0 %v2755
    %5833 = vmatpush2.bf16.msra.mxu0 %v2754
    %5834 = vmatprep.subr.bf16.mxu0 %v2751
    %5835 = vmatpush2.bf16.msra.mxu0 %v2750
    %5836 = vmatprep.subr.bf16.mxu0 %v2747
    %5837 = vmatpush2.bf16.msra.mxu0 %v2746
    %5838 = vmatprep.subr.bf16.mxu0 %v2743
    %5839 = vmatpush2.bf16.msra.mxu0 %v2742
    %5840 = vmatprep.subr.bf16.mxu0 %v2739
    %5841 = vmatpush2.bf16.msra.mxu0 %v2738
    %5842 = vmatprep.subr.bf16.mxu0 %v2735
    %5843 = vmatpush2.bf16.msra.mxu0 %v2734
    %5844 = vmatprep.subr.bf16.mxu0 %v2731
    %5845 = vmatpush2.bf16.msra.mxu0 %v2730
    %5846 = vmatprep.subr.bf16.mxu0 %v2727
    %5847 = vmatpush2.bf16.msra.mxu0 %v2726
    %5848 = vmatprep.mubr.bf16.mxu0 %v5815
    %5849 = vmatmul.mubr.bf16.gmra.mxu0 %v5814
    %v5850 = vpop.f32.mrf.mxu0
    %v5851 = vadd.f32 %v1277, %v5850
    %v5852 = vpop.f32.mrf.mxu0
    %v5853 = vadd.f32 %v1281, %v5852
    %v5854 = vpop.f32.mrf.mxu0
    %v5855 = vpop.f32.mrf.mxu0
    %5856 = vdwg.mxu0
    %5857 = vmatprep.subr.bf16.mxu0 %v2725
    %5858 = vmatpush1.bf16.msra.mxu0 %v2724
    %5859 = vmatprep.subr.bf16.mxu0 %v2721
    %5860 = vmatpush1.bf16.msra.mxu0 %v2720
    %5861 = vmatprep.subr.bf16.mxu0 %v2717
    %5862 = vmatpush1.bf16.msra.mxu0 %v2716
    %5863 = vmatprep.subr.bf16.mxu0 %v2713
    %5864 = vmatpush1.bf16.msra.mxu0 %v2712
    %5865 = vmatprep.subr.bf16.mxu0 %v2709
    %5866 = vmatpush1.bf16.msra.mxu0 %v2708
    %5867 = vmatprep.subr.bf16.mxu0 %v2705
    %5868 = vmatpush1.bf16.msra.mxu0 %v2704
    %5869 = vmatprep.subr.bf16.mxu0 %v2701
    %5870 = vmatpush1.bf16.msra.mxu0 %v2700
    %5871 = vmatprep.subr.bf16.mxu0 %v2697
    %5872 = vmatpush1.bf16.msra.mxu0 %v2696
    %5873 = vmatprep.subr.bf16.mxu0 %v2757
    %5874 = vmatpush2.bf16.msra.mxu0 %v2756
    %5875 = vmatprep.subr.bf16.mxu0 %v2753
    %5876 = vmatpush2.bf16.msra.mxu0 %v2752
    %5877 = vmatprep.subr.bf16.mxu0 %v2749
    %5878 = vmatpush2.bf16.msra.mxu0 %v2748
    %5879 = vmatprep.subr.bf16.mxu0 %v2745
    %5880 = vmatpush2.bf16.msra.mxu0 %v2744
    %5881 = vmatprep.subr.bf16.mxu0 %v2741
    %5882 = vmatpush2.bf16.msra.mxu0 %v2740
    %5883 = vmatprep.subr.bf16.mxu0 %v2737
    %5884 = vmatpush2.bf16.msra.mxu0 %v2736
    %5885 = vmatprep.subr.bf16.mxu0 %v2733
    %5886 = vmatpush2.bf16.msra.mxu0 %v2732
    %5887 = vmatprep.subr.bf16.mxu0 %v2729
    %5888 = vmatpush2.bf16.msra.mxu0 %v2728
    %5889 = vmatprep.mubr.bf16.mxu0 %v5815
    %5890 = vmatmul.mubr.bf16.gmra.mxu0 %v5814
    %v5891 = vpop.f32.mrf.mxu0
    %v5892 = vadd.f32 %v1285, %v5891
    %v5893 = vpop.f32.mrf.mxu0
    %v5894 = vadd.f32 %v1289, %v5893
    %v5895 = vpop.f32.mrf.mxu0
    %v5896 = vpop.f32.mrf.mxu0
    %5897 = vdwg.mxu0
    %v5898 = vxor.u32 %v5851, 2147483648
    %v5899 = vxor.u32 %v5853, 2147483648
    %v5900 = vxor.u32 %v5892, 2147483648
    %v5901 = vmul.f32 %v5898, 1.442695
    %v5902 = vpow.pop %v5901
    %v5903 = vmul.f32 %v5899, 1.442695
    %v5904 = vpow.pop %v5903
    %v5905 = vmul.f32 %v5900, 1.442695
    %v5906 = vpow.pop %v5905
    %v5907 = vadd.f32 %v5902, 1.0
    %v5908 = vadd.f32 %v5904, 1.0
    %v5909 = vadd.f32 %v5906, 1.0
    %v5910 = vrcp.pop %v5907
    %v5911 = vmul.f32 1.0, %v5910
    %v5912 = vrcp.pop %v5908
    %v5913 = vmul.f32 1.0, %v5912
    %v5914 = vrcp.pop %v5909
    %v5915 = vmul.f32 1.0, %v5914
    %v5916 = vtanh.pop %v5894
    %v5917 = vmul.f32 %v5913, %v5420
    %v5918 = vmul.f32 %v5911, %v5916
    %v5919 = vadd.f32 %v5917, %v5918
    %v5920 = vtanh.pop %v5919
    %v5921 = vmul.f32 %v5915, %v5920
    %5922 = vst [vmem:[#allocation2 + $0xc] sm:$0x3] %v5921
    %s5923 = sld [smem:[#allocation3 + $0x7]]
    %p5924 = scmp.gt.s32.totalorder %s5923, 0
    %s5925 = scalar_select %p5924, %s5923, 0
    %p5926 = scmp.lt.s32.totalorder %s5925, 54
    %s5927 = scalar_select %p5926, %s5925, 54
    %s5928 = smul.u32 %s5927, 4
    %s5929 = scalar_lea.vmem [#allocation9], %s5928
    %v5930 = vld [vmem:[%s5929] sm:$0xf]
    %s5931 = sld [smem:[#allocation3 + $0x87]]
    %p5932 = scmp.gt.s32.totalorder %s5931, 0
    %s5933 = scalar_select %p5932, %s5931, 0
    %p5934 = scmp.lt.s32.totalorder %s5933, 54
    %s5935 = scalar_select %p5934, %s5933, 54
    %s5936 = smul.u32 %s5935, 4
    %s5937 = scalar_lea.vmem [#allocation9], %s5936
    %v5938 = vld [vmem:[%s5937] sm:$0xf]
    %v5940 = vlaneseq
    %v5941 = vshrl.u32 %v5940, 7
    %v5942 = vsub.s32 0, %v5941
    %v5943 = vrot.slane %v5930, %v5942
    %v5944 = vlaneseq
    %v5945 = vshrl.u32 %v5944, 7
    %v5946 = vsub.s32 1, %v5945
    %v5947 = vrot.slane %v5930, %v5946
    %v5948 = vlaneseq
    %v5949 = vshrl.u32 %v5948, 7
    %v5950 = vsub.s32 2, %v5949
    %v5951 = vrot.slane %v5930, %v5950
    %v5952 = vlaneseq
    %v5953 = vshrl.u32 %v5952, 7
    %v5954 = vsub.s32 3, %v5953
    %v5955 = vrot.slane %v5930, %v5954
    %v5961 = vlaneseq
    %v5962 = vshrl.u32 %v5961, 7
    %v5963 = vsub.s32 0, %v5962
    %v5964 = vrot.slane %v5938, %v5963
    %v5965 = vlaneseq
    %v5966 = vshrl.u32 %v5965, 7
    %v5967 = vsub.s32 1, %v5966
    %v5968 = vrot.slane %v5938, %v5967
    %v5969 = vlaneseq
    %v5970 = vshrl.u32 %v5969, 7
    %v5971 = vsub.s32 2, %v5970
    %v5972 = vrot.slane %v5938, %v5971
    %v5973 = vlaneseq
    %v5974 = vshrl.u32 %v5973, 7
    %v5975 = vsub.s32 3, %v5974
    %v5976 = vrot.slane %v5938, %v5975
    %v5981 = vsel %vm1364, %v5943, %v5964
    %v5982 = vsel %vm1364, %v5947, %v5968
    %v5983 = vsel %vm1364, %v5951, %v5972
    %v5984 = vsel %vm1364, %v5955, %v5976
    %5985 = vmatprep.subr.bf16.mxu0 %v1495
    %5986 = vmatpush1.bf16.msra.mxu0 %v1494
    %5987 = vmatprep.subr.bf16.mxu0 %v1491
    %5988 = vmatpush1.bf16.msra.mxu0 %v1490
    %5989 = vmatprep.subr.bf16.mxu0 %v1487
    %5990 = vmatpush1.bf16.msra.mxu0 %v1486
    %5991 = vmatprep.subr.bf16.mxu0 %v1483
    %5992 = vmatpush1.bf16.msra.mxu0 %v1482
    %5993 = vmatprep.subr.bf16.mxu0 %v1479
    %5994 = vmatpush1.bf16.msra.mxu0 %v1478
    %5995 = vmatprep.subr.bf16.mxu0 %v1475
    %5996 = vmatpush1.bf16.msra.mxu0 %v1474
    %5997 = vmatprep.subr.bf16.mxu0 %v1471
    %5998 = vmatpush1.bf16.msra.mxu0 %v1470
    %5999 = vmatprep.subr.bf16.mxu0 %v1467
    %6000 = vmatpush1.bf16.msra.mxu0 %v1466
    %6001 = vmatprep.subr.bf16.mxu0 0
    %6002 = vmatpush2.bf16.msra.mxu0 0
    %6003 = vmatprep.subr.bf16.mxu0 0
    %6004 = vmatpush2.bf16.msra.mxu0 0
    %6005 = vmatprep.subr.bf16.mxu0 0
    %6006 = vmatpush2.bf16.msra.mxu0 0
    %6007 = vmatprep.subr.bf16.mxu0 0
    %6008 = vmatpush2.bf16.msra.mxu0 0
    %6009 = vmatprep.subr.bf16.mxu0 0
    %6010 = vmatpush2.bf16.msra.mxu0 0
    %6011 = vmatprep.subr.bf16.mxu0 0
    %6012 = vmatpush2.bf16.msra.mxu0 0
    %6013 = vmatprep.subr.bf16.mxu0 0
    %6014 = vmatpush2.bf16.msra.mxu0 0
    %6015 = vmatprep.subr.bf16.mxu0 0
    %6016 = vmatpush2.bf16.msra.mxu0 0
    %6017 = vmatprep.mubr.bf16.mxu0 0
    %6018 = vmatmul.mubr.bf16.gmra.mxu0 %v5596
    %v6019 = vpop.f32.mrf.mxu0
    %v6020 = vadd.f32 0.0, %v6019
    %v6021 = vpop.f32.mrf.mxu0
    %v6022 = vadd.f32 0.0, %v6021
    %v6023 = vpop.f32.mrf.mxu0
    %v6024 = vpop.f32.mrf.mxu0
    %6025 = vdwg.mxu0
    %6026 = vmatprep.subr.bf16.mxu0 %v1497
    %6027 = vmatpush1.bf16.msra.mxu0 %v1496
    %6028 = vmatprep.subr.bf16.mxu0 %v1493
    %6029 = vmatpush1.bf16.msra.mxu0 %v1492
    %6030 = vmatprep.subr.bf16.mxu0 %v1489
    %6031 = vmatpush1.bf16.msra.mxu0 %v1488
    %6032 = vmatprep.subr.bf16.mxu0 %v1485
    %6033 = vmatpush1.bf16.msra.mxu0 %v1484
    %6034 = vmatprep.subr.bf16.mxu0 %v1481
    %6035 = vmatpush1.bf16.msra.mxu0 %v1480
    %6036 = vmatprep.subr.bf16.mxu0 %v1477
    %6037 = vmatpush1.bf16.msra.mxu0 %v1476
    %6038 = vmatprep.subr.bf16.mxu0 %v1473
    %6039 = vmatpush1.bf16.msra.mxu0 %v1472
    %6040 = vmatprep.subr.bf16.mxu0 %v1469
    %6041 = vmatpush1.bf16.msra.mxu0 %v1468
    %6042 = vmatprep.subr.bf16.mxu0 0
    %6043 = vmatpush2.bf16.msra.mxu0 0
    %6044 = vmatprep.subr.bf16.mxu0 0
    %6045 = vmatpush2.bf16.msra.mxu0 0
    %6046 = vmatprep.subr.bf16.mxu0 0
    %6047 = vmatpush2.bf16.msra.mxu0 0
    %6048 = vmatprep.subr.bf16.mxu0 0
    %6049 = vmatpush2.bf16.msra.mxu0 0
    %6050 = vmatprep.subr.bf16.mxu0 0
    %6051 = vmatpush2.bf16.msra.mxu0 0
    %6052 = vmatprep.subr.bf16.mxu0 0
    %6053 = vmatpush2.bf16.msra.mxu0 0
    %6054 = vmatprep.subr.bf16.mxu0 0
    %6055 = vmatpush2.bf16.msra.mxu0 0
    %6056 = vmatprep.subr.bf16.mxu0 0
    %6057 = vmatpush2.bf16.msra.mxu0 0
    %6058 = vmatprep.mubr.bf16.mxu0 0
    %6059 = vmatmul.mubr.bf16.gmra.mxu0 %v5596
    %v6060 = vpop.f32.mrf.mxu0
    %v6061 = vadd.f32 0.0, %v6060
    %v6062 = vpop.f32.mrf.mxu0
    %v6063 = vadd.f32 0.0, %v6062
    %v6064 = vpop.f32.mrf.mxu0
    %v6065 = vpop.f32.mrf.mxu0
    %6066 = vdwg.mxu0
    %v6067 = vadd.f32 %v5981, %v6020
    %v6068 = vadd.f32 %v5982, %v6022
    %v6069 = vadd.f32 %v5983, %v6061
    %v6070 = vadd.f32 %v5984, %v6063
    %v6071 = vxor.u32 %v6067, 2147483648
    %v6072 = vxor.u32 %v6068, 2147483648
    %v6073 = vxor.u32 %v6069, 2147483648
    %v6074 = vmul.f32 %v6071, 1.442695
    %v6075 = vpow.pop %v6074
    %v6076 = vmul.f32 %v6072, 1.442695
    %v6077 = vpow.pop %v6076
    %v6078 = vmul.f32 %v6073, 1.442695
    %v6079 = vpow.pop %v6078
    %v6080 = vadd.f32 %v6075, 1.0
    %v6081 = vadd.f32 %v6077, 1.0
    %v6082 = vadd.f32 %v6079, 1.0
    %v6083 = vrcp.pop %v6080
    %v6084 = vmul.f32 1.0, %v6083
    %v6085 = vrcp.pop %v6081
    %v6086 = vmul.f32 1.0, %v6085
    %v6087 = vrcp.pop %v6082
    %v6088 = vmul.f32 1.0, %v6087
    %v6089 = vtanh.pop %v6070
    %v6090 = vmul.f32 %v6086, %v5593
    %v6091 = vmul.f32 %v6084, %v6089
    %v6092 = vadd.f32 %v6090, %v6091
    %v6093 = vtanh.pop %v6092
    %v6094 = vmul.f32 %v6088, %v6093
    %v6095 = vpack.c.bf16 %v6094, %v6094
    %6096 = vmatprep.subr.bf16.mxu0 %v1863
    %6097 = vmatpush1.bf16.msra.mxu0 %v1862
    %6098 = vmatprep.subr.bf16.mxu0 %v1859
    %6099 = vmatpush1.bf16.msra.mxu0 %v1858
    %6100 = vmatprep.subr.bf16.mxu0 %v1855
    %6101 = vmatpush1.bf16.msra.mxu0 %v1854
    %6102 = vmatprep.subr.bf16.mxu0 %v1851
    %6103 = vmatpush1.bf16.msra.mxu0 %v1850
    %6104 = vmatprep.subr.bf16.mxu0 %v1847
    %6105 = vmatpush1.bf16.msra.mxu0 %v1846
    %6106 = vmatprep.subr.bf16.mxu0 %v1843
    %6107 = vmatpush1.bf16.msra.mxu0 %v1842
    %6108 = vmatprep.subr.bf16.mxu0 %v1839
    %6109 = vmatpush1.bf16.msra.mxu0 %v1838
    %6110 = vmatprep.subr.bf16.mxu0 %v1835
    %6111 = vmatpush1.bf16.msra.mxu0 %v1834
    %6112 = vmatprep.subr.bf16.mxu0 %v1895
    %6113 = vmatpush2.bf16.msra.mxu0 %v1894
    %6114 = vmatprep.subr.bf16.mxu0 %v1891
    %6115 = vmatpush2.bf16.msra.mxu0 %v1890
    %6116 = vmatprep.subr.bf16.mxu0 %v1887
    %6117 = vmatpush2.bf16.msra.mxu0 %v1886
    %6118 = vmatprep.subr.bf16.mxu0 %v1883
    %6119 = vmatpush2.bf16.msra.mxu0 %v1882
    %6120 = vmatprep.subr.bf16.mxu0 %v1879
    %6121 = vmatpush2.bf16.msra.mxu0 %v1878
    %6122 = vmatprep.subr.bf16.mxu0 %v1875
    %6123 = vmatpush2.bf16.msra.mxu0 %v1874
    %6124 = vmatprep.subr.bf16.mxu0 %v1871
    %6125 = vmatpush2.bf16.msra.mxu0 %v1870
    %6126 = vmatprep.subr.bf16.mxu0 %v1867
    %6127 = vmatpush2.bf16.msra.mxu0 %v1866
    %6128 = vmatprep.mubr.bf16.mxu0 %v5703
    %6129 = vmatmul.mubr.bf16.gmra.mxu0 %v6095
    %v6130 = vpop.f32.mrf.mxu0
    %v6131 = vadd.f32 %v1255, %v6130
    %v6132 = vpop.f32.mrf.mxu0
    %v6133 = vadd.f32 %v1259, %v6132
    %v6134 = vpop.f32.mrf.mxu0
    %v6135 = vpop.f32.mrf.mxu0
    %6136 = vdwg.mxu0
    %6137 = vmatprep.subr.bf16.mxu0 %v1865
    %6138 = vmatpush1.bf16.msra.mxu0 %v1864
    %6139 = vmatprep.subr.bf16.mxu0 %v1861
    %6140 = vmatpush1.bf16.msra.mxu0 %v1860
    %6141 = vmatprep.subr.bf16.mxu0 %v1857
    %6142 = vmatpush1.bf16.msra.mxu0 %v1856
    %6143 = vmatprep.subr.bf16.mxu0 %v1853
    %6144 = vmatpush1.bf16.msra.mxu0 %v1852
    %6145 = vmatprep.subr.bf16.mxu0 %v1849
    %6146 = vmatpush1.bf16.msra.mxu0 %v1848
    %6147 = vmatprep.subr.bf16.mxu0 %v1845
    %6148 = vmatpush1.bf16.msra.mxu0 %v1844
    %6149 = vmatprep.subr.bf16.mxu0 %v1841
    %6150 = vmatpush1.bf16.msra.mxu0 %v1840
    %6151 = vmatprep.subr.bf16.mxu0 %v1837
    %6152 = vmatpush1.bf16.msra.mxu0 %v1836
    %6153 = vmatprep.subr.bf16.mxu0 %v1897
    %6154 = vmatpush2.bf16.msra.mxu0 %v1896
    %6155 = vmatprep.subr.bf16.mxu0 %v1893
    %6156 = vmatpush2.bf16.msra.mxu0 %v1892
    %6157 = vmatprep.subr.bf16.mxu0 %v1889
    %6158 = vmatpush2.bf16.msra.mxu0 %v1888
    %6159 = vmatprep.subr.bf16.mxu0 %v1885
    %6160 = vmatpush2.bf16.msra.mxu0 %v1884
    %6161 = vmatprep.subr.bf16.mxu0 %v1881
    %6162 = vmatpush2.bf16.msra.mxu0 %v1880
    %6163 = vmatprep.subr.bf16.mxu0 %v1877
    %6164 = vmatpush2.bf16.msra.mxu0 %v1876
    %6165 = vmatprep.subr.bf16.mxu0 %v1873
    %6166 = vmatpush2.bf16.msra.mxu0 %v1872
    %6167 = vmatprep.subr.bf16.mxu0 %v1869
    %6168 = vmatpush2.bf16.msra.mxu0 %v1868
    %6169 = vmatprep.mubr.bf16.mxu0 %v5703
    %6170 = vmatmul.mubr.bf16.gmra.mxu0 %v6095
    %v6171 = vpop.f32.mrf.mxu0
    %v6172 = vadd.f32 %v1263, %v6171
    %v6173 = vpop.f32.mrf.mxu0
    %v6174 = vadd.f32 %v1267, %v6173
    %v6175 = vpop.f32.mrf.mxu0
    %v6176 = vpop.f32.mrf.mxu0
    %6177 = vdwg.mxu0
    %v6178 = vxor.u32 %v6131, 2147483648
    %v6179 = vxor.u32 %v6133, 2147483648
    %v6180 = vxor.u32 %v6172, 2147483648
    %v6181 = vmul.f32 %v6178, 1.442695
    %v6182 = vpow.pop %v6181
    %v6183 = vmul.f32 %v6179, 1.442695
    %v6184 = vpow.pop %v6183
    %v6185 = vmul.f32 %v6180, 1.442695
    %v6186 = vpow.pop %v6185
    %v6187 = vadd.f32 %v6182, 1.0
    %v6188 = vadd.f32 %v6184, 1.0
    %v6189 = vadd.f32 %v6186, 1.0
    %v6190 = vrcp.pop %v6187
    %v6191 = vmul.f32 1.0, %v6190
    %v6192 = vrcp.pop %v6188
    %v6193 = vmul.f32 1.0, %v6192
    %v6194 = vrcp.pop %v6189
    %v6195 = vmul.f32 1.0, %v6194
    %v6196 = vtanh.pop %v6174
    %v6197 = vmul.f32 %v6193, %v5700
    %v6198 = vmul.f32 %v6191, %v6196
    %v6199 = vadd.f32 %v6197, %v6198
    %v6200 = vtanh.pop %v6199
    %v6201 = vmul.f32 %v6195, %v6200
    %v6202 = vpack.c.bf16 %v6201, %v6201
    %6203 = vmatprep.subr.bf16.mxu0 %v2291
    %6204 = vmatpush1.bf16.msra.mxu0 %v2290
    %6205 = vmatprep.subr.bf16.mxu0 %v2287
    %6206 = vmatpush1.bf16.msra.mxu0 %v2286
    %6207 = vmatprep.subr.bf16.mxu0 %v2283
    %6208 = vmatpush1.bf16.msra.mxu0 %v2282
    %6209 = vmatprep.subr.bf16.mxu0 %v2279
    %6210 = vmatpush1.bf16.msra.mxu0 %v2278
    %6211 = vmatprep.subr.bf16.mxu0 %v2275
    %6212 = vmatpush1.bf16.msra.mxu0 %v2274
    %6213 = vmatprep.subr.bf16.mxu0 %v2271
    %6214 = vmatpush1.bf16.msra.mxu0 %v2270
    %6215 = vmatprep.subr.bf16.mxu0 %v2267
    %6216 = vmatpush1.bf16.msra.mxu0 %v2266
    %6217 = vmatprep.subr.bf16.mxu0 %v2263
    %6218 = vmatpush1.bf16.msra.mxu0 %v2262
    %6219 = vmatprep.subr.bf16.mxu0 %v2323
    %6220 = vmatpush2.bf16.msra.mxu0 %v2322
    %6221 = vmatprep.subr.bf16.mxu0 %v2319
    %6222 = vmatpush2.bf16.msra.mxu0 %v2318
    %6223 = vmatprep.subr.bf16.mxu0 %v2315
    %6224 = vmatpush2.bf16.msra.mxu0 %v2314
    %6225 = vmatprep.subr.bf16.mxu0 %v2311
    %6226 = vmatpush2.bf16.msra.mxu0 %v2310
    %6227 = vmatprep.subr.bf16.mxu0 %v2307
    %6228 = vmatpush2.bf16.msra.mxu0 %v2306
    %6229 = vmatprep.subr.bf16.mxu0 %v2303
    %6230 = vmatpush2.bf16.msra.mxu0 %v2302
    %6231 = vmatprep.subr.bf16.mxu0 %v2299
    %6232 = vmatpush2.bf16.msra.mxu0 %v2298
    %6233 = vmatprep.subr.bf16.mxu0 %v2295
    %6234 = vmatpush2.bf16.msra.mxu0 %v2294
    %6235 = vmatprep.mubr.bf16.mxu0 %v5814
    %6236 = vmatmul.mubr.bf16.gmra.mxu0 %v6202
    %v6237 = vpop.f32.mrf.mxu0
    %v6238 = vadd.f32 0.0, %v6237
    %v6239 = vpop.f32.mrf.mxu0
    %v6240 = vadd.f32 0.0, %v6239
    %v6241 = vpop.f32.mrf.mxu0
    %v6242 = vpop.f32.mrf.mxu0
    %6243 = vdwg.mxu0
    %6244 = vmatprep.subr.bf16.mxu0 %v2293
    %6245 = vmatpush1.bf16.msra.mxu0 %v2292
    %6246 = vmatprep.subr.bf16.mxu0 %v2289
    %6247 = vmatpush1.bf16.msra.mxu0 %v2288
    %6248 = vmatprep.subr.bf16.mxu0 %v2285
    %6249 = vmatpush1.bf16.msra.mxu0 %v2284
    %6250 = vmatprep.subr.bf16.mxu0 %v2281
    %6251 = vmatpush1.bf16.msra.mxu0 %v2280
    %6252 = vmatprep.subr.bf16.mxu0 %v2277
    %6253 = vmatpush1.bf16.msra.mxu0 %v2276
    %6254 = vmatprep.subr.bf16.mxu0 %v2273
    %6255 = vmatpush1.bf16.msra.mxu0 %v2272
    %6256 = vmatprep.subr.bf16.mxu0 %v2269
    %6257 = vmatpush1.bf16.msra.mxu0 %v2268
    %6258 = vmatprep.subr.bf16.mxu0 %v2265
    %6259 = vmatpush1.bf16.msra.mxu0 %v2264
    %6260 = vmatprep.subr.bf16.mxu0 %v2325
    %6261 = vmatpush2.bf16.msra.mxu0 %v2324
    %6262 = vmatprep.subr.bf16.mxu0 %v2321
    %6263 = vmatpush2.bf16.msra.mxu0 %v2320
    %6264 = vmatprep.subr.bf16.mxu0 %v2317
    %6265 = vmatpush2.bf16.msra.mxu0 %v2316
    %6266 = vmatprep.subr.bf16.mxu0 %v2313
    %6267 = vmatpush2.bf16.msra.mxu0 %v2312
    %6268 = vmatprep.subr.bf16.mxu0 %v2309
    %6269 = vmatpush2.bf16.msra.mxu0 %v2308
    %6270 = vmatprep.subr.bf16.mxu0 %v2305
    %6271 = vmatpush2.bf16.msra.mxu0 %v2304
    %6272 = vmatprep.subr.bf16.mxu0 %v2301
    %6273 = vmatpush2.bf16.msra.mxu0 %v2300
    %6274 = vmatprep.subr.bf16.mxu0 %v2297
    %6275 = vmatpush2.bf16.msra.mxu0 %v2296
    %6276 = vmatprep.mubr.bf16.mxu0 %v5814
    %6277 = vmatmul.mubr.bf16.gmra.mxu0 %v6202
    %v6278 = vpop.f32.mrf.mxu0
    %v6279 = vadd.f32 0.0, %v6278
    %v6280 = vpop.f32.mrf.mxu0
    %v6281 = vadd.f32 0.0, %v6280
    %v6282 = vpop.f32.mrf.mxu0
    %v6283 = vpop.f32.mrf.mxu0
    %6284 = vdwg.mxu0
    %v6285 = vadd.f32 %v979, %v6238
    %v6286 = vadd.f32 %v981, %v6240
    %v6287 = vadd.f32 %v1020, %v6279
    %v6288 = vadd.f32 %v1022, %v6281
    %v6289 = vxor.u32 %v6285, 2147483648
    %v6290 = vxor.u32 %v6286, 2147483648
    %v6291 = vxor.u32 %v6287, 2147483648
    %v6292 = vmul.f32 %v6289, 1.442695
    %v6293 = vpow.pop %v6292
    %v6294 = vmul.f32 %v6290, 1.442695
    %v6295 = vpow.pop %v6294
    %v6296 = vmul.f32 %v6291, 1.442695
    %v6297 = vpow.pop %v6296
    %v6298 = vadd.f32 %v6293, 1.0
    %v6299 = vadd.f32 %v6295, 1.0
    %v6300 = vadd.f32 %v6297, 1.0
    %v6301 = vrcp.pop %v6298
    %v6302 = vmul.f32 1.0, %v6301
    %v6303 = vrcp.pop %v6299
    %v6304 = vmul.f32 1.0, %v6303
    %v6305 = vrcp.pop %v6300
    %v6306 = vmul.f32 1.0, %v6305
    %v6307 = vtanh.pop %v6288
    %v6308 = vmul.f32 %v6304, %v5811
    %v6309 = vmul.f32 %v6302, %v6307
    %v6310 = vadd.f32 %v6308, %v6309
    %v6311 = vtanh.pop %v6310
    %v6312 = vmul.f32 %v6306, %v6311
    %v6313 = vpack.c.bf16 %v6312, %v6312
    %v6314 = vpack.c.bf16 %v5921, %v5921
    %6315 = vmatprep.subr.bf16.mxu0 %v2723
    %6316 = vmatpush1.bf16.msra.mxu0 %v2722
    %6317 = vmatprep.subr.bf16.mxu0 %v2719
    %6318 = vmatpush1.bf16.msra.mxu0 %v2718
    %6319 = vmatprep.subr.bf16.mxu0 %v2715
    %6320 = vmatpush1.bf16.msra.mxu0 %v2714
    %6321 = vmatprep.subr.bf16.mxu0 %v2711
    %6322 = vmatpush1.bf16.msra.mxu0 %v2710
    %6323 = vmatprep.subr.bf16.mxu0 %v2707
    %6324 = vmatpush1.bf16.msra.mxu0 %v2706
    %6325 = vmatprep.subr.bf16.mxu0 %v2703
    %6326 = vmatpush1.bf16.msra.mxu0 %v2702
    %6327 = vmatprep.subr.bf16.mxu0 %v2699
    %6328 = vmatpush1.bf16.msra.mxu0 %v2698
    %6329 = vmatprep.subr.bf16.mxu0 %v2695
    %6330 = vmatpush1.bf16.msra.mxu0 %v2694
    %6331 = vmatprep.subr.bf16.mxu0 %v2755
    %6332 = vmatpush2.bf16.msra.mxu0 %v2754
    %6333 = vmatprep.subr.bf16.mxu0 %v2751
    %6334 = vmatpush2.bf16.msra.mxu0 %v2750
    %6335 = vmatprep.subr.bf16.mxu0 %v2747
    %6336 = vmatpush2.bf16.msra.mxu0 %v2746
    %6337 = vmatprep.subr.bf16.mxu0 %v2743
    %6338 = vmatpush2.bf16.msra.mxu0 %v2742
    %6339 = vmatprep.subr.bf16.mxu0 %v2739
    %6340 = vmatpush2.bf16.msra.mxu0 %v2738
    %6341 = vmatprep.subr.bf16.mxu0 %v2735
    %6342 = vmatpush2.bf16.msra.mxu0 %v2734
    %6343 = vmatprep.subr.bf16.mxu0 %v2731
    %6344 = vmatpush2.bf16.msra.mxu0 %v2730
    %6345 = vmatprep.subr.bf16.mxu0 %v2727
    %6346 = vmatpush2.bf16.msra.mxu0 %v2726
    %6347 = vmatprep.mubr.bf16.mxu0 %v6314
    %6348 = vmatmul.mubr.bf16.gmra.mxu0 %v6313
    %v6349 = vpop.f32.mrf.mxu0
    %v6350 = vadd.f32 %v1277, %v6349
    %v6351 = vpop.f32.mrf.mxu0
    %v6352 = vadd.f32 %v1281, %v6351
    %v6353 = vpop.f32.mrf.mxu0
    %v6354 = vpop.f32.mrf.mxu0
    %6355 = vdwg.mxu0
    %6356 = vmatprep.subr.bf16.mxu0 %v2725
    %6357 = vmatpush1.bf16.msra.mxu0 %v2724
    %6358 = vmatprep.subr.bf16.mxu0 %v2721
    %6359 = vmatpush1.bf16.msra.mxu0 %v2720
    %6360 = vmatprep.subr.bf16.mxu0 %v2717
    %6361 = vmatpush1.bf16.msra.mxu0 %v2716
    %6362 = vmatprep.subr.bf16.mxu0 %v2713
    %6363 = vmatpush1.bf16.msra.mxu0 %v2712
    %6364 = vmatprep.subr.bf16.mxu0 %v2709
    %6365 = vmatpush1.bf16.msra.mxu0 %v2708
    %6366 = vmatprep.subr.bf16.mxu0 %v2705
    %6367 = vmatpush1.bf16.msra.mxu0 %v2704
    %6368 = vmatprep.subr.bf16.mxu0 %v2701
    %6369 = vmatpush1.bf16.msra.mxu0 %v2700
    %6370 = vmatprep.subr.bf16.mxu0 %v2697
    %6371 = vmatpush1.bf16.msra.mxu0 %v2696
    %6372 = vmatprep.subr.bf16.mxu0 %v2757
    %6373 = vmatpush2.bf16.msra.mxu0 %v2756
    %6374 = vmatprep.subr.bf16.mxu0 %v2753
    %6375 = vmatpush2.bf16.msra.mxu0 %v2752
    %6376 = vmatprep.subr.bf16.mxu0 %v2749
    %6377 = vmatpush2.bf16.msra.mxu0 %v2748
    %6378 = vmatprep.subr.bf16.mxu0 %v2745
    %6379 = vmatpush2.bf16.msra.mxu0 %v2744
    %6380 = vmatprep.subr.bf16.mxu0 %v2741
    %6381 = vmatpush2.bf16.msra.mxu0 %v2740
    %6382 = vmatprep.subr.bf16.mxu0 %v2737
    %6383 = vmatpush2.bf16.msra.mxu0 %v2736
    %6384 = vmatprep.subr.bf16.mxu0 %v2733
    %6385 = vmatpush2.bf16.msra.mxu0 %v2732
    %6386 = vmatprep.subr.bf16.mxu0 %v2729
    %6387 = vmatpush2.bf16.msra.mxu0 %v2728
    %6388 = vmatprep.mubr.bf16.mxu0 %v6314
    %6389 = vmatmul.mubr.bf16.gmra.mxu0 %v6313
    %v6390 = vpop.f32.mrf.mxu0
    %v6391 = vadd.f32 %v1285, %v6390
    %v6392 = vpop.f32.mrf.mxu0
    %v6393 = vadd.f32 %v1289, %v6392
    %v6394 = vpop.f32.mrf.mxu0
    %v6395 = vpop.f32.mrf.mxu0
    %6396 = vdwg.mxu0
    %v6397 = vxor.u32 %v6350, 2147483648
    %v6398 = vxor.u32 %v6352, 2147483648
    %v6399 = vxor.u32 %v6391, 2147483648
    %v6400 = vmul.f32 %v6397, 1.442695
    %v6401 = vpow.pop %v6400
    %v6402 = vmul.f32 %v6398, 1.442695
    %v6403 = vpow.pop %v6402
    %v6404 = vmul.f32 %v6399, 1.442695
    %v6405 = vpow.pop %v6404
    %v6406 = vadd.f32 %v6401, 1.0
    %v6407 = vadd.f32 %v6403, 1.0
    %v6408 = vadd.f32 %v6405, 1.0
    %v6409 = vrcp.pop %v6406
    %v6410 = vmul.f32 1.0, %v6409
    %v6411 = vrcp.pop %v6407
    %v6412 = vmul.f32 1.0, %v6411
    %v6413 = vrcp.pop %v6408
    %v6414 = vmul.f32 1.0, %v6413
    %v6415 = vtanh.pop %v6393
    %v6416 = vmul.f32 %v6412, %v5919
    %v6417 = vmul.f32 %v6410, %v6415
    %v6418 = vadd.f32 %v6416, %v6417
    %v6419 = vtanh.pop %v6418
    %v6420 = vmul.f32 %v6414, %v6419
    %6421 = vst [vmem:[#allocation2 + $0xe] sm:$0x3] %v6420
    %v6422 = vld [vmem:[%s14] sm:$0x1]
    %v6424 = vlaneseq
    %v6425 = vshrl.u32 %v6424, 7
    %v6426 = vsub.s32 0, %v6425
    %v6427 = vrot.slane %v6422, %v6426
    %v6429 = vld [vmem:[#allocation2] sm:$0xff]
    %v6430 = vld [vmem:[#allocation2 + $0x8] sm:$0xff]
    %v6431 = vpack.c.bf16 %v6430, %v6429
    %v6432 = vld [vmem:[%s13] sm:$0xf]
    %v6433 = vld [vmem:[%s13 + $0x4] sm:$0xf]
    %v6434 = vld [vmem:[%s13 + $0x8] sm:$0xf]
    %v6435 = vld [vmem:[%s13 + $0xc] sm:$0xf]
    %v6436 = vld [vmem:[%s13 + $0x10] sm:$0xf]
    %v6437 = vld [vmem:[%s13 + $0x14] sm:$0xf]
    %v6438 = vld [vmem:[%s13 + $0x18] sm:$0xf]
    %v6439 = vld [vmem:[%s13 + $0x1c] sm:$0xf]
    %v6440 = vld [vmem:[%s13 + $0x20] sm:$0xf]
    %v6441 = vld [vmem:[%s13 + $0x24] sm:$0xf]
    %v6442 = vld [vmem:[%s13 + $0x28] sm:$0xf]
    %v6443 = vld [vmem:[%s13 + $0x2c] sm:$0xf]
    %v6444 = vld [vmem:[%s13 + $0x30] sm:$0xf]
    %v6445 = vld [vmem:[%s13 + $0x34] sm:$0xf]
    %v6446 = vld [vmem:[%s13 + $0x38] sm:$0xf]
    %v6447 = vld [vmem:[%s13 + $0x3c] sm:$0xf]
    %v6464 = vunpack.c.l.b16 %v6432
    %v6465 = vunpack.c.l.b16 %v6433
    %v6466 = vunpack.c.l.b16 %v6434
    %v6467 = vunpack.c.l.b16 %v6435
    %v6468 = vunpack.c.l.b16 %v6436
    %v6469 = vunpack.c.l.b16 %v6437
    %v6470 = vunpack.c.l.b16 %v6438
    %v6471 = vunpack.c.l.b16 %v6439
    %v6472 = vunpack.c.l.b16 %v6440
    %v6473 = vunpack.c.l.b16 %v6441
    %v6474 = vunpack.c.l.b16 %v6442
    %v6475 = vunpack.c.l.b16 %v6443
    %v6476 = vunpack.c.l.b16 %v6444
    %v6477 = vunpack.c.l.b16 %v6445
    %v6478 = vunpack.c.l.b16 %v6446
    %v6479 = vunpack.c.l.b16 %v6447
    %v6480 = vpack.c.b16 %v6465, %v6464
    %v6481 = vpack.c.b16 %v6467, %v6466
    %v6482 = vpack.c.b16 %v6469, %v6468
    %v6483 = vpack.c.b16 %v6471, %v6470
    %v6484 = vpack.c.b16 %v6473, %v6472
    %v6485 = vpack.c.b16 %v6475, %v6474
    %v6486 = vpack.c.b16 %v6477, %v6476
    %v6487 = vpack.c.b16 %v6479, %v6478
    %6496 = vmatprep.subr.bf16.mxu0 0
    %6497 = vmatpush1.bf16.msra.mxu0 %v6487
    %6498 = vmatprep.subr.bf16.mxu0 0
    %6499 = vmatpush1.bf16.msra.mxu0 %v6486
    %6500 = vmatprep.subr.bf16.mxu0 0
    %6501 = vmatpush1.bf16.msra.mxu0 %v6485
    %6502 = vmatprep.subr.bf16.mxu0 0
    %6503 = vmatpush1.bf16.msra.mxu0 %v6484
    %6504 = vmatprep.subr.bf16.mxu0 0
    %6505 = vmatpush1.bf16.msra.mxu0 %v6483
    %6506 = vmatprep.subr.bf16.mxu0 0
    %6507 = vmatpush1.bf16.msra.mxu0 %v6482
    %6508 = vmatprep.subr.bf16.mxu0 0
    %6509 = vmatpush1.bf16.msra.mxu0 %v6481
    %6510 = vmatprep.subr.bf16.mxu0 0
    %6511 = vmatpush1.bf16.msra.mxu0 %v6480
    %6512 = vmatprep.subr.bf16.mxu0 0
    %6513 = vmatpush2.bf16.msra.mxu0 0
    %6514 = vmatprep.subr.bf16.mxu0 0
    %6515 = vmatpush2.bf16.msra.mxu0 0
    %6516 = vmatprep.subr.bf16.mxu0 0
    %6517 = vmatpush2.bf16.msra.mxu0 0
    %6518 = vmatprep.subr.bf16.mxu0 0
    %6519 = vmatpush2.bf16.msra.mxu0 0
    %6520 = vmatprep.subr.bf16.mxu0 0
    %6521 = vmatpush2.bf16.msra.mxu0 0
    %6522 = vmatprep.subr.bf16.mxu0 0
    %6523 = vmatpush2.bf16.msra.mxu0 0
    %6524 = vmatprep.subr.bf16.mxu0 0
    %6525 = vmatpush2.bf16.msra.mxu0 0
    %6526 = vmatprep.subr.bf16.mxu0 0
    %6527 = vmatpush2.bf16.msra.mxu0 0
    %6528 = vmatprep.mubr.bf16.mxu0 0
    %6529 = vmatmul.mubr.bf16.gmra.mxu0 %v6431
    %v6530 = vpop.f32.mrf.mxu0
    %v6531 = vadd.f32 %v6427, %v6530
    %v6532 = vpop.f32.mrf.mxu0
    %v6533 = vpop.f32.mrf.mxu0
    %v6534 = vadd.f32 %v6427, %v6533
    %v6535 = vpop.f32.mrf.mxu0
    %6536 = vdwg.mxu0
    %6537 = vst [vmem:[%s19] sm:$0xff] %v6531
    %6538 = vst [vmem:[%s19 + $0x8] sm:$0xff] %v6534
    %6539 = vst [vmem:[%s20] sm:$0x3] %v6094
    %s6540 = scalar_lea.vmem %s20, 2
    %6541 = vst [vmem:[%s6540] sm:$0x3] %v6201
    %6542 = vst [vmem:[%s21] sm:$0x3] %v6092
    %s6543 = scalar_lea.vmem %s21, 2
    %6544 = vst [vmem:[%s6543] sm:$0x3] %v6199
    %6545 = vst [vmem:[%s22] sm:$0x3] %v6312
    %s6546 = scalar_lea.vmem %s22, 2
    %6547 = vst [vmem:[%s6546] sm:$0x3] %v6420
    %6548 = vst [vmem:[%s23] sm:$0x3] %v6310
    %s6549 = scalar_lea.vmem %s23, 2
    %6550 = vst [vmem:[%s6549] sm:$0x3] %v6418
    // Predicated region
    $region110: #{net_forward.1} parent=1 // pred_check
      _
    $region111: #{net_forward.1} parent=1 // pred_check_branch
      %6552 = sbr.rel (0) target = $region113
    $region112: #{net_forward.1} parent=1 // pred_region
      _
    $region113: #{net_forward.1} parent=1 // pred_fallthru
      _
    // Predicated region
    $region114: #{net_forward.1} parent=1 // pred_check
      _
    $region115: #{net_forward.1} parent=1 // pred_check_branch
      %6554 = sbr.rel (0) target = $region117
    $region116: #{net_forward.1} parent=1 // pred_region
      _
    $region117: #{net_forward.1} parent=1 // pred_fallthru
      _
    // Predicated region
    $region118: #{net_forward.1} parent=1 // pred_check
      _
    $region119: #{net_forward.1} parent=1 // pred_check_branch
      %6556 = sbr.rel (0) target = $region121
    $region120: #{net_forward.1} parent=1 // pred_region
      _
    $region121: #{net_forward.1} parent=1 // pred_fallthru
      _
    // Predicated region
    $region122: #{net_forward.1} parent=1 // pred_check
      _
    $region123: #{net_forward.1} parent=1 // pred_check_branch
      %6558 = sbr.rel (0) target = $region125
    $region124: #{net_forward.1} parent=1 // pred_region
      _
    $region125: #{net_forward.1} parent=1 // pred_fallthru
      _
    // Predicated region
    $region126: #{net_forward.1} parent=1 // pred_check
      _
    $region127: #{net_forward.1} parent=1 // pred_check_branch
      %6560 = sbr.rel (0) target = $region129
    $region128: #{net_forward.1} parent=1 // pred_region
      _
    $region129: #{net_forward.1} parent=1 // pred_fallthru
      _
    // Predicated region
    $region130: #{net_forward.1} parent=1 // pred_check
      _
    $region131: #{net_forward.1} parent=1 // pred_check_branch
      %6562 = sbr.rel (0) target = $region133
    $region132: #{net_forward.1} parent=1 // pred_region
      _
    $region133: #{net_forward.1} parent=1 // pred_fallthru
      _
    // Predicated region
    $region134: #{net_forward.1} parent=1 // pred_check
      _
    $region135: #{net_forward.1} parent=1 // pred_check_branch
      %6564 = sbr.rel (0) target = $region137
    $region136: #{net_forward.1} parent=1 // pred_region
      _
    $region137: #{net_forward.1} parent=1 // pred_fallthru
      _
    // Predicated region
    $region138: #{net_forward.1} parent=1 // pred_check
      _
    $region139: #{net_forward.1} parent=1 // pred_check_branch
      %6566 = sbr.rel (0) target = $region141
    $region140: #{net_forward.1} parent=1 // pred_region
      _
    $region141: #{net_forward.1} parent=1 // pred_fallthru
      _
    // Predicated region
    $region142: #{net_forward.1} parent=1 // pred_check
      _
    $region143: #{net_forward.1} parent=1 // pred_check_branch
      %6568 = sbr.rel (0) target = $region145
    $region144: #{net_forward.1} parent=1 // pred_region
      _
    $region145: #{net_forward.1} parent=1 // pred_fallthru
      _
    // Predicated region
    $region146: #{net_forward.1} parent=1 // pred_check
      _
    $region147: #{net_forward.1} parent=1 // pred_check_branch
      %6570 = sbr.rel (0) target = $region149
    $region148: #{net_forward.1} parent=1 // pred_region
      _
    $region149: #{net_forward.1} parent=1 // pred_fallthru
      _
    %6571 = vsyncpa [#allocation4], 1
    %6572 = vsyncpa [#allocation8], 1
    %6573 = vsyncpa [#allocation11], 1
    %6574 = vsyncpa [#allocation14], 1
    %6575 = vsyncpa [#allocation5], 1

</llo_original>
